<compile_context>
chip_gen: v7x
topology: tpu7x:2x2x1
jax: 0.10.0
libtpu: 0.0.40
codegen_flags: <defaults>
</compile_context>

<pallas_src>
import functools
import math

import numpy as np
import jax
import jax.numpy as jnp
from jax import lax
from jax.experimental import pallas as pl
from jax.experimental.pallas import tpu as pltpu


# ----------------------------------------------------------------------------
# exact GELU (erf based), built only from ops guaranteed to lower in Mosaic
# ----------------------------------------------------------------------------
def _erf(x):
    # Abramowitz & Stegun 7.1.26, |err| < 1.5e-7.
    a1, a2, a3, a4, a5 = (0.254829592, -0.284496736, 1.421413741,
                          -1.453152027, 1.061405429)
    p = 0.3275911
    sign = jnp.where(x >= 0.0, 1.0, -1.0)
    ax = jnp.abs(x)
    t = 1.0 / (1.0 + p * ax)
    poly = ((((a5 * t + a4) * t + a3) * t + a2) * t + a1) * t
    return sign * (1.0 - poly * jnp.exp(-ax * ax))


def _gelu_exact(x):
    # F.gelu default (erf based), matching the PyTorch GEGLU.
    return 0.5 * x * (1.0 + _erf(x * 0.7071067811865476))


# ----------------------------------------------------------------------------
# fused forward kernel: one grid step == one outer-batch element (F*H*W tokens)
# ----------------------------------------------------------------------------
def _fused_transformer_kernel(
        x_ref,
        gnM_ref, gnw_ref, gnb_ref,
        pinw_ref, pinb_ref,
        n1w_ref, n1b_ref, a1qkv_ref, a1ow_ref, a1ob_ref,
        n2w_ref, n2b_ref, a2qkv_ref, a2ow_ref, a2ob_ref,
        n3w_ref, n3b_ref, ffw1_ref, ffb1_ref, ffw2_ref, ffb2_ref,
        poutw_ref, poutb_ref,
        o_ref,
        *, num_frames, tokens_per_frame, heads, dim_head, gn_eps, ln_eps):
    F = num_frames
    L = tokens_per_frame
    T = F * L
    inner = heads * dim_head
    scale = dim_head ** -0.5

    # (T, C) tokens for this outer-batch element, rows ordered (frame, pixel).
    x = x_ref[...].astype(jnp.float32)

    # ---- GroupNorm(num_groups, C, eps=1e-6): stats per (frame, group) -------
    # gnM[i, j] = 1/(cg*L) if channels i, j share a group, else 0, so
    #   sum_rows(xf @ gnM) broadcasts the per-group mean to every channel.
    gnM = gnM_ref[...]
    gn_parts = []
    for f in range(F):
        xf = x[f * L:(f + 1) * L, :]
        mean = jnp.sum(jnp.dot(xf, gnM, preferred_element_type=jnp.float32),
                       axis=0, keepdims=True)
        xc = xf - mean
        var = jnp.sum(jnp.dot(xc * xc, gnM, preferred_element_type=jnp.float32),
                      axis=0, keepdims=True)
        gn_parts.append(xc * lax.rsqrt(var + gn_eps))
    gn = gn_parts[0] if F == 1 else jnp.concatenate(gn_parts, axis=0)
    gn = gn * gnw_ref[...] + gnb_ref[...]

    # ---- proj_in (1x1 conv == per-token linear) ------------------------------
    h = (jnp.dot(gn, pinw_ref[...], preferred_element_type=jnp.float32)
         + pinb_ref[...])                                         # (T, inner)

    def layer_norm(v, w, b):
        mu = jnp.mean(v, axis=-1, keepdims=True)
        vc = v - mu
        var = jnp.mean(vc * vc, axis=-1, keepdims=True)
        return vc * lax.rsqrt(var + ln_eps) * w + b

    def attention(v, seg_len, qkv_w, out_w, out_b):
        # v: (T, inner); self-attention within contiguous row segments of
        # length seg_len (seg_len == T -> joint (f l) attn; == L -> per-frame).
        qkv = jnp.dot(v, qkv_w, preferred_element_type=jnp.float32)  # (T, 3*inner)
        q = qkv[:, 0 * inner:1 * inner] * scale      # fold softmax scale into q
        k = qkv[:, 1 * inner:2 * inner]
        vv = qkv[:, 2 * inner:3 * inner]
        seg_out = []
        for s in range(T // seg_len):
            r0 = s * seg_len
            r1 = r0 + seg_len
            proj = None
            for hh in range(heads):
                c0 = hh * dim_head
                c1 = c0 + dim_head
                qs = q[r0:r1, c0:c1]
                ks = k[r0:r1, c0:c1]
                vs = vv[r0:r1, c0:c1]
                # QK^T without materializing a transpose.
                sim = lax.dot_general(qs, ks, (((1,), (1,)), ((), ())),
                                      preferred_element_type=jnp.float32)
                m = jnp.max(sim, axis=-1, keepdims=True)
                p = jnp.exp(sim - m)
                # Exact normalization to keep 1e-3 parity with the reference;
                # pl.reciprocal(..., approx=True) could be used once the
                # tolerance budget allows (EUP slot, essentially free).
                p = p / jnp.sum(p, axis=-1, keepdims=True)
                oh = jnp.dot(p, vs, preferred_element_type=jnp.float32)  # (seg, dh)
                # to_out is linear over the concatenated heads, so fold the
                # per-head row-slice of W_out here and sum -- avoids a lane-dim
                # concatenation of 16-wide head tiles.
                ph = jnp.dot(oh, out_w[c0:c1, :],
                             preferred_element_type=jnp.float32)
                proj = ph if proj is None else proj + ph
            seg_out.append(proj)
        o = seg_out[0] if len(seg_out) == 1 else jnp.concatenate(seg_out, axis=0)
        return o + out_b

    # attn1 over joint (frame, pixel) tokens: '(b f) l c -> b (f l) c'
    h = attention(layer_norm(h, n1w_ref[...], n1b_ref[...]), T,
                  a1qkv_ref[...], a1ow_ref[...], a1ob_ref[...]) + h
    # attn2 over per-frame tokens: 'b (f l) c -> (b f) l c'
    h = attention(layer_norm(h, n2w_ref[...], n2b_ref[...]), L,
                  a2qkv_ref[...], a2ow_ref[...], a2ob_ref[...]) + h
    # feed-forward: GEGLU projection, gate, output linear (Dropout(0)==identity)
    g = (jnp.dot(layer_norm(h, n3w_ref[...], n3b_ref[...]), ffw1_ref[...],
                 preferred_element_type=jnp.float32) + ffb1_ref[...])
    ffi = g.shape[-1] // 2
    gg = g[:, :ffi] * _gelu_exact(g[:, ffi:])
    h = (jnp.dot(gg, ffw2_ref[...], preferred_element_type=jnp.float32)
         + ffb2_ref[...]) + h

    # proj_out (1x1 conv) + outer residual (x_in, already in token layout)
    out = (jnp.dot(h, poutw_ref[...], preferred_element_type=jnp.float32)
           + poutb_ref[...]) + x
    o_ref[...] = out.astype(o_ref.dtype)


# ----------------------------------------------------------------------------
# one-time parameter packing (pre-transposed weights, QKV concatenated)
# ----------------------------------------------------------------------------
def pack_params(params):
    """Convert PyTorch-layout params (w: (out, in)) into the kernel layout."""
    def t(w):
        return jnp.asarray(w).T                      # (in, out)

    def row(v):
        return jnp.asarray(v).reshape(1, -1)

    def attn(a):
        wqkv = jnp.concatenate(
            [t(a["to_q_w"]), t(a["to_k_w"]), t(a["to_v_w"])], axis=1)
        return wqkv, t(a["to_out_w"]), row(a["to_out_b"])

    blk = params["block"]
    a1_qkv, a1_ow, a1_ob = attn(blk["attn1"])
    a2_qkv, a2_ow, a2_ob = attn(blk["attn2"])
    ff = blk["ff"]
    return {
        "gn_w": row(params["norm_w"]), "gn_b": row(params["norm_b"]),
        "pin_w": t(params["proj_in_w"]), "pin_b": row(params["proj_in_b"]),
        "n1_w": row(blk["norm1_w"]), "n1_b": row(blk["norm1_b"]),
        "a1_qkv": a1_qkv, "a1_ow": a1_ow, "a1_ob": a1_ob,
        "n2_w": row(blk["norm2_w"]), "n2_b": row(blk["norm2_b"]),
        "a2_qkv": a2_qkv, "a2_ow": a2_ow, "a2_ob": a2_ob,
        "n3_w": row(blk["norm3_w"]), "n3_b": row(blk["norm3_b"]),
        "ff_w1": t(ff["geglu_w"]), "ff_b1": row(ff["geglu_b"]),
        "ff_w2": t(ff["out_w"]), "ff_b2": row(ff["out_b"]),
        "pout_w": t(params["proj_out_w"]), "pout_b": row(params["proj_out_b"]),
    }


# ----------------------------------------------------------------------------
# wrapper: layout glue + single pallas_call
# ----------------------------------------------------------------------------
def spatial_transformer_3d(x, packed, *, heads, dim_head, num_frames=1,
                           num_groups=32, gn_eps=1e-6, ln_eps=1e-5):
    """SpatialTransformer3D.forward (depth=1, use_linear=False, context=None)."""
    BF, C, H, W = x.shape
    assert BF % num_frames == 0 and C % num_groups == 0
    B = BF // num_frames
    HW = H * W
    T = num_frames * HW
    inner = heads * dim_head
    ffi2 = packed["ff_b1"].shape[-1]                 # 2 * ff_inner

    # TODO(synk): for large H*W*num_frames (T >~ 1k) switch the attention to a
    # flash-style tiled online-softmax loop instead of materializing the (T, T)
    # score tile in VMEM (v7x has only 64 MiB physical VMEM).
    assert T <= 1024, "single-block fused kernel assumes the token count fits VMEM"

    # Constant group-averaging matrix for GroupNorm (built at trace time).
    cg = C // num_groups
    gid = np.arange(C) // cg
    gnM = jnp.asarray(
        (gid[:, None] == gid[None, :]).astype(np.float32) / float(cg * HW))

    # 'b c h w -> (b h w) c' with rows ordered (outer-batch, frame, pixel).
    x_tok = jnp.transpose(x.reshape(BF, C, HW), (0, 2, 1)).reshape(B * T, C)

    param_arrays = [
        gnM, packed["gn_w"], packed["gn_b"],
        packed["pin_w"], packed["pin_b"],
        packed["n1_w"], packed["n1_b"],
        packed["a1_qkv"], packed["a1_ow"], packed["a1_ob"],
        packed["n2_w"], packed["n2_b"],
        packed["a2_qkv"], packed["a2_ow"], packed["a2_ob"],
        packed["n3_w"], packed["n3_b"],
        packed["ff_w1"], packed["ff_b1"], packed["ff_w2"], packed["ff_b2"],
        packed["pout_w"], packed["pout_b"],
    ]
    in_specs = [pl.BlockSpec((T, C), lambda b: (b, 0))]
    in_specs += [pl.BlockSpec(a.shape, lambda b: (0, 0)) for a in param_arrays]

    flops = B * (
        2 * T * C * inner
        + 2 * (2 * T * inner * 3 * inner + 2 * T * inner * inner)
        + 4 * T * T * inner + 4 * T * HW * inner
        + 2 * T * inner * ffi2 + T * ffi2 * inner
        + 2 * T * inner * C)
    transcendentals = B * (T * T + T * HW + T * (ffi2 // 2))
    bytes_accessed = 8 * B * T * C + B * sum(4 * int(a.size) for a in param_arrays)

    kernel = functools.partial(
        _fused_transformer_kernel,
        num_frames=num_frames, tokens_per_frame=HW,
        heads=heads, dim_head=dim_head, gn_eps=gn_eps, ln_eps=ln_eps)

    out_tok = pl.pallas_call(
        kernel,
        out_shape=jax.ShapeDtypeStruct((B * T, C), x.dtype),
        grid_spec=pltpu.PrefetchScalarGridSpec(
            num_scalar_prefetch=0,
            grid=(B,),
            in_specs=in_specs,
            out_specs=pl.BlockSpec((T, C), lambda b: (b, 0)),
        ),
        compiler_params=pltpu.CompilerParams(
            dimension_semantics=("parallel",)),
        cost_estimate=pl.CostEstimate(
            flops=int(flops), transcendentals=int(transcendentals),
            bytes_accessed=int(bytes_accessed)),
    )(x_tok, *param_arrays)

    # '(b h w) c -> b c h w'
    return jnp.transpose(out_tok.reshape(BF, HW, C), (0, 2, 1)).reshape(BF, C, H, W)


# ----------------------------------------------------------------------------
# pure-JAX reference (replicates the PyTorch forward; high-precision matmuls)
# ----------------------------------------------------------------------------
def reference_forward(x, params, *, heads, dim_head, num_frames=1):
    HI = jax.lax.Precision.HIGHEST

    def lin(t, w, b=None):
        y = jnp.einsum("...k,nk->...n", t, w, precision=HI)
        return y if b is None else y + b

    def ln(t, w, b, eps=1e-5):
        mu = jnp.mean(t, axis=-1, keepdims=True)
        var = jnp.mean(jnp.square(t - mu), axis=-1, keepdims=True)
        return (t - mu) * jax.lax.rsqrt(var + eps) * w + b

    def gn(t, w, b, groups=32, eps=1e-6):
        B, C, H, W = t.shape
        tg = t.reshape(B, groups, -1)
        mu = jnp.mean(tg, axis=-1, keepdims=True)
        var = jnp.mean(jnp.square(tg - mu), axis=-1, keepdims=True)
        tg = (tg - mu) * jax.lax.rsqrt(var + eps)
        return (tg.reshape(B, C, H, W) * w.reshape(1, C, 1, 1)
                + b.reshape(1, C, 1, 1))

    def attn(t, p):
        B, N, _ = t.shape
        inner = heads * dim_head
        q, k, v = lin(t, p["to_q_w"]), lin(t, p["to_k_w"]), lin(t, p["to_v_w"])

        def sp(u):
            return (u.reshape(B, N, heads, dim_head)
                     .transpose(0, 2, 1, 3).reshape(B * heads, N, dim_head))

        q, k, v = sp(q), sp(k), sp(v)
        s = jnp.einsum("bid,bjd->bij", q, k, precision=HI) * (dim_head ** -0.5)
        a = jax.nn.softmax(s, axis=-1)
        o = jnp.einsum("bij,bjd->bid", a, v, precision=HI)
        o = (o.reshape(B, heads, N, dim_head)
              .transpose(0, 2, 1, 3).reshape(B, N, inner))
        return lin(o, p["to_out_w"], p["to_out_b"])

    def ff(t, p):
        h = lin(t, p["geglu_w"], p["geglu_b"])
        a, g = jnp.split(h, 2, axis=-1)
        return lin(a * jax.nn.gelu(g, approximate=False), p["out_w"], p["out_b"])

    B, C, H, W = x.shape
    x_in = x
    h = gn(x, params["norm_w"], params["norm_b"])
    h = jnp.transpose(h.reshape(B, C, H * W), (0, 2, 1))
    h = lin(h, params["proj_in_w"], params["proj_in_b"])
    bp = params["block"]
    BF, L, Cc = h.shape
    b = BF // num_frames
    h1 = h.reshape(b, num_frames * L, Cc)
    h1 = attn(ln(h1, bp["norm1_w"], bp["norm1_b"]), bp["attn1"]) + h1
    h = h1.reshape(BF, L, Cc)
    h = attn(ln(h, bp["norm2_w"], bp["norm2_b"]), bp["attn2"]) + h
    h = ff(ln(h, bp["norm3_w"], bp["norm3_b"]), bp["ff"]) + h
    h = lin(h, params["proj_out_w"], params["proj_out_b"])
    h = jnp.transpose(h, (0, 2, 1)).reshape(B, C, H, W)
    return h + x_in


# ----------------------------------------------------------------------------
if __name__ == "__main__":
    # SpatialTransformer3D(in_channels=32, n_heads=2, d_head=16, depth=1,
    #                      use_linear=False); x: (b*f, c, h, w), num_frames=2.
    C, heads, dim_head = 32, 2, 16
    inner = heads * dim_head            # 32
    ff_inner = 4 * inner                # 128
    Bm, F_, H, W = 2, 2, 8, 8           # batch=2 -> 2 parallel grid steps
    num_frames = F_

    key = jax.random.PRNGKey(0)
    ks = jax.random.split(key, 12)

    def w_init(k, shape, fan_in):
        return jax.random.normal(k, shape, jnp.float32) / math.sqrt(fan_in)

    def attn_params(k):
        kk = jax.random.split(k, 5)
        return {
            "to_q_w": w_init(kk[0], (inner, inner), inner),
            "to_k_w": w_init(kk[1], (inner, inner), inner),
            "to_v_w": w_init(kk[2], (inner, inner), inner),
            "to_out_w": w_init(kk[3], (inner, inner), inner),
            "to_out_b": 0.02 * jax.random.normal(kk[4], (inner,), jnp.float32),
        }

    params = {
        # GroupNorm / LayerNorm affine params at PyTorch init (ones / zeros).
        "norm_w": jnp.ones((C,), jnp.float32),
        "norm_b": jnp.zeros((C,), jnp.float32),
        # proj_in / proj_out are 1x1 convs; weights stored as (out, in).
        # NOTE: the PyTorch module zero-initialises proj_out (zero_module);
        # random weights are used here so the numerical check is non-trivial.
        "proj_in_w": w_init(ks[0], (inner, C), C),
        "proj_in_b": 0.02 * jax.random.normal(ks[1], (inner,), jnp.float32),
        "proj_out_w": w_init(ks[2], (C, inner), inner),
        "proj_out_b": 0.02 * jax.random.normal(ks[3], (C,), jnp.float32),
        "block": {
            "norm1_w": jnp.ones((inner,), jnp.float32),
            "norm1_b": jnp.zeros((inner,), jnp.float32),
            "norm2_w": jnp.ones((inner,), jnp.float32),
            "norm2_b": jnp.zeros((inner,), jnp.float32),
            "norm3_w": jnp.ones((inner,), jnp.float32),
            "norm3_b": jnp.zeros((inner,), jnp.float32),
            "attn1": attn_params(ks[4]),
            "attn2": attn_params(ks[5]),
            "ff": {
                "geglu_w": w_init(ks[6], (2 * ff_inner, inner), inner),
                "geglu_b": 0.02 * jax.random.normal(ks[7], (2 * ff_inner,),
                                                    jnp.float32),
                "out_w": w_init(ks[8], (inner, ff_inner), ff_inner),
                "out_b": 0.02 * jax.random.normal(ks[9], (inner,), jnp.float32),
            },
        },
    }

    x = jax.random.normal(ks[10], (Bm * F_, C, H, W), jnp.float32)

    packed = pack_params(params)        # one-time kernel-layout param prep
    fwd = jax.jit(functools.partial(spatial_transformer_3d, heads=heads,
                                    dim_head=dim_head, num_frames=num_frames))
    out = jax.block_until_ready(fwd(x, packed))

    ref = jax.block_until_ready(
        reference_forward(x, params, heads=heads, dim_head=dim_head,
                          num_frames=num_frames))

    assert out.shape == x.shape and out.dtype == x.dtype
    max_diff = float(jnp.max(jnp.abs(out - ref)))
    assert jnp.allclose(out, ref, atol=1e-3, rtol=1e-3), (
        f"mismatch vs reference: max |diff| = {max_diff}")

    print("KERNEL_OK")
</pallas_src>

<mosaic_0001>
module attributes {stable_mosaic.version = 11 : i64} {
  func.func @_fused_transformer_kernel(%arg0: i32, %arg1: memref<128x32xf32, #tpu.memory_space<vmem>>, %arg2: memref<32x32xf32, #tpu.memory_space<vmem>>, %arg3: memref<1x32xf32, #tpu.memory_space<vmem>>, %arg4: memref<1x32xf32, #tpu.memory_space<vmem>>, %arg5: memref<32x32xf32, #tpu.memory_space<vmem>>, %arg6: memref<1x32xf32, #tpu.memory_space<vmem>>, %arg7: memref<1x32xf32, #tpu.memory_space<vmem>>, %arg8: memref<1x32xf32, #tpu.memory_space<vmem>>, %arg9: memref<32x96xf32, #tpu.memory_space<vmem>>, %arg10: memref<32x32xf32, #tpu.memory_space<vmem>>, %arg11: memref<1x32xf32, #tpu.memory_space<vmem>>, %arg12: memref<1x32xf32, #tpu.memory_space<vmem>>, %arg13: memref<1x32xf32, #tpu.memory_space<vmem>>, %arg14: memref<32x96xf32, #tpu.memory_space<vmem>>, %arg15: memref<32x32xf32, #tpu.memory_space<vmem>>, %arg16: memref<1x32xf32, #tpu.memory_space<vmem>>, %arg17: memref<1x32xf32, #tpu.memory_space<vmem>>, %arg18: memref<1x32xf32, #tpu.memory_space<vmem>>, %arg19: memref<32x256xf32, #tpu.memory_space<vmem>>, %arg20: memref<1x256xf32, #tpu.memory_space<vmem>>, %arg21: memref<128x32xf32, #tpu.memory_space<vmem>>, %arg22: memref<1x32xf32, #tpu.memory_space<vmem>>, %arg23: memref<32x32xf32, #tpu.memory_space<vmem>>, %arg24: memref<1x32xf32, #tpu.memory_space<vmem>>, %arg25: memref<128x32xf32, #tpu.memory_space<vmem>>) attributes {dimension_semantics = [#tpu.dimension_semantics<parallel>], iteration_bounds = array<i64: 2>, scalar_prefetch = 0 : i64, scratch_operands = 0 : i64, tpu.core_type = #tpu.core_type<tc>, window_params = [{transform_indices = @transform_0, window_bounds = array<i64: 128, 32>}, {pipeline_mode = #tpu.pipeline_mode<synchronous>, transform_indices = @transform_1, window_bounds = array<i64: 32, 32>}, {pipeline_mode = #tpu.pipeline_mode<synchronous>, transform_indices = @transform_2, window_bounds = array<i64: 1, 32>}, {pipeline_mode = #tpu.pipeline_mode<synchronous>, transform_indices = @transform_3, window_bounds = array<i64: 1, 32>}, {pipeline_mode = #tpu.pipeline_mode<synchronous>, transform_indices = @transform_4, window_bounds = array<i64: 32, 32>}, {pipeline_mode = #tpu.pipeline_mode<synchronous>, transform_indices = @transform_5, window_bounds = array<i64: 1, 32>}, {pipeline_mode = #tpu.pipeline_mode<synchronous>, transform_indices = @transform_6, window_bounds = array<i64: 1, 32>}, {pipeline_mode = #tpu.pipeline_mode<synchronous>, transform_indices = @transform_7, window_bounds = array<i64: 1, 32>}, {pipeline_mode = #tpu.pipeline_mode<synchronous>, transform_indices = @transform_8, window_bounds = array<i64: 32, 96>}, {pipeline_mode = #tpu.pipeline_mode<synchronous>, transform_indices = @transform_9, window_bounds = array<i64: 32, 32>}, {pipeline_mode = #tpu.pipeline_mode<synchronous>, transform_indices = @transform_10, window_bounds = array<i64: 1, 32>}, {pipeline_mode = #tpu.pipeline_mode<synchronous>, transform_indices = @transform_11, window_bounds = array<i64: 1, 32>}, {pipeline_mode = #tpu.pipeline_mode<synchronous>, transform_indices = @transform_12, window_bounds = array<i64: 1, 32>}, {pipeline_mode = #tpu.pipeline_mode<synchronous>, transform_indices = @transform_13, window_bounds = array<i64: 32, 96>}, {pipeline_mode = #tpu.pipeline_mode<synchronous>, transform_indices = @transform_14, window_bounds = array<i64: 32, 32>}, {pipeline_mode = #tpu.pipeline_mode<synchronous>, transform_indices = @transform_15, window_bounds = array<i64: 1, 32>}, {pipeline_mode = #tpu.pipeline_mode<synchronous>, transform_indices = @transform_16, window_bounds = array<i64: 1, 32>}, {pipeline_mode = #tpu.pipeline_mode<synchronous>, transform_indices = @transform_17, window_bounds = array<i64: 1, 32>}, {pipeline_mode = #tpu.pipeline_mode<synchronous>, transform_indices = @transform_18, window_bounds = array<i64: 32, 256>}, {pipeline_mode = #tpu.pipeline_mode<synchronous>, transform_indices = @transform_19, window_bounds = array<i64: 1, 256>}, {pipeline_mode = #tpu.pipeline_mode<synchronous>, transform_indices = @transform_20, window_bounds = array<i64: 128, 32>}, {pipeline_mode = #tpu.pipeline_mode<synchronous>, transform_indices = @transform_21, window_bounds = array<i64: 1, 32>}, {pipeline_mode = #tpu.pipeline_mode<synchronous>, transform_indices = @transform_22, window_bounds = array<i64: 32, 32>}, {pipeline_mode = #tpu.pipeline_mode<synchronous>, transform_indices = @transform_23, window_bounds = array<i64: 1, 32>}, {transform_indices = @transform_24, window_bounds = array<i64: 128, 32>}]} {
    %c0 = arith.constant 0 : index
    %c0_0 = arith.constant 0 : index
    %0 = vector.load %arg1[%c0, %c0_0] : memref<128x32xf32, #tpu.memory_space<vmem>>, vector<128x32xf32>
    %c0_1 = arith.constant 0 : index
    %c0_2 = arith.constant 0 : index
    %1 = vector.load %arg2[%c0_1, %c0_2] : memref<32x32xf32, #tpu.memory_space<vmem>>, vector<32x32xf32>
    %2 = vector.extract_strided_slice %0 {offsets = [0, 0], sizes = [64, 32], strides = [1, 1]} : vector<128x32xf32> to vector<64x32xf32>
    %cst = arith.constant dense<0.000000e+00> : vector<64x32xf32>
    %3 = tpu.matmul %2, %1, %cst {dimension_numbers = #tpu.dot_dimension_numbers<[1], [0], [0], [1], [0, 0, 1, 1], [], []>} : vector<64x32xf32>, vector<32x32xf32>, vector<64x32xf32> -> vector<64x32xf32>
    %cst_3 = arith.constant dense<0.000000e+00> : vector<32xf32>
    %4 = vector.multi_reduction <add>, %3, %cst_3 [0] : vector<64x32xf32> to vector<32xf32>
    %5 = vector.shape_cast %4 : vector<32xf32> to vector<1x32xf32>
    %6 = vector.broadcast %5 : vector<1x32xf32> to vector<64x32xf32>
    %7 = arith.subf %2, %6 : vector<64x32xf32>
    %8 = arith.mulf %7, %7 : vector<64x32xf32>
    %cst_4 = arith.constant dense<0.000000e+00> : vector<64x32xf32>
    %9 = tpu.matmul %8, %1, %cst_4 {dimension_numbers = #tpu.dot_dimension_numbers<[1], [0], [0], [1], [0, 0, 1, 1], [], []>} : vector<64x32xf32>, vector<32x32xf32>, vector<64x32xf32> -> vector<64x32xf32>
    %cst_5 = arith.constant dense<0.000000e+00> : vector<32xf32>
    %10 = vector.multi_reduction <add>, %9, %cst_5 [0] : vector<64x32xf32> to vector<32xf32>
    %11 = vector.shape_cast %10 : vector<32xf32> to vector<1x32xf32>
    %cst_6 = arith.constant 9.99999997E-7 : f32
    %12 = vector.broadcast %cst_6 : f32 to vector<1x32xf32>
    %13 = arith.addf %11, %12 : vector<1x32xf32>
    %14 = math.rsqrt %13 : vector<1x32xf32>
    %15 = vector.broadcast %14 : vector<1x32xf32> to vector<64x32xf32>
    %16 = arith.mulf %7, %15 : vector<64x32xf32>
    %17 = vector.extract_strided_slice %0 {offsets = [64, 0], sizes = [64, 32], strides = [1, 1]} : vector<128x32xf32> to vector<64x32xf32>
    %cst_7 = arith.constant dense<0.000000e+00> : vector<64x32xf32>
    %18 = tpu.matmul %17, %1, %cst_7 {dimension_numbers = #tpu.dot_dimension_numbers<[1], [0], [0], [1], [0, 0, 1, 1], [], []>} : vector<64x32xf32>, vector<32x32xf32>, vector<64x32xf32> -> vector<64x32xf32>
    %cst_8 = arith.constant dense<0.000000e+00> : vector<32xf32>
    %19 = vector.multi_reduction <add>, %18, %cst_8 [0] : vector<64x32xf32> to vector<32xf32>
    %20 = vector.shape_cast %19 : vector<32xf32> to vector<1x32xf32>
    %21 = vector.broadcast %20 : vector<1x32xf32> to vector<64x32xf32>
    %22 = arith.subf %17, %21 : vector<64x32xf32>
    %23 = arith.mulf %22, %22 : vector<64x32xf32>
    %cst_9 = arith.constant dense<0.000000e+00> : vector<64x32xf32>
    %24 = tpu.matmul %23, %1, %cst_9 {dimension_numbers = #tpu.dot_dimension_numbers<[1], [0], [0], [1], [0, 0, 1, 1], [], []>} : vector<64x32xf32>, vector<32x32xf32>, vector<64x32xf32> -> vector<64x32xf32>
    %cst_10 = arith.constant dense<0.000000e+00> : vector<32xf32>
    %25 = vector.multi_reduction <add>, %24, %cst_10 [0] : vector<64x32xf32> to vector<32xf32>
    %26 = vector.shape_cast %25 : vector<32xf32> to vector<1x32xf32>
    %cst_11 = arith.constant 9.99999997E-7 : f32
    %27 = vector.broadcast %cst_11 : f32 to vector<1x32xf32>
    %28 = arith.addf %26, %27 : vector<1x32xf32>
    %29 = math.rsqrt %28 : vector<1x32xf32>
    %30 = vector.broadcast %29 : vector<1x32xf32> to vector<64x32xf32>
    %31 = arith.mulf %22, %30 : vector<64x32xf32>
    %32 = tpu.concatenate %16, %31 in 0 : vector<64x32xf32>, vector<64x32xf32> -> vector<128x32xf32>
    %c0_12 = arith.constant 0 : index
    %c0_13 = arith.constant 0 : index
    %33 = vector.load %arg3[%c0_12, %c0_13] : memref<1x32xf32, #tpu.memory_space<vmem>>, vector<1x32xf32>
    %34 = vector.broadcast %33 : vector<1x32xf32> to vector<128x32xf32>
    %35 = arith.mulf %32, %34 : vector<128x32xf32>
    %c0_14 = arith.constant 0 : index
    %c0_15 = arith.constant 0 : index
    %36 = vector.load %arg4[%c0_14, %c0_15] : memref<1x32xf32, #tpu.memory_space<vmem>>, vector<1x32xf32>
    %37 = vector.broadcast %36 : vector<1x32xf32> to vector<128x32xf32>
    %38 = arith.addf %35, %37 : vector<128x32xf32>
    %c0_16 = arith.constant 0 : index
    %c0_17 = arith.constant 0 : index
    %39 = vector.load %arg5[%c0_16, %c0_17] : memref<32x32xf32, #tpu.memory_space<vmem>>, vector<32x32xf32>
    %cst_18 = arith.constant dense<0.000000e+00> : vector<128x32xf32>
    %40 = tpu.matmul %38, %39, %cst_18 {dimension_numbers = #tpu.dot_dimension_numbers<[1], [0], [0], [1], [0, 0, 1, 1], [], []>} : vector<128x32xf32>, vector<32x32xf32>, vector<128x32xf32> -> vector<128x32xf32>
    %c0_19 = arith.constant 0 : index
    %c0_20 = arith.constant 0 : index
    %41 = vector.load %arg6[%c0_19, %c0_20] : memref<1x32xf32, #tpu.memory_space<vmem>>, vector<1x32xf32>
    %42 = vector.broadcast %41 : vector<1x32xf32> to vector<128x32xf32>
    %43 = arith.addf %40, %42 : vector<128x32xf32>
    %c0_21 = arith.constant 0 : index
    %c0_22 = arith.constant 0 : index
    %44 = vector.load %arg7[%c0_21, %c0_22] : memref<1x32xf32, #tpu.memory_space<vmem>>, vector<1x32xf32>
    %c0_23 = arith.constant 0 : index
    %c0_24 = arith.constant 0 : index
    %45 = vector.load %arg8[%c0_23, %c0_24] : memref<1x32xf32, #tpu.memory_space<vmem>>, vector<1x32xf32>
    %cst_25 = arith.constant dense<0.000000e+00> : vector<128xf32>
    %46 = vector.multi_reduction <add>, %43, %cst_25 [1] : vector<128x32xf32> to vector<128xf32>
    %47 = vector.shape_cast %46 : vector<128xf32> to vector<128x1xf32>
    %cst_26 = arith.constant 3.200000e+01 : f32
    %48 = vector.broadcast %cst_26 : f32 to vector<128x1xf32>
    %49 = arith.divf %47, %48 : vector<128x1xf32>
    %50 = vector.broadcast %49 : vector<128x1xf32> to vector<128x32xf32>
    %51 = arith.subf %43, %50 : vector<128x32xf32>
    %52 = arith.mulf %51, %51 : vector<128x32xf32>
    %cst_27 = arith.constant dense<0.000000e+00> : vector<128xf32>
    %53 = vector.multi_reduction <add>, %52, %cst_27 [1] : vector<128x32xf32> to vector<128xf32>
    %54 = vector.shape_cast %53 : vector<128xf32> to vector<128x1xf32>
    %cst_28 = arith.constant 3.200000e+01 : f32
    %55 = vector.broadcast %cst_28 : f32 to vector<128x1xf32>
    %56 = arith.divf %54, %55 : vector<128x1xf32>
    %cst_29 = arith.constant 9.99999974E-6 : f32
    %57 = vector.broadcast %cst_29 : f32 to vector<128x1xf32>
    %58 = arith.addf %56, %57 : vector<128x1xf32>
    %59 = math.rsqrt %58 : vector<128x1xf32>
    %60 = vector.broadcast %59 : vector<128x1xf32> to vector<128x32xf32>
    %61 = arith.mulf %51, %60 : vector<128x32xf32>
    %62 = vector.broadcast %44 : vector<1x32xf32> to vector<128x32xf32>
    %63 = arith.mulf %61, %62 : vector<128x32xf32>
    %64 = vector.broadcast %45 : vector<1x32xf32> to vector<128x32xf32>
    %65 = arith.addf %63, %64 : vector<128x32xf32>
    %c0_30 = arith.constant 0 : index
    %c0_31 = arith.constant 0 : index
    %66 = vector.load %arg9[%c0_30, %c0_31] : memref<32x96xf32, #tpu.memory_space<vmem>>, vector<32x96xf32>
    %c0_32 = arith.constant 0 : index
    %c0_33 = arith.constant 0 : index
    %67 = vector.load %arg10[%c0_32, %c0_33] : memref<32x32xf32, #tpu.memory_space<vmem>>, vector<32x32xf32>
    %c0_34 = arith.constant 0 : index
    %c0_35 = arith.constant 0 : index
    %68 = vector.load %arg11[%c0_34, %c0_35] : memref<1x32xf32, #tpu.memory_space<vmem>>, vector<1x32xf32>
    %cst_36 = arith.constant dense<0.000000e+00> : vector<128x96xf32>
    %69 = tpu.matmul %65, %66, %cst_36 {dimension_numbers = #tpu.dot_dimension_numbers<[1], [0], [0], [1], [0, 0, 1, 1], [], []>} : vector<128x32xf32>, vector<32x96xf32>, vector<128x96xf32> -> vector<128x96xf32>
    %70 = vector.extract_strided_slice %69 {offsets = [0, 0], sizes = [128, 32], strides = [1, 1]} : vector<128x96xf32> to vector<128x32xf32>
    %cst_37 = arith.constant 2.500000e-01 : f32
    %71 = vector.broadcast %cst_37 : f32 to vector<128x32xf32>
    %72 = arith.mulf %70, %71 : vector<128x32xf32>
    %73 = vector.extract_strided_slice %69 {offsets = [0, 32], sizes = [128, 32], strides = [1, 1]} : vector<128x96xf32> to vector<128x32xf32>
    %74 = vector.extract_strided_slice %69 {offsets = [0, 64], sizes = [128, 32], strides = [1, 1]} : vector<128x96xf32> to vector<128x32xf32>
    %75 = vector.extract_strided_slice %72 {offsets = [0, 0], sizes = [128, 16], strides = [1, 1]} : vector<128x32xf32> to vector<128x16xf32>
    %76 = vector.extract_strided_slice %73 {offsets = [0, 0], sizes = [128, 16], strides = [1, 1]} : vector<128x32xf32> to vector<128x16xf32>
    %77 = vector.extract_strided_slice %74 {offsets = [0, 0], sizes = [128, 16], strides = [1, 1]} : vector<128x32xf32> to vector<128x16xf32>
    %cst_38 = arith.constant dense<0.000000e+00> : vector<128x128xf32>
    %78 = tpu.matmul %75, %76, %cst_38 {dimension_numbers = #tpu.dot_dimension_numbers<[1], [1], [0], [0], [0, 0, 1, 0], [], []>} : vector<128x16xf32>, vector<128x16xf32>, vector<128x128xf32> -> vector<128x128xf32>
    %cst_39 = arith.constant dense<0xFF800000> : vector<128xf32>
    %79 = vector.multi_reduction <maximumf>, %78, %cst_39 [1] : vector<128x128xf32> to vector<128xf32>
    %80 = vector.shape_cast %79 : vector<128xf32> to vector<128x1xf32>
    %81 = vector.broadcast %80 : vector<128x1xf32> to vector<128x128xf32>
    %82 = arith.subf %78, %81 : vector<128x128xf32>
    %83 = math.exp %82 : vector<128x128xf32>
    %cst_40 = arith.constant dense<0.000000e+00> : vector<128xf32>
    %84 = vector.multi_reduction <add>, %83, %cst_40 [1] : vector<128x128xf32> to vector<128xf32>
    %85 = vector.shape_cast %84 : vector<128xf32> to vector<128x1xf32>
    %86 = vector.broadcast %85 : vector<128x1xf32> to vector<128x128xf32>
    %87 = arith.divf %83, %86 : vector<128x128xf32>
    %cst_41 = arith.constant dense<0.000000e+00> : vector<128x16xf32>
    %88 = tpu.matmul %87, %77, %cst_41 {dimension_numbers = #tpu.dot_dimension_numbers<[1], [0], [0], [1], [0, 0, 1, 1], [], []>} : vector<128x128xf32>, vector<128x16xf32>, vector<128x16xf32> -> vector<128x16xf32>
    %89 = vector.extract_strided_slice %67 {offsets = [0, 0], sizes = [16, 32], strides = [1, 1]} : vector<32x32xf32> to vector<16x32xf32>
    %cst_42 = arith.constant dense<0.000000e+00> : vector<128x32xf32>
    %90 = tpu.matmul %88, %89, %cst_42 {dimension_numbers = #tpu.dot_dimension_numbers<[1], [0], [0], [1], [0, 0, 1, 1], [], []>} : vector<128x16xf32>, vector<16x32xf32>, vector<128x32xf32> -> vector<128x32xf32>
    %91 = vector.extract_strided_slice %72 {offsets = [0, 16], sizes = [128, 16], strides = [1, 1]} : vector<128x32xf32> to vector<128x16xf32>
    %92 = vector.extract_strided_slice %73 {offsets = [0, 16], sizes = [128, 16], strides = [1, 1]} : vector<128x32xf32> to vector<128x16xf32>
    %93 = vector.extract_strided_slice %74 {offsets = [0, 16], sizes = [128, 16], strides = [1, 1]} : vector<128x32xf32> to vector<128x16xf32>
    %cst_43 = arith.constant dense<0.000000e+00> : vector<128x128xf32>
    %94 = tpu.matmul %91, %92, %cst_43 {dimension_numbers = #tpu.dot_dimension_numbers<[1], [1], [0], [0], [0, 0, 1, 0], [], []>} : vector<128x16xf32>, vector<128x16xf32>, vector<128x128xf32> -> vector<128x128xf32>
    %cst_44 = arith.constant dense<0xFF800000> : vector<128xf32>
    %95 = vector.multi_reduction <maximumf>, %94, %cst_44 [1] : vector<128x128xf32> to vector<128xf32>
    %96 = vector.shape_cast %95 : vector<128xf32> to vector<128x1xf32>
    %97 = vector.broadcast %96 : vector<128x1xf32> to vector<128x128xf32>
    %98 = arith.subf %94, %97 : vector<128x128xf32>
    %99 = math.exp %98 : vector<128x128xf32>
    %cst_45 = arith.constant dense<0.000000e+00> : vector<128xf32>
    %100 = vector.multi_reduction <add>, %99, %cst_45 [1] : vector<128x128xf32> to vector<128xf32>
    %101 = vector.shape_cast %100 : vector<128xf32> to vector<128x1xf32>
    %102 = vector.broadcast %101 : vector<128x1xf32> to vector<128x128xf32>
    %103 = arith.divf %99, %102 : vector<128x128xf32>
    %cst_46 = arith.constant dense<0.000000e+00> : vector<128x16xf32>
    %104 = tpu.matmul %103, %93, %cst_46 {dimension_numbers = #tpu.dot_dimension_numbers<[1], [0], [0], [1], [0, 0, 1, 1], [], []>} : vector<128x128xf32>, vector<128x16xf32>, vector<128x16xf32> -> vector<128x16xf32>
    %105 = vector.extract_strided_slice %67 {offsets = [16, 0], sizes = [16, 32], strides = [1, 1]} : vector<32x32xf32> to vector<16x32xf32>
    %cst_47 = arith.constant dense<0.000000e+00> : vector<128x32xf32>
    %106 = tpu.matmul %104, %105, %cst_47 {dimension_numbers = #tpu.dot_dimension_numbers<[1], [0], [0], [1], [0, 0, 1, 1], [], []>} : vector<128x16xf32>, vector<16x32xf32>, vector<128x32xf32> -> vector<128x32xf32>
    %107 = arith.addf %90, %106 : vector<128x32xf32>
    %108 = vector.broadcast %68 : vector<1x32xf32> to vector<128x32xf32>
    %109 = arith.addf %107, %108 : vector<128x32xf32>
    %110 = arith.addf %109, %43 : vector<128x32xf32>
    %c0_48 = arith.constant 0 : index
    %c0_49 = arith.constant 0 : index
    %111 = vector.load %arg12[%c0_48, %c0_49] : memref<1x32xf32, #tpu.memory_space<vmem>>, vector<1x32xf32>
    %c0_50 = arith.constant 0 : index
    %c0_51 = arith.constant 0 : index
    %112 = vector.load %arg13[%c0_50, %c0_51] : memref<1x32xf32, #tpu.memory_space<vmem>>, vector<1x32xf32>
    %cst_52 = arith.constant dense<0.000000e+00> : vector<128xf32>
    %113 = vector.multi_reduction <add>, %110, %cst_52 [1] : vector<128x32xf32> to vector<128xf32>
    %114 = vector.shape_cast %113 : vector<128xf32> to vector<128x1xf32>
    %cst_53 = arith.constant 3.200000e+01 : f32
    %115 = vector.broadcast %cst_53 : f32 to vector<128x1xf32>
    %116 = arith.divf %114, %115 : vector<128x1xf32>
    %117 = vector.broadcast %116 : vector<128x1xf32> to vector<128x32xf32>
    %118 = arith.subf %110, %117 : vector<128x32xf32>
    %119 = arith.mulf %118, %118 : vector<128x32xf32>
    %cst_54 = arith.constant dense<0.000000e+00> : vector<128xf32>
    %120 = vector.multi_reduction <add>, %119, %cst_54 [1] : vector<128x32xf32> to vector<128xf32>
    %121 = vector.shape_cast %120 : vector<128xf32> to vector<128x1xf32>
    %cst_55 = arith.constant 3.200000e+01 : f32
    %122 = vector.broadcast %cst_55 : f32 to vector<128x1xf32>
    %123 = arith.divf %121, %122 : vector<128x1xf32>
    %cst_56 = arith.constant 9.99999974E-6 : f32
    %124 = vector.broadcast %cst_56 : f32 to vector<128x1xf32>
    %125 = arith.addf %123, %124 : vector<128x1xf32>
    %126 = math.rsqrt %125 : vector<128x1xf32>
    %127 = vector.broadcast %126 : vector<128x1xf32> to vector<128x32xf32>
    %128 = arith.mulf %118, %127 : vector<128x32xf32>
    %129 = vector.broadcast %111 : vector<1x32xf32> to vector<128x32xf32>
    %130 = arith.mulf %128, %129 : vector<128x32xf32>
    %131 = vector.broadcast %112 : vector<1x32xf32> to vector<128x32xf32>
    %132 = arith.addf %130, %131 : vector<128x32xf32>
    %c0_57 = arith.constant 0 : index
    %c0_58 = arith.constant 0 : index
    %133 = vector.load %arg14[%c0_57, %c0_58] : memref<32x96xf32, #tpu.memory_space<vmem>>, vector<32x96xf32>
    %c0_59 = arith.constant 0 : index
    %c0_60 = arith.constant 0 : index
    %134 = vector.load %arg15[%c0_59, %c0_60] : memref<32x32xf32, #tpu.memory_space<vmem>>, vector<32x32xf32>
    %c0_61 = arith.constant 0 : index
    %c0_62 = arith.constant 0 : index
    %135 = vector.load %arg16[%c0_61, %c0_62] : memref<1x32xf32, #tpu.memory_space<vmem>>, vector<1x32xf32>
    %cst_63 = arith.constant dense<0.000000e+00> : vector<128x96xf32>
    %136 = tpu.matmul %132, %133, %cst_63 {dimension_numbers = #tpu.dot_dimension_numbers<[1], [0], [0], [1], [0, 0, 1, 1], [], []>} : vector<128x32xf32>, vector<32x96xf32>, vector<128x96xf32> -> vector<128x96xf32>
    %137 = vector.extract_strided_slice %136 {offsets = [0, 0], sizes = [128, 32], strides = [1, 1]} : vector<128x96xf32> to vector<128x32xf32>
    %cst_64 = arith.constant 2.500000e-01 : f32
    %138 = vector.broadcast %cst_64 : f32 to vector<128x32xf32>
    %139 = arith.mulf %137, %138 : vector<128x32xf32>
    %140 = vector.extract_strided_slice %136 {offsets = [0, 32], sizes = [128, 32], strides = [1, 1]} : vector<128x96xf32> to vector<128x32xf32>
    %141 = vector.extract_strided_slice %136 {offsets = [0, 64], sizes = [128, 32], strides = [1, 1]} : vector<128x96xf32> to vector<128x32xf32>
    %142 = vector.extract_strided_slice %139 {offsets = [0, 0], sizes = [64, 16], strides = [1, 1]} : vector<128x32xf32> to vector<64x16xf32>
    %143 = vector.extract_strided_slice %140 {offsets = [0, 0], sizes = [64, 16], strides = [1, 1]} : vector<128x32xf32> to vector<64x16xf32>
    %144 = vector.extract_strided_slice %141 {offsets = [0, 0], sizes = [64, 16], strides = [1, 1]} : vector<128x32xf32> to vector<64x16xf32>
    %cst_65 = arith.constant dense<0.000000e+00> : vector<64x64xf32>
    %145 = tpu.matmul %142, %143, %cst_65 {dimension_numbers = #tpu.dot_dimension_numbers<[1], [1], [0], [0], [0, 0, 1, 0], [], []>} : vector<64x16xf32>, vector<64x16xf32>, vector<64x64xf32> -> vector<64x64xf32>
    %cst_66 = arith.constant dense<0xFF800000> : vector<64xf32>
    %146 = vector.multi_reduction <maximumf>, %145, %cst_66 [1] : vector<64x64xf32> to vector<64xf32>
    %147 = vector.shape_cast %146 : vector<64xf32> to vector<64x1xf32>
    %148 = vector.broadcast %147 : vector<64x1xf32> to vector<64x64xf32>
    %149 = arith.subf %145, %148 : vector<64x64xf32>
    %150 = math.exp %149 : vector<64x64xf32>
    %cst_67 = arith.constant dense<0.000000e+00> : vector<64xf32>
    %151 = vector.multi_reduction <add>, %150, %cst_67 [1] : vector<64x64xf32> to vector<64xf32>
    %152 = vector.shape_cast %151 : vector<64xf32> to vector<64x1xf32>
    %153 = vector.broadcast %152 : vector<64x1xf32> to vector<64x64xf32>
    %154 = arith.divf %150, %153 : vector<64x64xf32>
    %cst_68 = arith.constant dense<0.000000e+00> : vector<64x16xf32>
    %155 = tpu.matmul %154, %144, %cst_68 {dimension_numbers = #tpu.dot_dimension_numbers<[1], [0], [0], [1], [0, 0, 1, 1], [], []>} : vector<64x64xf32>, vector<64x16xf32>, vector<64x16xf32> -> vector<64x16xf32>
    %156 = vector.extract_strided_slice %134 {offsets = [0, 0], sizes = [16, 32], strides = [1, 1]} : vector<32x32xf32> to vector<16x32xf32>
    %cst_69 = arith.constant dense<0.000000e+00> : vector<64x32xf32>
    %157 = tpu.matmul %155, %156, %cst_69 {dimension_numbers = #tpu.dot_dimension_numbers<[1], [0], [0], [1], [0, 0, 1, 1], [], []>} : vector<64x16xf32>, vector<16x32xf32>, vector<64x32xf32> -> vector<64x32xf32>
    %158 = vector.extract_strided_slice %139 {offsets = [0, 16], sizes = [64, 16], strides = [1, 1]} : vector<128x32xf32> to vector<64x16xf32>
    %159 = vector.extract_strided_slice %140 {offsets = [0, 16], sizes = [64, 16], strides = [1, 1]} : vector<128x32xf32> to vector<64x16xf32>
    %160 = vector.extract_strided_slice %141 {offsets = [0, 16], sizes = [64, 16], strides = [1, 1]} : vector<128x32xf32> to vector<64x16xf32>
    %cst_70 = arith.constant dense<0.000000e+00> : vector<64x64xf32>
    %161 = tpu.matmul %158, %159, %cst_70 {dimension_numbers = #tpu.dot_dimension_numbers<[1], [1], [0], [0], [0, 0, 1, 0], [], []>} : vector<64x16xf32>, vector<64x16xf32>, vector<64x64xf32> -> vector<64x64xf32>
    %cst_71 = arith.constant dense<0xFF800000> : vector<64xf32>
    %162 = vector.multi_reduction <maximumf>, %161, %cst_71 [1] : vector<64x64xf32> to vector<64xf32>
    %163 = vector.shape_cast %162 : vector<64xf32> to vector<64x1xf32>
    %164 = vector.broadcast %163 : vector<64x1xf32> to vector<64x64xf32>
    %165 = arith.subf %161, %164 : vector<64x64xf32>
    %166 = math.exp %165 : vector<64x64xf32>
    %cst_72 = arith.constant dense<0.000000e+00> : vector<64xf32>
    %167 = vector.multi_reduction <add>, %166, %cst_72 [1] : vector<64x64xf32> to vector<64xf32>
    %168 = vector.shape_cast %167 : vector<64xf32> to vector<64x1xf32>
    %169 = vector.broadcast %168 : vector<64x1xf32> to vector<64x64xf32>
    %170 = arith.divf %166, %169 : vector<64x64xf32>
    %cst_73 = arith.constant dense<0.000000e+00> : vector<64x16xf32>
    %171 = tpu.matmul %170, %160, %cst_73 {dimension_numbers = #tpu.dot_dimension_numbers<[1], [0], [0], [1], [0, 0, 1, 1], [], []>} : vector<64x64xf32>, vector<64x16xf32>, vector<64x16xf32> -> vector<64x16xf32>
    %172 = vector.extract_strided_slice %134 {offsets = [16, 0], sizes = [16, 32], strides = [1, 1]} : vector<32x32xf32> to vector<16x32xf32>
    %cst_74 = arith.constant dense<0.000000e+00> : vector<64x32xf32>
    %173 = tpu.matmul %171, %172, %cst_74 {dimension_numbers = #tpu.dot_dimension_numbers<[1], [0], [0], [1], [0, 0, 1, 1], [], []>} : vector<64x16xf32>, vector<16x32xf32>, vector<64x32xf32> -> vector<64x32xf32>
    %174 = arith.addf %157, %173 : vector<64x32xf32>
    %175 = vector.extract_strided_slice %139 {offsets = [64, 0], sizes = [64, 16], strides = [1, 1]} : vector<128x32xf32> to vector<64x16xf32>
    %176 = vector.extract_strided_slice %140 {offsets = [64, 0], sizes = [64, 16], strides = [1, 1]} : vector<128x32xf32> to vector<64x16xf32>
    %177 = vector.extract_strided_slice %141 {offsets = [64, 0], sizes = [64, 16], strides = [1, 1]} : vector<128x32xf32> to vector<64x16xf32>
    %cst_75 = arith.constant dense<0.000000e+00> : vector<64x64xf32>
    %178 = tpu.matmul %175, %176, %cst_75 {dimension_numbers = #tpu.dot_dimension_numbers<[1], [1], [0], [0], [0, 0, 1, 0], [], []>} : vector<64x16xf32>, vector<64x16xf32>, vector<64x64xf32> -> vector<64x64xf32>
    %cst_76 = arith.constant dense<0xFF800000> : vector<64xf32>
    %179 = vector.multi_reduction <maximumf>, %178, %cst_76 [1] : vector<64x64xf32> to vector<64xf32>
    %180 = vector.shape_cast %179 : vector<64xf32> to vector<64x1xf32>
    %181 = vector.broadcast %180 : vector<64x1xf32> to vector<64x64xf32>
    %182 = arith.subf %178, %181 : vector<64x64xf32>
    %183 = math.exp %182 : vector<64x64xf32>
    %cst_77 = arith.constant dense<0.000000e+00> : vector<64xf32>
    %184 = vector.multi_reduction <add>, %183, %cst_77 [1] : vector<64x64xf32> to vector<64xf32>
    %185 = vector.shape_cast %184 : vector<64xf32> to vector<64x1xf32>
    %186 = vector.broadcast %185 : vector<64x1xf32> to vector<64x64xf32>
    %187 = arith.divf %183, %186 : vector<64x64xf32>
    %cst_78 = arith.constant dense<0.000000e+00> : vector<64x16xf32>
    %188 = tpu.matmul %187, %177, %cst_78 {dimension_numbers = #tpu.dot_dimension_numbers<[1], [0], [0], [1], [0, 0, 1, 1], [], []>} : vector<64x64xf32>, vector<64x16xf32>, vector<64x16xf32> -> vector<64x16xf32>
    %189 = vector.extract_strided_slice %134 {offsets = [0, 0], sizes = [16, 32], strides = [1, 1]} : vector<32x32xf32> to vector<16x32xf32>
    %cst_79 = arith.constant dense<0.000000e+00> : vector<64x32xf32>
    %190 = tpu.matmul %188, %189, %cst_79 {dimension_numbers = #tpu.dot_dimension_numbers<[1], [0], [0], [1], [0, 0, 1, 1], [], []>} : vector<64x16xf32>, vector<16x32xf32>, vector<64x32xf32> -> vector<64x32xf32>
    %191 = vector.extract_strided_slice %139 {offsets = [64, 16], sizes = [64, 16], strides = [1, 1]} : vector<128x32xf32> to vector<64x16xf32>
    %192 = vector.extract_strided_slice %140 {offsets = [64, 16], sizes = [64, 16], strides = [1, 1]} : vector<128x32xf32> to vector<64x16xf32>
    %193 = vector.extract_strided_slice %141 {offsets = [64, 16], sizes = [64, 16], strides = [1, 1]} : vector<128x32xf32> to vector<64x16xf32>
    %cst_80 = arith.constant dense<0.000000e+00> : vector<64x64xf32>
    %194 = tpu.matmul %191, %192, %cst_80 {dimension_numbers = #tpu.dot_dimension_numbers<[1], [1], [0], [0], [0, 0, 1, 0], [], []>} : vector<64x16xf32>, vector<64x16xf32>, vector<64x64xf32> -> vector<64x64xf32>
    %cst_81 = arith.constant dense<0xFF800000> : vector<64xf32>
    %195 = vector.multi_reduction <maximumf>, %194, %cst_81 [1] : vector<64x64xf32> to vector<64xf32>
    %196 = vector.shape_cast %195 : vector<64xf32> to vector<64x1xf32>
    %197 = vector.broadcast %196 : vector<64x1xf32> to vector<64x64xf32>
    %198 = arith.subf %194, %197 : vector<64x64xf32>
    %199 = math.exp %198 : vector<64x64xf32>
    %cst_82 = arith.constant dense<0.000000e+00> : vector<64xf32>
    %200 = vector.multi_reduction <add>, %199, %cst_82 [1] : vector<64x64xf32> to vector<64xf32>
    %201 = vector.shape_cast %200 : vector<64xf32> to vector<64x1xf32>
    %202 = vector.broadcast %201 : vector<64x1xf32> to vector<64x64xf32>
    %203 = arith.divf %199, %202 : vector<64x64xf32>
    %cst_83 = arith.constant dense<0.000000e+00> : vector<64x16xf32>
    %204 = tpu.matmul %203, %193, %cst_83 {dimension_numbers = #tpu.dot_dimension_numbers<[1], [0], [0], [1], [0, 0, 1, 1], [], []>} : vector<64x64xf32>, vector<64x16xf32>, vector<64x16xf32> -> vector<64x16xf32>
    %205 = vector.extract_strided_slice %134 {offsets = [16, 0], sizes = [16, 32], strides = [1, 1]} : vector<32x32xf32> to vector<16x32xf32>
    %cst_84 = arith.constant dense<0.000000e+00> : vector<64x32xf32>
    %206 = tpu.matmul %204, %205, %cst_84 {dimension_numbers = #tpu.dot_dimension_numbers<[1], [0], [0], [1], [0, 0, 1, 1], [], []>} : vector<64x16xf32>, vector<16x32xf32>, vector<64x32xf32> -> vector<64x32xf32>
    %207 = arith.addf %190, %206 : vector<64x32xf32>
    %208 = tpu.concatenate %174, %207 in 0 : vector<64x32xf32>, vector<64x32xf32> -> vector<128x32xf32>
    %209 = vector.broadcast %135 : vector<1x32xf32> to vector<128x32xf32>
    %210 = arith.addf %208, %209 : vector<128x32xf32>
    %211 = arith.addf %210, %110 : vector<128x32xf32>
    %c0_85 = arith.constant 0 : index
    %c0_86 = arith.constant 0 : index
    %212 = vector.load %arg17[%c0_85, %c0_86] : memref<1x32xf32, #tpu.memory_space<vmem>>, vector<1x32xf32>
    %c0_87 = arith.constant 0 : index
    %c0_88 = arith.constant 0 : index
    %213 = vector.load %arg18[%c0_87, %c0_88] : memref<1x32xf32, #tpu.memory_space<vmem>>, vector<1x32xf32>
    %cst_89 = arith.constant dense<0.000000e+00> : vector<128xf32>
    %214 = vector.multi_reduction <add>, %211, %cst_89 [1] : vector<128x32xf32> to vector<128xf32>
    %215 = vector.shape_cast %214 : vector<128xf32> to vector<128x1xf32>
    %cst_90 = arith.constant 3.200000e+01 : f32
    %216 = vector.broadcast %cst_90 : f32 to vector<128x1xf32>
    %217 = arith.divf %215, %216 : vector<128x1xf32>
    %218 = vector.broadcast %217 : vector<128x1xf32> to vector<128x32xf32>
    %219 = arith.subf %211, %218 : vector<128x32xf32>
    %220 = arith.mulf %219, %219 : vector<128x32xf32>
    %cst_91 = arith.constant dense<0.000000e+00> : vector<128xf32>
    %221 = vector.multi_reduction <add>, %220, %cst_91 [1] : vector<128x32xf32> to vector<128xf32>
    %222 = vector.shape_cast %221 : vector<128xf32> to vector<128x1xf32>
    %cst_92 = arith.constant 3.200000e+01 : f32
    %223 = vector.broadcast %cst_92 : f32 to vector<128x1xf32>
    %224 = arith.divf %222, %223 : vector<128x1xf32>
    %cst_93 = arith.constant 9.99999974E-6 : f32
    %225 = vector.broadcast %cst_93 : f32 to vector<128x1xf32>
    %226 = arith.addf %224, %225 : vector<128x1xf32>
    %227 = math.rsqrt %226 : vector<128x1xf32>
    %228 = vector.broadcast %227 : vector<128x1xf32> to vector<128x32xf32>
    %229 = arith.mulf %219, %228 : vector<128x32xf32>
    %230 = vector.broadcast %212 : vector<1x32xf32> to vector<128x32xf32>
    %231 = arith.mulf %229, %230 : vector<128x32xf32>
    %232 = vector.broadcast %213 : vector<1x32xf32> to vector<128x32xf32>
    %233 = arith.addf %231, %232 : vector<128x32xf32>
    %c0_94 = arith.constant 0 : index
    %c0_95 = arith.constant 0 : index
    %234 = vector.load %arg19[%c0_94, %c0_95] : memref<32x256xf32, #tpu.memory_space<vmem>>, vector<32x256xf32>
    %cst_96 = arith.constant dense<0.000000e+00> : vector<128x256xf32>
    %235 = tpu.matmul %233, %234, %cst_96 {dimension_numbers = #tpu.dot_dimension_numbers<[1], [0], [0], [1], [0, 0, 1, 1], [], []>} : vector<128x32xf32>, vector<32x256xf32>, vector<128x256xf32> -> vector<128x256xf32>
    %c0_97 = arith.constant 0 : index
    %c0_98 = arith.constant 0 : index
    %236 = vector.load %arg20[%c0_97, %c0_98] : memref<1x256xf32, #tpu.memory_space<vmem>>, vector<1x256xf32>
    %237 = vector.broadcast %236 : vector<1x256xf32> to vector<128x256xf32>
    %238 = arith.addf %235, %237 : vector<128x256xf32>
    %239 = vector.extract_strided_slice %238 {offsets = [0, 0], sizes = [128, 128], strides = [1, 1]} : vector<128x256xf32> to vector<128x128xf32>
    %240 = vector.extract_strided_slice %238 {offsets = [0, 128], sizes = [128, 128], strides = [1, 1]} : vector<128x256xf32> to vector<128x128xf32>
    %cst_99 = arith.constant 5.000000e-01 : f32
    %241 = vector.broadcast %cst_99 : f32 to vector<128x128xf32>
    %242 = arith.mulf %241, %240 : vector<128x128xf32>
    %cst_100 = arith.constant 0.707106769 : f32
    %243 = vector.broadcast %cst_100 : f32 to vector<128x128xf32>
    %244 = arith.mulf %240, %243 : vector<128x128xf32>
    %cst_101 = arith.constant 0.000000e+00 : f32
    %245 = vector.broadcast %cst_101 : f32 to vector<128x128xf32>
    %246 = arith.cmpf oge, %244, %245 : vector<128x128xf32>
    %cst_102 = arith.constant 1.000000e+00 : f32
    %cst_103 = arith.constant -1.000000e+00 : f32
    %247 = vector.broadcast %cst_102 : f32 to vector<128x128xf32>
    %248 = vector.broadcast %cst_103 : f32 to vector<128x128xf32>
    %249 = arith.select %246, %247, %248 : vector<128x128xi1>, vector<128x128xf32>
    %250 = math.absf %244 : vector<128x128xf32>
    %cst_104 = arith.constant 0.327591091 : f32
    %251 = vector.broadcast %cst_104 : f32 to vector<128x128xf32>
    %252 = arith.mulf %251, %250 : vector<128x128xf32>
    %cst_105 = arith.constant 1.000000e+00 : f32
    %253 = vector.broadcast %cst_105 : f32 to vector<128x128xf32>
    %254 = arith.addf %253, %252 : vector<128x128xf32>
    %cst_106 = arith.constant 1.000000e+00 : f32
    %255 = vector.broadcast %cst_106 : f32 to vector<128x128xf32>
    %256 = arith.divf %255, %254 : vector<128x128xf32>
    %cst_107 = arith.constant 1.06140542 : f32
    %257 = vector.broadcast %cst_107 : f32 to vector<128x128xf32>
    %258 = arith.mulf %257, %256 : vector<128x128xf32>
    %cst_108 = arith.constant -1.45315206 : f32
    %259 = vector.broadcast %cst_108 : f32 to vector<128x128xf32>
    %260 = arith.addf %258, %259 : vector<128x128xf32>
    %261 = arith.mulf %260, %256 : vector<128x128xf32>
    %cst_109 = arith.constant 1.42141378 : f32
    %262 = vector.broadcast %cst_109 : f32 to vector<128x128xf32>
    %263 = arith.addf %261, %262 : vector<128x128xf32>
    %264 = arith.mulf %263, %256 : vector<128x128xf32>
    %cst_110 = arith.constant -0.284496725 : f32
    %265 = vector.broadcast %cst_110 : f32 to vector<128x128xf32>
    %266 = arith.addf %264, %265 : vector<128x128xf32>
    %267 = arith.mulf %266, %256 : vector<128x128xf32>
    %cst_111 = arith.constant 0.254829586 : f32
    %268 = vector.broadcast %cst_111 : f32 to vector<128x128xf32>
    %269 = arith.addf %267, %268 : vector<128x128xf32>
    %270 = arith.mulf %269, %256 : vector<128x128xf32>
    %cst_112 = arith.constant 0.000000e+00 : f32
    %271 = vector.broadcast %cst_112 : f32 to vector<128x128xf32>
    %272 = arith.subf %271, %250 : vector<128x128xf32>
    %273 = arith.mulf %272, %250 : vector<128x128xf32>
    %274 = math.exp %273 : vector<128x128xf32>
    %275 = arith.mulf %270, %274 : vector<128x128xf32>
    %cst_113 = arith.constant 1.000000e+00 : f32
    %276 = vector.broadcast %cst_113 : f32 to vector<128x128xf32>
    %277 = arith.subf %276, %275 : vector<128x128xf32>
    %278 = arith.mulf %249, %277 : vector<128x128xf32>
    %cst_114 = arith.constant 1.000000e+00 : f32
    %279 = vector.broadcast %cst_114 : f32 to vector<128x128xf32>
    %280 = arith.addf %279, %278 : vector<128x128xf32>
    %281 = arith.mulf %242, %280 : vector<128x128xf32>
    %282 = arith.mulf %239, %281 : vector<128x128xf32>
    %c0_115 = arith.constant 0 : index
    %c0_116 = arith.constant 0 : index
    %283 = vector.load %arg21[%c0_115, %c0_116] : memref<128x32xf32, #tpu.memory_space<vmem>>, vector<128x32xf32>
    %cst_117 = arith.constant dense<0.000000e+00> : vector<128x32xf32>
    %284 = tpu.matmul %282, %283, %cst_117 {dimension_numbers = #tpu.dot_dimension_numbers<[1], [0], [0], [1], [0, 0, 1, 1], [], []>} : vector<128x128xf32>, vector<128x32xf32>, vector<128x32xf32> -> vector<128x32xf32>
    %c0_118 = arith.constant 0 : index
    %c0_119 = arith.constant 0 : index
    %285 = vector.load %arg22[%c0_118, %c0_119] : memref<1x32xf32, #tpu.memory_space<vmem>>, vector<1x32xf32>
    %286 = vector.broadcast %285 : vector<1x32xf32> to vector<128x32xf32>
    %287 = arith.addf %284, %286 : vector<128x32xf32>
    %288 = arith.addf %287, %211 : vector<128x32xf32>
    %c0_120 = arith.constant 0 : index
    %c0_121 = arith.constant 0 : index
    %289 = vector.load %arg23[%c0_120, %c0_121] : memref<32x32xf32, #tpu.memory_space<vmem>>, vector<32x32xf32>
    %cst_122 = arith.constant dense<0.000000e+00> : vector<128x32xf32>
    %290 = tpu.matmul %288, %289, %cst_122 {dimension_numbers = #tpu.dot_dimension_numbers<[1], [0], [0], [1], [0, 0, 1, 1], [], []>} : vector<128x32xf32>, vector<32x32xf32>, vector<128x32xf32> -> vector<128x32xf32>
    %c0_123 = arith.constant 0 : index
    %c0_124 = arith.constant 0 : index
    %291 = vector.load %arg24[%c0_123, %c0_124] : memref<1x32xf32, #tpu.memory_space<vmem>>, vector<1x32xf32>
    %292 = vector.broadcast %291 : vector<1x32xf32> to vector<128x32xf32>
    %293 = arith.addf %290, %292 : vector<128x32xf32>
    %294 = arith.addf %293, %0 : vector<128x32xf32>
    %c0_125 = arith.constant 0 : index
    %c0_126 = arith.constant 0 : index
    %295 = vector.load %arg25[%c0_125, %c0_126] : memref<128x32xf32, #tpu.memory_space<vmem>>, vector<128x32xf32>
    tpu.vector_store %arg25[%c0_125, %c0_126], %294 {strides = array<i32>} : memref<128x32xf32, #tpu.memory_space<vmem>>, vector<128x32xf32>,
    return
  }
  func.func @transform_0(%arg0: i32) -> (i32, i32) {
    %c0_i32 = arith.constant 0 : i32
    %c0_i32_0 = arith.constant 0 : i32
    return %arg0, %c0_i32 : i32, i32
  }
  func.func @transform_1(%arg0: i32) -> (i32, i32) {
    %c0_i32 = arith.constant 0 : i32
    %c0_i32_0 = arith.constant 0 : i32
    %c0_i32_1 = arith.constant 0 : i32
    return %c0_i32, %c0_i32_0 : i32, i32
  }
  func.func @transform_2(%arg0: i32) -> (i32, i32) {
    %c0_i32 = arith.constant 0 : i32
    %c0_i32_0 = arith.constant 0 : i32
    %c0_i32_1 = arith.constant 0 : i32
    return %c0_i32, %c0_i32_0 : i32, i32
  }
  func.func @transform_3(%arg0: i32) -> (i32, i32) {
    %c0_i32 = arith.constant 0 : i32
    %c0_i32_0 = arith.constant 0 : i32
    %c0_i32_1 = arith.constant 0 : i32
    return %c0_i32, %c0_i32_0 : i32, i32
  }
  func.func @transform_4(%arg0: i32) -> (i32, i32) {
    %c0_i32 = arith.constant 0 : i32
    %c0_i32_0 = arith.constant 0 : i32
    %c0_i32_1 = arith.constant 0 : i32
    return %c0_i32, %c0_i32_0 : i32, i32
  }
  func.func @transform_5(%arg0: i32) -> (i32, i32) {
    %c0_i32 = arith.constant 0 : i32
    %c0_i32_0 = arith.constant 0 : i32
    %c0_i32_1 = arith.constant 0 : i32
    return %c0_i32, %c0_i32_0 : i32, i32
  }
  func.func @transform_6(%arg0: i32) -> (i32, i32) {
    %c0_i32 = arith.constant 0 : i32
    %c0_i32_0 = arith.constant 0 : i32
    %c0_i32_1 = arith.constant 0 : i32
    return %c0_i32, %c0_i32_0 : i32, i32
  }
  func.func @transform_7(%arg0: i32) -> (i32, i32) {
    %c0_i32 = arith.constant 0 : i32
    %c0_i32_0 = arith.constant 0 : i32
    %c0_i32_1 = arith.constant 0 : i32
    return %c0_i32, %c0_i32_0 : i32, i32
  }
  func.func @transform_8(%arg0: i32) -> (i32, i32) {
    %c0_i32 = arith.constant 0 : i32
    %c0_i32_0 = arith.constant 0 : i32
    %c0_i32_1 = arith.constant 0 : i32
    return %c0_i32, %c0_i32_0 : i32, i32
  }
  func.func @transform_9(%arg0: i32) -> (i32, i32) {
    %c0_i32 = arith.constant 0 : i32
    %c0_i32_0 = arith.constant 0 : i32
    %c0_i32_1 = arith.constant 0 : i32
    return %c0_i32, %c0_i32_0 : i32, i32
  }
  func.func @transform_10(%arg0: i32) -> (i32, i32) {
    %c0_i32 = arith.constant 0 : i32
    %c0_i32_0 = arith.constant 0 : i32
    %c0_i32_1 = arith.constant 0 : i32
    return %c0_i32, %c0_i32_0 : i32, i32
  }
  func.func @transform_11(%arg0: i32) -> (i32, i32) {
    %c0_i32 = arith.constant 0 : i32
    %c0_i32_0 = arith.constant 0 : i32
    %c0_i32_1 = arith.constant 0 : i32
    return %c0_i32, %c0_i32_0 : i32, i32
  }
  func.func @transform_12(%arg0: i32) -> (i32, i32) {
    %c0_i32 = arith.constant 0 : i32
    %c0_i32_0 = arith.constant 0 : i32
    %c0_i32_1 = arith.constant 0 : i32
    return %c0_i32, %c0_i32_0 : i32, i32
  }
  func.func @transform_13(%arg0: i32) -> (i32, i32) {
    %c0_i32 = arith.constant 0 : i32
    %c0_i32_0 = arith.constant 0 : i32
    %c0_i32_1 = arith.constant 0 : i32
    return %c0_i32, %c0_i32_0 : i32, i32
  }
  func.func @transform_14(%arg0: i32) -> (i32, i32) {
    %c0_i32 = arith.constant 0 : i32
    %c0_i32_0 = arith.constant 0 : i32
    %c0_i32_1 = arith.constant 0 : i32
    return %c0_i32, %c0_i32_0 : i32, i32
  }
  func.func @transform_15(%arg0: i32) -> (i32, i32) {
    %c0_i32 = arith.constant 0 : i32
    %c0_i32_0 = arith.constant 0 : i32
    %c0_i32_1 = arith.constant 0 : i32
    return %c0_i32, %c0_i32_0 : i32, i32
  }
  func.func @transform_16(%arg0: i32) -> (i32, i32) {
    %c0_i32 = arith.constant 0 : i32
    %c0_i32_0 = arith.constant 0 : i32
    %c0_i32_1 = arith.constant 0 : i32
    return %c0_i32, %c0_i32_0 : i32, i32
  }
  func.func @transform_17(%arg0: i32) -> (i32, i32) {
    %c0_i32 = arith.constant 0 : i32
    %c0_i32_0 = arith.constant 0 : i32
    %c0_i32_1 = arith.constant 0 : i32
    return %c0_i32, %c0_i32_0 : i32, i32
  }
  func.func @transform_18(%arg0: i32) -> (i32, i32) {
    %c0_i32 = arith.constant 0 : i32
    %c0_i32_0 = arith.constant 0 : i32
    %c0_i32_1 = arith.constant 0 : i32
    return %c0_i32, %c0_i32_0 : i32, i32
  }
  func.func @transform_19(%arg0: i32) -> (i32, i32) {
    %c0_i32 = arith.constant 0 : i32
    %c0_i32_0 = arith.constant 0 : i32
    %c0_i32_1 = arith.constant 0 : i32
    return %c0_i32, %c0_i32_0 : i32, i32
  }
  func.func @transform_20(%arg0: i32) -> (i32, i32) {
    %c0_i32 = arith.constant 0 : i32
    %c0_i32_0 = arith.constant 0 : i32
    %c0_i32_1 = arith.constant 0 : i32
    return %c0_i32, %c0_i32_0 : i32, i32
  }
  func.func @transform_21(%arg0: i32) -> (i32, i32) {
    %c0_i32 = arith.constant 0 : i32
    %c0_i32_0 = arith.constant 0 : i32
    %c0_i32_1 = arith.constant 0 : i32
    return %c0_i32, %c0_i32_0 : i32, i32
  }
  func.func @transform_22(%arg0: i32) -> (i32, i32) {
    %c0_i32 = arith.constant 0 : i32
    %c0_i32_0 = arith.constant 0 : i32
    %c0_i32_1 = arith.constant 0 : i32
    return %c0_i32, %c0_i32_0 : i32, i32
  }
  func.func @transform_23(%arg0: i32) -> (i32, i32) {
    %c0_i32 = arith.constant 0 : i32
    %c0_i32_0 = arith.constant 0 : i32
    %c0_i32_1 = arith.constant 0 : i32
    return %c0_i32, %c0_i32_0 : i32, i32
  }
  func.func @transform_24(%arg0: i32) -> (i32, i32) {
    %c0_i32 = arith.constant 0 : i32
    %c0_i32_0 = arith.constant 0 : i32
    return %arg0, %c0_i32 : i32, i32
  }
}

</mosaic_0001>

<llo_original>
// kernel: spatial_transformer_3d.1
$region0: #{spatial_transformer_3d.1}
  #allocation0 [shape = 'u32[]', space=smem, size = 0x4, offset = 0x4, fixed_abs, tag = 'smem constant byte address 0x4 - core index']
  #allocation1 [shape = 'u32[144,128]{1,0:T(1,128)}', space=vmem, size = 0x12000, scoped, tag = 'internal scratch']
  %s0 = inlined_call_operand.hbm [shape: f32[256,32], index: 0, kind: input, shape index: {}]
  %s1 = inlined_call_operand.hbm [shape: f32[32,32], index: 1, kind: input, shape index: {}]
  %s2 = inlined_call_operand.hbm [shape: f32[1,32], index: 2, kind: input, shape index: {}]
  %s3 = inlined_call_operand.hbm [shape: f32[1,32], index: 3, kind: input, shape index: {}]
  %s4 = inlined_call_operand.vmem [shape: f32[32,32], index: 4, kind: input, shape index: {}]
  %s5 = inlined_call_operand.vmem [shape: f32[1,32], index: 5, kind: input, shape index: {}]
  %s6 = inlined_call_operand.hbm [shape: f32[1,32], index: 6, kind: input, shape index: {}]
  %s7 = inlined_call_operand.hbm [shape: f32[1,32], index: 7, kind: input, shape index: {}]
  %s8 = inlined_call_operand.vmem [shape: f32[32,96], index: 8, kind: input, shape index: {}]
  %s9 = inlined_call_operand.vmem [shape: f32[32,32], index: 9, kind: input, shape index: {}]
  %s10 = inlined_call_operand.hbm [shape: f32[1,32], index: 10, kind: input, shape index: {}]
  %s11 = inlined_call_operand.hbm [shape: f32[1,32], index: 11, kind: input, shape index: {}]
  %s12 = inlined_call_operand.hbm [shape: f32[1,32], index: 12, kind: input, shape index: {}]
  %s13 = inlined_call_operand.hbm [shape: f32[32,96], index: 13, kind: input, shape index: {}]
  %s14 = inlined_call_operand.hbm [shape: f32[32,32], index: 14, kind: input, shape index: {}]
  %s15 = inlined_call_operand.hbm [shape: f32[1,32], index: 15, kind: input, shape index: {}]
  %s16 = inlined_call_operand.vmem [shape: f32[1,32], index: 16, kind: input, shape index: {}]
  %s17 = inlined_call_operand.vmem [shape: f32[1,32], index: 17, kind: input, shape index: {}]
  %s18 = inlined_call_operand.vmem [shape: f32[32,256], index: 18, kind: input, shape index: {}]
  %s19 = inlined_call_operand.hbm [shape: f32[1,256], index: 19, kind: input, shape index: {}]
  %s20 = inlined_call_operand.vmem [shape: f32[128,32], index: 20, kind: input, shape index: {}]
  %s21 = inlined_call_operand.hbm [shape: f32[1,32], index: 21, kind: input, shape index: {}]
  %s22 = inlined_call_operand.vmem [shape: f32[32,32], index: 22, kind: input, shape index: {}]
  %s23 = inlined_call_operand.vmem [shape: f32[1,32], index: 23, kind: input, shape index: {}]
  %s24 = inlined_call_operand.hbm [shape: f32[256,32], index: 24, kind: output, shape index: {}]
  %s25 = sld [smem:[#allocation0]]
  $region185: #{spatial_transformer_3d.1} parent=0
    _
  %s27 = ssub.s32 1, %s25
  %s28 = scalar_select 0, %s27, %s25
  $region1: #{spatial_transformer_3d.1} parent=0
    #allocation2 [shape = 'u8[131072]{0}', space=vmem, size = 0x20000, scoped, tag = 'input window, operand 0']
    #allocation3 [shape = 's32[2]{0}', space=sflag, size = 0x8, scoped, tag = 'scoped memory for spatial_transformer_3d.1']
    #allocation4 [shape = 's32[2]{0}', space=sflag, size = 0x8, scoped, tag = 'scoped memory for spatial_transformer_3d.1']
    #allocation5 [shape = 'u8[16384]{0}', space=vmem, size = 0x4000, scoped, tag = 'input window, operand 1, single buffered']
    #allocation6 [shape = 's32[1]{0}', space=sflag, size = 0x4, scoped, tag = 'scoped memory for spatial_transformer_3d.1']
    #allocation7 [shape = 'u8[512]{0}', space=vmem, size = 0x400, scoped, tag = 'input window, operand 2, single buffered']
    #allocation8 [shape = 'u8[512]{0}', space=vmem, size = 0x400, scoped, tag = 'input window, operand 3, single buffered']
    #allocation9 [shape = 's32[1]{0}', space=sflag, size = 0x4, scoped, tag = 'scoped memory for spatial_transformer_3d.1']
    #allocation10 [shape = 'u8[512]{0}', space=vmem, size = 0x400, scoped, tag = 'input window, operand 6, single buffered']
    #allocation11 [shape = 'u8[512]{0}', space=vmem, size = 0x400, scoped, tag = 'input window, operand 7, single buffered']
    #allocation12 [shape = 's32[1]{0}', space=sflag, size = 0x4, scoped, tag = 'scoped memory for spatial_transformer_3d.1']
    #allocation13 [shape = 'u8[512]{0}', space=vmem, size = 0x400, scoped, tag = 'input window, operand 10, single buffered']
    #allocation14 [shape = 'u8[512]{0}', space=vmem, size = 0x400, scoped, tag = 'input window, operand 11, single buffered']
    #allocation15 [shape = 's32[1]{0}', space=sflag, size = 0x4, scoped, tag = 'scoped memory for spatial_transformer_3d.1']
    #allocation16 [shape = 'u8[512]{0}', space=vmem, size = 0x400, scoped, tag = 'input window, operand 12, single buffered']
    #allocation17 [shape = 'u8[16384]{0}', space=vmem, size = 0x4000, scoped, tag = 'input window, operand 13, single buffered']
    #allocation18 [shape = 's32[1]{0}', space=sflag, size = 0x4, scoped, tag = 'scoped memory for spatial_transformer_3d.1']
    #allocation19 [shape = 'u8[16384]{0}', space=vmem, size = 0x4000, scoped, tag = 'input window, operand 14, single buffered']
    #allocation20 [shape = 'u8[512]{0}', space=vmem, size = 0x400, scoped, tag = 'input window, operand 15, single buffered']
    #allocation21 [shape = 's32[1]{0}', space=sflag, size = 0x4, scoped, tag = 'scoped memory for spatial_transformer_3d.1']
    #allocation22 [shape = 'u8[1024]{0}', space=vmem, size = 0x400, scoped, tag = 'input window, operand 19, single buffered']
    #allocation23 [shape = 'u8[512]{0}', space=vmem, size = 0x400, scoped, tag = 'input window, operand 21, single buffered']
    #allocation24 [shape = 's32[1]{0}', space=sflag, size = 0x4, scoped, tag = 'scoped memory for spatial_transformer_3d.1']
    #allocation25 [shape = 'u8[131072]{0}', space=vmem, size = 0x20000, scoped, tag = 'output window, operand 0']
    %29 = vsyncpa [#allocation3], 0
    %s30 = scalar_lea.sflag [#allocation3], 1
    %31 = vsyncpa %s30, 0
    %32 = vsyncpa [#allocation6], 0
    %33 = vsyncpa [#allocation9], 0
    %34 = vsyncpa [#allocation12], 0
    %35 = vsyncpa [#allocation15], 0
    %36 = vsyncpa [#allocation18], 0
    %37 = vsyncpa [#allocation21], 0
    %38 = vsyncpa [#allocation24], 0
    %39 = vsyncpa [#allocation4], 0
    %s40 = scalar_lea.sflag [#allocation4], 1
    %41 = vsyncpa %s40, 0
    loop: start=0, step=1, limit=4
    $region2: #{spatial_transformer_3d.1} parent=1 // loop_pre_header
      _
    $region3: #{spatial_transformer_3d.1} parent=1 // loop_header
      %s43 = sphi 0, %s47
      %p44 = scmp.ge.s32.totalorder %s43, 4
      %s53 = sphi 0, %s55
      %s56 = sphi 0, %s53
      %s57 = sphi 0, %s56
      %s73 = sphi 0, %s57
      %s77 = sphi 0, %s77
      %s79 = sphi 0, %s77
      %s80 = sphi 0, %s79
      %s94 = sphi 0, %s80
      %s98 = sphi 0, %s98
      %s100 = sphi 0, %s98
      %s101 = sphi 0, %s100
      %s115 = sphi 0, %s101
      %s119 = sphi 0, %s119
      %s121 = sphi 0, %s119
      %s122 = sphi 0, %s121
      %s136 = sphi 0, %s122
      %s140 = sphi 0, %s140
      %s142 = sphi 0, %s140
      %s143 = sphi 0, %s142
      %s157 = sphi 0, %s143
      %s161 = sphi 0, %s161
      %s163 = sphi 0, %s161
      %s164 = sphi 0, %s163
      %s178 = sphi 0, %s164
      %s182 = sphi 0, %s182
      %s184 = sphi 0, %s182
      %s185 = sphi 0, %s184
      %s199 = sphi 0, %s185
      %s203 = sphi 0, %s203
      %s205 = sphi 0, %s203
      %s206 = sphi 0, %s205
      %s220 = sphi 0, %s206
      %s224 = sphi 0, %s224
      %s226 = sphi 0, %s224
      %s227 = sphi 0, %s226
      %s241 = sphi 0, %s227
      %s245 = sphi 0, %s245
      %s247 = sphi 0, %s245
      %s248 = sphi 0, %s247
      %s262 = sphi 0, %s248
      %s266 = sphi 0, %s266
      %s268 = sphi 0, %s266
      %s269 = sphi 0, %s268
      %s283 = sphi 0, %s269
      %s287 = sphi 0, %s287
      %s289 = sphi 0, %s287
      %s290 = sphi 0, %s289
      %s304 = sphi 0, %s290
      %s308 = sphi 0, %s308
      %s310 = sphi 0, %s308
      %s311 = sphi 0, %s310
      %s325 = sphi 0, %s311
      %s329 = sphi 0, %s329
      %s331 = sphi 0, %s329
      %s332 = sphi 0, %s331
      %s346 = sphi 0, %s332
      %s350 = sphi 0, %s350
      %s352 = sphi 0, %s350
      %s353 = sphi 0, %s352
      %s367 = sphi 0, %s353
      %s371 = sphi 0, %s371
      %s373 = sphi 0, %s371
      %s374 = sphi 0, %s373
      %s388 = sphi 0, %s374
      %s392 = sphi 0, %s392
      %s394 = sphi 0, %s392
      %s395 = sphi 0, %s394
      %s409 = sphi 0, %s395
      %s413 = sphi 0, %s413
      %s415 = sphi 0, %s413
      %s416 = sphi 0, %s415
      %s430 = sphi 0, %s416
      %s434 = sphi 0, %s434
      %s436 = sphi 0, %s434
      %s437 = sphi 0, %s436
      %s451 = sphi 0, %s437
      %s455 = sphi 0, %s455
      %s457 = sphi 0, %s455
      %s458 = sphi 0, %s457
      %s472 = sphi 0, %s458
      %s476 = sphi 0, %s476
      %s478 = sphi 0, %s476
      %s479 = sphi 0, %s478
      %s493 = sphi 0, %s479
      %s497 = sphi 0, %s497
      %s499 = sphi 0, %s497
      %s500 = sphi 0, %s499
      %s514 = sphi 0, %s500
      %s518 = sphi 0, %s518
      %s520 = sphi 0, %s518
      %s521 = sphi 0, %s520
      %s535 = sphi 0, %s521
      %s539 = sphi 0, %s539
      %s541 = sphi 0, %s539
      %s542 = sphi 0, %s541
      %s556 = sphi 0, %s542
      %s562 = sphi 0, %s564
      %s565 = sphi 0, %s562
      %s566 = sphi 0, %s565
      %s582 = sphi 0, %s566
    $region4: #{spatial_transformer_3d.1} parent=1 // loop_header_branch
      %46 = sbr.rel (%p44) target = $region8
    $region5: #{spatial_transformer_3d.1} parent=1 // loop_body
      %s48 = ssub.s32 %s43, 1
      %s49 = ssub.s32 %s43, 2
      %s50 = sadd.s32 %s43, 1
      %s51 = ssub.s32 %s43, %s50
      %p52 = scmp.eq.s32.totalorder %s51, 0
      %s54 = sadd.s32 %s53, 1
      %s55 = scalar_select %p52, %s53, %s54
      %p58 = pneg %p52
      %p59 = scmp.eq.s32.totalorder %s43, 1
      %p60 = por %p58, %p59
      %p61 = scmp.ne.s32.totalorder %s53, %s56
      %p62 = scmp.eq.s32.totalorder %s43, 0
      %p63 = por %p61, %p62
      %p64 = scmp.ne.s32.totalorder %s53, %s56
      %p65 = scmp.eq.s32.totalorder %s48, 1
      %p66 = por %p64, %p65
      %p67 = scmp.ne.s32.totalorder %s56, %s57
      %p68 = scmp.eq.s32.totalorder %s48, 0
      %p69 = por %p67, %p68
      %p70 = scmp.ne.s32.totalorder %s56, %s57
      %p71 = scmp.eq.s32.totalorder %s49, 1
      %p72 = por %p70, %p71
      %p74 = scmp.ne.s32.totalorder %s57, %s73
      %p75 = scmp.eq.s32.totalorder %s49, 0
      %p76 = por %p74, %p75
      %s78 = sadd.s32 %s77, 1
      %p81 = scmp.eq.s32.totalorder %s43, 1
      %p82 = scmp.ne.s32.totalorder %s77, %s79
      %p83 = scmp.eq.s32.totalorder %s43, 0
      %p84 = por %p82, %p83
      %p85 = scmp.ne.s32.totalorder %s77, %s79
      %p86 = scmp.eq.s32.totalorder %s48, 1
      %p87 = por %p85, %p86
      %p88 = scmp.ne.s32.totalorder %s79, %s80
      %p89 = scmp.eq.s32.totalorder %s48, 0
      %p90 = por %p88, %p89
      %p91 = scmp.ne.s32.totalorder %s79, %s80
      %p92 = scmp.eq.s32.totalorder %s49, 1
      %p93 = por %p91, %p92
      %p95 = scmp.ne.s32.totalorder %s80, %s94
      %p96 = scmp.eq.s32.totalorder %s49, 0
      %p97 = por %p95, %p96
      %s99 = sadd.s32 %s98, 1
      %p102 = scmp.eq.s32.totalorder %s43, 1
      %p103 = scmp.ne.s32.totalorder %s98, %s100
      %p104 = scmp.eq.s32.totalorder %s43, 0
      %p105 = por %p103, %p104
      %p106 = scmp.ne.s32.totalorder %s98, %s100
      %p107 = scmp.eq.s32.totalorder %s48, 1
      %p108 = por %p106, %p107
      %p109 = scmp.ne.s32.totalorder %s100, %s101
      %p110 = scmp.eq.s32.totalorder %s48, 0
      %p111 = por %p109, %p110
      %p112 = scmp.ne.s32.totalorder %s100, %s101
      %p113 = scmp.eq.s32.totalorder %s49, 1
      %p114 = por %p112, %p113
      %p116 = scmp.ne.s32.totalorder %s101, %s115
      %p117 = scmp.eq.s32.totalorder %s49, 0
      %p118 = por %p116, %p117
      %s120 = sadd.s32 %s119, 1
      %p123 = scmp.eq.s32.totalorder %s43, 1
      %p124 = scmp.ne.s32.totalorder %s119, %s121
      %p125 = scmp.eq.s32.totalorder %s43, 0
      %p126 = por %p124, %p125
      %p127 = scmp.ne.s32.totalorder %s119, %s121
      %p128 = scmp.eq.s32.totalorder %s48, 1
      %p129 = por %p127, %p128
      %p130 = scmp.ne.s32.totalorder %s121, %s122
      %p131 = scmp.eq.s32.totalorder %s48, 0
      %p132 = por %p130, %p131
      %p133 = scmp.ne.s32.totalorder %s121, %s122
      %p134 = scmp.eq.s32.totalorder %s49, 1
      %p135 = por %p133, %p134
      %p137 = scmp.ne.s32.totalorder %s122, %s136
      %p138 = scmp.eq.s32.totalorder %s49, 0
      %p139 = por %p137, %p138
      %s141 = sadd.s32 %s140, 1
      %p144 = scmp.eq.s32.totalorder %s43, 1
      %p145 = scmp.ne.s32.totalorder %s140, %s142
      %p146 = scmp.eq.s32.totalorder %s43, 0
      %p147 = por %p145, %p146
      %p148 = scmp.ne.s32.totalorder %s140, %s142
      %p149 = scmp.eq.s32.totalorder %s48, 1
      %p150 = por %p148, %p149
      %p151 = scmp.ne.s32.totalorder %s142, %s143
      %p152 = scmp.eq.s32.totalorder %s48, 0
      %p153 = por %p151, %p152
      %p154 = scmp.ne.s32.totalorder %s142, %s143
      %p155 = scmp.eq.s32.totalorder %s49, 1
      %p156 = por %p154, %p155
      %p158 = scmp.ne.s32.totalorder %s143, %s157
      %p159 = scmp.eq.s32.totalorder %s49, 0
      %p160 = por %p158, %p159
      %s162 = sadd.s32 %s161, 1
      %p165 = scmp.eq.s32.totalorder %s43, 1
      %p166 = scmp.ne.s32.totalorder %s161, %s163
      %p167 = scmp.eq.s32.totalorder %s43, 0
      %p168 = por %p166, %p167
      %p169 = scmp.ne.s32.totalorder %s161, %s163
      %p170 = scmp.eq.s32.totalorder %s48, 1
      %p171 = por %p169, %p170
      %p172 = scmp.ne.s32.totalorder %s163, %s164
      %p173 = scmp.eq.s32.totalorder %s48, 0
      %p174 = por %p172, %p173
      %p175 = scmp.ne.s32.totalorder %s163, %s164
      %p176 = scmp.eq.s32.totalorder %s49, 1
      %p177 = por %p175, %p176
      %p179 = scmp.ne.s32.totalorder %s164, %s178
      %p180 = scmp.eq.s32.totalorder %s49, 0
      %p181 = por %p179, %p180
      %s183 = sadd.s32 %s182, 1
      %p186 = scmp.eq.s32.totalorder %s43, 1
      %p187 = scmp.ne.s32.totalorder %s182, %s184
      %p188 = scmp.eq.s32.totalorder %s43, 0
      %p189 = por %p187, %p188
      %p190 = scmp.ne.s32.totalorder %s182, %s184
      %p191 = scmp.eq.s32.totalorder %s48, 1
      %p192 = por %p190, %p191
      %p193 = scmp.ne.s32.totalorder %s184, %s185
      %p194 = scmp.eq.s32.totalorder %s48, 0
      %p195 = por %p193, %p194
      %p196 = scmp.ne.s32.totalorder %s184, %s185
      %p197 = scmp.eq.s32.totalorder %s49, 1
      %p198 = por %p196, %p197
      %p200 = scmp.ne.s32.totalorder %s185, %s199
      %p201 = scmp.eq.s32.totalorder %s49, 0
      %p202 = por %p200, %p201
      %s204 = sadd.s32 %s203, 1
      %p207 = scmp.eq.s32.totalorder %s43, 1
      %p208 = scmp.ne.s32.totalorder %s203, %s205
      %p209 = scmp.eq.s32.totalorder %s43, 0
      %p210 = por %p208, %p209
      %p211 = scmp.ne.s32.totalorder %s203, %s205
      %p212 = scmp.eq.s32.totalorder %s48, 1
      %p213 = por %p211, %p212
      %p214 = scmp.ne.s32.totalorder %s205, %s206
      %p215 = scmp.eq.s32.totalorder %s48, 0
      %p216 = por %p214, %p215
      %p217 = scmp.ne.s32.totalorder %s205, %s206
      %p218 = scmp.eq.s32.totalorder %s49, 1
      %p219 = por %p217, %p218
      %p221 = scmp.ne.s32.totalorder %s206, %s220
      %p222 = scmp.eq.s32.totalorder %s49, 0
      %p223 = por %p221, %p222
      %s225 = sadd.s32 %s224, 1
      %p228 = scmp.eq.s32.totalorder %s43, 1
      %p229 = scmp.ne.s32.totalorder %s224, %s226
      %p230 = scmp.eq.s32.totalorder %s43, 0
      %p231 = por %p229, %p230
      %p232 = scmp.ne.s32.totalorder %s224, %s226
      %p233 = scmp.eq.s32.totalorder %s48, 1
      %p234 = por %p232, %p233
      %p235 = scmp.ne.s32.totalorder %s226, %s227
      %p236 = scmp.eq.s32.totalorder %s48, 0
      %p237 = por %p235, %p236
      %p238 = scmp.ne.s32.totalorder %s226, %s227
      %p239 = scmp.eq.s32.totalorder %s49, 1
      %p240 = por %p238, %p239
      %p242 = scmp.ne.s32.totalorder %s227, %s241
      %p243 = scmp.eq.s32.totalorder %s49, 0
      %p244 = por %p242, %p243
      %s246 = sadd.s32 %s245, 1
      %p249 = scmp.eq.s32.totalorder %s43, 1
      %p250 = scmp.ne.s32.totalorder %s245, %s247
      %p251 = scmp.eq.s32.totalorder %s43, 0
      %p252 = por %p250, %p251
      %p253 = scmp.ne.s32.totalorder %s245, %s247
      %p254 = scmp.eq.s32.totalorder %s48, 1
      %p255 = por %p253, %p254
      %p256 = scmp.ne.s32.totalorder %s247, %s248
      %p257 = scmp.eq.s32.totalorder %s48, 0
      %p258 = por %p256, %p257
      %p259 = scmp.ne.s32.totalorder %s247, %s248
      %p260 = scmp.eq.s32.totalorder %s49, 1
      %p261 = por %p259, %p260
      %p263 = scmp.ne.s32.totalorder %s248, %s262
      %p264 = scmp.eq.s32.totalorder %s49, 0
      %p265 = por %p263, %p264
      %s267 = sadd.s32 %s266, 1
      %p270 = scmp.eq.s32.totalorder %s43, 1
      %p271 = scmp.ne.s32.totalorder %s266, %s268
      %p272 = scmp.eq.s32.totalorder %s43, 0
      %p273 = por %p271, %p272
      %p274 = scmp.ne.s32.totalorder %s266, %s268
      %p275 = scmp.eq.s32.totalorder %s48, 1
      %p276 = por %p274, %p275
      %p277 = scmp.ne.s32.totalorder %s268, %s269
      %p278 = scmp.eq.s32.totalorder %s48, 0
      %p279 = por %p277, %p278
      %p280 = scmp.ne.s32.totalorder %s268, %s269
      %p281 = scmp.eq.s32.totalorder %s49, 1
      %p282 = por %p280, %p281
      %p284 = scmp.ne.s32.totalorder %s269, %s283
      %p285 = scmp.eq.s32.totalorder %s49, 0
      %p286 = por %p284, %p285
      %s288 = sadd.s32 %s287, 1
      %p291 = scmp.eq.s32.totalorder %s43, 1
      %p292 = scmp.ne.s32.totalorder %s287, %s289
      %p293 = scmp.eq.s32.totalorder %s43, 0
      %p294 = por %p292, %p293
      %p295 = scmp.ne.s32.totalorder %s287, %s289
      %p296 = scmp.eq.s32.totalorder %s48, 1
      %p297 = por %p295, %p296
      %p298 = scmp.ne.s32.totalorder %s289, %s290
      %p299 = scmp.eq.s32.totalorder %s48, 0
      %p300 = por %p298, %p299
      %p301 = scmp.ne.s32.totalorder %s289, %s290
      %p302 = scmp.eq.s32.totalorder %s49, 1
      %p303 = por %p301, %p302
      %p305 = scmp.ne.s32.totalorder %s290, %s304
      %p306 = scmp.eq.s32.totalorder %s49, 0
      %p307 = por %p305, %p306
      %s309 = sadd.s32 %s308, 1
      %p312 = scmp.eq.s32.totalorder %s43, 1
      %p313 = scmp.ne.s32.totalorder %s308, %s310
      %p314 = scmp.eq.s32.totalorder %s43, 0
      %p315 = por %p313, %p314
      %p316 = scmp.ne.s32.totalorder %s308, %s310
      %p317 = scmp.eq.s32.totalorder %s48, 1
      %p318 = por %p316, %p317
      %p319 = scmp.ne.s32.totalorder %s310, %s311
      %p320 = scmp.eq.s32.totalorder %s48, 0
      %p321 = por %p319, %p320
      %p322 = scmp.ne.s32.totalorder %s310, %s311
      %p323 = scmp.eq.s32.totalorder %s49, 1
      %p324 = por %p322, %p323
      %p326 = scmp.ne.s32.totalorder %s311, %s325
      %p327 = scmp.eq.s32.totalorder %s49, 0
      %p328 = por %p326, %p327
      %s330 = sadd.s32 %s329, 1
      %p333 = scmp.eq.s32.totalorder %s43, 1
      %p334 = scmp.ne.s32.totalorder %s329, %s331
      %p335 = scmp.eq.s32.totalorder %s43, 0
      %p336 = por %p334, %p335
      %p337 = scmp.ne.s32.totalorder %s329, %s331
      %p338 = scmp.eq.s32.totalorder %s48, 1
      %p339 = por %p337, %p338
      %p340 = scmp.ne.s32.totalorder %s331, %s332
      %p341 = scmp.eq.s32.totalorder %s48, 0
      %p342 = por %p340, %p341
      %p343 = scmp.ne.s32.totalorder %s331, %s332
      %p344 = scmp.eq.s32.totalorder %s49, 1
      %p345 = por %p343, %p344
      %p347 = scmp.ne.s32.totalorder %s332, %s346
      %p348 = scmp.eq.s32.totalorder %s49, 0
      %p349 = por %p347, %p348
      %s351 = sadd.s32 %s350, 1
      %p354 = scmp.eq.s32.totalorder %s43, 1
      %p355 = scmp.ne.s32.totalorder %s350, %s352
      %p356 = scmp.eq.s32.totalorder %s43, 0
      %p357 = por %p355, %p356
      %p358 = scmp.ne.s32.totalorder %s350, %s352
      %p359 = scmp.eq.s32.totalorder %s48, 1
      %p360 = por %p358, %p359
      %p361 = scmp.ne.s32.totalorder %s352, %s353
      %p362 = scmp.eq.s32.totalorder %s48, 0
      %p363 = por %p361, %p362
      %p364 = scmp.ne.s32.totalorder %s352, %s353
      %p365 = scmp.eq.s32.totalorder %s49, 1
      %p366 = por %p364, %p365
      %p368 = scmp.ne.s32.totalorder %s353, %s367
      %p369 = scmp.eq.s32.totalorder %s49, 0
      %p370 = por %p368, %p369
      %s372 = sadd.s32 %s371, 1
      %p375 = scmp.eq.s32.totalorder %s43, 1
      %p376 = scmp.ne.s32.totalorder %s371, %s373
      %p377 = scmp.eq.s32.totalorder %s43, 0
      %p378 = por %p376, %p377
      %p379 = scmp.ne.s32.totalorder %s371, %s373
      %p380 = scmp.eq.s32.totalorder %s48, 1
      %p381 = por %p379, %p380
      %p382 = scmp.ne.s32.totalorder %s373, %s374
      %p383 = scmp.eq.s32.totalorder %s48, 0
      %p384 = por %p382, %p383
      %p385 = scmp.ne.s32.totalorder %s373, %s374
      %p386 = scmp.eq.s32.totalorder %s49, 1
      %p387 = por %p385, %p386
      %p389 = scmp.ne.s32.totalorder %s374, %s388
      %p390 = scmp.eq.s32.totalorder %s49, 0
      %p391 = por %p389, %p390
      %s393 = sadd.s32 %s392, 1
      %p396 = scmp.eq.s32.totalorder %s43, 1
      %p397 = scmp.ne.s32.totalorder %s392, %s394
      %p398 = scmp.eq.s32.totalorder %s43, 0
      %p399 = por %p397, %p398
      %p400 = scmp.ne.s32.totalorder %s392, %s394
      %p401 = scmp.eq.s32.totalorder %s48, 1
      %p402 = por %p400, %p401
      %p403 = scmp.ne.s32.totalorder %s394, %s395
      %p404 = scmp.eq.s32.totalorder %s48, 0
      %p405 = por %p403, %p404
      %p406 = scmp.ne.s32.totalorder %s394, %s395
      %p407 = scmp.eq.s32.totalorder %s49, 1
      %p408 = por %p406, %p407
      %p410 = scmp.ne.s32.totalorder %s395, %s409
      %p411 = scmp.eq.s32.totalorder %s49, 0
      %p412 = por %p410, %p411
      %s414 = sadd.s32 %s413, 1
      %p417 = scmp.eq.s32.totalorder %s43, 1
      %p418 = scmp.ne.s32.totalorder %s413, %s415
      %p419 = scmp.eq.s32.totalorder %s43, 0
      %p420 = por %p418, %p419
      %p421 = scmp.ne.s32.totalorder %s413, %s415
      %p422 = scmp.eq.s32.totalorder %s48, 1
      %p423 = por %p421, %p422
      %p424 = scmp.ne.s32.totalorder %s415, %s416
      %p425 = scmp.eq.s32.totalorder %s48, 0
      %p426 = por %p424, %p425
      %p427 = scmp.ne.s32.totalorder %s415, %s416
      %p428 = scmp.eq.s32.totalorder %s49, 1
      %p429 = por %p427, %p428
      %p431 = scmp.ne.s32.totalorder %s416, %s430
      %p432 = scmp.eq.s32.totalorder %s49, 0
      %p433 = por %p431, %p432
      %s435 = sadd.s32 %s434, 1
      %p438 = scmp.eq.s32.totalorder %s43, 1
      %p439 = scmp.ne.s32.totalorder %s434, %s436
      %p440 = scmp.eq.s32.totalorder %s43, 0
      %p441 = por %p439, %p440
      %p442 = scmp.ne.s32.totalorder %s434, %s436
      %p443 = scmp.eq.s32.totalorder %s48, 1
      %p444 = por %p442, %p443
      %p445 = scmp.ne.s32.totalorder %s436, %s437
      %p446 = scmp.eq.s32.totalorder %s48, 0
      %p447 = por %p445, %p446
      %p448 = scmp.ne.s32.totalorder %s436, %s437
      %p449 = scmp.eq.s32.totalorder %s49, 1
      %p450 = por %p448, %p449
      %p452 = scmp.ne.s32.totalorder %s437, %s451
      %p453 = scmp.eq.s32.totalorder %s49, 0
      %p454 = por %p452, %p453
      %s456 = sadd.s32 %s455, 1
      %p459 = scmp.eq.s32.totalorder %s43, 1
      %p460 = scmp.ne.s32.totalorder %s455, %s457
      %p461 = scmp.eq.s32.totalorder %s43, 0
      %p462 = por %p460, %p461
      %p463 = scmp.ne.s32.totalorder %s455, %s457
      %p464 = scmp.eq.s32.totalorder %s48, 1
      %p465 = por %p463, %p464
      %p466 = scmp.ne.s32.totalorder %s457, %s458
      %p467 = scmp.eq.s32.totalorder %s48, 0
      %p468 = por %p466, %p467
      %p469 = scmp.ne.s32.totalorder %s457, %s458
      %p470 = scmp.eq.s32.totalorder %s49, 1
      %p471 = por %p469, %p470
      %p473 = scmp.ne.s32.totalorder %s458, %s472
      %p474 = scmp.eq.s32.totalorder %s49, 0
      %p475 = por %p473, %p474
      %s477 = sadd.s32 %s476, 1
      %p480 = scmp.eq.s32.totalorder %s43, 1
      %p481 = scmp.ne.s32.totalorder %s476, %s478
      %p482 = scmp.eq.s32.totalorder %s43, 0
      %p483 = por %p481, %p482
      %p484 = scmp.ne.s32.totalorder %s476, %s478
      %p485 = scmp.eq.s32.totalorder %s48, 1
      %p486 = por %p484, %p485
      %p487 = scmp.ne.s32.totalorder %s478, %s479
      %p488 = scmp.eq.s32.totalorder %s48, 0
      %p489 = por %p487, %p488
      %p490 = scmp.ne.s32.totalorder %s478, %s479
      %p491 = scmp.eq.s32.totalorder %s49, 1
      %p492 = por %p490, %p491
      %p494 = scmp.ne.s32.totalorder %s479, %s493
      %p495 = scmp.eq.s32.totalorder %s49, 0
      %p496 = por %p494, %p495
      %s498 = sadd.s32 %s497, 1
      %p501 = scmp.eq.s32.totalorder %s43, 1
      %p502 = scmp.ne.s32.totalorder %s497, %s499
      %p503 = scmp.eq.s32.totalorder %s43, 0
      %p504 = por %p502, %p503
      %p505 = scmp.ne.s32.totalorder %s497, %s499
      %p506 = scmp.eq.s32.totalorder %s48, 1
      %p507 = por %p505, %p506
      %p508 = scmp.ne.s32.totalorder %s499, %s500
      %p509 = scmp.eq.s32.totalorder %s48, 0
      %p510 = por %p508, %p509
      %p511 = scmp.ne.s32.totalorder %s499, %s500
      %p512 = scmp.eq.s32.totalorder %s49, 1
      %p513 = por %p511, %p512
      %p515 = scmp.ne.s32.totalorder %s500, %s514
      %p516 = scmp.eq.s32.totalorder %s49, 0
      %p517 = por %p515, %p516
      %s519 = sadd.s32 %s518, 1
      %p522 = scmp.eq.s32.totalorder %s43, 1
      %p523 = scmp.ne.s32.totalorder %s518, %s520
      %p524 = scmp.eq.s32.totalorder %s43, 0
      %p525 = por %p523, %p524
      %p526 = scmp.ne.s32.totalorder %s518, %s520
      %p527 = scmp.eq.s32.totalorder %s48, 1
      %p528 = por %p526, %p527
      %p529 = scmp.ne.s32.totalorder %s520, %s521
      %p530 = scmp.eq.s32.totalorder %s48, 0
      %p531 = por %p529, %p530
      %p532 = scmp.ne.s32.totalorder %s520, %s521
      %p533 = scmp.eq.s32.totalorder %s49, 1
      %p534 = por %p532, %p533
      %p536 = scmp.ne.s32.totalorder %s521, %s535
      %p537 = scmp.eq.s32.totalorder %s49, 0
      %p538 = por %p536, %p537
      %s540 = sadd.s32 %s539, 1
      %p543 = scmp.eq.s32.totalorder %s43, 1
      %p544 = scmp.ne.s32.totalorder %s539, %s541
      %p545 = scmp.eq.s32.totalorder %s43, 0
      %p546 = por %p544, %p545
      %p547 = scmp.ne.s32.totalorder %s539, %s541
      %p548 = scmp.eq.s32.totalorder %s48, 1
      %p549 = por %p547, %p548
      %p550 = scmp.ne.s32.totalorder %s541, %s542
      %p551 = scmp.eq.s32.totalorder %s48, 0
      %p552 = por %p550, %p551
      %p553 = scmp.ne.s32.totalorder %s541, %s542
      %p554 = scmp.eq.s32.totalorder %s49, 1
      %p555 = por %p553, %p554
      %p557 = scmp.ne.s32.totalorder %s542, %s556
      %p558 = scmp.eq.s32.totalorder %s49, 0
      %p559 = por %p557, %p558
      %s560 = ssub.s32 %s43, %s50
      %p561 = scmp.eq.s32.totalorder %s560, 0
      %s563 = sadd.s32 %s562, 1
      %s564 = scalar_select %p561, %s562, %s563
      %p567 = pneg %p561
      %p568 = scmp.eq.s32.totalorder %s43, 1
      %p569 = por %p567, %p568
      %p570 = scmp.ne.s32.totalorder %s562, %s565
      %p571 = scmp.eq.s32.totalorder %s43, 0
      %p572 = por %p570, %p571
      %p573 = scmp.ne.s32.totalorder %s562, %s565
      %p574 = scmp.eq.s32.totalorder %s48, 1
      %p575 = por %p573, %p574
      %p576 = scmp.ne.s32.totalorder %s565, %s566
      %p577 = scmp.eq.s32.totalorder %s48, 0
      %p578 = por %p576, %p577
      %p579 = scmp.ne.s32.totalorder %s565, %s566
      %p580 = scmp.eq.s32.totalorder %s49, 1
      %p581 = por %p579, %p580
      %p583 = scmp.ne.s32.totalorder %s566, %s582
      %p584 = scmp.eq.s32.totalorder %s49, 0
      %p585 = por %p583, %p584
      %p586 = scmp.le.s32.totalorder 1, %s43
      %p587 = scmp.lt.s32.totalorder %s43, 3
      %p588 = pnand %p586, %p587
      %p589 = pneg %p588
      // Predicated region
      $region9: #{spatial_transformer_3d.1} parent=5 // pred_check
        _
      $region10: #{spatial_transformer_3d.1} parent=5 // pred_check_branch
        %591 = sbr.rel (%p588) target = $region12
      $region11: #{spatial_transformer_3d.1} parent=5 // pred_region
        %s592 = ssub.s32 %s43, 1
        // Predicated region
        $region13: #{spatial_transformer_3d.1} parent=11 // pred_check
          %p593 = pneg %p90
        $region14: #{spatial_transformer_3d.1} parent=11 // pred_check_branch
          %595 = sbr.rel (%p593) target = $region16
        $region15: #{spatial_transformer_3d.1} parent=11 // pred_region
          %s597 = ssub.s32 512, 512
          %598 = vsyncadd [#allocation6], %s597
          %s599 = sshll.u32 [#allocation5], 4
          %s600 = int_to_ptr.vmem [resolvable:$true] %s599
          %605 = dma.hbm_to_vmem [thread:$0]  %s1, 512, %s600, [#allocation6], 128, 128, 8
        $region16: #{spatial_transformer_3d.1} parent=11 // pred_fallthru
          _
        // Predicated region
        $region17: #{spatial_transformer_3d.1} parent=11 // pred_check
          %p606 = pneg %p111
        $region18: #{spatial_transformer_3d.1} parent=11 // pred_check_branch
          %608 = sbr.rel (%p606) target = $region20
        $region19: #{spatial_transformer_3d.1} parent=11 // pred_region
          %s610 = ssub.s32 16, 16
          %611 = vsyncadd [#allocation6], %s610
          %s613 = sshll.u32 [#allocation7], 4
          %s614 = int_to_ptr.vmem [resolvable:$true] %s613
          %616 = dma.hbm_to_vmem [thread:$0]  %s2, 16, %s614, [#allocation6]
        $region20: #{spatial_transformer_3d.1} parent=11 // pred_fallthru
          _
        // Predicated region
        $region21: #{spatial_transformer_3d.1} parent=11 // pred_check
          %p617 = pneg %p132
        $region22: #{spatial_transformer_3d.1} parent=11 // pred_check_branch
          %619 = sbr.rel (%p617) target = $region24
        $region23: #{spatial_transformer_3d.1} parent=11 // pred_region
          %s621 = ssub.s32 16, 16
          %622 = vsyncadd [#allocation9], %s621
          %s624 = sshll.u32 [#allocation8], 4
          %s625 = int_to_ptr.vmem [resolvable:$true] %s624
          %627 = dma.hbm_to_vmem [thread:$0]  %s3, 16, %s625, [#allocation9]
        $region24: #{spatial_transformer_3d.1} parent=11 // pred_fallthru
          _
        // Predicated region
        $region25: #{spatial_transformer_3d.1} parent=11 // pred_check
          %p628 = pneg %p153
        $region26: #{spatial_transformer_3d.1} parent=11 // pred_check_branch
          %630 = sbr.rel (%p628) target = $region28
        $region27: #{spatial_transformer_3d.1} parent=11 // pred_region
          _
        $region28: #{spatial_transformer_3d.1} parent=11 // pred_fallthru
          _
        // Predicated region
        $region29: #{spatial_transformer_3d.1} parent=11 // pred_check
          %p631 = pneg %p174
        $region30: #{spatial_transformer_3d.1} parent=11 // pred_check_branch
          %633 = sbr.rel (%p631) target = $region32
        $region31: #{spatial_transformer_3d.1} parent=11 // pred_region
          _
        $region32: #{spatial_transformer_3d.1} parent=11 // pred_fallthru
          _
        // Predicated region
        $region33: #{spatial_transformer_3d.1} parent=11 // pred_check
          %p634 = pneg %p195
        $region34: #{spatial_transformer_3d.1} parent=11 // pred_check_branch
          %636 = sbr.rel (%p634) target = $region36
        $region35: #{spatial_transformer_3d.1} parent=11 // pred_region
          %s638 = ssub.s32 16, 16
          %639 = vsyncadd [#allocation9], %s638
          %s641 = sshll.u32 [#allocation10], 4
          %s642 = int_to_ptr.vmem [resolvable:$true] %s641
          %644 = dma.hbm_to_vmem [thread:$0]  %s6, 16, %s642, [#allocation9]
        $region36: #{spatial_transformer_3d.1} parent=11 // pred_fallthru
          _
        // Predicated region
        $region37: #{spatial_transformer_3d.1} parent=11 // pred_check
          %p645 = pneg %p216
        $region38: #{spatial_transformer_3d.1} parent=11 // pred_check_branch
          %647 = sbr.rel (%p645) target = $region40
        $region39: #{spatial_transformer_3d.1} parent=11 // pred_region
          %s649 = ssub.s32 16, 16
          %650 = vsyncadd [#allocation12], %s649
          %s652 = sshll.u32 [#allocation11], 4
          %s653 = int_to_ptr.vmem [resolvable:$true] %s652
          %655 = dma.hbm_to_vmem [thread:$0]  %s7, 16, %s653, [#allocation12]
        $region40: #{spatial_transformer_3d.1} parent=11 // pred_fallthru
          _
        // Predicated region
        $region41: #{spatial_transformer_3d.1} parent=11 // pred_check
          %p656 = pneg %p237
        $region42: #{spatial_transformer_3d.1} parent=11 // pred_check_branch
          %658 = sbr.rel (%p656) target = $region44
        $region43: #{spatial_transformer_3d.1} parent=11 // pred_region
          _
        $region44: #{spatial_transformer_3d.1} parent=11 // pred_fallthru
          _
        // Predicated region
        $region45: #{spatial_transformer_3d.1} parent=11 // pred_check
          %p659 = pneg %p258
        $region46: #{spatial_transformer_3d.1} parent=11 // pred_check_branch
          %661 = sbr.rel (%p659) target = $region48
        $region47: #{spatial_transformer_3d.1} parent=11 // pred_region
          _
        $region48: #{spatial_transformer_3d.1} parent=11 // pred_fallthru
          _
        // Predicated region
        $region49: #{spatial_transformer_3d.1} parent=11 // pred_check
          %p662 = pneg %p279
        $region50: #{spatial_transformer_3d.1} parent=11 // pred_check_branch
          %664 = sbr.rel (%p662) target = $region52
        $region51: #{spatial_transformer_3d.1} parent=11 // pred_region
          %s666 = ssub.s32 16, 16
          %667 = vsyncadd [#allocation12], %s666
          %s669 = sshll.u32 [#allocation13], 4
          %s670 = int_to_ptr.vmem [resolvable:$true] %s669
          %672 = dma.hbm_to_vmem [thread:$0]  %s10, 16, %s670, [#allocation12]
        $region52: #{spatial_transformer_3d.1} parent=11 // pred_fallthru
          _
        // Predicated region
        $region53: #{spatial_transformer_3d.1} parent=11 // pred_check
          %p673 = pneg %p300
        $region54: #{spatial_transformer_3d.1} parent=11 // pred_check_branch
          %675 = sbr.rel (%p673) target = $region56
        $region55: #{spatial_transformer_3d.1} parent=11 // pred_region
          %s677 = ssub.s32 16, 16
          %678 = vsyncadd [#allocation15], %s677
          %s680 = sshll.u32 [#allocation14], 4
          %s681 = int_to_ptr.vmem [resolvable:$true] %s680
          %683 = dma.hbm_to_vmem [thread:$0]  %s11, 16, %s681, [#allocation15]
        $region56: #{spatial_transformer_3d.1} parent=11 // pred_fallthru
          _
        // Predicated region
        $region57: #{spatial_transformer_3d.1} parent=11 // pred_check
          %p684 = pneg %p321
        $region58: #{spatial_transformer_3d.1} parent=11 // pred_check_branch
          %686 = sbr.rel (%p684) target = $region60
        $region59: #{spatial_transformer_3d.1} parent=11 // pred_region
          %s688 = ssub.s32 16, 16
          %689 = vsyncadd [#allocation15], %s688
          %s691 = sshll.u32 [#allocation16], 4
          %s692 = int_to_ptr.vmem [resolvable:$true] %s691
          %694 = dma.hbm_to_vmem [thread:$0]  %s12, 16, %s692, [#allocation15]
        $region60: #{spatial_transformer_3d.1} parent=11 // pred_fallthru
          _
        // Predicated region
        $region61: #{spatial_transformer_3d.1} parent=11 // pred_check
          %p695 = pneg %p342
        $region62: #{spatial_transformer_3d.1} parent=11 // pred_check_branch
          %697 = sbr.rel (%p695) target = $region64
        $region63: #{spatial_transformer_3d.1} parent=11 // pred_region
          %s699 = ssub.s32 512, 512
          %700 = vsyncadd [#allocation18], %s699
          %s701 = sshll.u32 [#allocation17], 4
          %s702 = int_to_ptr.vmem [resolvable:$true] %s701
          %707 = dma.hbm_to_vmem [thread:$0]  %s13, 512, %s702, [#allocation18], 128, 128, 8
        $region64: #{spatial_transformer_3d.1} parent=11 // pred_fallthru
          _
        // Predicated region
        $region65: #{spatial_transformer_3d.1} parent=11 // pred_check
          %p708 = pneg %p363
        $region66: #{spatial_transformer_3d.1} parent=11 // pred_check_branch
          %710 = sbr.rel (%p708) target = $region68
        $region67: #{spatial_transformer_3d.1} parent=11 // pred_region
          %s712 = ssub.s32 512, 512
          %713 = vsyncadd [#allocation18], %s712
          %s714 = sshll.u32 [#allocation19], 4
          %s715 = int_to_ptr.vmem [resolvable:$true] %s714
          %720 = dma.hbm_to_vmem [thread:$0]  %s14, 512, %s715, [#allocation18], 128, 128, 8
        $region68: #{spatial_transformer_3d.1} parent=11 // pred_fallthru
          _
        // Predicated region
        $region69: #{spatial_transformer_3d.1} parent=11 // pred_check
          %p721 = pneg %p384
        $region70: #{spatial_transformer_3d.1} parent=11 // pred_check_branch
          %723 = sbr.rel (%p721) target = $region72
        $region71: #{spatial_transformer_3d.1} parent=11 // pred_region
          %s725 = ssub.s32 16, 16
          %726 = vsyncadd [#allocation21], %s725
          %s728 = sshll.u32 [#allocation20], 4
          %s729 = int_to_ptr.vmem [resolvable:$true] %s728
          %731 = dma.hbm_to_vmem [thread:$0]  %s15, 16, %s729, [#allocation21]
        $region72: #{spatial_transformer_3d.1} parent=11 // pred_fallthru
          _
        // Predicated region
        $region73: #{spatial_transformer_3d.1} parent=11 // pred_check
          %p732 = pneg %p405
        $region74: #{spatial_transformer_3d.1} parent=11 // pred_check_branch
          %734 = sbr.rel (%p732) target = $region76
        $region75: #{spatial_transformer_3d.1} parent=11 // pred_region
          _
        $region76: #{spatial_transformer_3d.1} parent=11 // pred_fallthru
          _
        // Predicated region
        $region77: #{spatial_transformer_3d.1} parent=11 // pred_check
          %p735 = pneg %p426
        $region78: #{spatial_transformer_3d.1} parent=11 // pred_check_branch
          %737 = sbr.rel (%p735) target = $region80
        $region79: #{spatial_transformer_3d.1} parent=11 // pred_region
          _
        $region80: #{spatial_transformer_3d.1} parent=11 // pred_fallthru
          _
        // Predicated region
        $region81: #{spatial_transformer_3d.1} parent=11 // pred_check
          %p738 = pneg %p447
        $region82: #{spatial_transformer_3d.1} parent=11 // pred_check_branch
          %740 = sbr.rel (%p738) target = $region84
        $region83: #{spatial_transformer_3d.1} parent=11 // pred_region
          _
        $region84: #{spatial_transformer_3d.1} parent=11 // pred_fallthru
          _
        // Predicated region
        $region85: #{spatial_transformer_3d.1} parent=11 // pred_check
          %p741 = pneg %p468
        $region86: #{spatial_transformer_3d.1} parent=11 // pred_check_branch
          %743 = sbr.rel (%p741) target = $region88
        $region87: #{spatial_transformer_3d.1} parent=11 // pred_region
          %s745 = ssub.s32 32, 32
          %746 = vsyncadd [#allocation21], %s745
          %s748 = sshll.u32 [#allocation22], 4
          %s749 = int_to_ptr.vmem [resolvable:$true] %s748
          %751 = dma.hbm_to_vmem [thread:$0]  %s19, 32, %s749, [#allocation21]
        $region88: #{spatial_transformer_3d.1} parent=11 // pred_fallthru
          _
        // Predicated region
        $region89: #{spatial_transformer_3d.1} parent=11 // pred_check
          %p752 = pneg %p489
        $region90: #{spatial_transformer_3d.1} parent=11 // pred_check_branch
          %754 = sbr.rel (%p752) target = $region92
        $region91: #{spatial_transformer_3d.1} parent=11 // pred_region
          _
        $region92: #{spatial_transformer_3d.1} parent=11 // pred_fallthru
          _
        // Predicated region
        $region93: #{spatial_transformer_3d.1} parent=11 // pred_check
          %p755 = pneg %p510
        $region94: #{spatial_transformer_3d.1} parent=11 // pred_check_branch
          %757 = sbr.rel (%p755) target = $region96
        $region95: #{spatial_transformer_3d.1} parent=11 // pred_region
          %s759 = ssub.s32 16, 16
          %760 = vsyncadd [#allocation24], %s759
          %s762 = sshll.u32 [#allocation23], 4
          %s763 = int_to_ptr.vmem [resolvable:$true] %s762
          %765 = dma.hbm_to_vmem [thread:$0]  %s21, 16, %s763, [#allocation24]
        $region96: #{spatial_transformer_3d.1} parent=11 // pred_fallthru
          _
        // Predicated region
        $region97: #{spatial_transformer_3d.1} parent=11 // pred_check
          %p766 = pneg %p531
        $region98: #{spatial_transformer_3d.1} parent=11 // pred_check_branch
          %768 = sbr.rel (%p766) target = $region100
        $region99: #{spatial_transformer_3d.1} parent=11 // pred_region
          _
        $region100: #{spatial_transformer_3d.1} parent=11 // pred_fallthru
          _
        // Predicated region
        $region101: #{spatial_transformer_3d.1} parent=11 // pred_check
          %p769 = pneg %p552
        $region102: #{spatial_transformer_3d.1} parent=11 // pred_check_branch
          %771 = sbr.rel (%p769) target = $region104
        $region103: #{spatial_transformer_3d.1} parent=11 // pred_region
          _
        $region104: #{spatial_transformer_3d.1} parent=11 // pred_fallthru
          _
      $region12: #{spatial_transformer_3d.1} parent=5 // pred_fallthru
        _
      %p772 = scmp.lt.s32.totalorder %s43, 2
      // Predicated region
      $region105: #{spatial_transformer_3d.1} parent=5 // pred_check
        %p773 = pneg %p772
      $region106: #{spatial_transformer_3d.1} parent=5 // pred_check_branch
        %775 = sbr.rel (%p773) target = $region108
      $region107: #{spatial_transformer_3d.1} parent=5 // pred_region
        // Predicated region
        $region109: #{spatial_transformer_3d.1} parent=107 // pred_check
          %p776 = pneg %p63
        $region110: #{spatial_transformer_3d.1} parent=107 // pred_check_branch
          %778 = sbr.rel (%p776) target = $region112
        $region111: #{spatial_transformer_3d.1} parent=107 // pred_region
          %s779 = sand.u32 %s53, 1
          %s780 = scalar_lea.sflag [#allocation3], %s779
          %s781 = sand.u32 %s53, 1
          %s782 = smul.addr %s781, 128
          %s783 = scalar_lea.vmem [#allocation2], %s782
          %s784 = smul.u32 16, %s43
          %s786 = ssub.s32 2048, 2048
          %787 = vsyncadd %s780, %s786
          %s788 = smul.addr %s784, 128
          %s789 = scalar_lea.hbm %s0, %s788
          %s790 = sshll.u32 %s783, 4
          %s791 = int_to_ptr.vmem [resolvable:$true] %s790
          %796 = dma.hbm_to_vmem [thread:$0]  %s789, 2048, %s791, %s780, 128, 128, 8
        $region112: #{spatial_transformer_3d.1} parent=107 // pred_fallthru
          _
      $region108: #{spatial_transformer_3d.1} parent=5 // pred_fallthru
        _
      %p797 = scmp.le.s32.totalorder 1, %s43
      %p798 = scmp.lt.s32.totalorder %s43, 3
      %p799 = pnand %p797, %p798
      %p800 = pneg %p799
      // Predicated region
      $region113: #{spatial_transformer_3d.1} parent=5 // pred_check
        _
      $region114: #{spatial_transformer_3d.1} parent=5 // pred_check_branch
        %802 = sbr.rel (%p799) target = $region116
      $region115: #{spatial_transformer_3d.1} parent=5 // pred_region
        %s803 = ssub.s32 %s43, 1
        %s804 = sand.u32 %s56, 1
        %s805 = scalar_lea.sflag [#allocation3], %s804
        %s806 = sand.u32 %s56, 1
        %s807 = smul.addr %s806, 128
        %s808 = scalar_lea.vmem [#allocation2], %s807
        // Predicated region
        $region117: #{spatial_transformer_3d.1} parent=115 // pred_check
          %p809 = pneg %p69
        $region118: #{spatial_transformer_3d.1} parent=115 // pred_check_branch
          %811 = sbr.rel (%p809) target = $region120
        $region119: #{spatial_transformer_3d.1} parent=115 // pred_region
          %812 = dma.done %s805, 2048
        $region120: #{spatial_transformer_3d.1} parent=115 // pred_fallthru
          _
        // Predicated region
        $region121: #{spatial_transformer_3d.1} parent=115 // pred_check
          %p813 = pneg %p90
        $region122: #{spatial_transformer_3d.1} parent=115 // pred_check_branch
          %815 = sbr.rel (%p813) target = $region124
        $region123: #{spatial_transformer_3d.1} parent=115 // pred_region
          %816 = dma.done [#allocation6], 512
        $region124: #{spatial_transformer_3d.1} parent=115 // pred_fallthru
          _
        // Predicated region
        $region125: #{spatial_transformer_3d.1} parent=115 // pred_check
          %p817 = pneg %p111
        $region126: #{spatial_transformer_3d.1} parent=115 // pred_check_branch
          %819 = sbr.rel (%p817) target = $region128
        $region127: #{spatial_transformer_3d.1} parent=115 // pred_region
          %820 = dma.done [#allocation6], 16
        $region128: #{spatial_transformer_3d.1} parent=115 // pred_fallthru
          _
        // Predicated region
        $region129: #{spatial_transformer_3d.1} parent=115 // pred_check
          %p821 = pneg %p132
        $region130: #{spatial_transformer_3d.1} parent=115 // pred_check_branch
          %823 = sbr.rel (%p821) target = $region132
        $region131: #{spatial_transformer_3d.1} parent=115 // pred_region
          %824 = dma.done [#allocation9], 16
        $region132: #{spatial_transformer_3d.1} parent=115 // pred_fallthru
          _
        // Predicated region
        $region133: #{spatial_transformer_3d.1} parent=115 // pred_check
          %p825 = pneg %p195
        $region134: #{spatial_transformer_3d.1} parent=115 // pred_check_branch
          %827 = sbr.rel (%p825) target = $region136
        $region135: #{spatial_transformer_3d.1} parent=115 // pred_region
          %828 = dma.done [#allocation9], 16
        $region136: #{spatial_transformer_3d.1} parent=115 // pred_fallthru
          _
        // Predicated region
        $region137: #{spatial_transformer_3d.1} parent=115 // pred_check
          %p829 = pneg %p216
        $region138: #{spatial_transformer_3d.1} parent=115 // pred_check_branch
          %831 = sbr.rel (%p829) target = $region140
        $region139: #{spatial_transformer_3d.1} parent=115 // pred_region
          %832 = dma.done [#allocation12], 16
        $region140: #{spatial_transformer_3d.1} parent=115 // pred_fallthru
          _
        // Predicated region
        $region141: #{spatial_transformer_3d.1} parent=115 // pred_check
          %p833 = pneg %p279
        $region142: #{spatial_transformer_3d.1} parent=115 // pred_check_branch
          %835 = sbr.rel (%p833) target = $region144
        $region143: #{spatial_transformer_3d.1} parent=115 // pred_region
          %836 = dma.done [#allocation12], 16
        $region144: #{spatial_transformer_3d.1} parent=115 // pred_fallthru
          _
        // Predicated region
        $region145: #{spatial_transformer_3d.1} parent=115 // pred_check
          %p837 = pneg %p300
        $region146: #{spatial_transformer_3d.1} parent=115 // pred_check_branch
          %839 = sbr.rel (%p837) target = $region148
        $region147: #{spatial_transformer_3d.1} parent=115 // pred_region
          %840 = dma.done [#allocation15], 16
        $region148: #{spatial_transformer_3d.1} parent=115 // pred_fallthru
          _
        // Predicated region
        $region149: #{spatial_transformer_3d.1} parent=115 // pred_check
          %p841 = pneg %p321
        $region150: #{spatial_transformer_3d.1} parent=115 // pred_check_branch
          %843 = sbr.rel (%p841) target = $region152
        $region151: #{spatial_transformer_3d.1} parent=115 // pred_region
          %844 = dma.done [#allocation15], 16
        $region152: #{spatial_transformer_3d.1} parent=115 // pred_fallthru
          _
        // Predicated region
        $region153: #{spatial_transformer_3d.1} parent=115 // pred_check
          %p845 = pneg %p342
        $region154: #{spatial_transformer_3d.1} parent=115 // pred_check_branch
          %847 = sbr.rel (%p845) target = $region156
        $region155: #{spatial_transformer_3d.1} parent=115 // pred_region
          %848 = dma.done [#allocation18], 512
        $region156: #{spatial_transformer_3d.1} parent=115 // pred_fallthru
          _
        // Predicated region
        $region157: #{spatial_transformer_3d.1} parent=115 // pred_check
          %p849 = pneg %p363
        $region158: #{spatial_transformer_3d.1} parent=115 // pred_check_branch
          %851 = sbr.rel (%p849) target = $region160
        $region159: #{spatial_transformer_3d.1} parent=115 // pred_region
          %852 = dma.done [#allocation18], 512
        $region160: #{spatial_transformer_3d.1} parent=115 // pred_fallthru
          _
        // Predicated region
        $region161: #{spatial_transformer_3d.1} parent=115 // pred_check
          %p853 = pneg %p384
        $region162: #{spatial_transformer_3d.1} parent=115 // pred_check_branch
          %855 = sbr.rel (%p853) target = $region164
        $region163: #{spatial_transformer_3d.1} parent=115 // pred_region
          %856 = dma.done [#allocation21], 16
        $region164: #{spatial_transformer_3d.1} parent=115 // pred_fallthru
          _
        // Predicated region
        $region165: #{spatial_transformer_3d.1} parent=115 // pred_check
          %p857 = pneg %p468
        $region166: #{spatial_transformer_3d.1} parent=115 // pred_check_branch
          %859 = sbr.rel (%p857) target = $region168
        $region167: #{spatial_transformer_3d.1} parent=115 // pred_region
          %860 = dma.done [#allocation21], 32
        $region168: #{spatial_transformer_3d.1} parent=115 // pred_fallthru
          _
        // Predicated region
        $region169: #{spatial_transformer_3d.1} parent=115 // pred_check
          %p861 = pneg %p510
        $region170: #{spatial_transformer_3d.1} parent=115 // pred_check_branch
          %863 = sbr.rel (%p861) target = $region172
        $region171: #{spatial_transformer_3d.1} parent=115 // pred_region
          %864 = dma.done [#allocation24], 16
        $region172: #{spatial_transformer_3d.1} parent=115 // pred_fallthru
          _
        %s865 = sand.u32 %s56, 1
        %s866 = scalar_lea.sflag [#allocation3], %s865
        %s867 = sand.u32 %s56, 1
        %s868 = smul.addr %s867, 128
        %s869 = scalar_lea.vmem [#allocation2], %s868
        %p870 = pneg %p69
        %p871 = pneg %p66
        %p872 = pneg %p90
        %p873 = pneg %p87
        %p874 = pneg %p111
        %p875 = pneg %p108
        %p876 = pneg %p132
        %p877 = pneg %p129
        %p878 = pneg %p153
        %p879 = pneg %p150
        %p880 = pneg %p174
        %p881 = pneg %p171
        %p882 = pneg %p195
        %p883 = pneg %p192
        %p884 = pneg %p216
        %p885 = pneg %p213
        %p886 = pneg %p237
        %p887 = pneg %p234
        %p888 = pneg %p258
        %p889 = pneg %p255
        %p890 = pneg %p279
        %p891 = pneg %p276
        %p892 = pneg %p300
        %p893 = pneg %p297
        %p894 = pneg %p321
        %p895 = pneg %p318
        %p896 = pneg %p342
        %p897 = pneg %p339
        %p898 = pneg %p363
        %p899 = pneg %p360
        %p900 = pneg %p384
        %p901 = pneg %p381
        %p902 = pneg %p405
        %p903 = pneg %p402
        %p904 = pneg %p426
        %p905 = pneg %p423
        %p906 = pneg %p447
        %p907 = pneg %p444
        %p908 = pneg %p468
        %p909 = pneg %p465
        %p910 = pneg %p489
        %p911 = pneg %p486
        %p912 = pneg %p510
        %p913 = pneg %p507
        %p914 = pneg %p531
        %p915 = pneg %p528
        %p916 = pneg %p552
        %p917 = pneg %p549
        %p918 = pneg %p578
        %p919 = pneg %p575
        %s920 = sand.u32 %s565, 1
        %s921 = scalar_lea.sflag [#allocation4], %s920
        %s922 = sand.u32 %s565, 1
        %s923 = smul.addr %s922, 128
        %s924 = scalar_lea.vmem [#allocation25], %s923
        %s925 = smul.u32 16, %s48
        %s926 = smul.u32 16, %s48
        %v927 = vld [vmem:[%s808] sm:$0xff]
        %v928 = vld [vmem:[%s808 + $0x8] sm:$0xff]
        %v929 = vld [vmem:[%s808 + $0x10] sm:$0xff]
        %v930 = vld [vmem:[%s808 + $0x18] sm:$0xff]
        %v931 = vld [vmem:[%s808 + $0x20] sm:$0xff]
        %v932 = vld [vmem:[%s808 + $0x28] sm:$0xff]
        %v933 = vld [vmem:[%s808 + $0x30] sm:$0xff]
        %v934 = vld [vmem:[%s808 + $0x38] sm:$0xff]
        %v935 = vld [vmem:[%s808 + $0x40] sm:$0xff]
        %v936 = vld [vmem:[%s808 + $0x48] sm:$0xff]
        %v937 = vld [vmem:[%s808 + $0x50] sm:$0xff]
        %v938 = vld [vmem:[%s808 + $0x58] sm:$0xff]
        %v939 = vld [vmem:[%s808 + $0x60] sm:$0xff]
        %v940 = vld [vmem:[%s808 + $0x68] sm:$0xff]
        %v941 = vld [vmem:[%s808 + $0x70] sm:$0xff]
        %v942 = vld [vmem:[%s808 + $0x78] sm:$0xff]
        %v943 = vld [vmem:[#allocation5] sm:$0xff]
        %v944 = vld [vmem:[#allocation5 + $0x8] sm:$0xff]
        %v945 = vld [vmem:[#allocation5 + $0x10] sm:$0xff]
        %v946 = vld [vmem:[#allocation5 + $0x18] sm:$0xff]
        %vm947 = vcmask 261120
        %v949 = vsel %vm947, %v927, 0
        %v952 = vsel %vm947, %v928, 0
        %v955 = vsel %vm947, %v929, 0
        %v958 = vsel %vm947, %v930, 0
        %v961 = vsel %vm947, %v931, 0
        %v964 = vsel %vm947, %v932, 0
        %v967 = vsel %vm947, %v933, 0
        %v970 = vsel %vm947, %v934, 0
        %972 = vmatprep.subr.mxu0 0.0
        %973 = vmatpush1.msra.mxu0 %v943
        %974 = vmatprep.subr.mxu0 0.0
        %975 = vmatpush1.msra.mxu0 %v944
        %976 = vmatprep.subr.mxu0 0.0
        %977 = vmatpush1.msra.mxu0 %v945
        %978 = vmatprep.subr.mxu0 0.0
        %979 = vmatpush1.msra.mxu0 %v946
        %980 = vmatprep.subr.mxu0 0.0
        %981 = vmatpush1.msra.mxu0 0.0
        %982 = vmatprep.subr.mxu0 0.0
        %983 = vmatpush1.msra.mxu0 0.0
        %984 = vmatprep.subr.mxu0 0.0
        %985 = vmatpush1.msra.mxu0 0.0
        %986 = vmatprep.subr.mxu0 0.0
        %987 = vmatpush1.msra.mxu0 0.0
        %988 = vmatprep.subr.mxu0 0.0
        %989 = vmatpush1.msra.mxu0 0.0
        %990 = vmatprep.subr.mxu0 0.0
        %991 = vmatpush1.msra.mxu0 0.0
        %992 = vmatprep.subr.mxu0 0.0
        %993 = vmatpush1.msra.mxu0 0.0
        %994 = vmatprep.subr.mxu0 0.0
        %995 = vmatpush1.msra.mxu0 0.0
        %996 = vmatprep.subr.mxu0 0.0
        %997 = vmatpush1.msra.mxu0 0.0
        %998 = vmatprep.subr.mxu0 0.0
        %999 = vmatpush1.msra.mxu0 0.0
        %1000 = vmatprep.subr.mxu0 0.0
        %1001 = vmatpush1.msra.mxu0 0.0
        %1002 = vmatprep.subr.mxu0 0.0
        %1003 = vmatpush1.msra.mxu0 0.0
        %1004 = vmatprep.subr.mxu0 0.0
        %1005 = vmatpush1.msra.mxu0 0.0
        %1006 = vmatprep.subr.mxu0 0.0
        %1007 = vmatpush1.msra.mxu0 0.0
        %1008 = vmatprep.subr.mxu0 0.0
        %1009 = vmatpush1.msra.mxu0 0.0
        %1010 = vmatprep.subr.mxu0 0.0
        %1011 = vmatpush1.msra.mxu0 0.0
        %1012 = vmatprep.subr.mxu0 0.0
        %1013 = vmatpush1.msra.mxu0 0.0
        %1014 = vmatprep.subr.mxu0 0.0
        %1015 = vmatpush1.msra.mxu0 0.0
        %1016 = vmatprep.subr.mxu0 0.0
        %1017 = vmatpush1.msra.mxu0 0.0
        %1018 = vmatprep.subr.mxu0 0.0
        %1019 = vmatpush1.msra.mxu0 0.0
        %1020 = vmatprep.subr.mxu0 0.0
        %1021 = vmatpush1.msra.mxu0 0.0
        %1022 = vmatprep.subr.mxu0 0.0
        %1023 = vmatpush1.msra.mxu0 0.0
        %1024 = vmatprep.subr.mxu0 0.0
        %1025 = vmatpush1.msra.mxu0 0.0
        %1026 = vmatprep.subr.mxu0 0.0
        %1027 = vmatpush1.msra.mxu0 0.0
        %1028 = vmatprep.subr.mxu0 0.0
        %1029 = vmatpush1.msra.mxu0 0.0
        %1030 = vmatprep.subr.mxu0 0.0
        %1031 = vmatpush1.msra.mxu0 0.0
        %1032 = vmatprep.subr.mxu0 0.0
        %1033 = vmatpush1.msra.mxu0 0.0
        %1034 = vmatprep.subr.mxu0 0.0
        %1035 = vmatpush1.msra.mxu0 0.0
        %1036 = vmatprep.mubr.f32.mxu0 0.0
        %1037 = vmatmul.mubr.f32.gmra.mrb[0].mxu0 %v949
        %v1038 = vpop.f32.mrb[0].mxu0
        %v1039 = vadd.f32 0.0, %v1038
        %v1040 = vpop.f32.mrb[0].mxu0
        %1041 = vmatprep.mubr.f32.mxu0 0.0
        %1042 = vmatmul.mubr.f32.gmra.mrb[0].mxu0 %v952
        %v1043 = vpop.f32.mrb[0].mxu0
        %v1044 = vadd.f32 0.0, %v1043
        %v1045 = vpop.f32.mrb[0].mxu0
        %1046 = vmatprep.mubr.f32.mxu0 0.0
        %1047 = vmatmul.mubr.f32.gmra.mrb[0].mxu0 %v955
        %v1048 = vpop.f32.mrb[0].mxu0
        %v1049 = vadd.f32 0.0, %v1048
        %v1050 = vpop.f32.mrb[0].mxu0
        %1051 = vmatprep.mubr.f32.mxu0 0.0
        %1052 = vmatmul.mubr.f32.gmra.mrb[0].mxu0 %v958
        %v1053 = vpop.f32.mrb[0].mxu0
        %v1054 = vadd.f32 0.0, %v1053
        %v1055 = vpop.f32.mrb[0].mxu0
        %1056 = vmatprep.mubr.f32.mxu0 0.0
        %1057 = vmatmul.mubr.f32.gmra.mrb[0].mxu0 %v961
        %v1058 = vpop.f32.mrb[0].mxu0
        %v1059 = vadd.f32 0.0, %v1058
        %v1060 = vpop.f32.mrb[0].mxu0
        %1061 = vmatprep.mubr.f32.mxu0 0.0
        %1062 = vmatmul.mubr.f32.gmra.mrb[0].mxu0 %v964
        %v1063 = vpop.f32.mrb[0].mxu0
        %v1064 = vadd.f32 0.0, %v1063
        %v1065 = vpop.f32.mrb[0].mxu0
        %1066 = vmatprep.mubr.f32.mxu0 0.0
        %1067 = vmatmul.mubr.f32.gmra.mrb[0].mxu0 %v967
        %v1068 = vpop.f32.mrb[0].mxu0
        %v1069 = vadd.f32 0.0, %v1068
        %v1070 = vpop.f32.mrb[0].mxu0
        %1071 = vmatprep.mubr.f32.mxu0 0.0
        %1072 = vmatmul.mubr.f32.gmra.mrb[0].mxu0 %v970
        %v1073 = vpop.f32.mrb[0].mxu0
        %v1074 = vadd.f32 0.0, %v1073
        %v1075 = vpop.f32.mrb[0].mxu0
        %1076 = vdwg.mxu0
        %v1077 = vsel %vm947, %v1039, 0.0
        %v1078 = vsel %vm947, %v1044, 0.0
        %v1079 = vadd.f32 %v1077, %v1078
        %v1080 = vsel %vm947, %v1049, 0.0
        %v1081 = vadd.f32 %v1079, %v1080
        %v1082 = vsel %vm947, %v1054, 0.0
        %v1083 = vadd.f32 %v1081, %v1082
        %v1084 = vsel %vm947, %v1059, 0.0
        %v1085 = vadd.f32 %v1083, %v1084
        %v1086 = vsel %vm947, %v1064, 0.0
        %v1087 = vadd.f32 %v1085, %v1086
        %v1088 = vsel %vm947, %v1069, 0.0
        %v1089 = vadd.f32 %v1087, %v1088
        %v1090 = vsel %vm947, %v1074, 0.0
        %v1091 = vadd.f32 %v1089, %v1090
        %v1092 = vrot.slane %v1091, 4
        %v1093 = vadd.f32 %v1091, %v1092
        %v1094 = vrot.slane %v1093, 2
        %v1095 = vadd.f32 %v1093, %v1094
        %v1096 = vrot.slane %v1095, 1
        %v1097 = vadd.f32 %v1095, %v1096
        %v1098 = vsub.f32 %v927, %v1097
        %v1099 = vsub.f32 %v928, %v1097
        %v1100 = vsub.f32 %v929, %v1097
        %v1101 = vsub.f32 %v930, %v1097
        %v1102 = vsub.f32 %v931, %v1097
        %v1103 = vsub.f32 %v932, %v1097
        %v1104 = vsub.f32 %v933, %v1097
        %v1105 = vsub.f32 %v934, %v1097
        %v1106 = vmul.f32 %v1098, %v1098
        %v1107 = vmul.f32 %v1099, %v1099
        %v1108 = vmul.f32 %v1100, %v1100
        %v1109 = vmul.f32 %v1101, %v1101
        %v1110 = vmul.f32 %v1102, %v1102
        %v1111 = vmul.f32 %v1103, %v1103
        %v1112 = vmul.f32 %v1104, %v1104
        %v1113 = vmul.f32 %v1105, %v1105
        %v1115 = vsel %vm947, %v1106, 0
        %v1118 = vsel %vm947, %v1107, 0
        %v1121 = vsel %vm947, %v1108, 0
        %v1124 = vsel %vm947, %v1109, 0
        %v1127 = vsel %vm947, %v1110, 0
        %v1130 = vsel %vm947, %v1111, 0
        %v1133 = vsel %vm947, %v1112, 0
        %v1136 = vsel %vm947, %v1113, 0
        %1138 = vmatprep.subr.mxu0 0.0
        %1139 = vmatpush1.msra.mxu0 %v943
        %1140 = vmatprep.subr.mxu0 0.0
        %1141 = vmatpush1.msra.mxu0 %v944
        %1142 = vmatprep.subr.mxu0 0.0
        %1143 = vmatpush1.msra.mxu0 %v945
        %1144 = vmatprep.subr.mxu0 0.0
        %1145 = vmatpush1.msra.mxu0 %v946
        %1146 = vmatprep.subr.mxu0 0.0
        %1147 = vmatpush1.msra.mxu0 0.0
        %1148 = vmatprep.subr.mxu0 0.0
        %1149 = vmatpush1.msra.mxu0 0.0
        %1150 = vmatprep.subr.mxu0 0.0
        %1151 = vmatpush1.msra.mxu0 0.0
        %1152 = vmatprep.subr.mxu0 0.0
        %1153 = vmatpush1.msra.mxu0 0.0
        %1154 = vmatprep.subr.mxu0 0.0
        %1155 = vmatpush1.msra.mxu0 0.0
        %1156 = vmatprep.subr.mxu0 0.0
        %1157 = vmatpush1.msra.mxu0 0.0
        %1158 = vmatprep.subr.mxu0 0.0
        %1159 = vmatpush1.msra.mxu0 0.0
        %1160 = vmatprep.subr.mxu0 0.0
        %1161 = vmatpush1.msra.mxu0 0.0
        %1162 = vmatprep.subr.mxu0 0.0
        %1163 = vmatpush1.msra.mxu0 0.0
        %1164 = vmatprep.subr.mxu0 0.0
        %1165 = vmatpush1.msra.mxu0 0.0
        %1166 = vmatprep.subr.mxu0 0.0
        %1167 = vmatpush1.msra.mxu0 0.0
        %1168 = vmatprep.subr.mxu0 0.0
        %1169 = vmatpush1.msra.mxu0 0.0
        %1170 = vmatprep.subr.mxu0 0.0
        %1171 = vmatpush1.msra.mxu0 0.0
        %1172 = vmatprep.subr.mxu0 0.0
        %1173 = vmatpush1.msra.mxu0 0.0
        %1174 = vmatprep.subr.mxu0 0.0
        %1175 = vmatpush1.msra.mxu0 0.0
        %1176 = vmatprep.subr.mxu0 0.0
        %1177 = vmatpush1.msra.mxu0 0.0
        %1178 = vmatprep.subr.mxu0 0.0
        %1179 = vmatpush1.msra.mxu0 0.0
        %1180 = vmatprep.subr.mxu0 0.0
        %1181 = vmatpush1.msra.mxu0 0.0
        %1182 = vmatprep.subr.mxu0 0.0
        %1183 = vmatpush1.msra.mxu0 0.0
        %1184 = vmatprep.subr.mxu0 0.0
        %1185 = vmatpush1.msra.mxu0 0.0
        %1186 = vmatprep.subr.mxu0 0.0
        %1187 = vmatpush1.msra.mxu0 0.0
        %1188 = vmatprep.subr.mxu0 0.0
        %1189 = vmatpush1.msra.mxu0 0.0
        %1190 = vmatprep.subr.mxu0 0.0
        %1191 = vmatpush1.msra.mxu0 0.0
        %1192 = vmatprep.subr.mxu0 0.0
        %1193 = vmatpush1.msra.mxu0 0.0
        %1194 = vmatprep.subr.mxu0 0.0
        %1195 = vmatpush1.msra.mxu0 0.0
        %1196 = vmatprep.subr.mxu0 0.0
        %1197 = vmatpush1.msra.mxu0 0.0
        %1198 = vmatprep.subr.mxu0 0.0
        %1199 = vmatpush1.msra.mxu0 0.0
        %1200 = vmatprep.subr.mxu0 0.0
        %1201 = vmatpush1.msra.mxu0 0.0
        %1202 = vmatprep.mubr.f32.mxu0 0.0
        %1203 = vmatmul.mubr.f32.gmra.mrb[0].mxu0 %v1115
        %v1204 = vpop.f32.mrb[0].mxu0
        %v1205 = vadd.f32 0.0, %v1204
        %v1206 = vpop.f32.mrb[0].mxu0
        %1207 = vmatprep.mubr.f32.mxu0 0.0
        %1208 = vmatmul.mubr.f32.gmra.mrb[0].mxu0 %v1118
        %v1209 = vpop.f32.mrb[0].mxu0
        %v1210 = vadd.f32 0.0, %v1209
        %v1211 = vpop.f32.mrb[0].mxu0
        %1212 = vmatprep.mubr.f32.mxu0 0.0
        %1213 = vmatmul.mubr.f32.gmra.mrb[0].mxu0 %v1121
        %v1214 = vpop.f32.mrb[0].mxu0
        %v1215 = vadd.f32 0.0, %v1214
        %v1216 = vpop.f32.mrb[0].mxu0
        %1217 = vmatprep.mubr.f32.mxu0 0.0
        %1218 = vmatmul.mubr.f32.gmra.mrb[0].mxu0 %v1124
        %v1219 = vpop.f32.mrb[0].mxu0
        %v1220 = vadd.f32 0.0, %v1219
        %v1221 = vpop.f32.mrb[0].mxu0
        %1222 = vmatprep.mubr.f32.mxu0 0.0
        %1223 = vmatmul.mubr.f32.gmra.mrb[0].mxu0 %v1127
        %v1224 = vpop.f32.mrb[0].mxu0
        %v1225 = vadd.f32 0.0, %v1224
        %v1226 = vpop.f32.mrb[0].mxu0
        %1227 = vmatprep.mubr.f32.mxu0 0.0
        %1228 = vmatmul.mubr.f32.gmra.mrb[0].mxu0 %v1130
        %v1229 = vpop.f32.mrb[0].mxu0
        %v1230 = vadd.f32 0.0, %v1229
        %v1231 = vpop.f32.mrb[0].mxu0
        %1232 = vmatprep.mubr.f32.mxu0 0.0
        %1233 = vmatmul.mubr.f32.gmra.mrb[0].mxu0 %v1133
        %v1234 = vpop.f32.mrb[0].mxu0
        %v1235 = vadd.f32 0.0, %v1234
        %v1236 = vpop.f32.mrb[0].mxu0
        %1237 = vmatprep.mubr.f32.mxu0 0.0
        %1238 = vmatmul.mubr.f32.gmra.mrb[0].mxu0 %v1136
        %v1239 = vpop.f32.mrb[0].mxu0
        %v1240 = vadd.f32 0.0, %v1239
        %v1241 = vpop.f32.mrb[0].mxu0
        %1242 = vdwg.mxu0
        %v1243 = vsel %vm947, %v1205, 0.0
        %v1244 = vsel %vm947, %v1210, 0.0
        %v1245 = vadd.f32 %v1243, %v1244
        %v1246 = vsel %vm947, %v1215, 0.0
        %v1247 = vadd.f32 %v1245, %v1246
        %v1248 = vsel %vm947, %v1220, 0.0
        %v1249 = vadd.f32 %v1247, %v1248
        %v1250 = vsel %vm947, %v1225, 0.0
        %v1251 = vadd.f32 %v1249, %v1250
        %v1252 = vsel %vm947, %v1230, 0.0
        %v1253 = vadd.f32 %v1251, %v1252
        %v1254 = vsel %vm947, %v1235, 0.0
        %v1255 = vadd.f32 %v1253, %v1254
        %v1256 = vsel %vm947, %v1240, 0.0
        %v1257 = vadd.f32 %v1255, %v1256
        %v1258 = vrot.slane %v1257, 4
        %v1259 = vadd.f32 %v1257, %v1258
        %v1260 = vrot.slane %v1259, 2
        %v1261 = vadd.f32 %v1259, %v1260
        %v1262 = vrot.slane %v1261, 1
        %v1263 = vadd.f32 %v1261, %v1262
        %v1264 = vadd.f32 %v1263, 1e-06
        %v1265 = vrsqrt.pop %v1264
        %v1266 = vmul.f32 %v1098, %v1265
        %v1267 = vmul.f32 %v1099, %v1265
        %v1268 = vmul.f32 %v1100, %v1265
        %v1269 = vmul.f32 %v1101, %v1265
        %v1270 = vmul.f32 %v1102, %v1265
        %v1271 = vmul.f32 %v1103, %v1265
        %v1272 = vmul.f32 %v1104, %v1265
        %v1273 = vmul.f32 %v1105, %v1265
        %v1275 = vsel %vm947, %v935, 0
        %v1278 = vsel %vm947, %v936, 0
        %v1281 = vsel %vm947, %v937, 0
        %v1284 = vsel %vm947, %v938, 0
        %v1287 = vsel %vm947, %v939, 0
        %v1290 = vsel %vm947, %v940, 0
        %v1293 = vsel %vm947, %v941, 0
        %v1296 = vsel %vm947, %v942, 0
        %1298 = vmatprep.subr.mxu0 0.0
        %1299 = vmatpush1.msra.mxu0 %v943
        %1300 = vmatprep.subr.mxu0 0.0
        %1301 = vmatpush1.msra.mxu0 %v944
        %1302 = vmatprep.subr.mxu0 0.0
        %1303 = vmatpush1.msra.mxu0 %v945
        %1304 = vmatprep.subr.mxu0 0.0
        %1305 = vmatpush1.msra.mxu0 %v946
        %1306 = vmatprep.subr.mxu0 0.0
        %1307 = vmatpush1.msra.mxu0 0.0
        %1308 = vmatprep.subr.mxu0 0.0
        %1309 = vmatpush1.msra.mxu0 0.0
        %1310 = vmatprep.subr.mxu0 0.0
        %1311 = vmatpush1.msra.mxu0 0.0
        %1312 = vmatprep.subr.mxu0 0.0
        %1313 = vmatpush1.msra.mxu0 0.0
        %1314 = vmatprep.subr.mxu0 0.0
        %1315 = vmatpush1.msra.mxu0 0.0
        %1316 = vmatprep.subr.mxu0 0.0
        %1317 = vmatpush1.msra.mxu0 0.0
        %1318 = vmatprep.subr.mxu0 0.0
        %1319 = vmatpush1.msra.mxu0 0.0
        %1320 = vmatprep.subr.mxu0 0.0
        %1321 = vmatpush1.msra.mxu0 0.0
        %1322 = vmatprep.subr.mxu0 0.0
        %1323 = vmatpush1.msra.mxu0 0.0
        %1324 = vmatprep.subr.mxu0 0.0
        %1325 = vmatpush1.msra.mxu0 0.0
        %1326 = vmatprep.subr.mxu0 0.0
        %1327 = vmatpush1.msra.mxu0 0.0
        %1328 = vmatprep.subr.mxu0 0.0
        %1329 = vmatpush1.msra.mxu0 0.0
        %1330 = vmatprep.subr.mxu0 0.0
        %1331 = vmatpush1.msra.mxu0 0.0
        %1332 = vmatprep.subr.mxu0 0.0
        %1333 = vmatpush1.msra.mxu0 0.0
        %1334 = vmatprep.subr.mxu0 0.0
        %1335 = vmatpush1.msra.mxu0 0.0
        %1336 = vmatprep.subr.mxu0 0.0
        %1337 = vmatpush1.msra.mxu0 0.0
        %1338 = vmatprep.subr.mxu0 0.0
        %1339 = vmatpush1.msra.mxu0 0.0
        %1340 = vmatprep.subr.mxu0 0.0
        %1341 = vmatpush1.msra.mxu0 0.0
        %1342 = vmatprep.subr.mxu0 0.0
        %1343 = vmatpush1.msra.mxu0 0.0
        %1344 = vmatprep.subr.mxu0 0.0
        %1345 = vmatpush1.msra.mxu0 0.0
        %1346 = vmatprep.subr.mxu0 0.0
        %1347 = vmatpush1.msra.mxu0 0.0
        %1348 = vmatprep.subr.mxu0 0.0
        %1349 = vmatpush1.msra.mxu0 0.0
        %1350 = vmatprep.subr.mxu0 0.0
        %1351 = vmatpush1.msra.mxu0 0.0
        %1352 = vmatprep.subr.mxu0 0.0
        %1353 = vmatpush1.msra.mxu0 0.0
        %1354 = vmatprep.subr.mxu0 0.0
        %1355 = vmatpush1.msra.mxu0 0.0
        %1356 = vmatprep.subr.mxu0 0.0
        %1357 = vmatpush1.msra.mxu0 0.0
        %1358 = vmatprep.subr.mxu0 0.0
        %1359 = vmatpush1.msra.mxu0 0.0
        %1360 = vmatprep.subr.mxu0 0.0
        %1361 = vmatpush1.msra.mxu0 0.0
        %1362 = vmatprep.mubr.f32.mxu0 0.0
        %1363 = vmatmul.mubr.f32.gmra.mrb[0].mxu0 %v1275
        %v1364 = vpop.f32.mrb[0].mxu0
        %v1365 = vadd.f32 0.0, %v1364
        %v1366 = vpop.f32.mrb[0].mxu0
        %1367 = vmatprep.mubr.f32.mxu0 0.0
        %1368 = vmatmul.mubr.f32.gmra.mrb[0].mxu0 %v1278
        %v1369 = vpop.f32.mrb[0].mxu0
        %v1370 = vadd.f32 0.0, %v1369
        %v1371 = vpop.f32.mrb[0].mxu0
        %1372 = vmatprep.mubr.f32.mxu0 0.0
        %1373 = vmatmul.mubr.f32.gmra.mrb[0].mxu0 %v1281
        %v1374 = vpop.f32.mrb[0].mxu0
        %v1375 = vadd.f32 0.0, %v1374
        %v1376 = vpop.f32.mrb[0].mxu0
        %1377 = vmatprep.mubr.f32.mxu0 0.0
        %1378 = vmatmul.mubr.f32.gmra.mrb[0].mxu0 %v1284
        %v1379 = vpop.f32.mrb[0].mxu0
        %v1380 = vadd.f32 0.0, %v1379
        %v1381 = vpop.f32.mrb[0].mxu0
        %1382 = vmatprep.mubr.f32.mxu0 0.0
        %1383 = vmatmul.mubr.f32.gmra.mrb[0].mxu0 %v1287
        %v1384 = vpop.f32.mrb[0].mxu0
        %v1385 = vadd.f32 0.0, %v1384
        %v1386 = vpop.f32.mrb[0].mxu0
        %1387 = vmatprep.mubr.f32.mxu0 0.0
        %1388 = vmatmul.mubr.f32.gmra.mrb[0].mxu0 %v1290
        %v1389 = vpop.f32.mrb[0].mxu0
        %v1390 = vadd.f32 0.0, %v1389
        %v1391 = vpop.f32.mrb[0].mxu0
        %1392 = vmatprep.mubr.f32.mxu0 0.0
        %1393 = vmatmul.mubr.f32.gmra.mrb[0].mxu0 %v1293
        %v1394 = vpop.f32.mrb[0].mxu0
        %v1395 = vadd.f32 0.0, %v1394
        %v1396 = vpop.f32.mrb[0].mxu0
        %1397 = vmatprep.mubr.f32.mxu0 0.0
        %1398 = vmatmul.mubr.f32.gmra.mrb[0].mxu0 %v1296
        %v1399 = vpop.f32.mrb[0].mxu0
        %v1400 = vadd.f32 0.0, %v1399
        %v1401 = vpop.f32.mrb[0].mxu0
        %1402 = vdwg.mxu0
        %v1403 = vsel %vm947, %v1365, 0.0
        %v1404 = vsel %vm947, %v1370, 0.0
        %v1405 = vadd.f32 %v1403, %v1404
        %v1406 = vsel %vm947, %v1375, 0.0
        %v1407 = vadd.f32 %v1405, %v1406
        %v1408 = vsel %vm947, %v1380, 0.0
        %v1409 = vadd.f32 %v1407, %v1408
        %v1410 = vsel %vm947, %v1385, 0.0
        %v1411 = vadd.f32 %v1409, %v1410
        %v1412 = vsel %vm947, %v1390, 0.0
        %v1413 = vadd.f32 %v1411, %v1412
        %v1414 = vsel %vm947, %v1395, 0.0
        %v1415 = vadd.f32 %v1413, %v1414
        %v1416 = vsel %vm947, %v1400, 0.0
        %v1417 = vadd.f32 %v1415, %v1416
        %v1418 = vrot.slane %v1417, 4
        %v1419 = vadd.f32 %v1417, %v1418
        %v1420 = vrot.slane %v1419, 2
        %v1421 = vadd.f32 %v1419, %v1420
        %v1422 = vrot.slane %v1421, 1
        %v1423 = vadd.f32 %v1421, %v1422
        %v1424 = vsub.f32 %v935, %v1423
        %v1425 = vsub.f32 %v936, %v1423
        %v1426 = vsub.f32 %v937, %v1423
        %v1427 = vsub.f32 %v938, %v1423
        %v1428 = vsub.f32 %v939, %v1423
        %v1429 = vsub.f32 %v940, %v1423
        %v1430 = vsub.f32 %v941, %v1423
        %v1431 = vsub.f32 %v942, %v1423
        %v1432 = vmul.f32 %v1424, %v1424
        %v1433 = vmul.f32 %v1425, %v1425
        %v1434 = vmul.f32 %v1426, %v1426
        %v1435 = vmul.f32 %v1427, %v1427
        %v1436 = vmul.f32 %v1428, %v1428
        %v1437 = vmul.f32 %v1429, %v1429
        %v1438 = vmul.f32 %v1430, %v1430
        %v1439 = vmul.f32 %v1431, %v1431
        %v1441 = vsel %vm947, %v1432, 0
        %v1444 = vsel %vm947, %v1433, 0
        %v1447 = vsel %vm947, %v1434, 0
        %v1450 = vsel %vm947, %v1435, 0
        %v1453 = vsel %vm947, %v1436, 0
        %v1456 = vsel %vm947, %v1437, 0
        %v1459 = vsel %vm947, %v1438, 0
        %v1462 = vsel %vm947, %v1439, 0
        %1464 = vmatprep.subr.mxu0 0.0
        %1465 = vmatpush1.msra.mxu0 %v943
        %1466 = vmatprep.subr.mxu0 0.0
        %1467 = vmatpush1.msra.mxu0 %v944
        %1468 = vmatprep.subr.mxu0 0.0
        %1469 = vmatpush1.msra.mxu0 %v945
        %1470 = vmatprep.subr.mxu0 0.0
        %1471 = vmatpush1.msra.mxu0 %v946
        %1472 = vmatprep.subr.mxu0 0.0
        %1473 = vmatpush1.msra.mxu0 0.0
        %1474 = vmatprep.subr.mxu0 0.0
        %1475 = vmatpush1.msra.mxu0 0.0
        %1476 = vmatprep.subr.mxu0 0.0
        %1477 = vmatpush1.msra.mxu0 0.0
        %1478 = vmatprep.subr.mxu0 0.0
        %1479 = vmatpush1.msra.mxu0 0.0
        %1480 = vmatprep.subr.mxu0 0.0
        %1481 = vmatpush1.msra.mxu0 0.0
        %1482 = vmatprep.subr.mxu0 0.0
        %1483 = vmatpush1.msra.mxu0 0.0
        %1484 = vmatprep.subr.mxu0 0.0
        %1485 = vmatpush1.msra.mxu0 0.0
        %1486 = vmatprep.subr.mxu0 0.0
        %1487 = vmatpush1.msra.mxu0 0.0
        %1488 = vmatprep.subr.mxu0 0.0
        %1489 = vmatpush1.msra.mxu0 0.0
        %1490 = vmatprep.subr.mxu0 0.0
        %1491 = vmatpush1.msra.mxu0 0.0
        %1492 = vmatprep.subr.mxu0 0.0
        %1493 = vmatpush1.msra.mxu0 0.0
        %1494 = vmatprep.subr.mxu0 0.0
        %1495 = vmatpush1.msra.mxu0 0.0
        %1496 = vmatprep.subr.mxu0 0.0
        %1497 = vmatpush1.msra.mxu0 0.0
        %1498 = vmatprep.subr.mxu0 0.0
        %1499 = vmatpush1.msra.mxu0 0.0
        %1500 = vmatprep.subr.mxu0 0.0
        %1501 = vmatpush1.msra.mxu0 0.0
        %1502 = vmatprep.subr.mxu0 0.0
        %1503 = vmatpush1.msra.mxu0 0.0
        %1504 = vmatprep.subr.mxu0 0.0
        %1505 = vmatpush1.msra.mxu0 0.0
        %1506 = vmatprep.subr.mxu0 0.0
        %1507 = vmatpush1.msra.mxu0 0.0
        %1508 = vmatprep.subr.mxu0 0.0
        %1509 = vmatpush1.msra.mxu0 0.0
        %1510 = vmatprep.subr.mxu0 0.0
        %1511 = vmatpush1.msra.mxu0 0.0
        %1512 = vmatprep.subr.mxu0 0.0
        %1513 = vmatpush1.msra.mxu0 0.0
        %1514 = vmatprep.subr.mxu0 0.0
        %1515 = vmatpush1.msra.mxu0 0.0
        %1516 = vmatprep.subr.mxu0 0.0
        %1517 = vmatpush1.msra.mxu0 0.0
        %1518 = vmatprep.subr.mxu0 0.0
        %1519 = vmatpush1.msra.mxu0 0.0
        %1520 = vmatprep.subr.mxu0 0.0
        %1521 = vmatpush1.msra.mxu0 0.0
        %1522 = vmatprep.subr.mxu0 0.0
        %1523 = vmatpush1.msra.mxu0 0.0
        %1524 = vmatprep.subr.mxu0 0.0
        %1525 = vmatpush1.msra.mxu0 0.0
        %1526 = vmatprep.subr.mxu0 0.0
        %1527 = vmatpush1.msra.mxu0 0.0
        %1528 = vmatprep.mubr.f32.mxu0 0.0
        %1529 = vmatmul.mubr.f32.gmra.mrb[0].mxu0 %v1441
        %v1530 = vpop.f32.mrb[0].mxu0
        %v1531 = vadd.f32 0.0, %v1530
        %v1532 = vpop.f32.mrb[0].mxu0
        %1533 = vmatprep.mubr.f32.mxu0 0.0
        %1534 = vmatmul.mubr.f32.gmra.mrb[0].mxu0 %v1444
        %v1535 = vpop.f32.mrb[0].mxu0
        %v1536 = vadd.f32 0.0, %v1535
        %v1537 = vpop.f32.mrb[0].mxu0
        %1538 = vmatprep.mubr.f32.mxu0 0.0
        %1539 = vmatmul.mubr.f32.gmra.mrb[0].mxu0 %v1447
        %v1540 = vpop.f32.mrb[0].mxu0
        %v1541 = vadd.f32 0.0, %v1540
        %v1542 = vpop.f32.mrb[0].mxu0
        %1543 = vmatprep.mubr.f32.mxu0 0.0
        %1544 = vmatmul.mubr.f32.gmra.mrb[0].mxu0 %v1450
        %v1545 = vpop.f32.mrb[0].mxu0
        %v1546 = vadd.f32 0.0, %v1545
        %v1547 = vpop.f32.mrb[0].mxu0
        %1548 = vmatprep.mubr.f32.mxu0 0.0
        %1549 = vmatmul.mubr.f32.gmra.mrb[0].mxu0 %v1453
        %v1550 = vpop.f32.mrb[0].mxu0
        %v1551 = vadd.f32 0.0, %v1550
        %v1552 = vpop.f32.mrb[0].mxu0
        %1553 = vmatprep.mubr.f32.mxu0 0.0
        %1554 = vmatmul.mubr.f32.gmra.mrb[0].mxu0 %v1456
        %v1555 = vpop.f32.mrb[0].mxu0
        %v1556 = vadd.f32 0.0, %v1555
        %v1557 = vpop.f32.mrb[0].mxu0
        %1558 = vmatprep.mubr.f32.mxu0 0.0
        %1559 = vmatmul.mubr.f32.gmra.mrb[0].mxu0 %v1459
        %v1560 = vpop.f32.mrb[0].mxu0
        %v1561 = vadd.f32 0.0, %v1560
        %v1562 = vpop.f32.mrb[0].mxu0
        %1563 = vmatprep.mubr.f32.mxu0 0.0
        %1564 = vmatmul.mubr.f32.gmra.mrb[0].mxu0 %v1462
        %v1565 = vpop.f32.mrb[0].mxu0
        %v1566 = vadd.f32 0.0, %v1565
        %v1567 = vpop.f32.mrb[0].mxu0
        %1568 = vdwg.mxu0
        %v1569 = vsel %vm947, %v1531, 0.0
        %v1570 = vsel %vm947, %v1536, 0.0
        %v1571 = vadd.f32 %v1569, %v1570
        %v1572 = vsel %vm947, %v1541, 0.0
        %v1573 = vadd.f32 %v1571, %v1572
        %v1574 = vsel %vm947, %v1546, 0.0
        %v1575 = vadd.f32 %v1573, %v1574
        %v1576 = vsel %vm947, %v1551, 0.0
        %v1577 = vadd.f32 %v1575, %v1576
        %v1578 = vsel %vm947, %v1556, 0.0
        %v1579 = vadd.f32 %v1577, %v1578
        %v1580 = vsel %vm947, %v1561, 0.0
        %v1581 = vadd.f32 %v1579, %v1580
        %v1582 = vsel %vm947, %v1566, 0.0
        %v1583 = vadd.f32 %v1581, %v1582
        %v1584 = vrot.slane %v1583, 4
        %v1585 = vadd.f32 %v1583, %v1584
        %v1586 = vrot.slane %v1585, 2
        %v1587 = vadd.f32 %v1585, %v1586
        %v1588 = vrot.slane %v1587, 1
        %v1589 = vadd.f32 %v1587, %v1588
        %v1590 = vadd.f32 %v1589, 1e-06
        %v1591 = vrsqrt.pop %v1590
        %v1592 = vmul.f32 %v1424, %v1591
        %v1593 = vmul.f32 %v1425, %v1591
        %v1594 = vmul.f32 %v1426, %v1591
        %v1595 = vmul.f32 %v1427, %v1591
        %v1596 = vmul.f32 %v1428, %v1591
        %v1597 = vmul.f32 %v1429, %v1591
        %v1598 = vmul.f32 %v1430, %v1591
        %v1599 = vmul.f32 %v1431, %v1591
        %v1600 = vld [vmem:[#allocation7] sm:$0x1]
        %v1602 = vlaneseq
        %v1603 = vshrl.u32 %v1602, 7
        %v1604 = vsub.s32 0, %v1603
        %v1605 = vrot.slane %v1600, %v1604
        %v1607 = vmul.f32 %v1266, %v1605
        %v1608 = vmul.f32 %v1267, %v1605
        %v1609 = vmul.f32 %v1268, %v1605
        %v1610 = vmul.f32 %v1269, %v1605
        %v1611 = vmul.f32 %v1270, %v1605
        %v1612 = vmul.f32 %v1271, %v1605
        %v1613 = vmul.f32 %v1272, %v1605
        %v1614 = vmul.f32 %v1273, %v1605
        %v1615 = vmul.f32 %v1592, %v1605
        %v1616 = vmul.f32 %v1593, %v1605
        %v1617 = vmul.f32 %v1594, %v1605
        %v1618 = vmul.f32 %v1595, %v1605
        %v1619 = vmul.f32 %v1596, %v1605
        %v1620 = vmul.f32 %v1597, %v1605
        %v1621 = vmul.f32 %v1598, %v1605
        %v1622 = vmul.f32 %v1599, %v1605
        %v1623 = vld [vmem:[#allocation8] sm:$0x1]
        %v1625 = vlaneseq
        %v1626 = vshrl.u32 %v1625, 7
        %v1627 = vsub.s32 0, %v1626
        %v1628 = vrot.slane %v1623, %v1627
        %v1630 = vadd.f32 %v1607, %v1628
        %v1631 = vadd.f32 %v1608, %v1628
        %v1632 = vadd.f32 %v1609, %v1628
        %v1633 = vadd.f32 %v1610, %v1628
        %v1634 = vadd.f32 %v1611, %v1628
        %v1635 = vadd.f32 %v1612, %v1628
        %v1636 = vadd.f32 %v1613, %v1628
        %v1637 = vadd.f32 %v1614, %v1628
        %v1638 = vadd.f32 %v1615, %v1628
        %v1639 = vadd.f32 %v1616, %v1628
        %v1640 = vadd.f32 %v1617, %v1628
        %v1641 = vadd.f32 %v1618, %v1628
        %v1642 = vadd.f32 %v1619, %v1628
        %v1643 = vadd.f32 %v1620, %v1628
        %v1644 = vadd.f32 %v1621, %v1628
        %v1645 = vadd.f32 %v1622, %v1628
        %v1646 = vld [vmem:[%s4] sm:$0xff]
        %v1647 = vld [vmem:[%s4 + $0x8] sm:$0xff]
        %v1648 = vld [vmem:[%s4 + $0x10] sm:$0xff]
        %v1649 = vld [vmem:[%s4 + $0x18] sm:$0xff]
        %v1650 = vld [vmem:[%s5] sm:$0x1]
        %v1652 = vlaneseq
        %v1653 = vshrl.u32 %v1652, 7
        %v1654 = vsub.s32 0, %v1653
        %v1655 = vrot.slane %v1650, %v1654
        %v1658 = vsel %vm947, %v1630, 0
        %v1661 = vsel %vm947, %v1631, 0
        %v1664 = vsel %vm947, %v1632, 0
        %v1667 = vsel %vm947, %v1633, 0
        %v1670 = vsel %vm947, %v1634, 0
        %v1673 = vsel %vm947, %v1635, 0
        %v1676 = vsel %vm947, %v1636, 0
        %v1679 = vsel %vm947, %v1637, 0
        %v1682 = vsel %vm947, %v1638, 0
        %v1685 = vsel %vm947, %v1639, 0
        %v1688 = vsel %vm947, %v1640, 0
        %v1691 = vsel %vm947, %v1641, 0
        %v1694 = vsel %vm947, %v1642, 0
        %v1697 = vsel %vm947, %v1643, 0
        %v1700 = vsel %vm947, %v1644, 0
        %v1703 = vsel %vm947, %v1645, 0
        %1705 = vmatprep.subr.mxu0 0.0
        %1706 = vmatpush1.msra.mxu0 %v1646
        %1707 = vmatprep.subr.mxu0 0.0
        %1708 = vmatpush1.msra.mxu0 %v1647
        %1709 = vmatprep.subr.mxu0 0.0
        %1710 = vmatpush1.msra.mxu0 %v1648
        %1711 = vmatprep.subr.mxu0 0.0
        %1712 = vmatpush1.msra.mxu0 %v1649
        %1713 = vmatprep.subr.mxu0 0.0
        %1714 = vmatpush1.msra.mxu0 0.0
        %1715 = vmatprep.subr.mxu0 0.0
        %1716 = vmatpush1.msra.mxu0 0.0
        %1717 = vmatprep.subr.mxu0 0.0
        %1718 = vmatpush1.msra.mxu0 0.0
        %1719 = vmatprep.subr.mxu0 0.0
        %1720 = vmatpush1.msra.mxu0 0.0
        %1721 = vmatprep.subr.mxu0 0.0
        %1722 = vmatpush1.msra.mxu0 0.0
        %1723 = vmatprep.subr.mxu0 0.0
        %1724 = vmatpush1.msra.mxu0 0.0
        %1725 = vmatprep.subr.mxu0 0.0
        %1726 = vmatpush1.msra.mxu0 0.0
        %1727 = vmatprep.subr.mxu0 0.0
        %1728 = vmatpush1.msra.mxu0 0.0
        %1729 = vmatprep.subr.mxu0 0.0
        %1730 = vmatpush1.msra.mxu0 0.0
        %1731 = vmatprep.subr.mxu0 0.0
        %1732 = vmatpush1.msra.mxu0 0.0
        %1733 = vmatprep.subr.mxu0 0.0
        %1734 = vmatpush1.msra.mxu0 0.0
        %1735 = vmatprep.subr.mxu0 0.0
        %1736 = vmatpush1.msra.mxu0 0.0
        %1737 = vmatprep.subr.mxu0 0.0
        %1738 = vmatpush1.msra.mxu0 0.0
        %1739 = vmatprep.subr.mxu0 0.0
        %1740 = vmatpush1.msra.mxu0 0.0
        %1741 = vmatprep.subr.mxu0 0.0
        %1742 = vmatpush1.msra.mxu0 0.0
        %1743 = vmatprep.subr.mxu0 0.0
        %1744 = vmatpush1.msra.mxu0 0.0
        %1745 = vmatprep.subr.mxu0 0.0
        %1746 = vmatpush1.msra.mxu0 0.0
        %1747 = vmatprep.subr.mxu0 0.0
        %1748 = vmatpush1.msra.mxu0 0.0
        %1749 = vmatprep.subr.mxu0 0.0
        %1750 = vmatpush1.msra.mxu0 0.0
        %1751 = vmatprep.subr.mxu0 0.0
        %1752 = vmatpush1.msra.mxu0 0.0
        %1753 = vmatprep.subr.mxu0 0.0
        %1754 = vmatpush1.msra.mxu0 0.0
        %1755 = vmatprep.subr.mxu0 0.0
        %1756 = vmatpush1.msra.mxu0 0.0
        %1757 = vmatprep.subr.mxu0 0.0
        %1758 = vmatpush1.msra.mxu0 0.0
        %1759 = vmatprep.subr.mxu0 0.0
        %1760 = vmatpush1.msra.mxu0 0.0
        %1761 = vmatprep.subr.mxu0 0.0
        %1762 = vmatpush1.msra.mxu0 0.0
        %1763 = vmatprep.subr.mxu0 0.0
        %1764 = vmatpush1.msra.mxu0 0.0
        %1765 = vmatprep.subr.mxu0 0.0
        %1766 = vmatpush1.msra.mxu0 0.0
        %1767 = vmatprep.subr.mxu0 0.0
        %1768 = vmatpush1.msra.mxu0 0.0
        %1769 = vmatprep.mubr.f32.mxu0 0.0
        %1770 = vmatmul.mubr.f32.gmra.mrb[0].mxu0 %v1658
        %v1771 = vpop.f32.mrb[0].mxu0
        %v1772 = vadd.f32 %v1655, %v1771
        %v1773 = vpop.f32.mrb[0].mxu0
        %1774 = vmatprep.mubr.f32.mxu0 0.0
        %1775 = vmatmul.mubr.f32.gmra.mrb[0].mxu0 %v1661
        %v1776 = vpop.f32.mrb[0].mxu0
        %v1777 = vadd.f32 %v1655, %v1776
        %v1778 = vpop.f32.mrb[0].mxu0
        %1779 = vmatprep.mubr.f32.mxu0 0.0
        %1780 = vmatmul.mubr.f32.gmra.mrb[0].mxu0 %v1664
        %v1781 = vpop.f32.mrb[0].mxu0
        %v1782 = vadd.f32 %v1655, %v1781
        %v1783 = vpop.f32.mrb[0].mxu0
        %1784 = vmatprep.mubr.f32.mxu0 0.0
        %1785 = vmatmul.mubr.f32.gmra.mrb[0].mxu0 %v1667
        %v1786 = vpop.f32.mrb[0].mxu0
        %v1787 = vadd.f32 %v1655, %v1786
        %v1788 = vpop.f32.mrb[0].mxu0
        %1789 = vmatprep.mubr.f32.mxu0 0.0
        %1790 = vmatmul.mubr.f32.gmra.mrb[0].mxu0 %v1670
        %v1791 = vpop.f32.mrb[0].mxu0
        %v1792 = vadd.f32 %v1655, %v1791
        %v1793 = vpop.f32.mrb[0].mxu0
        %1794 = vmatprep.mubr.f32.mxu0 0.0
        %1795 = vmatmul.mubr.f32.gmra.mrb[0].mxu0 %v1673
        %v1796 = vpop.f32.mrb[0].mxu0
        %v1797 = vadd.f32 %v1655, %v1796
        %v1798 = vpop.f32.mrb[0].mxu0
        %1799 = vmatprep.mubr.f32.mxu0 0.0
        %1800 = vmatmul.mubr.f32.gmra.mrb[0].mxu0 %v1676
        %v1801 = vpop.f32.mrb[0].mxu0
        %v1802 = vadd.f32 %v1655, %v1801
        %v1803 = vpop.f32.mrb[0].mxu0
        %1804 = vmatprep.mubr.f32.mxu0 0.0
        %1805 = vmatmul.mubr.f32.gmra.mrb[0].mxu0 %v1679
        %v1806 = vpop.f32.mrb[0].mxu0
        %v1807 = vadd.f32 %v1655, %v1806
        %v1808 = vpop.f32.mrb[0].mxu0
        %1809 = vmatprep.mubr.f32.mxu0 0.0
        %1810 = vmatmul.mubr.f32.gmra.mrb[0].mxu0 %v1682
        %v1811 = vpop.f32.mrb[0].mxu0
        %v1812 = vadd.f32 %v1655, %v1811
        %v1813 = vpop.f32.mrb[0].mxu0
        %1814 = vmatprep.mubr.f32.mxu0 0.0
        %1815 = vmatmul.mubr.f32.gmra.mrb[0].mxu0 %v1685
        %v1816 = vpop.f32.mrb[0].mxu0
        %v1817 = vadd.f32 %v1655, %v1816
        %v1818 = vpop.f32.mrb[0].mxu0
        %1819 = vmatprep.mubr.f32.mxu0 0.0
        %1820 = vmatmul.mubr.f32.gmra.mrb[0].mxu0 %v1688
        %v1821 = vpop.f32.mrb[0].mxu0
        %v1822 = vadd.f32 %v1655, %v1821
        %v1823 = vpop.f32.mrb[0].mxu0
        %1824 = vmatprep.mubr.f32.mxu0 0.0
        %1825 = vmatmul.mubr.f32.gmra.mrb[0].mxu0 %v1691
        %v1826 = vpop.f32.mrb[0].mxu0
        %v1827 = vadd.f32 %v1655, %v1826
        %v1828 = vpop.f32.mrb[0].mxu0
        %1829 = vmatprep.mubr.f32.mxu0 0.0
        %1830 = vmatmul.mubr.f32.gmra.mrb[0].mxu0 %v1694
        %v1831 = vpop.f32.mrb[0].mxu0
        %v1832 = vadd.f32 %v1655, %v1831
        %v1833 = vpop.f32.mrb[0].mxu0
        %1834 = vmatprep.mubr.f32.mxu0 0.0
        %1835 = vmatmul.mubr.f32.gmra.mrb[0].mxu0 %v1697
        %v1836 = vpop.f32.mrb[0].mxu0
        %v1837 = vadd.f32 %v1655, %v1836
        %v1838 = vpop.f32.mrb[0].mxu0
        %1839 = vmatprep.mubr.f32.mxu0 0.0
        %1840 = vmatmul.mubr.f32.gmra.mrb[0].mxu0 %v1700
        %v1841 = vpop.f32.mrb[0].mxu0
        %v1842 = vadd.f32 %v1655, %v1841
        %v1843 = vpop.f32.mrb[0].mxu0
        %1844 = vmatprep.mubr.f32.mxu0 0.0
        %1845 = vmatmul.mubr.f32.gmra.mrb[0].mxu0 %v1703
        %v1846 = vpop.f32.mrb[0].mxu0
        %v1847 = vadd.f32 %v1655, %v1846
        %v1848 = vpop.f32.mrb[0].mxu0
        %1849 = vdwg.mxu0
        %v1850 = vld [vmem:[#allocation10] sm:$0x1]
        %v1851 = vld [vmem:[#allocation11] sm:$0x1]
        %v1852 = vsel %vm947, %v1772, 0.0
        %1853 = vadd.xlane.f32.xlu0 %v1852
        %v1854 = vpop.xlane.xlu0 %1853
        %v1855 = vsel %vm947, %v1777, 0.0
        %1856 = vadd.xlane.f32.xlu0 %v1855
        %v1857 = vpop.xlane.xlu0 %1856
        %v1858 = vsel %vm947, %v1782, 0.0
        %1859 = vadd.xlane.f32.xlu0 %v1858
        %v1860 = vpop.xlane.xlu0 %1859
        %v1861 = vsel %vm947, %v1787, 0.0
        %1862 = vadd.xlane.f32.xlu0 %v1861
        %v1863 = vpop.xlane.xlu0 %1862
        %v1864 = vsel %vm947, %v1792, 0.0
        %1865 = vadd.xlane.f32.xlu0 %v1864
        %v1866 = vpop.xlane.xlu0 %1865
        %v1867 = vsel %vm947, %v1797, 0.0
        %1868 = vadd.xlane.f32.xlu0 %v1867
        %v1869 = vpop.xlane.xlu0 %1868
        %v1870 = vsel %vm947, %v1802, 0.0
        %1871 = vadd.xlane.f32.xlu0 %v1870
        %v1872 = vpop.xlane.xlu0 %1871
        %v1873 = vsel %vm947, %v1807, 0.0
        %1874 = vadd.xlane.f32.xlu0 %v1873
        %v1875 = vpop.xlane.xlu0 %1874
        %v1876 = vsel %vm947, %v1812, 0.0
        %1877 = vadd.xlane.f32.xlu0 %v1876
        %v1878 = vpop.xlane.xlu0 %1877
        %v1879 = vsel %vm947, %v1817, 0.0
        %1880 = vadd.xlane.f32.xlu0 %v1879
        %v1881 = vpop.xlane.xlu0 %1880
        %v1882 = vsel %vm947, %v1822, 0.0
        %1883 = vadd.xlane.f32.xlu0 %v1882
        %v1884 = vpop.xlane.xlu0 %1883
        %v1885 = vsel %vm947, %v1827, 0.0
        %1886 = vadd.xlane.f32.xlu0 %v1885
        %v1887 = vpop.xlane.xlu0 %1886
        %v1888 = vsel %vm947, %v1832, 0.0
        %1889 = vadd.xlane.f32.xlu0 %v1888
        %v1890 = vpop.xlane.xlu0 %1889
        %v1891 = vsel %vm947, %v1837, 0.0
        %1892 = vadd.xlane.f32.xlu0 %v1891
        %v1893 = vpop.xlane.xlu0 %1892
        %v1894 = vsel %vm947, %v1842, 0.0
        %1895 = vadd.xlane.f32.xlu0 %v1894
        %v1896 = vpop.xlane.xlu0 %1895
        %v1897 = vsel %vm947, %v1847, 0.0
        %1898 = vadd.xlane.f32.xlu0 %v1897
        %v1899 = vpop.xlane.xlu0 %1898
        %v1900 = vrcp.pop 32.0
        %v1901 = vmul.f32 %v1854, %v1900
        %v1902 = vmul.f32 %v1857, %v1900
        %v1903 = vmul.f32 %v1860, %v1900
        %v1904 = vmul.f32 %v1863, %v1900
        %v1905 = vmul.f32 %v1866, %v1900
        %v1906 = vmul.f32 %v1869, %v1900
        %v1907 = vmul.f32 %v1872, %v1900
        %v1908 = vmul.f32 %v1875, %v1900
        %v1909 = vmul.f32 %v1878, %v1900
        %v1910 = vmul.f32 %v1881, %v1900
        %v1911 = vmul.f32 %v1884, %v1900
        %v1912 = vmul.f32 %v1887, %v1900
        %v1913 = vmul.f32 %v1890, %v1900
        %v1914 = vmul.f32 %v1893, %v1900
        %v1915 = vmul.f32 %v1896, %v1900
        %v1916 = vmul.f32 %v1899, %v1900
        %v1917 = vsub.f32 %v1772, %v1901
        %v1918 = vsub.f32 %v1777, %v1902
        %v1919 = vsub.f32 %v1782, %v1903
        %v1920 = vsub.f32 %v1787, %v1904
        %v1921 = vsub.f32 %v1792, %v1905
        %v1922 = vsub.f32 %v1797, %v1906
        %v1923 = vsub.f32 %v1802, %v1907
        %v1924 = vsub.f32 %v1807, %v1908
        %v1925 = vsub.f32 %v1812, %v1909
        %v1926 = vsub.f32 %v1817, %v1910
        %v1927 = vsub.f32 %v1822, %v1911
        %v1928 = vsub.f32 %v1827, %v1912
        %v1929 = vsub.f32 %v1832, %v1913
        %v1930 = vsub.f32 %v1837, %v1914
        %v1931 = vsub.f32 %v1842, %v1915
        %v1932 = vsub.f32 %v1847, %v1916
        %v1933 = vmul.f32 %v1917, %v1917
        %v1934 = vmul.f32 %v1918, %v1918
        %v1935 = vmul.f32 %v1919, %v1919
        %v1936 = vmul.f32 %v1920, %v1920
        %v1937 = vmul.f32 %v1921, %v1921
        %v1938 = vmul.f32 %v1922, %v1922
        %v1939 = vmul.f32 %v1923, %v1923
        %v1940 = vmul.f32 %v1924, %v1924
        %v1941 = vmul.f32 %v1925, %v1925
        %v1942 = vmul.f32 %v1926, %v1926
        %v1943 = vmul.f32 %v1927, %v1927
        %v1944 = vmul.f32 %v1928, %v1928
        %v1945 = vmul.f32 %v1929, %v1929
        %v1946 = vmul.f32 %v1930, %v1930
        %v1947 = vmul.f32 %v1931, %v1931
        %v1948 = vmul.f32 %v1932, %v1932
        %v1949 = vsel %vm947, %v1933, 0.0
        %1950 = vadd.xlane.f32.xlu0 %v1949
        %v1951 = vpop.xlane.xlu0 %1950
        %v1952 = vsel %vm947, %v1934, 0.0
        %1953 = vadd.xlane.f32.xlu0 %v1952
        %v1954 = vpop.xlane.xlu0 %1953
        %v1955 = vsel %vm947, %v1935, 0.0
        %1956 = vadd.xlane.f32.xlu0 %v1955
        %v1957 = vpop.xlane.xlu0 %1956
        %v1958 = vsel %vm947, %v1936, 0.0
        %1959 = vadd.xlane.f32.xlu0 %v1958
        %v1960 = vpop.xlane.xlu0 %1959
        %v1961 = vsel %vm947, %v1937, 0.0
        %1962 = vadd.xlane.f32.xlu0 %v1961
        %v1963 = vpop.xlane.xlu0 %1962
        %v1964 = vsel %vm947, %v1938, 0.0
        %1965 = vadd.xlane.f32.xlu0 %v1964
        %v1966 = vpop.xlane.xlu0 %1965
        %v1967 = vsel %vm947, %v1939, 0.0
        %1968 = vadd.xlane.f32.xlu0 %v1967
        %v1969 = vpop.xlane.xlu0 %1968
        %v1970 = vsel %vm947, %v1940, 0.0
        %1971 = vadd.xlane.f32.xlu0 %v1970
        %v1972 = vpop.xlane.xlu0 %1971
        %v1973 = vsel %vm947, %v1941, 0.0
        %1974 = vadd.xlane.f32.xlu0 %v1973
        %v1975 = vpop.xlane.xlu0 %1974
        %v1976 = vsel %vm947, %v1942, 0.0
        %1977 = vadd.xlane.f32.xlu0 %v1976
        %v1978 = vpop.xlane.xlu0 %1977
        %v1979 = vsel %vm947, %v1943, 0.0
        %1980 = vadd.xlane.f32.xlu0 %v1979
        %v1981 = vpop.xlane.xlu0 %1980
        %v1982 = vsel %vm947, %v1944, 0.0
        %1983 = vadd.xlane.f32.xlu0 %v1982
        %v1984 = vpop.xlane.xlu0 %1983
        %v1985 = vsel %vm947, %v1945, 0.0
        %1986 = vadd.xlane.f32.xlu0 %v1985
        %v1987 = vpop.xlane.xlu0 %1986
        %v1988 = vsel %vm947, %v1946, 0.0
        %1989 = vadd.xlane.f32.xlu0 %v1988
        %v1990 = vpop.xlane.xlu0 %1989
        %v1991 = vsel %vm947, %v1947, 0.0
        %1992 = vadd.xlane.f32.xlu0 %v1991
        %v1993 = vpop.xlane.xlu0 %1992
        %v1994 = vsel %vm947, %v1948, 0.0
        %1995 = vadd.xlane.f32.xlu0 %v1994
        %v1996 = vpop.xlane.xlu0 %1995
        %v1997 = vmul.f32 %v1951, %v1900
        %v1998 = vmul.f32 %v1954, %v1900
        %v1999 = vmul.f32 %v1957, %v1900
        %v2000 = vmul.f32 %v1960, %v1900
        %v2001 = vmul.f32 %v1963, %v1900
        %v2002 = vmul.f32 %v1966, %v1900
        %v2003 = vmul.f32 %v1969, %v1900
        %v2004 = vmul.f32 %v1972, %v1900
        %v2005 = vmul.f32 %v1975, %v1900
        %v2006 = vmul.f32 %v1978, %v1900
        %v2007 = vmul.f32 %v1981, %v1900
        %v2008 = vmul.f32 %v1984, %v1900
        %v2009 = vmul.f32 %v1987, %v1900
        %v2010 = vmul.f32 %v1990, %v1900
        %v2011 = vmul.f32 %v1993, %v1900
        %v2012 = vmul.f32 %v1996, %v1900
        %v2013 = vadd.f32 %v1997, 1e-05
        %v2014 = vadd.f32 %v1998, 1e-05
        %v2015 = vadd.f32 %v1999, 1e-05
        %v2016 = vadd.f32 %v2000, 1e-05
        %v2017 = vadd.f32 %v2001, 1e-05
        %v2018 = vadd.f32 %v2002, 1e-05
        %v2019 = vadd.f32 %v2003, 1e-05
        %v2020 = vadd.f32 %v2004, 1e-05
        %v2021 = vadd.f32 %v2005, 1e-05
        %v2022 = vadd.f32 %v2006, 1e-05
        %v2023 = vadd.f32 %v2007, 1e-05
        %v2024 = vadd.f32 %v2008, 1e-05
        %v2025 = vadd.f32 %v2009, 1e-05
        %v2026 = vadd.f32 %v2010, 1e-05
        %v2027 = vadd.f32 %v2011, 1e-05
        %v2028 = vadd.f32 %v2012, 1e-05
        %v2029 = vrsqrt.pop %v2013
        %v2030 = vrsqrt.pop %v2014
        %v2031 = vrsqrt.pop %v2015
        %v2032 = vrsqrt.pop %v2016
        %v2033 = vrsqrt.pop %v2017
        %v2034 = vrsqrt.pop %v2018
        %v2035 = vrsqrt.pop %v2019
        %v2036 = vrsqrt.pop %v2020
        %v2037 = vrsqrt.pop %v2021
        %v2038 = vrsqrt.pop %v2022
        %v2039 = vrsqrt.pop %v2023
        %v2040 = vrsqrt.pop %v2024
        %v2041 = vrsqrt.pop %v2025
        %v2042 = vrsqrt.pop %v2026
        %v2043 = vrsqrt.pop %v2027
        %v2044 = vrsqrt.pop %v2028
        %v2045 = vmul.f32 %v1917, %v2029
        %v2046 = vmul.f32 %v1918, %v2030
        %v2047 = vmul.f32 %v1919, %v2031
        %v2048 = vmul.f32 %v1920, %v2032
        %v2049 = vmul.f32 %v1921, %v2033
        %v2050 = vmul.f32 %v1922, %v2034
        %v2051 = vmul.f32 %v1923, %v2035
        %v2052 = vmul.f32 %v1924, %v2036
        %v2053 = vmul.f32 %v1925, %v2037
        %v2054 = vmul.f32 %v1926, %v2038
        %v2055 = vmul.f32 %v1927, %v2039
        %v2056 = vmul.f32 %v1928, %v2040
        %v2057 = vmul.f32 %v1929, %v2041
        %v2058 = vmul.f32 %v1930, %v2042
        %v2059 = vmul.f32 %v1931, %v2043
        %v2060 = vmul.f32 %v1932, %v2044
        %v2062 = vlaneseq
        %v2063 = vshrl.u32 %v2062, 7
        %v2064 = vsub.s32 0, %v2063
        %v2065 = vrot.slane %v1850, %v2064
        %v2067 = vmul.f32 %v2045, %v2065
        %v2068 = vmul.f32 %v2046, %v2065
        %v2069 = vmul.f32 %v2047, %v2065
        %v2070 = vmul.f32 %v2048, %v2065
        %v2071 = vmul.f32 %v2049, %v2065
        %v2072 = vmul.f32 %v2050, %v2065
        %v2073 = vmul.f32 %v2051, %v2065
        %v2074 = vmul.f32 %v2052, %v2065
        %v2075 = vmul.f32 %v2053, %v2065
        %v2076 = vmul.f32 %v2054, %v2065
        %v2077 = vmul.f32 %v2055, %v2065
        %v2078 = vmul.f32 %v2056, %v2065
        %v2079 = vmul.f32 %v2057, %v2065
        %v2080 = vmul.f32 %v2058, %v2065
        %v2081 = vmul.f32 %v2059, %v2065
        %v2082 = vmul.f32 %v2060, %v2065
        %v2084 = vlaneseq
        %v2085 = vshrl.u32 %v2084, 7
        %v2086 = vsub.s32 0, %v2085
        %v2087 = vrot.slane %v1851, %v2086
        %v2089 = vadd.f32 %v2067, %v2087
        %v2090 = vadd.f32 %v2068, %v2087
        %v2091 = vadd.f32 %v2069, %v2087
        %v2092 = vadd.f32 %v2070, %v2087
        %v2093 = vadd.f32 %v2071, %v2087
        %v2094 = vadd.f32 %v2072, %v2087
        %v2095 = vadd.f32 %v2073, %v2087
        %v2096 = vadd.f32 %v2074, %v2087
        %v2097 = vadd.f32 %v2075, %v2087
        %v2098 = vadd.f32 %v2076, %v2087
        %v2099 = vadd.f32 %v2077, %v2087
        %v2100 = vadd.f32 %v2078, %v2087
        %v2101 = vadd.f32 %v2079, %v2087
        %v2102 = vadd.f32 %v2080, %v2087
        %v2103 = vadd.f32 %v2081, %v2087
        %v2104 = vadd.f32 %v2082, %v2087
        %v2105 = vld [vmem:[%s8] sm:$0xff]
        %v2106 = vld [vmem:[%s8 + $0x8] sm:$0xff]
        %v2107 = vld [vmem:[%s8 + $0x10] sm:$0xff]
        %v2108 = vld [vmem:[%s8 + $0x18] sm:$0xff]
        %v2109 = vld [vmem:[%s9] sm:$0xff]
        %v2110 = vld [vmem:[%s9 + $0x8] sm:$0xff]
        %v2111 = vld [vmem:[%s9 + $0x10] sm:$0xff]
        %v2112 = vld [vmem:[%s9 + $0x18] sm:$0xff]
        %v2113 = vld [vmem:[#allocation13] sm:$0x1]
        %v2115 = vsel %vm947, %v2089, 0
        %v2118 = vsel %vm947, %v2090, 0
        %v2121 = vsel %vm947, %v2091, 0
        %v2124 = vsel %vm947, %v2092, 0
        %v2127 = vsel %vm947, %v2093, 0
        %v2130 = vsel %vm947, %v2094, 0
        %v2133 = vsel %vm947, %v2095, 0
        %v2136 = vsel %vm947, %v2096, 0
        %v2139 = vsel %vm947, %v2097, 0
        %v2142 = vsel %vm947, %v2098, 0
        %v2145 = vsel %vm947, %v2099, 0
        %v2148 = vsel %vm947, %v2100, 0
        %v2151 = vsel %vm947, %v2101, 0
        %v2154 = vsel %vm947, %v2102, 0
        %v2157 = vsel %vm947, %v2103, 0
        %v2160 = vsel %vm947, %v2104, 0
        %2162 = vmatprep.subr.mxu0 0.0
        %2163 = vmatpush1.msra.mxu0 %v2105
        %2164 = vmatprep.subr.mxu0 0.0
        %2165 = vmatpush1.msra.mxu0 %v2106
        %2166 = vmatprep.subr.mxu0 0.0
        %2167 = vmatpush1.msra.mxu0 %v2107
        %2168 = vmatprep.subr.mxu0 0.0
        %2169 = vmatpush1.msra.mxu0 %v2108
        %2170 = vmatprep.subr.mxu0 0.0
        %2171 = vmatpush1.msra.mxu0 0.0
        %2172 = vmatprep.subr.mxu0 0.0
        %2173 = vmatpush1.msra.mxu0 0.0
        %2174 = vmatprep.subr.mxu0 0.0
        %2175 = vmatpush1.msra.mxu0 0.0
        %2176 = vmatprep.subr.mxu0 0.0
        %2177 = vmatpush1.msra.mxu0 0.0
        %2178 = vmatprep.subr.mxu0 0.0
        %2179 = vmatpush1.msra.mxu0 0.0
        %2180 = vmatprep.subr.mxu0 0.0
        %2181 = vmatpush1.msra.mxu0 0.0
        %2182 = vmatprep.subr.mxu0 0.0
        %2183 = vmatpush1.msra.mxu0 0.0
        %2184 = vmatprep.subr.mxu0 0.0
        %2185 = vmatpush1.msra.mxu0 0.0
        %2186 = vmatprep.subr.mxu0 0.0
        %2187 = vmatpush1.msra.mxu0 0.0
        %2188 = vmatprep.subr.mxu0 0.0
        %2189 = vmatpush1.msra.mxu0 0.0
        %2190 = vmatprep.subr.mxu0 0.0
        %2191 = vmatpush1.msra.mxu0 0.0
        %2192 = vmatprep.subr.mxu0 0.0
        %2193 = vmatpush1.msra.mxu0 0.0
        %2194 = vmatprep.subr.mxu0 0.0
        %2195 = vmatpush1.msra.mxu0 0.0
        %2196 = vmatprep.subr.mxu0 0.0
        %2197 = vmatpush1.msra.mxu0 0.0
        %2198 = vmatprep.subr.mxu0 0.0
        %2199 = vmatpush1.msra.mxu0 0.0
        %2200 = vmatprep.subr.mxu0 0.0
        %2201 = vmatpush1.msra.mxu0 0.0
        %2202 = vmatprep.subr.mxu0 0.0
        %2203 = vmatpush1.msra.mxu0 0.0
        %2204 = vmatprep.subr.mxu0 0.0
        %2205 = vmatpush1.msra.mxu0 0.0
        %2206 = vmatprep.subr.mxu0 0.0
        %2207 = vmatpush1.msra.mxu0 0.0
        %2208 = vmatprep.subr.mxu0 0.0
        %2209 = vmatpush1.msra.mxu0 0.0
        %2210 = vmatprep.subr.mxu0 0.0
        %2211 = vmatpush1.msra.mxu0 0.0
        %2212 = vmatprep.subr.mxu0 0.0
        %2213 = vmatpush1.msra.mxu0 0.0
        %2214 = vmatprep.subr.mxu0 0.0
        %2215 = vmatpush1.msra.mxu0 0.0
        %2216 = vmatprep.subr.mxu0 0.0
        %2217 = vmatpush1.msra.mxu0 0.0
        %2218 = vmatprep.subr.mxu0 0.0
        %2219 = vmatpush1.msra.mxu0 0.0
        %2220 = vmatprep.subr.mxu0 0.0
        %2221 = vmatpush1.msra.mxu0 0.0
        %2222 = vmatprep.subr.mxu0 0.0
        %2223 = vmatpush1.msra.mxu0 0.0
        %2224 = vmatprep.subr.mxu0 0.0
        %2225 = vmatpush1.msra.mxu0 0.0
        %2226 = vmatprep.mubr.f32.mxu0 0.0
        %2227 = vmatmul.mubr.f32.gmra.mrb[0].mxu0 %v2115
        %v2228 = vpop.f32.mrb[0].mxu0
        %v2229 = vadd.f32 0.0, %v2228
        %v2230 = vpop.f32.mrb[0].mxu0
        %2231 = vmatprep.mubr.f32.mxu0 0.0
        %2232 = vmatmul.mubr.f32.gmra.mrb[0].mxu0 %v2118
        %v2233 = vpop.f32.mrb[0].mxu0
        %v2234 = vadd.f32 0.0, %v2233
        %v2235 = vpop.f32.mrb[0].mxu0
        %2236 = vmatprep.mubr.f32.mxu0 0.0
        %2237 = vmatmul.mubr.f32.gmra.mrb[0].mxu0 %v2121
        %v2238 = vpop.f32.mrb[0].mxu0
        %v2239 = vadd.f32 0.0, %v2238
        %v2240 = vpop.f32.mrb[0].mxu0
        %2241 = vmatprep.mubr.f32.mxu0 0.0
        %2242 = vmatmul.mubr.f32.gmra.mrb[0].mxu0 %v2124
        %v2243 = vpop.f32.mrb[0].mxu0
        %v2244 = vadd.f32 0.0, %v2243
        %v2245 = vpop.f32.mrb[0].mxu0
        %2246 = vmatprep.mubr.f32.mxu0 0.0
        %2247 = vmatmul.mubr.f32.gmra.mrb[0].mxu0 %v2127
        %v2248 = vpop.f32.mrb[0].mxu0
        %v2249 = vadd.f32 0.0, %v2248
        %v2250 = vpop.f32.mrb[0].mxu0
        %2251 = vmatprep.mubr.f32.mxu0 0.0
        %2252 = vmatmul.mubr.f32.gmra.mrb[0].mxu0 %v2130
        %v2253 = vpop.f32.mrb[0].mxu0
        %v2254 = vadd.f32 0.0, %v2253
        %v2255 = vpop.f32.mrb[0].mxu0
        %2256 = vmatprep.mubr.f32.mxu0 0.0
        %2257 = vmatmul.mubr.f32.gmra.mrb[0].mxu0 %v2133
        %v2258 = vpop.f32.mrb[0].mxu0
        %v2259 = vadd.f32 0.0, %v2258
        %v2260 = vpop.f32.mrb[0].mxu0
        %2261 = vmatprep.mubr.f32.mxu0 0.0
        %2262 = vmatmul.mubr.f32.gmra.mrb[0].mxu0 %v2136
        %v2263 = vpop.f32.mrb[0].mxu0
        %v2264 = vadd.f32 0.0, %v2263
        %v2265 = vpop.f32.mrb[0].mxu0
        %2266 = vmatprep.mubr.f32.mxu0 0.0
        %2267 = vmatmul.mubr.f32.gmra.mrb[0].mxu0 %v2139
        %v2268 = vpop.f32.mrb[0].mxu0
        %v2269 = vadd.f32 0.0, %v2268
        %v2270 = vpop.f32.mrb[0].mxu0
        %2271 = vmatprep.mubr.f32.mxu0 0.0
        %2272 = vmatmul.mubr.f32.gmra.mrb[0].mxu0 %v2142
        %v2273 = vpop.f32.mrb[0].mxu0
        %v2274 = vadd.f32 0.0, %v2273
        %v2275 = vpop.f32.mrb[0].mxu0
        %2276 = vmatprep.mubr.f32.mxu0 0.0
        %2277 = vmatmul.mubr.f32.gmra.mrb[0].mxu0 %v2145
        %v2278 = vpop.f32.mrb[0].mxu0
        %v2279 = vadd.f32 0.0, %v2278
        %v2280 = vpop.f32.mrb[0].mxu0
        %2281 = vmatprep.mubr.f32.mxu0 0.0
        %2282 = vmatmul.mubr.f32.gmra.mrb[0].mxu0 %v2148
        %v2283 = vpop.f32.mrb[0].mxu0
        %v2284 = vadd.f32 0.0, %v2283
        %v2285 = vpop.f32.mrb[0].mxu0
        %2286 = vmatprep.mubr.f32.mxu0 0.0
        %2287 = vmatmul.mubr.f32.gmra.mrb[0].mxu0 %v2151
        %v2288 = vpop.f32.mrb[0].mxu0
        %v2289 = vadd.f32 0.0, %v2288
        %v2290 = vpop.f32.mrb[0].mxu0
        %2291 = vmatprep.mubr.f32.mxu0 0.0
        %2292 = vmatmul.mubr.f32.gmra.mrb[0].mxu0 %v2154
        %v2293 = vpop.f32.mrb[0].mxu0
        %v2294 = vadd.f32 0.0, %v2293
        %v2295 = vpop.f32.mrb[0].mxu0
        %2296 = vmatprep.mubr.f32.mxu0 0.0
        %2297 = vmatmul.mubr.f32.gmra.mrb[0].mxu0 %v2157
        %v2298 = vpop.f32.mrb[0].mxu0
        %v2299 = vadd.f32 0.0, %v2298
        %v2300 = vpop.f32.mrb[0].mxu0
        %2301 = vmatprep.mubr.f32.mxu0 0.0
        %2302 = vmatmul.mubr.f32.gmra.mrb[0].mxu0 %v2160
        %v2303 = vpop.f32.mrb[0].mxu0
        %v2304 = vadd.f32 0.0, %v2303
        %v2305 = vpop.f32.mrb[0].mxu0
        %2306 = vdwg.mxu0
        %v2307 = vmul.f32 %v2229, 0.25
        %v2308 = vmul.f32 %v2234, 0.25
        %v2309 = vmul.f32 %v2239, 0.25
        %v2310 = vmul.f32 %v2244, 0.25
        %v2311 = vmul.f32 %v2249, 0.25
        %v2312 = vmul.f32 %v2254, 0.25
        %v2313 = vmul.f32 %v2259, 0.25
        %v2314 = vmul.f32 %v2264, 0.25
        %v2315 = vmul.f32 %v2269, 0.25
        %v2316 = vmul.f32 %v2274, 0.25
        %v2317 = vmul.f32 %v2279, 0.25
        %v2318 = vmul.f32 %v2284, 0.25
        %v2319 = vmul.f32 %v2289, 0.25
        %v2320 = vmul.f32 %v2294, 0.25
        %v2321 = vmul.f32 %v2299, 0.25
        %v2322 = vmul.f32 %v2304, 0.25
        %2339 = vrot.lane.b32.xlu0 %v2229, 96
        %v2340 = vpop.permute.xlu0 %2339
        %2341 = vrot.lane.b32.xlu0 %v2234, 96
        %v2342 = vpop.permute.xlu0 %2341
        %2343 = vrot.lane.b32.xlu0 %v2239, 96
        %v2344 = vpop.permute.xlu0 %2343
        %2345 = vrot.lane.b32.xlu0 %v2244, 96
        %v2346 = vpop.permute.xlu0 %2345
        %2347 = vrot.lane.b32.xlu0 %v2249, 96
        %v2348 = vpop.permute.xlu0 %2347
        %2349 = vrot.lane.b32.xlu0 %v2254, 96
        %v2350 = vpop.permute.xlu0 %2349
        %2351 = vrot.lane.b32.xlu0 %v2259, 96
        %v2352 = vpop.permute.xlu0 %2351
        %2353 = vrot.lane.b32.xlu0 %v2264, 96
        %v2354 = vpop.permute.xlu0 %2353
        %2355 = vrot.lane.b32.xlu0 %v2269, 96
        %v2356 = vpop.permute.xlu0 %2355
        %2357 = vrot.lane.b32.xlu0 %v2274, 96
        %v2358 = vpop.permute.xlu0 %2357
        %2359 = vrot.lane.b32.xlu0 %v2279, 96
        %v2360 = vpop.permute.xlu0 %2359
        %2361 = vrot.lane.b32.xlu0 %v2284, 96
        %v2362 = vpop.permute.xlu0 %2361
        %2363 = vrot.lane.b32.xlu0 %v2289, 96
        %v2364 = vpop.permute.xlu0 %2363
        %2365 = vrot.lane.b32.xlu0 %v2294, 96
        %v2366 = vpop.permute.xlu0 %2365
        %2367 = vrot.lane.b32.xlu0 %v2299, 96
        %v2368 = vpop.permute.xlu0 %2367
        %2369 = vrot.lane.b32.xlu0 %v2304, 96
        %v2370 = vpop.permute.xlu0 %2369
        %vm2371 = vcmask 130048
        %v2373 = vsel %vm2371, %v2307, 0
        %v2376 = vsel %vm2371, %v2308, 0
        %v2379 = vsel %vm2371, %v2309, 0
        %v2382 = vsel %vm2371, %v2310, 0
        %v2385 = vsel %vm2371, %v2311, 0
        %v2388 = vsel %vm2371, %v2312, 0
        %v2391 = vsel %vm2371, %v2313, 0
        %v2394 = vsel %vm2371, %v2314, 0
        %v2397 = vsel %vm2371, %v2315, 0
        %v2400 = vsel %vm2371, %v2316, 0
        %v2403 = vsel %vm2371, %v2317, 0
        %v2406 = vsel %vm2371, %v2318, 0
        %v2409 = vsel %vm2371, %v2319, 0
        %v2412 = vsel %vm2371, %v2320, 0
        %v2415 = vsel %vm2371, %v2321, 0
        %v2418 = vsel %vm2371, %v2322, 0
        %v2420 = vsel %vm2371, %v2340, 0
        %v2422 = vsel %vm2371, %v2342, 0
        %v2424 = vsel %vm2371, %v2344, 0
        %v2426 = vsel %vm2371, %v2346, 0
        %v2428 = vsel %vm2371, %v2348, 0
        %v2430 = vsel %vm2371, %v2350, 0
        %v2432 = vsel %vm2371, %v2352, 0
        %v2434 = vsel %vm2371, %v2354, 0
        %v2436 = vsel %vm2371, %v2356, 0
        %v2438 = vsel %vm2371, %v2358, 0
        %v2440 = vsel %vm2371, %v2360, 0
        %v2442 = vsel %vm2371, %v2362, 0
        %v2444 = vsel %vm2371, %v2364, 0
        %v2446 = vsel %vm2371, %v2366, 0
        %v2448 = vsel %vm2371, %v2368, 0
        %v2450 = vsel %vm2371, %v2370, 0
        %2452 = vmatprep.subr.mxu0 0.0
        %2453 = vmatpush1.xpose.msra.mxu0 %v2420
        %2454 = vmatprep.subr.mxu0 0.0
        %2455 = vmatpush1.xpose.msra.mxu0 %v2422
        %2456 = vmatprep.subr.mxu0 0.0
        %2457 = vmatpush1.xpose.msra.mxu0 %v2424
        %2458 = vmatprep.subr.mxu0 0.0
        %2459 = vmatpush1.xpose.msra.mxu0 %v2426
        %2460 = vmatprep.subr.mxu0 0.0
        %2461 = vmatpush1.xpose.msra.mxu0 %v2428
        %2462 = vmatprep.subr.mxu0 0.0
        %2463 = vmatpush1.xpose.msra.mxu0 %v2430
        %2464 = vmatprep.subr.mxu0 0.0
        %2465 = vmatpush1.xpose.msra.mxu0 %v2432
        %2466 = vmatprep.subr.mxu0 0.0
        %2467 = vmatpush1.xpose.msra.mxu0 %v2434
        %2468 = vmatprep.subr.mxu0 0.0
        %2469 = vmatpush1.xpose.msra.mxu0 %v2436
        %2470 = vmatprep.subr.mxu0 0.0
        %2471 = vmatpush1.xpose.msra.mxu0 %v2438
        %2472 = vmatprep.subr.mxu0 0.0
        %2473 = vmatpush1.xpose.msra.mxu0 %v2440
        %2474 = vmatprep.subr.mxu0 0.0
        %2475 = vmatpush1.xpose.msra.mxu0 %v2442
        %2476 = vmatprep.subr.mxu0 0.0
        %2477 = vmatpush1.xpose.msra.mxu0 %v2444
        %2478 = vmatprep.subr.mxu0 0.0
        %2479 = vmatpush1.xpose.msra.mxu0 %v2446
        %2480 = vmatprep.subr.mxu0 0.0
        %2481 = vmatpush1.xpose.msra.mxu0 %v2448
        %2482 = vmatprep.subr.mxu0 0.0
        %2483 = vmatpush1.xpose.msra.mxu0 %v2450
        %2484 = vmatprep.subr.mxu0 0.0
        %2485 = vmatpush1.xpose.msra.mxu0 0.0
        %2486 = vmatprep.subr.mxu0 0.0
        %2487 = vmatpush1.xpose.msra.mxu0 0.0
        %2488 = vmatprep.subr.mxu0 0.0
        %2489 = vmatpush1.xpose.msra.mxu0 0.0
        %2490 = vmatprep.subr.mxu0 0.0
        %2491 = vmatpush1.xpose.msra.mxu0 0.0
        %2492 = vmatprep.subr.mxu0 0.0
        %2493 = vmatpush1.xpose.msra.mxu0 0.0
        %2494 = vmatprep.subr.mxu0 0.0
        %2495 = vmatpush1.xpose.msra.mxu0 0.0
        %2496 = vmatprep.subr.mxu0 0.0
        %2497 = vmatpush1.xpose.msra.mxu0 0.0
        %2498 = vmatprep.subr.mxu0 0.0
        %2499 = vmatpush1.xpose.msra.mxu0 0.0
        %2500 = vmatprep.subr.mxu0 0.0
        %2501 = vmatpush1.xpose.msra.mxu0 0.0
        %2502 = vmatprep.subr.mxu0 0.0
        %2503 = vmatpush1.xpose.msra.mxu0 0.0
        %2504 = vmatprep.subr.mxu0 0.0
        %2505 = vmatpush1.xpose.msra.mxu0 0.0
        %2506 = vmatprep.subr.mxu0 0.0
        %2507 = vmatpush1.xpose.msra.mxu0 0.0
        %2508 = vmatprep.subr.mxu0 0.0
        %2509 = vmatpush1.xpose.msra.mxu0 0.0
        %2510 = vmatprep.subr.mxu0 0.0
        %2511 = vmatpush1.xpose.msra.mxu0 0.0
        %2512 = vmatprep.subr.mxu0 0.0
        %2513 = vmatpush1.xpose.msra.mxu0 0.0
        %2514 = vmatprep.subr.mxu0 0.0
        %2515 = vmatpush1.xpose.msra.mxu0 0.0
        %2516 = vmatprep.mubr.f32.mxu0 0.0
        %2517 = vmatmul.mubr.f32.gmra.mrb[0].mxu0 %v2373
        %v2518 = vpop.f32.mrb[0].mxu0
        %v2519 = vadd.f32 0.0, %v2518
        %v2520 = vpop.f32.mrb[0].mxu0
        %2521 = vmatprep.mubr.f32.mxu0 0.0
        %2522 = vmatmul.mubr.f32.gmra.mrb[0].mxu0 %v2376
        %v2523 = vpop.f32.mrb[0].mxu0
        %v2524 = vadd.f32 0.0, %v2523
        %v2525 = vpop.f32.mrb[0].mxu0
        %2526 = vmatprep.mubr.f32.mxu0 0.0
        %2527 = vmatmul.mubr.f32.gmra.mrb[0].mxu0 %v2379
        %v2528 = vpop.f32.mrb[0].mxu0
        %v2529 = vadd.f32 0.0, %v2528
        %v2530 = vpop.f32.mrb[0].mxu0
        %2531 = vmatprep.mubr.f32.mxu0 0.0
        %2532 = vmatmul.mubr.f32.gmra.mrb[0].mxu0 %v2382
        %v2533 = vpop.f32.mrb[0].mxu0
        %v2534 = vadd.f32 0.0, %v2533
        %v2535 = vpop.f32.mrb[0].mxu0
        %2536 = vmatprep.mubr.f32.mxu0 0.0
        %2537 = vmatmul.mubr.f32.gmra.mrb[0].mxu0 %v2385
        %v2538 = vpop.f32.mrb[0].mxu0
        %v2539 = vadd.f32 0.0, %v2538
        %v2540 = vpop.f32.mrb[0].mxu0
        %2541 = vmatprep.mubr.f32.mxu0 0.0
        %2542 = vmatmul.mubr.f32.gmra.mrb[0].mxu0 %v2388
        %v2543 = vpop.f32.mrb[0].mxu0
        %v2544 = vadd.f32 0.0, %v2543
        %v2545 = vpop.f32.mrb[0].mxu0
        %2546 = vmatprep.mubr.f32.mxu0 0.0
        %2547 = vmatmul.mubr.f32.gmra.mrb[0].mxu0 %v2391
        %v2548 = vpop.f32.mrb[0].mxu0
        %v2549 = vadd.f32 0.0, %v2548
        %v2550 = vpop.f32.mrb[0].mxu0
        %2551 = vmatprep.mubr.f32.mxu0 0.0
        %2552 = vmatmul.mubr.f32.gmra.mrb[0].mxu0 %v2394
        %v2553 = vpop.f32.mrb[0].mxu0
        %v2554 = vadd.f32 0.0, %v2553
        %v2555 = vpop.f32.mrb[0].mxu0
        %2556 = vmatprep.mubr.f32.mxu0 0.0
        %2557 = vmatmul.mubr.f32.gmra.mrb[0].mxu0 %v2397
        %v2558 = vpop.f32.mrb[0].mxu0
        %v2559 = vadd.f32 0.0, %v2558
        %v2560 = vpop.f32.mrb[0].mxu0
        %2561 = vmatprep.mubr.f32.mxu0 0.0
        %2562 = vmatmul.mubr.f32.gmra.mrb[0].mxu0 %v2400
        %v2563 = vpop.f32.mrb[0].mxu0
        %v2564 = vadd.f32 0.0, %v2563
        %v2565 = vpop.f32.mrb[0].mxu0
        %2566 = vmatprep.mubr.f32.mxu0 0.0
        %2567 = vmatmul.mubr.f32.gmra.mrb[0].mxu0 %v2403
        %v2568 = vpop.f32.mrb[0].mxu0
        %v2569 = vadd.f32 0.0, %v2568
        %v2570 = vpop.f32.mrb[0].mxu0
        %2571 = vmatprep.mubr.f32.mxu0 0.0
        %2572 = vmatmul.mubr.f32.gmra.mrb[0].mxu0 %v2406
        %v2573 = vpop.f32.mrb[0].mxu0
        %v2574 = vadd.f32 0.0, %v2573
        %v2575 = vpop.f32.mrb[0].mxu0
        %2576 = vmatprep.mubr.f32.mxu0 0.0
        %2577 = vmatmul.mubr.f32.gmra.mrb[0].mxu0 %v2409
        %v2578 = vpop.f32.mrb[0].mxu0
        %v2579 = vadd.f32 0.0, %v2578
        %v2580 = vpop.f32.mrb[0].mxu0
        %2581 = vmatprep.mubr.f32.mxu0 0.0
        %2582 = vmatmul.mubr.f32.gmra.mrb[0].mxu0 %v2412
        %v2583 = vpop.f32.mrb[0].mxu0
        %v2584 = vadd.f32 0.0, %v2583
        %v2585 = vpop.f32.mrb[0].mxu0
        %2586 = vmatprep.mubr.f32.mxu0 0.0
        %2587 = vmatmul.mubr.f32.gmra.mrb[0].mxu0 %v2415
        %v2588 = vpop.f32.mrb[0].mxu0
        %v2589 = vadd.f32 0.0, %v2588
        %v2590 = vpop.f32.mrb[0].mxu0
        %2591 = vmatprep.mubr.f32.mxu0 0.0
        %2592 = vmatmul.mubr.f32.gmra.mrb[0].mxu0 %v2418
        %v2593 = vpop.f32.mrb[0].mxu0
        %v2594 = vadd.f32 0.0, %v2593
        %v2595 = vpop.f32.mrb[0].mxu0
        %2596 = vdwg.mxu0
        %2597 = vmax.xlane.f32.xlu0 %v2519
        %v2598 = vpop.xlane.xlu0 %2597
        %2599 = vmax.xlane.f32.xlu0 %v2524
        %v2600 = vpop.xlane.xlu0 %2599
        %2601 = vmax.xlane.f32.xlu0 %v2529
        %v2602 = vpop.xlane.xlu0 %2601
        %2603 = vmax.xlane.f32.xlu0 %v2534
        %v2604 = vpop.xlane.xlu0 %2603
        %2605 = vmax.xlane.f32.xlu0 %v2539
        %v2606 = vpop.xlane.xlu0 %2605
        %2607 = vmax.xlane.f32.xlu0 %v2544
        %v2608 = vpop.xlane.xlu0 %2607
        %2609 = vmax.xlane.f32.xlu0 %v2549
        %v2610 = vpop.xlane.xlu0 %2609
        %2611 = vmax.xlane.f32.xlu0 %v2554
        %v2612 = vpop.xlane.xlu0 %2611
        %2613 = vmax.xlane.f32.xlu0 %v2559
        %v2614 = vpop.xlane.xlu0 %2613
        %2615 = vmax.xlane.f32.xlu0 %v2564
        %v2616 = vpop.xlane.xlu0 %2615
        %2617 = vmax.xlane.f32.xlu0 %v2569
        %v2618 = vpop.xlane.xlu0 %2617
        %2619 = vmax.xlane.f32.xlu0 %v2574
        %v2620 = vpop.xlane.xlu0 %2619
        %2621 = vmax.xlane.f32.xlu0 %v2579
        %v2622 = vpop.xlane.xlu0 %2621
        %2623 = vmax.xlane.f32.xlu0 %v2584
        %v2624 = vpop.xlane.xlu0 %2623
        %2625 = vmax.xlane.f32.xlu0 %v2589
        %v2626 = vpop.xlane.xlu0 %2625
        %2627 = vmax.xlane.f32.xlu0 %v2594
        %v2628 = vpop.xlane.xlu0 %2627
        %v2629 = vsub.f32 %v2519, %v2598
        %v2630 = vsub.f32 %v2524, %v2600
        %v2631 = vsub.f32 %v2529, %v2602
        %v2632 = vsub.f32 %v2534, %v2604
        %v2633 = vsub.f32 %v2539, %v2606
        %v2634 = vsub.f32 %v2544, %v2608
        %v2635 = vsub.f32 %v2549, %v2610
        %v2636 = vsub.f32 %v2554, %v2612
        %v2637 = vsub.f32 %v2559, %v2614
        %v2638 = vsub.f32 %v2564, %v2616
        %v2639 = vsub.f32 %v2569, %v2618
        %v2640 = vsub.f32 %v2574, %v2620
        %v2641 = vsub.f32 %v2579, %v2622
        %v2642 = vsub.f32 %v2584, %v2624
        %v2643 = vsub.f32 %v2589, %v2626
        %v2644 = vsub.f32 %v2594, %v2628
        %v2645 = vmul.f32 %v2629, 1.442695
        %v2646 = vpow.pop %v2645
        %v2647 = vmul.f32 %v2630, 1.442695
        %v2648 = vpow.pop %v2647
        %v2649 = vmul.f32 %v2631, 1.442695
        %v2650 = vpow.pop %v2649
        %v2651 = vmul.f32 %v2632, 1.442695
        %v2652 = vpow.pop %v2651
        %v2653 = vmul.f32 %v2633, 1.442695
        %v2654 = vpow.pop %v2653
        %v2655 = vmul.f32 %v2634, 1.442695
        %v2656 = vpow.pop %v2655
        %v2657 = vmul.f32 %v2635, 1.442695
        %v2658 = vpow.pop %v2657
        %v2659 = vmul.f32 %v2636, 1.442695
        %v2660 = vpow.pop %v2659
        %v2661 = vmul.f32 %v2637, 1.442695
        %v2662 = vpow.pop %v2661
        %v2663 = vmul.f32 %v2638, 1.442695
        %v2664 = vpow.pop %v2663
        %v2665 = vmul.f32 %v2639, 1.442695
        %v2666 = vpow.pop %v2665
        %v2667 = vmul.f32 %v2640, 1.442695
        %v2668 = vpow.pop %v2667
        %v2669 = vmul.f32 %v2641, 1.442695
        %v2670 = vpow.pop %v2669
        %v2671 = vmul.f32 %v2642, 1.442695
        %v2672 = vpow.pop %v2671
        %v2673 = vmul.f32 %v2643, 1.442695
        %v2674 = vpow.pop %v2673
        %v2675 = vmul.f32 %v2644, 1.442695
        %v2676 = vpow.pop %v2675
        %2677 = vadd.xlane.f32.xlu0 %v2646
        %v2678 = vpop.xlane.xlu0 %2677
        %2679 = vadd.xlane.f32.xlu0 %v2648
        %v2680 = vpop.xlane.xlu0 %2679
        %2681 = vadd.xlane.f32.xlu0 %v2650
        %v2682 = vpop.xlane.xlu0 %2681
        %2683 = vadd.xlane.f32.xlu0 %v2652
        %v2684 = vpop.xlane.xlu0 %2683
        %2685 = vadd.xlane.f32.xlu0 %v2654
        %v2686 = vpop.xlane.xlu0 %2685
        %2687 = vadd.xlane.f32.xlu0 %v2656
        %v2688 = vpop.xlane.xlu0 %2687
        %2689 = vadd.xlane.f32.xlu0 %v2658
        %v2690 = vpop.xlane.xlu0 %2689
        %2691 = vadd.xlane.f32.xlu0 %v2660
        %v2692 = vpop.xlane.xlu0 %2691
        %2693 = vadd.xlane.f32.xlu0 %v2662
        %v2694 = vpop.xlane.xlu0 %2693
        %2695 = vadd.xlane.f32.xlu0 %v2664
        %v2696 = vpop.xlane.xlu0 %2695
        %2697 = vadd.xlane.f32.xlu0 %v2666
        %v2698 = vpop.xlane.xlu0 %2697
        %2699 = vadd.xlane.f32.xlu0 %v2668
        %v2700 = vpop.xlane.xlu0 %2699
        %2701 = vadd.xlane.f32.xlu0 %v2670
        %v2702 = vpop.xlane.xlu0 %2701
        %2703 = vadd.xlane.f32.xlu0 %v2672
        %v2704 = vpop.xlane.xlu0 %2703
        %2705 = vadd.xlane.f32.xlu0 %v2674
        %v2706 = vpop.xlane.xlu0 %2705
        %2707 = vadd.xlane.f32.xlu0 %v2676
        %v2708 = vpop.xlane.xlu0 %2707
        %v2709 = vrcp.pop %v2678
        %v2710 = vmul.f32 %v2646, %v2709
        %v2711 = vrcp.pop %v2680
        %v2712 = vmul.f32 %v2648, %v2711
        %v2713 = vrcp.pop %v2682
        %v2714 = vmul.f32 %v2650, %v2713
        %v2715 = vrcp.pop %v2684
        %v2716 = vmul.f32 %v2652, %v2715
        %v2717 = vrcp.pop %v2686
        %v2718 = vmul.f32 %v2654, %v2717
        %v2719 = vrcp.pop %v2688
        %v2720 = vmul.f32 %v2656, %v2719
        %v2721 = vrcp.pop %v2690
        %v2722 = vmul.f32 %v2658, %v2721
        %v2723 = vrcp.pop %v2692
        %v2724 = vmul.f32 %v2660, %v2723
        %v2725 = vrcp.pop %v2694
        %v2726 = vmul.f32 %v2662, %v2725
        %v2727 = vrcp.pop %v2696
        %v2728 = vmul.f32 %v2664, %v2727
        %v2729 = vrcp.pop %v2698
        %v2730 = vmul.f32 %v2666, %v2729
        %v2731 = vrcp.pop %v2700
        %v2732 = vmul.f32 %v2668, %v2731
        %v2733 = vrcp.pop %v2702
        %v2734 = vmul.f32 %v2670, %v2733
        %v2735 = vrcp.pop %v2704
        %v2736 = vmul.f32 %v2672, %v2735
        %v2737 = vrcp.pop %v2706
        %v2738 = vmul.f32 %v2674, %v2737
        %v2739 = vrcp.pop %v2708
        %v2740 = vmul.f32 %v2676, %v2739
        %2741 = vrot.lane.b32.xlu0 %v2229, 64
        %v2742 = vpop.permute.xlu0 %2741
        %2743 = vrot.lane.b32.xlu0 %v2234, 64
        %v2744 = vpop.permute.xlu0 %2743
        %2745 = vrot.lane.b32.xlu0 %v2239, 64
        %v2746 = vpop.permute.xlu0 %2745
        %2747 = vrot.lane.b32.xlu0 %v2244, 64
        %v2748 = vpop.permute.xlu0 %2747
        %2749 = vrot.lane.b32.xlu0 %v2249, 64
        %v2750 = vpop.permute.xlu0 %2749
        %2751 = vrot.lane.b32.xlu0 %v2254, 64
        %v2752 = vpop.permute.xlu0 %2751
        %2753 = vrot.lane.b32.xlu0 %v2259, 64
        %v2754 = vpop.permute.xlu0 %2753
        %2755 = vrot.lane.b32.xlu0 %v2264, 64
        %v2756 = vpop.permute.xlu0 %2755
        %2757 = vrot.lane.b32.xlu0 %v2269, 64
        %v2758 = vpop.permute.xlu0 %2757
        %2759 = vrot.lane.b32.xlu0 %v2274, 64
        %v2760 = vpop.permute.xlu0 %2759
        %2761 = vrot.lane.b32.xlu0 %v2279, 64
        %v2762 = vpop.permute.xlu0 %2761
        %2763 = vrot.lane.b32.xlu0 %v2284, 64
        %v2764 = vpop.permute.xlu0 %2763
        %2765 = vrot.lane.b32.xlu0 %v2289, 64
        %v2766 = vpop.permute.xlu0 %2765
        %2767 = vrot.lane.b32.xlu0 %v2294, 64
        %v2768 = vpop.permute.xlu0 %2767
        %2769 = vrot.lane.b32.xlu0 %v2299, 64
        %v2770 = vpop.permute.xlu0 %2769
        %2771 = vrot.lane.b32.xlu0 %v2304, 64
        %v2772 = vpop.permute.xlu0 %2771
        %2789 = vmatprep.subr.mxu0 0.0
        %2790 = vmatpush1.msra.mxu0 %v2742
        %2791 = vmatprep.subr.mxu0 0.0
        %2792 = vmatpush1.msra.mxu0 %v2744
        %2793 = vmatprep.subr.mxu0 0.0
        %2794 = vmatpush1.msra.mxu0 %v2746
        %2795 = vmatprep.subr.mxu0 0.0
        %2796 = vmatpush1.msra.mxu0 %v2748
        %2797 = vmatprep.subr.mxu0 0.0
        %2798 = vmatpush1.msra.mxu0 %v2750
        %2799 = vmatprep.subr.mxu0 0.0
        %2800 = vmatpush1.msra.mxu0 %v2752
        %2801 = vmatprep.subr.mxu0 0.0
        %2802 = vmatpush1.msra.mxu0 %v2754
        %2803 = vmatprep.subr.mxu0 0.0
        %2804 = vmatpush1.msra.mxu0 %v2756
        %2805 = vmatprep.subr.mxu0 0.0
        %2806 = vmatpush1.msra.mxu0 %v2758
        %2807 = vmatprep.subr.mxu0 0.0
        %2808 = vmatpush1.msra.mxu0 %v2760
        %2809 = vmatprep.subr.mxu0 0.0
        %2810 = vmatpush1.msra.mxu0 %v2762
        %2811 = vmatprep.subr.mxu0 0.0
        %2812 = vmatpush1.msra.mxu0 %v2764
        %2813 = vmatprep.subr.mxu0 0.0
        %2814 = vmatpush1.msra.mxu0 %v2766
        %2815 = vmatprep.subr.mxu0 0.0
        %2816 = vmatpush1.msra.mxu0 %v2768
        %2817 = vmatprep.subr.mxu0 0.0
        %2818 = vmatpush1.msra.mxu0 %v2770
        %2819 = vmatprep.subr.mxu0 0.0
        %2820 = vmatpush1.msra.mxu0 %v2772
        %2821 = vmatprep.subr.mxu0 0.0
        %2822 = vmatpush1.msra.mxu0 0.0
        %2823 = vmatprep.subr.mxu0 0.0
        %2824 = vmatpush1.msra.mxu0 0.0
        %2825 = vmatprep.subr.mxu0 0.0
        %2826 = vmatpush1.msra.mxu0 0.0
        %2827 = vmatprep.subr.mxu0 0.0
        %2828 = vmatpush1.msra.mxu0 0.0
        %2829 = vmatprep.subr.mxu0 0.0
        %2830 = vmatpush1.msra.mxu0 0.0
        %2831 = vmatprep.subr.mxu0 0.0
        %2832 = vmatpush1.msra.mxu0 0.0
        %2833 = vmatprep.subr.mxu0 0.0
        %2834 = vmatpush1.msra.mxu0 0.0
        %2835 = vmatprep.subr.mxu0 0.0
        %2836 = vmatpush1.msra.mxu0 0.0
        %2837 = vmatprep.subr.mxu0 0.0
        %2838 = vmatpush1.msra.mxu0 0.0
        %2839 = vmatprep.subr.mxu0 0.0
        %2840 = vmatpush1.msra.mxu0 0.0
        %2841 = vmatprep.subr.mxu0 0.0
        %2842 = vmatpush1.msra.mxu0 0.0
        %2843 = vmatprep.subr.mxu0 0.0
        %2844 = vmatpush1.msra.mxu0 0.0
        %2845 = vmatprep.subr.mxu0 0.0
        %2846 = vmatpush1.msra.mxu0 0.0
        %2847 = vmatprep.subr.mxu0 0.0
        %2848 = vmatpush1.msra.mxu0 0.0
        %2849 = vmatprep.subr.mxu0 0.0
        %2850 = vmatpush1.msra.mxu0 0.0
        %2851 = vmatprep.subr.mxu0 0.0
        %2852 = vmatpush1.msra.mxu0 0.0
        %2853 = vmatprep.mubr.f32.mxu0 0.0
        %2854 = vmatmul.mubr.f32.gmra.mrb[0].mxu0 %v2710
        %v2855 = vpop.f32.mrb[0].mxu0
        %v2856 = vadd.f32 0.0, %v2855
        %v2857 = vpop.f32.mrb[0].mxu0
        %2858 = vmatprep.mubr.f32.mxu0 0.0
        %2859 = vmatmul.mubr.f32.gmra.mrb[0].mxu0 %v2712
        %v2860 = vpop.f32.mrb[0].mxu0
        %v2861 = vadd.f32 0.0, %v2860
        %v2862 = vpop.f32.mrb[0].mxu0
        %2863 = vmatprep.mubr.f32.mxu0 0.0
        %2864 = vmatmul.mubr.f32.gmra.mrb[0].mxu0 %v2714
        %v2865 = vpop.f32.mrb[0].mxu0
        %v2866 = vadd.f32 0.0, %v2865
        %v2867 = vpop.f32.mrb[0].mxu0
        %2868 = vmatprep.mubr.f32.mxu0 0.0
        %2869 = vmatmul.mubr.f32.gmra.mrb[0].mxu0 %v2716
        %v2870 = vpop.f32.mrb[0].mxu0
        %v2871 = vadd.f32 0.0, %v2870
        %v2872 = vpop.f32.mrb[0].mxu0
        %2873 = vmatprep.mubr.f32.mxu0 0.0
        %2874 = vmatmul.mubr.f32.gmra.mrb[0].mxu0 %v2718
        %v2875 = vpop.f32.mrb[0].mxu0
        %v2876 = vadd.f32 0.0, %v2875
        %v2877 = vpop.f32.mrb[0].mxu0
        %2878 = vmatprep.mubr.f32.mxu0 0.0
        %2879 = vmatmul.mubr.f32.gmra.mrb[0].mxu0 %v2720
        %v2880 = vpop.f32.mrb[0].mxu0
        %v2881 = vadd.f32 0.0, %v2880
        %v2882 = vpop.f32.mrb[0].mxu0
        %2883 = vmatprep.mubr.f32.mxu0 0.0
        %2884 = vmatmul.mubr.f32.gmra.mrb[0].mxu0 %v2722
        %v2885 = vpop.f32.mrb[0].mxu0
        %v2886 = vadd.f32 0.0, %v2885
        %v2887 = vpop.f32.mrb[0].mxu0
        %2888 = vmatprep.mubr.f32.mxu0 0.0
        %2889 = vmatmul.mubr.f32.gmra.mrb[0].mxu0 %v2724
        %v2890 = vpop.f32.mrb[0].mxu0
        %v2891 = vadd.f32 0.0, %v2890
        %v2892 = vpop.f32.mrb[0].mxu0
        %2893 = vmatprep.mubr.f32.mxu0 0.0
        %2894 = vmatmul.mubr.f32.gmra.mrb[0].mxu0 %v2726
        %v2895 = vpop.f32.mrb[0].mxu0
        %v2896 = vadd.f32 0.0, %v2895
        %v2897 = vpop.f32.mrb[0].mxu0
        %2898 = vmatprep.mubr.f32.mxu0 0.0
        %2899 = vmatmul.mubr.f32.gmra.mrb[0].mxu0 %v2728
        %v2900 = vpop.f32.mrb[0].mxu0
        %v2901 = vadd.f32 0.0, %v2900
        %v2902 = vpop.f32.mrb[0].mxu0
        %2903 = vmatprep.mubr.f32.mxu0 0.0
        %2904 = vmatmul.mubr.f32.gmra.mrb[0].mxu0 %v2730
        %v2905 = vpop.f32.mrb[0].mxu0
        %v2906 = vadd.f32 0.0, %v2905
        %v2907 = vpop.f32.mrb[0].mxu0
        %2908 = vmatprep.mubr.f32.mxu0 0.0
        %2909 = vmatmul.mubr.f32.gmra.mrb[0].mxu0 %v2732
        %v2910 = vpop.f32.mrb[0].mxu0
        %v2911 = vadd.f32 0.0, %v2910
        %v2912 = vpop.f32.mrb[0].mxu0
        %2913 = vmatprep.mubr.f32.mxu0 0.0
        %2914 = vmatmul.mubr.f32.gmra.mrb[0].mxu0 %v2734
        %v2915 = vpop.f32.mrb[0].mxu0
        %v2916 = vadd.f32 0.0, %v2915
        %v2917 = vpop.f32.mrb[0].mxu0
        %2918 = vmatprep.mubr.f32.mxu0 0.0
        %2919 = vmatmul.mubr.f32.gmra.mrb[0].mxu0 %v2736
        %v2920 = vpop.f32.mrb[0].mxu0
        %v2921 = vadd.f32 0.0, %v2920
        %v2922 = vpop.f32.mrb[0].mxu0
        %2923 = vmatprep.mubr.f32.mxu0 0.0
        %2924 = vmatmul.mubr.f32.gmra.mrb[0].mxu0 %v2738
        %v2925 = vpop.f32.mrb[0].mxu0
        %v2926 = vadd.f32 0.0, %v2925
        %v2927 = vpop.f32.mrb[0].mxu0
        %2928 = vmatprep.mubr.f32.mxu0 0.0
        %2929 = vmatmul.mubr.f32.gmra.mrb[0].mxu0 %v2740
        %v2930 = vpop.f32.mrb[0].mxu0
        %v2931 = vadd.f32 0.0, %v2930
        %v2932 = vpop.f32.mrb[0].mxu0
        %2933 = vdwg.mxu0
        %2934 = vrot.lane.b32.xlu0 %v2307, 112
        %v2935 = vpop.permute.xlu0 %2934
        %2936 = vrot.lane.b32.xlu0 %v2308, 112
        %v2937 = vpop.permute.xlu0 %2936
        %2938 = vrot.lane.b32.xlu0 %v2309, 112
        %v2939 = vpop.permute.xlu0 %2938
        %2940 = vrot.lane.b32.xlu0 %v2310, 112
        %v2941 = vpop.permute.xlu0 %2940
        %2942 = vrot.lane.b32.xlu0 %v2311, 112
        %v2943 = vpop.permute.xlu0 %2942
        %2944 = vrot.lane.b32.xlu0 %v2312, 112
        %v2945 = vpop.permute.xlu0 %2944
        %2946 = vrot.lane.b32.xlu0 %v2313, 112
        %v2947 = vpop.permute.xlu0 %2946
        %2948 = vrot.lane.b32.xlu0 %v2314, 112
        %v2949 = vpop.permute.xlu0 %2948
        %2950 = vrot.lane.b32.xlu0 %v2315, 112
        %v2951 = vpop.permute.xlu0 %2950
        %2952 = vrot.lane.b32.xlu0 %v2316, 112
        %v2953 = vpop.permute.xlu0 %2952
        %2954 = vrot.lane.b32.xlu0 %v2317, 112
        %v2955 = vpop.permute.xlu0 %2954
        %2956 = vrot.lane.b32.xlu0 %v2318, 112
        %v2957 = vpop.permute.xlu0 %2956
        %2958 = vrot.lane.b32.xlu0 %v2319, 112
        %v2959 = vpop.permute.xlu0 %2958
        %2960 = vrot.lane.b32.xlu0 %v2320, 112
        %v2961 = vpop.permute.xlu0 %2960
        %2962 = vrot.lane.b32.xlu0 %v2321, 112
        %v2963 = vpop.permute.xlu0 %2962
        %2964 = vrot.lane.b32.xlu0 %v2322, 112
        %v2965 = vpop.permute.xlu0 %2964
        %2966 = vrot.lane.b32.xlu0 %v2229, 80
        %v2967 = vpop.permute.xlu0 %2966
        %2968 = vrot.lane.b32.xlu0 %v2234, 80
        %v2969 = vpop.permute.xlu0 %2968
        %2970 = vrot.lane.b32.xlu0 %v2239, 80
        %v2971 = vpop.permute.xlu0 %2970
        %2972 = vrot.lane.b32.xlu0 %v2244, 80
        %v2973 = vpop.permute.xlu0 %2972
        %2974 = vrot.lane.b32.xlu0 %v2249, 80
        %v2975 = vpop.permute.xlu0 %2974
        %2976 = vrot.lane.b32.xlu0 %v2254, 80
        %v2977 = vpop.permute.xlu0 %2976
        %2978 = vrot.lane.b32.xlu0 %v2259, 80
        %v2979 = vpop.permute.xlu0 %2978
        %2980 = vrot.lane.b32.xlu0 %v2264, 80
        %v2981 = vpop.permute.xlu0 %2980
        %2982 = vrot.lane.b32.xlu0 %v2269, 80
        %v2983 = vpop.permute.xlu0 %2982
        %2984 = vrot.lane.b32.xlu0 %v2274, 80
        %v2985 = vpop.permute.xlu0 %2984
        %2986 = vrot.lane.b32.xlu0 %v2279, 80
        %v2987 = vpop.permute.xlu0 %2986
        %2988 = vrot.lane.b32.xlu0 %v2284, 80
        %v2989 = vpop.permute.xlu0 %2988
        %2990 = vrot.lane.b32.xlu0 %v2289, 80
        %v2991 = vpop.permute.xlu0 %2990
        %2992 = vrot.lane.b32.xlu0 %v2294, 80
        %v2993 = vpop.permute.xlu0 %2992
        %2994 = vrot.lane.b32.xlu0 %v2299, 80
        %v2995 = vpop.permute.xlu0 %2994
        %2996 = vrot.lane.b32.xlu0 %v2304, 80
        %v2997 = vpop.permute.xlu0 %2996
        %v2998 = vsel %vm2371, %v2935, 0
        %v3000 = vsel %vm2371, %v2937, 0
        %v3002 = vsel %vm2371, %v2939, 0
        %v3004 = vsel %vm2371, %v2941, 0
        %v3006 = vsel %vm2371, %v2943, 0
        %v3008 = vsel %vm2371, %v2945, 0
        %v3010 = vsel %vm2371, %v2947, 0
        %v3012 = vsel %vm2371, %v2949, 0
        %v3014 = vsel %vm2371, %v2951, 0
        %v3016 = vsel %vm2371, %v2953, 0
        %v3018 = vsel %vm2371, %v2955, 0
        %v3020 = vsel %vm2371, %v2957, 0
        %v3022 = vsel %vm2371, %v2959, 0
        %v3024 = vsel %vm2371, %v2961, 0
        %v3026 = vsel %vm2371, %v2963, 0
        %v3028 = vsel %vm2371, %v2965, 0
        %v3030 = vsel %vm2371, %v2967, 0
        %v3032 = vsel %vm2371, %v2969, 0
        %v3034 = vsel %vm2371, %v2971, 0
        %v3036 = vsel %vm2371, %v2973, 0
        %v3038 = vsel %vm2371, %v2975, 0
        %v3040 = vsel %vm2371, %v2977, 0
        %v3042 = vsel %vm2371, %v2979, 0
        %v3044 = vsel %vm2371, %v2981, 0
        %v3046 = vsel %vm2371, %v2983, 0
        %v3048 = vsel %vm2371, %v2985, 0
        %v3050 = vsel %vm2371, %v2987, 0
        %v3052 = vsel %vm2371, %v2989, 0
        %v3054 = vsel %vm2371, %v2991, 0
        %v3056 = vsel %vm2371, %v2993, 0
        %v3058 = vsel %vm2371, %v2995, 0
        %v3060 = vsel %vm2371, %v2997, 0
        %3062 = vmatprep.subr.mxu0 0.0
        %3063 = vmatpush1.xpose.msra.mxu0 %v3030
        %3064 = vmatprep.subr.mxu0 0.0
        %3065 = vmatpush1.xpose.msra.mxu0 %v3032
        %3066 = vmatprep.subr.mxu0 0.0
        %3067 = vmatpush1.xpose.msra.mxu0 %v3034
        %3068 = vmatprep.subr.mxu0 0.0
        %3069 = vmatpush1.xpose.msra.mxu0 %v3036
        %3070 = vmatprep.subr.mxu0 0.0
        %3071 = vmatpush1.xpose.msra.mxu0 %v3038
        %3072 = vmatprep.subr.mxu0 0.0
        %3073 = vmatpush1.xpose.msra.mxu0 %v3040
        %3074 = vmatprep.subr.mxu0 0.0
        %3075 = vmatpush1.xpose.msra.mxu0 %v3042
        %3076 = vmatprep.subr.mxu0 0.0
        %3077 = vmatpush1.xpose.msra.mxu0 %v3044
        %3078 = vmatprep.subr.mxu0 0.0
        %3079 = vmatpush1.xpose.msra.mxu0 %v3046
        %3080 = vmatprep.subr.mxu0 0.0
        %3081 = vmatpush1.xpose.msra.mxu0 %v3048
        %3082 = vmatprep.subr.mxu0 0.0
        %3083 = vmatpush1.xpose.msra.mxu0 %v3050
        %3084 = vmatprep.subr.mxu0 0.0
        %3085 = vmatpush1.xpose.msra.mxu0 %v3052
        %3086 = vmatprep.subr.mxu0 0.0
        %3087 = vmatpush1.xpose.msra.mxu0 %v3054
        %3088 = vmatprep.subr.mxu0 0.0
        %3089 = vmatpush1.xpose.msra.mxu0 %v3056
        %3090 = vmatprep.subr.mxu0 0.0
        %3091 = vmatpush1.xpose.msra.mxu0 %v3058
        %3092 = vmatprep.subr.mxu0 0.0
        %3093 = vmatpush1.xpose.msra.mxu0 %v3060
        %3094 = vmatprep.subr.mxu0 0.0
        %3095 = vmatpush1.xpose.msra.mxu0 0.0
        %3096 = vmatprep.subr.mxu0 0.0
        %3097 = vmatpush1.xpose.msra.mxu0 0.0
        %3098 = vmatprep.subr.mxu0 0.0
        %3099 = vmatpush1.xpose.msra.mxu0 0.0
        %3100 = vmatprep.subr.mxu0 0.0
        %3101 = vmatpush1.xpose.msra.mxu0 0.0
        %3102 = vmatprep.subr.mxu0 0.0
        %3103 = vmatpush1.xpose.msra.mxu0 0.0
        %3104 = vmatprep.subr.mxu0 0.0
        %3105 = vmatpush1.xpose.msra.mxu0 0.0
        %3106 = vmatprep.subr.mxu0 0.0
        %3107 = vmatpush1.xpose.msra.mxu0 0.0
        %3108 = vmatprep.subr.mxu0 0.0
        %3109 = vmatpush1.xpose.msra.mxu0 0.0
        %3110 = vmatprep.subr.mxu0 0.0
        %3111 = vmatpush1.xpose.msra.mxu0 0.0
        %3112 = vmatprep.subr.mxu0 0.0
        %3113 = vmatpush1.xpose.msra.mxu0 0.0
        %3114 = vmatprep.subr.mxu0 0.0
        %3115 = vmatpush1.xpose.msra.mxu0 0.0
        %3116 = vmatprep.subr.mxu0 0.0
        %3117 = vmatpush1.xpose.msra.mxu0 0.0
        %3118 = vmatprep.subr.mxu0 0.0
        %3119 = vmatpush1.xpose.msra.mxu0 0.0
        %3120 = vmatprep.subr.mxu0 0.0
        %3121 = vmatpush1.xpose.msra.mxu0 0.0
        %3122 = vmatprep.subr.mxu0 0.0
        %3123 = vmatpush1.xpose.msra.mxu0 0.0
        %3124 = vmatprep.subr.mxu0 0.0
        %3125 = vmatpush1.xpose.msra.mxu0 0.0
        %3126 = vmatprep.mubr.f32.mxu0 0.0
        %3127 = vmatmul.mubr.f32.gmra.mrb[0].mxu0 %v2998
        %v3128 = vpop.f32.mrb[0].mxu0
        %v3129 = vadd.f32 0.0, %v3128
        %v3130 = vpop.f32.mrb[0].mxu0
        %3131 = vmatprep.mubr.f32.mxu0 0.0
        %3132 = vmatmul.mubr.f32.gmra.mrb[0].mxu0 %v3000
        %v3133 = vpop.f32.mrb[0].mxu0
        %v3134 = vadd.f32 0.0, %v3133
        %v3135 = vpop.f32.mrb[0].mxu0
        %3136 = vmatprep.mubr.f32.mxu0 0.0
        %3137 = vmatmul.mubr.f32.gmra.mrb[0].mxu0 %v3002
        %v3138 = vpop.f32.mrb[0].mxu0
        %v3139 = vadd.f32 0.0, %v3138
        %v3140 = vpop.f32.mrb[0].mxu0
        %3141 = vmatprep.mubr.f32.mxu0 0.0
        %3142 = vmatmul.mubr.f32.gmra.mrb[0].mxu0 %v3004
        %v3143 = vpop.f32.mrb[0].mxu0
        %v3144 = vadd.f32 0.0, %v3143
        %v3145 = vpop.f32.mrb[0].mxu0
        %3146 = vmatprep.mubr.f32.mxu0 0.0
        %3147 = vmatmul.mubr.f32.gmra.mrb[0].mxu0 %v3006
        %v3148 = vpop.f32.mrb[0].mxu0
        %v3149 = vadd.f32 0.0, %v3148
        %v3150 = vpop.f32.mrb[0].mxu0
        %3151 = vmatprep.mubr.f32.mxu0 0.0
        %3152 = vmatmul.mubr.f32.gmra.mrb[0].mxu0 %v3008
        %v3153 = vpop.f32.mrb[0].mxu0
        %v3154 = vadd.f32 0.0, %v3153
        %v3155 = vpop.f32.mrb[0].mxu0
        %3156 = vmatprep.mubr.f32.mxu0 0.0
        %3157 = vmatmul.mubr.f32.gmra.mrb[0].mxu0 %v3010
        %v3158 = vpop.f32.mrb[0].mxu0
        %v3159 = vadd.f32 0.0, %v3158
        %v3160 = vpop.f32.mrb[0].mxu0
        %3161 = vmatprep.mubr.f32.mxu0 0.0
        %3162 = vmatmul.mubr.f32.gmra.mrb[0].mxu0 %v3012
        %v3163 = vpop.f32.mrb[0].mxu0
        %v3164 = vadd.f32 0.0, %v3163
        %v3165 = vpop.f32.mrb[0].mxu0
        %3166 = vmatprep.mubr.f32.mxu0 0.0
        %3167 = vmatmul.mubr.f32.gmra.mrb[0].mxu0 %v3014
        %v3168 = vpop.f32.mrb[0].mxu0
        %v3169 = vadd.f32 0.0, %v3168
        %v3170 = vpop.f32.mrb[0].mxu0
        %3171 = vmatprep.mubr.f32.mxu0 0.0
        %3172 = vmatmul.mubr.f32.gmra.mrb[0].mxu0 %v3016
        %v3173 = vpop.f32.mrb[0].mxu0
        %v3174 = vadd.f32 0.0, %v3173
        %v3175 = vpop.f32.mrb[0].mxu0
        %3176 = vmatprep.mubr.f32.mxu0 0.0
        %3177 = vmatmul.mubr.f32.gmra.mrb[0].mxu0 %v3018
        %v3178 = vpop.f32.mrb[0].mxu0
        %v3179 = vadd.f32 0.0, %v3178
        %v3180 = vpop.f32.mrb[0].mxu0
        %3181 = vmatprep.mubr.f32.mxu0 0.0
        %3182 = vmatmul.mubr.f32.gmra.mrb[0].mxu0 %v3020
        %v3183 = vpop.f32.mrb[0].mxu0
        %v3184 = vadd.f32 0.0, %v3183
        %v3185 = vpop.f32.mrb[0].mxu0
        %3186 = vmatprep.mubr.f32.mxu0 0.0
        %3187 = vmatmul.mubr.f32.gmra.mrb[0].mxu0 %v3022
        %v3188 = vpop.f32.mrb[0].mxu0
        %v3189 = vadd.f32 0.0, %v3188
        %v3190 = vpop.f32.mrb[0].mxu0
        %3191 = vmatprep.mubr.f32.mxu0 0.0
        %3192 = vmatmul.mubr.f32.gmra.mrb[0].mxu0 %v3024
        %v3193 = vpop.f32.mrb[0].mxu0
        %v3194 = vadd.f32 0.0, %v3193
        %v3195 = vpop.f32.mrb[0].mxu0
        %3196 = vmatprep.mubr.f32.mxu0 0.0
        %3197 = vmatmul.mubr.f32.gmra.mrb[0].mxu0 %v3026
        %v3198 = vpop.f32.mrb[0].mxu0
        %v3199 = vadd.f32 0.0, %v3198
        %v3200 = vpop.f32.mrb[0].mxu0
        %3201 = vmatprep.mubr.f32.mxu0 0.0
        %3202 = vmatmul.mubr.f32.gmra.mrb[0].mxu0 %v3028
        %v3203 = vpop.f32.mrb[0].mxu0
        %v3204 = vadd.f32 0.0, %v3203
        %v3205 = vpop.f32.mrb[0].mxu0
        %3206 = vdwg.mxu0
        %3207 = vmax.xlane.f32.xlu0 %v3129
        %v3208 = vpop.xlane.xlu0 %3207
        %3209 = vmax.xlane.f32.xlu0 %v3134
        %v3210 = vpop.xlane.xlu0 %3209
        %3211 = vmax.xlane.f32.xlu0 %v3139
        %v3212 = vpop.xlane.xlu0 %3211
        %3213 = vmax.xlane.f32.xlu0 %v3144
        %v3214 = vpop.xlane.xlu0 %3213
        %3215 = vmax.xlane.f32.xlu0 %v3149
        %v3216 = vpop.xlane.xlu0 %3215
        %3217 = vmax.xlane.f32.xlu0 %v3154
        %v3218 = vpop.xlane.xlu0 %3217
        %3219 = vmax.xlane.f32.xlu0 %v3159
        %v3220 = vpop.xlane.xlu0 %3219
        %3221 = vmax.xlane.f32.xlu0 %v3164
        %v3222 = vpop.xlane.xlu0 %3221
        %3223 = vmax.xlane.f32.xlu0 %v3169
        %v3224 = vpop.xlane.xlu0 %3223
        %3225 = vmax.xlane.f32.xlu0 %v3174
        %v3226 = vpop.xlane.xlu0 %3225
        %3227 = vmax.xlane.f32.xlu0 %v3179
        %v3228 = vpop.xlane.xlu0 %3227
        %3229 = vmax.xlane.f32.xlu0 %v3184
        %v3230 = vpop.xlane.xlu0 %3229
        %3231 = vmax.xlane.f32.xlu0 %v3189
        %v3232 = vpop.xlane.xlu0 %3231
        %3233 = vmax.xlane.f32.xlu0 %v3194
        %v3234 = vpop.xlane.xlu0 %3233
        %3235 = vmax.xlane.f32.xlu0 %v3199
        %v3236 = vpop.xlane.xlu0 %3235
        %3237 = vmax.xlane.f32.xlu0 %v3204
        %v3238 = vpop.xlane.xlu0 %3237
        %v3239 = vsub.f32 %v3129, %v3208
        %v3240 = vsub.f32 %v3134, %v3210
        %v3241 = vsub.f32 %v3139, %v3212
        %v3242 = vsub.f32 %v3144, %v3214
        %v3243 = vsub.f32 %v3149, %v3216
        %v3244 = vsub.f32 %v3154, %v3218
        %v3245 = vsub.f32 %v3159, %v3220
        %v3246 = vsub.f32 %v3164, %v3222
        %v3247 = vsub.f32 %v3169, %v3224
        %v3248 = vsub.f32 %v3174, %v3226
        %v3249 = vsub.f32 %v3179, %v3228
        %v3250 = vsub.f32 %v3184, %v3230
        %v3251 = vsub.f32 %v3189, %v3232
        %v3252 = vsub.f32 %v3194, %v3234
        %v3253 = vsub.f32 %v3199, %v3236
        %v3254 = vsub.f32 %v3204, %v3238
        %v3255 = vmul.f32 %v3239, 1.442695
        %v3256 = vpow.pop %v3255
        %v3257 = vmul.f32 %v3240, 1.442695
        %v3258 = vpow.pop %v3257
        %v3259 = vmul.f32 %v3241, 1.442695
        %v3260 = vpow.pop %v3259
        %v3261 = vmul.f32 %v3242, 1.442695
        %v3262 = vpow.pop %v3261
        %v3263 = vmul.f32 %v3243, 1.442695
        %v3264 = vpow.pop %v3263
        %v3265 = vmul.f32 %v3244, 1.442695
        %v3266 = vpow.pop %v3265
        %v3267 = vmul.f32 %v3245, 1.442695
        %v3268 = vpow.pop %v3267
        %v3269 = vmul.f32 %v3246, 1.442695
        %v3270 = vpow.pop %v3269
        %v3271 = vmul.f32 %v3247, 1.442695
        %v3272 = vpow.pop %v3271
        %v3273 = vmul.f32 %v3248, 1.442695
        %v3274 = vpow.pop %v3273
        %v3275 = vmul.f32 %v3249, 1.442695
        %v3276 = vpow.pop %v3275
        %v3277 = vmul.f32 %v3250, 1.442695
        %v3278 = vpow.pop %v3277
        %v3279 = vmul.f32 %v3251, 1.442695
        %v3280 = vpow.pop %v3279
        %v3281 = vmul.f32 %v3252, 1.442695
        %v3282 = vpow.pop %v3281
        %v3283 = vmul.f32 %v3253, 1.442695
        %v3284 = vpow.pop %v3283
        %v3285 = vmul.f32 %v3254, 1.442695
        %v3286 = vpow.pop %v3285
        %3287 = vadd.xlane.f32.xlu0 %v3256
        %v3288 = vpop.xlane.xlu0 %3287
        %3289 = vadd.xlane.f32.xlu0 %v3258
        %v3290 = vpop.xlane.xlu0 %3289
        %3291 = vadd.xlane.f32.xlu0 %v3260
        %v3292 = vpop.xlane.xlu0 %3291
        %3293 = vadd.xlane.f32.xlu0 %v3262
        %v3294 = vpop.xlane.xlu0 %3293
        %3295 = vadd.xlane.f32.xlu0 %v3264
        %v3296 = vpop.xlane.xlu0 %3295
        %3297 = vadd.xlane.f32.xlu0 %v3266
        %v3298 = vpop.xlane.xlu0 %3297
        %3299 = vadd.xlane.f32.xlu0 %v3268
        %v3300 = vpop.xlane.xlu0 %3299
        %3301 = vadd.xlane.f32.xlu0 %v3270
        %v3302 = vpop.xlane.xlu0 %3301
        %3303 = vadd.xlane.f32.xlu0 %v3272
        %v3304 = vpop.xlane.xlu0 %3303
        %3305 = vadd.xlane.f32.xlu0 %v3274
        %v3306 = vpop.xlane.xlu0 %3305
        %3307 = vadd.xlane.f32.xlu0 %v3276
        %v3308 = vpop.xlane.xlu0 %3307
        %3309 = vadd.xlane.f32.xlu0 %v3278
        %v3310 = vpop.xlane.xlu0 %3309
        %3311 = vadd.xlane.f32.xlu0 %v3280
        %v3312 = vpop.xlane.xlu0 %3311
        %3313 = vadd.xlane.f32.xlu0 %v3282
        %v3314 = vpop.xlane.xlu0 %3313
        %3315 = vadd.xlane.f32.xlu0 %v3284
        %v3316 = vpop.xlane.xlu0 %3315
        %3317 = vadd.xlane.f32.xlu0 %v3286
        %v3318 = vpop.xlane.xlu0 %3317
        %v3319 = vrcp.pop %v3288
        %v3320 = vmul.f32 %v3256, %v3319
        %v3321 = vrcp.pop %v3290
        %v3322 = vmul.f32 %v3258, %v3321
        %v3323 = vrcp.pop %v3292
        %v3324 = vmul.f32 %v3260, %v3323
        %v3325 = vrcp.pop %v3294
        %v3326 = vmul.f32 %v3262, %v3325
        %v3327 = vrcp.pop %v3296
        %v3328 = vmul.f32 %v3264, %v3327
        %v3329 = vrcp.pop %v3298
        %v3330 = vmul.f32 %v3266, %v3329
        %v3331 = vrcp.pop %v3300
        %v3332 = vmul.f32 %v3268, %v3331
        %v3333 = vrcp.pop %v3302
        %v3334 = vmul.f32 %v3270, %v3333
        %v3335 = vrcp.pop %v3304
        %v3336 = vmul.f32 %v3272, %v3335
        %v3337 = vrcp.pop %v3306
        %v3338 = vmul.f32 %v3274, %v3337
        %v3339 = vrcp.pop %v3308
        %v3340 = vmul.f32 %v3276, %v3339
        %v3341 = vrcp.pop %v3310
        %v3342 = vmul.f32 %v3278, %v3341
        %v3343 = vrcp.pop %v3312
        %v3344 = vmul.f32 %v3280, %v3343
        %v3345 = vrcp.pop %v3314
        %v3346 = vmul.f32 %v3282, %v3345
        %v3347 = vrcp.pop %v3316
        %v3348 = vmul.f32 %v3284, %v3347
        %v3349 = vrcp.pop %v3318
        %v3350 = vmul.f32 %v3286, %v3349
        %3351 = vrot.lane.b32.xlu0 %v2229, 48
        %v3352 = vpop.permute.xlu0 %3351
        %3353 = vrot.lane.b32.xlu0 %v2234, 48
        %v3354 = vpop.permute.xlu0 %3353
        %3355 = vrot.lane.b32.xlu0 %v2239, 48
        %v3356 = vpop.permute.xlu0 %3355
        %3357 = vrot.lane.b32.xlu0 %v2244, 48
        %v3358 = vpop.permute.xlu0 %3357
        %3359 = vrot.lane.b32.xlu0 %v2249, 48
        %v3360 = vpop.permute.xlu0 %3359
        %3361 = vrot.lane.b32.xlu0 %v2254, 48
        %v3362 = vpop.permute.xlu0 %3361
        %3363 = vrot.lane.b32.xlu0 %v2259, 48
        %v3364 = vpop.permute.xlu0 %3363
        %3365 = vrot.lane.b32.xlu0 %v2264, 48
        %v3366 = vpop.permute.xlu0 %3365
        %3367 = vrot.lane.b32.xlu0 %v2269, 48
        %v3368 = vpop.permute.xlu0 %3367
        %3369 = vrot.lane.b32.xlu0 %v2274, 48
        %v3370 = vpop.permute.xlu0 %3369
        %3371 = vrot.lane.b32.xlu0 %v2279, 48
        %v3372 = vpop.permute.xlu0 %3371
        %3373 = vrot.lane.b32.xlu0 %v2284, 48
        %v3374 = vpop.permute.xlu0 %3373
        %3375 = vrot.lane.b32.xlu0 %v2289, 48
        %v3376 = vpop.permute.xlu0 %3375
        %3377 = vrot.lane.b32.xlu0 %v2294, 48
        %v3378 = vpop.permute.xlu0 %3377
        %3379 = vrot.lane.b32.xlu0 %v2299, 48
        %v3380 = vpop.permute.xlu0 %3379
        %3381 = vrot.lane.b32.xlu0 %v2304, 48
        %v3382 = vpop.permute.xlu0 %3381
        %3399 = vmatprep.subr.mxu0 0.0
        %3400 = vmatpush1.msra.mxu0 %v3352
        %3401 = vmatprep.subr.mxu0 0.0
        %3402 = vmatpush1.msra.mxu0 %v3354
        %3403 = vmatprep.subr.mxu0 0.0
        %3404 = vmatpush1.msra.mxu0 %v3356
        %3405 = vmatprep.subr.mxu0 0.0
        %3406 = vmatpush1.msra.mxu0 %v3358
        %3407 = vmatprep.subr.mxu0 0.0
        %3408 = vmatpush1.msra.mxu0 %v3360
        %3409 = vmatprep.subr.mxu0 0.0
        %3410 = vmatpush1.msra.mxu0 %v3362
        %3411 = vmatprep.subr.mxu0 0.0
        %3412 = vmatpush1.msra.mxu0 %v3364
        %3413 = vmatprep.subr.mxu0 0.0
        %3414 = vmatpush1.msra.mxu0 %v3366
        %3415 = vmatprep.subr.mxu0 0.0
        %3416 = vmatpush1.msra.mxu0 %v3368
        %3417 = vmatprep.subr.mxu0 0.0
        %3418 = vmatpush1.msra.mxu0 %v3370
        %3419 = vmatprep.subr.mxu0 0.0
        %3420 = vmatpush1.msra.mxu0 %v3372
        %3421 = vmatprep.subr.mxu0 0.0
        %3422 = vmatpush1.msra.mxu0 %v3374
        %3423 = vmatprep.subr.mxu0 0.0
        %3424 = vmatpush1.msra.mxu0 %v3376
        %3425 = vmatprep.subr.mxu0 0.0
        %3426 = vmatpush1.msra.mxu0 %v3378
        %3427 = vmatprep.subr.mxu0 0.0
        %3428 = vmatpush1.msra.mxu0 %v3380
        %3429 = vmatprep.subr.mxu0 0.0
        %3430 = vmatpush1.msra.mxu0 %v3382
        %3431 = vmatprep.subr.mxu0 0.0
        %3432 = vmatpush1.msra.mxu0 0.0
        %3433 = vmatprep.subr.mxu0 0.0
        %3434 = vmatpush1.msra.mxu0 0.0
        %3435 = vmatprep.subr.mxu0 0.0
        %3436 = vmatpush1.msra.mxu0 0.0
        %3437 = vmatprep.subr.mxu0 0.0
        %3438 = vmatpush1.msra.mxu0 0.0
        %3439 = vmatprep.subr.mxu0 0.0
        %3440 = vmatpush1.msra.mxu0 0.0
        %3441 = vmatprep.subr.mxu0 0.0
        %3442 = vmatpush1.msra.mxu0 0.0
        %3443 = vmatprep.subr.mxu0 0.0
        %3444 = vmatpush1.msra.mxu0 0.0
        %3445 = vmatprep.subr.mxu0 0.0
        %3446 = vmatpush1.msra.mxu0 0.0
        %3447 = vmatprep.subr.mxu0 0.0
        %3448 = vmatpush1.msra.mxu0 0.0
        %3449 = vmatprep.subr.mxu0 0.0
        %3450 = vmatpush1.msra.mxu0 0.0
        %3451 = vmatprep.subr.mxu0 0.0
        %3452 = vmatpush1.msra.mxu0 0.0
        %3453 = vmatprep.subr.mxu0 0.0
        %3454 = vmatpush1.msra.mxu0 0.0
        %3455 = vmatprep.subr.mxu0 0.0
        %3456 = vmatpush1.msra.mxu0 0.0
        %3457 = vmatprep.subr.mxu0 0.0
        %3458 = vmatpush1.msra.mxu0 0.0
        %3459 = vmatprep.subr.mxu0 0.0
        %3460 = vmatpush1.msra.mxu0 0.0
        %3461 = vmatprep.subr.mxu0 0.0
        %3462 = vmatpush1.msra.mxu0 0.0
        %3463 = vmatprep.mubr.f32.mxu0 0.0
        %3464 = vmatmul.mubr.f32.gmra.mrb[0].mxu0 %v3320
        %v3465 = vpop.f32.mrb[0].mxu0
        %v3466 = vadd.f32 0.0, %v3465
        %v3467 = vpop.f32.mrb[0].mxu0
        %3468 = vmatprep.mubr.f32.mxu0 0.0
        %3469 = vmatmul.mubr.f32.gmra.mrb[0].mxu0 %v3322
        %v3470 = vpop.f32.mrb[0].mxu0
        %v3471 = vadd.f32 0.0, %v3470
        %v3472 = vpop.f32.mrb[0].mxu0
        %3473 = vmatprep.mubr.f32.mxu0 0.0
        %3474 = vmatmul.mubr.f32.gmra.mrb[0].mxu0 %v3324
        %v3475 = vpop.f32.mrb[0].mxu0
        %v3476 = vadd.f32 0.0, %v3475
        %v3477 = vpop.f32.mrb[0].mxu0
        %3478 = vmatprep.mubr.f32.mxu0 0.0
        %3479 = vmatmul.mubr.f32.gmra.mrb[0].mxu0 %v3326
        %v3480 = vpop.f32.mrb[0].mxu0
        %v3481 = vadd.f32 0.0, %v3480
        %v3482 = vpop.f32.mrb[0].mxu0
        %3483 = vmatprep.mubr.f32.mxu0 0.0
        %3484 = vmatmul.mubr.f32.gmra.mrb[0].mxu0 %v3328
        %v3485 = vpop.f32.mrb[0].mxu0
        %v3486 = vadd.f32 0.0, %v3485
        %v3487 = vpop.f32.mrb[0].mxu0
        %3488 = vmatprep.mubr.f32.mxu0 0.0
        %3489 = vmatmul.mubr.f32.gmra.mrb[0].mxu0 %v3330
        %v3490 = vpop.f32.mrb[0].mxu0
        %v3491 = vadd.f32 0.0, %v3490
        %v3492 = vpop.f32.mrb[0].mxu0
        %3493 = vmatprep.mubr.f32.mxu0 0.0
        %3494 = vmatmul.mubr.f32.gmra.mrb[0].mxu0 %v3332
        %v3495 = vpop.f32.mrb[0].mxu0
        %v3496 = vadd.f32 0.0, %v3495
        %v3497 = vpop.f32.mrb[0].mxu0
        %3498 = vmatprep.mubr.f32.mxu0 0.0
        %3499 = vmatmul.mubr.f32.gmra.mrb[0].mxu0 %v3334
        %v3500 = vpop.f32.mrb[0].mxu0
        %v3501 = vadd.f32 0.0, %v3500
        %v3502 = vpop.f32.mrb[0].mxu0
        %3503 = vmatprep.mubr.f32.mxu0 0.0
        %3504 = vmatmul.mubr.f32.gmra.mrb[0].mxu0 %v3336
        %v3505 = vpop.f32.mrb[0].mxu0
        %v3506 = vadd.f32 0.0, %v3505
        %v3507 = vpop.f32.mrb[0].mxu0
        %3508 = vmatprep.mubr.f32.mxu0 0.0
        %3509 = vmatmul.mubr.f32.gmra.mrb[0].mxu0 %v3338
        %v3510 = vpop.f32.mrb[0].mxu0
        %v3511 = vadd.f32 0.0, %v3510
        %v3512 = vpop.f32.mrb[0].mxu0
        %3513 = vmatprep.mubr.f32.mxu0 0.0
        %3514 = vmatmul.mubr.f32.gmra.mrb[0].mxu0 %v3340
        %v3515 = vpop.f32.mrb[0].mxu0
        %v3516 = vadd.f32 0.0, %v3515
        %v3517 = vpop.f32.mrb[0].mxu0
        %3518 = vmatprep.mubr.f32.mxu0 0.0
        %3519 = vmatmul.mubr.f32.gmra.mrb[0].mxu0 %v3342
        %v3520 = vpop.f32.mrb[0].mxu0
        %v3521 = vadd.f32 0.0, %v3520
        %v3522 = vpop.f32.mrb[0].mxu0
        %3523 = vmatprep.mubr.f32.mxu0 0.0
        %3524 = vmatmul.mubr.f32.gmra.mrb[0].mxu0 %v3344
        %v3525 = vpop.f32.mrb[0].mxu0
        %v3526 = vadd.f32 0.0, %v3525
        %v3527 = vpop.f32.mrb[0].mxu0
        %3528 = vmatprep.mubr.f32.mxu0 0.0
        %3529 = vmatmul.mubr.f32.gmra.mrb[0].mxu0 %v3346
        %v3530 = vpop.f32.mrb[0].mxu0
        %v3531 = vadd.f32 0.0, %v3530
        %v3532 = vpop.f32.mrb[0].mxu0
        %3533 = vmatprep.mubr.f32.mxu0 0.0
        %3534 = vmatmul.mubr.f32.gmra.mrb[0].mxu0 %v3348
        %v3535 = vpop.f32.mrb[0].mxu0
        %v3536 = vadd.f32 0.0, %v3535
        %v3537 = vpop.f32.mrb[0].mxu0
        %3538 = vmatprep.mubr.f32.mxu0 0.0
        %3539 = vmatmul.mubr.f32.gmra.mrb[0].mxu0 %v3350
        %v3540 = vpop.f32.mrb[0].mxu0
        %v3541 = vadd.f32 0.0, %v3540
        %v3542 = vpop.f32.mrb[0].mxu0
        %3543 = vdwg.mxu0
        %v3545 = vsel %vm2371, %v3466, 0
        %v3548 = vsel %vm2371, %v3471, 0
        %v3551 = vsel %vm2371, %v3476, 0
        %v3554 = vsel %vm2371, %v3481, 0
        %v3557 = vsel %vm2371, %v3486, 0
        %v3560 = vsel %vm2371, %v3491, 0
        %v3563 = vsel %vm2371, %v3496, 0
        %v3566 = vsel %vm2371, %v3501, 0
        %v3569 = vsel %vm2371, %v3506, 0
        %v3572 = vsel %vm2371, %v3511, 0
        %v3575 = vsel %vm2371, %v3516, 0
        %v3578 = vsel %vm2371, %v3521, 0
        %v3581 = vsel %vm2371, %v3526, 0
        %v3584 = vsel %vm2371, %v3531, 0
        %v3587 = vsel %vm2371, %v3536, 0
        %v3590 = vsel %vm2371, %v3541, 0
        %3592 = vmatprep.subr.mxu0 0.0
        %3593 = vmatpush1.msra.mxu0 %v2111
        %3594 = vmatprep.subr.mxu0 0.0
        %3595 = vmatpush1.msra.mxu0 %v2112
        %3596 = vmatprep.subr.mxu0 0.0
        %3597 = vmatpush1.msra.mxu0 0.0
        %3598 = vmatprep.subr.mxu0 0.0
        %3599 = vmatpush1.msra.mxu0 0.0
        %3600 = vmatprep.subr.mxu0 0.0
        %3601 = vmatpush1.msra.mxu0 0.0
        %3602 = vmatprep.subr.mxu0 0.0
        %3603 = vmatpush1.msra.mxu0 0.0
        %3604 = vmatprep.subr.mxu0 0.0
        %3605 = vmatpush1.msra.mxu0 0.0
        %3606 = vmatprep.subr.mxu0 0.0
        %3607 = vmatpush1.msra.mxu0 0.0
        %3608 = vmatprep.subr.mxu0 0.0
        %3609 = vmatpush1.msra.mxu0 0.0
        %3610 = vmatprep.subr.mxu0 0.0
        %3611 = vmatpush1.msra.mxu0 0.0
        %3612 = vmatprep.subr.mxu0 0.0
        %3613 = vmatpush1.msra.mxu0 0.0
        %3614 = vmatprep.subr.mxu0 0.0
        %3615 = vmatpush1.msra.mxu0 0.0
        %3616 = vmatprep.subr.mxu0 0.0
        %3617 = vmatpush1.msra.mxu0 0.0
        %3618 = vmatprep.subr.mxu0 0.0
        %3619 = vmatpush1.msra.mxu0 0.0
        %3620 = vmatprep.subr.mxu0 0.0
        %3621 = vmatpush1.msra.mxu0 0.0
        %3622 = vmatprep.subr.mxu0 0.0
        %3623 = vmatpush1.msra.mxu0 0.0
        %3624 = vmatprep.subr.mxu0 0.0
        %3625 = vmatpush1.msra.mxu0 0.0
        %3626 = vmatprep.subr.mxu0 0.0
        %3627 = vmatpush1.msra.mxu0 0.0
        %3628 = vmatprep.subr.mxu0 0.0
        %3629 = vmatpush1.msra.mxu0 0.0
        %3630 = vmatprep.subr.mxu0 0.0
        %3631 = vmatpush1.msra.mxu0 0.0
        %3632 = vmatprep.subr.mxu0 0.0
        %3633 = vmatpush1.msra.mxu0 0.0
        %3634 = vmatprep.subr.mxu0 0.0
        %3635 = vmatpush1.msra.mxu0 0.0
        %3636 = vmatprep.subr.mxu0 0.0
        %3637 = vmatpush1.msra.mxu0 0.0
        %3638 = vmatprep.subr.mxu0 0.0
        %3639 = vmatpush1.msra.mxu0 0.0
        %3640 = vmatprep.subr.mxu0 0.0
        %3641 = vmatpush1.msra.mxu0 0.0
        %3642 = vmatprep.subr.mxu0 0.0
        %3643 = vmatpush1.msra.mxu0 0.0
        %3644 = vmatprep.subr.mxu0 0.0
        %3645 = vmatpush1.msra.mxu0 0.0
        %3646 = vmatprep.subr.mxu0 0.0
        %3647 = vmatpush1.msra.mxu0 0.0
        %3648 = vmatprep.subr.mxu0 0.0
        %3649 = vmatpush1.msra.mxu0 0.0
        %3650 = vmatprep.subr.mxu0 0.0
        %3651 = vmatpush1.msra.mxu0 0.0
        %3652 = vmatprep.subr.mxu0 0.0
        %3653 = vmatpush1.msra.mxu0 0.0
        %3654 = vmatprep.subr.mxu0 0.0
        %3655 = vmatpush1.msra.mxu0 0.0
        %3656 = vmatprep.mubr.f32.mxu0 0.0
        %3657 = vmatmul.mubr.f32.gmra.mrb[0].mxu0 %v3545
        %v3658 = vpop.f32.mrb[0].mxu0
        %v3659 = vadd.f32 0.0, %v3658
        %v3660 = vpop.f32.mrb[0].mxu0
        %3661 = vmatprep.mubr.f32.mxu0 0.0
        %3662 = vmatmul.mubr.f32.gmra.mrb[0].mxu0 %v3548
        %v3663 = vpop.f32.mrb[0].mxu0
        %v3664 = vadd.f32 0.0, %v3663
        %v3665 = vpop.f32.mrb[0].mxu0
        %3666 = vmatprep.mubr.f32.mxu0 0.0
        %3667 = vmatmul.mubr.f32.gmra.mrb[0].mxu0 %v3551
        %v3668 = vpop.f32.mrb[0].mxu0
        %v3669 = vadd.f32 0.0, %v3668
        %v3670 = vpop.f32.mrb[0].mxu0
        %3671 = vmatprep.mubr.f32.mxu0 0.0
        %3672 = vmatmul.mubr.f32.gmra.mrb[0].mxu0 %v3554
        %v3673 = vpop.f32.mrb[0].mxu0
        %v3674 = vadd.f32 0.0, %v3673
        %v3675 = vpop.f32.mrb[0].mxu0
        %3676 = vmatprep.mubr.f32.mxu0 0.0
        %3677 = vmatmul.mubr.f32.gmra.mrb[0].mxu0 %v3557
        %v3678 = vpop.f32.mrb[0].mxu0
        %v3679 = vadd.f32 0.0, %v3678
        %v3680 = vpop.f32.mrb[0].mxu0
        %3681 = vmatprep.mubr.f32.mxu0 0.0
        %3682 = vmatmul.mubr.f32.gmra.mrb[0].mxu0 %v3560
        %v3683 = vpop.f32.mrb[0].mxu0
        %v3684 = vadd.f32 0.0, %v3683
        %v3685 = vpop.f32.mrb[0].mxu0
        %3686 = vmatprep.mubr.f32.mxu0 0.0
        %3687 = vmatmul.mubr.f32.gmra.mrb[0].mxu0 %v3563
        %v3688 = vpop.f32.mrb[0].mxu0
        %v3689 = vadd.f32 0.0, %v3688
        %v3690 = vpop.f32.mrb[0].mxu0
        %3691 = vmatprep.mubr.f32.mxu0 0.0
        %3692 = vmatmul.mubr.f32.gmra.mrb[0].mxu0 %v3566
        %v3693 = vpop.f32.mrb[0].mxu0
        %v3694 = vadd.f32 0.0, %v3693
        %v3695 = vpop.f32.mrb[0].mxu0
        %3696 = vmatprep.mubr.f32.mxu0 0.0
        %3697 = vmatmul.mubr.f32.gmra.mrb[0].mxu0 %v3569
        %v3698 = vpop.f32.mrb[0].mxu0
        %v3699 = vadd.f32 0.0, %v3698
        %v3700 = vpop.f32.mrb[0].mxu0
        %3701 = vmatprep.mubr.f32.mxu0 0.0
        %3702 = vmatmul.mubr.f32.gmra.mrb[0].mxu0 %v3572
        %v3703 = vpop.f32.mrb[0].mxu0
        %v3704 = vadd.f32 0.0, %v3703
        %v3705 = vpop.f32.mrb[0].mxu0
        %3706 = vmatprep.mubr.f32.mxu0 0.0
        %3707 = vmatmul.mubr.f32.gmra.mrb[0].mxu0 %v3575
        %v3708 = vpop.f32.mrb[0].mxu0
        %v3709 = vadd.f32 0.0, %v3708
        %v3710 = vpop.f32.mrb[0].mxu0
        %3711 = vmatprep.mubr.f32.mxu0 0.0
        %3712 = vmatmul.mubr.f32.gmra.mrb[0].mxu0 %v3578
        %v3713 = vpop.f32.mrb[0].mxu0
        %v3714 = vadd.f32 0.0, %v3713
        %v3715 = vpop.f32.mrb[0].mxu0
        %3716 = vmatprep.mubr.f32.mxu0 0.0
        %3717 = vmatmul.mubr.f32.gmra.mrb[0].mxu0 %v3581
        %v3718 = vpop.f32.mrb[0].mxu0
        %v3719 = vadd.f32 0.0, %v3718
        %v3720 = vpop.f32.mrb[0].mxu0
        %3721 = vmatprep.mubr.f32.mxu0 0.0
        %3722 = vmatmul.mubr.f32.gmra.mrb[0].mxu0 %v3584
        %v3723 = vpop.f32.mrb[0].mxu0
        %v3724 = vadd.f32 0.0, %v3723
        %v3725 = vpop.f32.mrb[0].mxu0
        %3726 = vmatprep.mubr.f32.mxu0 0.0
        %3727 = vmatmul.mubr.f32.gmra.mrb[0].mxu0 %v3587
        %v3728 = vpop.f32.mrb[0].mxu0
        %v3729 = vadd.f32 0.0, %v3728
        %v3730 = vpop.f32.mrb[0].mxu0
        %3731 = vmatprep.mubr.f32.mxu0 0.0
        %3732 = vmatmul.mubr.f32.gmra.mrb[0].mxu0 %v3590
        %v3733 = vpop.f32.mrb[0].mxu0
        %v3734 = vadd.f32 0.0, %v3733
        %v3735 = vpop.f32.mrb[0].mxu0
        %3736 = vdwg.mxu0
        %v3738 = vsel %vm2371, %v2856, 0
        %v3741 = vsel %vm2371, %v2861, 0
        %v3744 = vsel %vm2371, %v2866, 0
        %v3747 = vsel %vm2371, %v2871, 0
        %v3750 = vsel %vm2371, %v2876, 0
        %v3753 = vsel %vm2371, %v2881, 0
        %v3756 = vsel %vm2371, %v2886, 0
        %v3759 = vsel %vm2371, %v2891, 0
        %v3762 = vsel %vm2371, %v2896, 0
        %v3765 = vsel %vm2371, %v2901, 0
        %v3768 = vsel %vm2371, %v2906, 0
        %v3771 = vsel %vm2371, %v2911, 0
        %v3774 = vsel %vm2371, %v2916, 0
        %v3777 = vsel %vm2371, %v2921, 0
        %v3780 = vsel %vm2371, %v2926, 0
        %v3783 = vsel %vm2371, %v2931, 0
        %3785 = vmatprep.subr.mxu0 0.0
        %3786 = vmatpush1.msra.mxu0 %v2109
        %3787 = vmatprep.subr.mxu0 0.0
        %3788 = vmatpush1.msra.mxu0 %v2110
        %3789 = vmatprep.subr.mxu0 0.0
        %3790 = vmatpush1.msra.mxu0 0.0
        %3791 = vmatprep.subr.mxu0 0.0
        %3792 = vmatpush1.msra.mxu0 0.0
        %3793 = vmatprep.subr.mxu0 0.0
        %3794 = vmatpush1.msra.mxu0 0.0
        %3795 = vmatprep.subr.mxu0 0.0
        %3796 = vmatpush1.msra.mxu0 0.0
        %3797 = vmatprep.subr.mxu0 0.0
        %3798 = vmatpush1.msra.mxu0 0.0
        %3799 = vmatprep.subr.mxu0 0.0
        %3800 = vmatpush1.msra.mxu0 0.0
        %3801 = vmatprep.subr.mxu0 0.0
        %3802 = vmatpush1.msra.mxu0 0.0
        %3803 = vmatprep.subr.mxu0 0.0
        %3804 = vmatpush1.msra.mxu0 0.0
        %3805 = vmatprep.subr.mxu0 0.0
        %3806 = vmatpush1.msra.mxu0 0.0
        %3807 = vmatprep.subr.mxu0 0.0
        %3808 = vmatpush1.msra.mxu0 0.0
        %3809 = vmatprep.subr.mxu0 0.0
        %3810 = vmatpush1.msra.mxu0 0.0
        %3811 = vmatprep.subr.mxu0 0.0
        %3812 = vmatpush1.msra.mxu0 0.0
        %3813 = vmatprep.subr.mxu0 0.0
        %3814 = vmatpush1.msra.mxu0 0.0
        %3815 = vmatprep.subr.mxu0 0.0
        %3816 = vmatpush1.msra.mxu0 0.0
        %3817 = vmatprep.subr.mxu0 0.0
        %3818 = vmatpush1.msra.mxu0 0.0
        %3819 = vmatprep.subr.mxu0 0.0
        %3820 = vmatpush1.msra.mxu0 0.0
        %3821 = vmatprep.subr.mxu0 0.0
        %3822 = vmatpush1.msra.mxu0 0.0
        %3823 = vmatprep.subr.mxu0 0.0
        %3824 = vmatpush1.msra.mxu0 0.0
        %3825 = vmatprep.subr.mxu0 0.0
        %3826 = vmatpush1.msra.mxu0 0.0
        %3827 = vmatprep.subr.mxu0 0.0
        %3828 = vmatpush1.msra.mxu0 0.0
        %3829 = vmatprep.subr.mxu0 0.0
        %3830 = vmatpush1.msra.mxu0 0.0
        %3831 = vmatprep.subr.mxu0 0.0
        %3832 = vmatpush1.msra.mxu0 0.0
        %3833 = vmatprep.subr.mxu0 0.0
        %3834 = vmatpush1.msra.mxu0 0.0
        %3835 = vmatprep.subr.mxu0 0.0
        %3836 = vmatpush1.msra.mxu0 0.0
        %3837 = vmatprep.subr.mxu0 0.0
        %3838 = vmatpush1.msra.mxu0 0.0
        %3839 = vmatprep.subr.mxu0 0.0
        %3840 = vmatpush1.msra.mxu0 0.0
        %3841 = vmatprep.subr.mxu0 0.0
        %3842 = vmatpush1.msra.mxu0 0.0
        %3843 = vmatprep.subr.mxu0 0.0
        %3844 = vmatpush1.msra.mxu0 0.0
        %3845 = vmatprep.subr.mxu0 0.0
        %3846 = vmatpush1.msra.mxu0 0.0
        %3847 = vmatprep.subr.mxu0 0.0
        %3848 = vmatpush1.msra.mxu0 0.0
        %3849 = vmatprep.mubr.f32.mxu0 0.0
        %3850 = vmatmul.mubr.f32.gmra.mrb[0].mxu0 %v3738
        %v3851 = vpop.f32.mrb[0].mxu0
        %v3852 = vadd.f32 %v3659, %v3851
        %v3853 = vpop.f32.mrb[0].mxu0
        %3854 = vmatprep.mubr.f32.mxu0 0.0
        %3855 = vmatmul.mubr.f32.gmra.mrb[0].mxu0 %v3741
        %v3856 = vpop.f32.mrb[0].mxu0
        %v3857 = vadd.f32 %v3664, %v3856
        %v3858 = vpop.f32.mrb[0].mxu0
        %3859 = vmatprep.mubr.f32.mxu0 0.0
        %3860 = vmatmul.mubr.f32.gmra.mrb[0].mxu0 %v3744
        %v3861 = vpop.f32.mrb[0].mxu0
        %v3862 = vadd.f32 %v3669, %v3861
        %v3863 = vpop.f32.mrb[0].mxu0
        %3864 = vmatprep.mubr.f32.mxu0 0.0
        %3865 = vmatmul.mubr.f32.gmra.mrb[0].mxu0 %v3747
        %v3866 = vpop.f32.mrb[0].mxu0
        %v3867 = vadd.f32 %v3674, %v3866
        %v3868 = vpop.f32.mrb[0].mxu0
        %3869 = vmatprep.mubr.f32.mxu0 0.0
        %3870 = vmatmul.mubr.f32.gmra.mrb[0].mxu0 %v3750
        %v3871 = vpop.f32.mrb[0].mxu0
        %v3872 = vadd.f32 %v3679, %v3871
        %v3873 = vpop.f32.mrb[0].mxu0
        %3874 = vmatprep.mubr.f32.mxu0 0.0
        %3875 = vmatmul.mubr.f32.gmra.mrb[0].mxu0 %v3753
        %v3876 = vpop.f32.mrb[0].mxu0
        %v3877 = vadd.f32 %v3684, %v3876
        %v3878 = vpop.f32.mrb[0].mxu0
        %3879 = vmatprep.mubr.f32.mxu0 0.0
        %3880 = vmatmul.mubr.f32.gmra.mrb[0].mxu0 %v3756
        %v3881 = vpop.f32.mrb[0].mxu0
        %v3882 = vadd.f32 %v3689, %v3881
        %v3883 = vpop.f32.mrb[0].mxu0
        %3884 = vmatprep.mubr.f32.mxu0 0.0
        %3885 = vmatmul.mubr.f32.gmra.mrb[0].mxu0 %v3759
        %v3886 = vpop.f32.mrb[0].mxu0
        %v3887 = vadd.f32 %v3694, %v3886
        %v3888 = vpop.f32.mrb[0].mxu0
        %3889 = vmatprep.mubr.f32.mxu0 0.0
        %3890 = vmatmul.mubr.f32.gmra.mrb[0].mxu0 %v3762
        %v3891 = vpop.f32.mrb[0].mxu0
        %v3892 = vadd.f32 %v3699, %v3891
        %v3893 = vpop.f32.mrb[0].mxu0
        %3894 = vmatprep.mubr.f32.mxu0 0.0
        %3895 = vmatmul.mubr.f32.gmra.mrb[0].mxu0 %v3765
        %v3896 = vpop.f32.mrb[0].mxu0
        %v3897 = vadd.f32 %v3704, %v3896
        %v3898 = vpop.f32.mrb[0].mxu0
        %3899 = vmatprep.mubr.f32.mxu0 0.0
        %3900 = vmatmul.mubr.f32.gmra.mrb[0].mxu0 %v3768
        %v3901 = vpop.f32.mrb[0].mxu0
        %v3902 = vadd.f32 %v3709, %v3901
        %v3903 = vpop.f32.mrb[0].mxu0
        %3904 = vmatprep.mubr.f32.mxu0 0.0
        %3905 = vmatmul.mubr.f32.gmra.mrb[0].mxu0 %v3771
        %v3906 = vpop.f32.mrb[0].mxu0
        %v3907 = vadd.f32 %v3714, %v3906
        %v3908 = vpop.f32.mrb[0].mxu0
        %3909 = vmatprep.mubr.f32.mxu0 0.0
        %3910 = vmatmul.mubr.f32.gmra.mrb[0].mxu0 %v3774
        %v3911 = vpop.f32.mrb[0].mxu0
        %v3912 = vadd.f32 %v3719, %v3911
        %v3913 = vpop.f32.mrb[0].mxu0
        %3914 = vmatprep.mubr.f32.mxu0 0.0
        %3915 = vmatmul.mubr.f32.gmra.mrb[0].mxu0 %v3777
        %v3916 = vpop.f32.mrb[0].mxu0
        %v3917 = vadd.f32 %v3724, %v3916
        %v3918 = vpop.f32.mrb[0].mxu0
        %3919 = vmatprep.mubr.f32.mxu0 0.0
        %3920 = vmatmul.mubr.f32.gmra.mrb[0].mxu0 %v3780
        %v3921 = vpop.f32.mrb[0].mxu0
        %v3922 = vadd.f32 %v3729, %v3921
        %v3923 = vpop.f32.mrb[0].mxu0
        %3924 = vmatprep.mubr.f32.mxu0 0.0
        %3925 = vmatmul.mubr.f32.gmra.mrb[0].mxu0 %v3783
        %v3926 = vpop.f32.mrb[0].mxu0
        %v3927 = vadd.f32 %v3734, %v3926
        %v3928 = vpop.f32.mrb[0].mxu0
        %3929 = vdwg.mxu0
        %v3931 = vlaneseq
        %v3932 = vshrl.u32 %v3931, 7
        %v3933 = vsub.s32 0, %v3932
        %v3934 = vrot.slane %v2113, %v3933
        %v3936 = vadd.f32 %v3852, %v3934
        %v3937 = vadd.f32 %v3857, %v3934
        %v3938 = vadd.f32 %v3862, %v3934
        %v3939 = vadd.f32 %v3867, %v3934
        %v3940 = vadd.f32 %v3872, %v3934
        %v3941 = vadd.f32 %v3877, %v3934
        %v3942 = vadd.f32 %v3882, %v3934
        %v3943 = vadd.f32 %v3887, %v3934
        %v3944 = vadd.f32 %v3892, %v3934
        %v3945 = vadd.f32 %v3897, %v3934
        %v3946 = vadd.f32 %v3902, %v3934
        %v3947 = vadd.f32 %v3907, %v3934
        %v3948 = vadd.f32 %v3912, %v3934
        %v3949 = vadd.f32 %v3917, %v3934
        %v3950 = vadd.f32 %v3922, %v3934
        %v3951 = vadd.f32 %v3927, %v3934
        %v3952 = vadd.f32 %v3936, %v1772
        %v3953 = vadd.f32 %v3937, %v1777
        %v3954 = vadd.f32 %v3938, %v1782
        %v3955 = vadd.f32 %v3939, %v1787
        %v3956 = vadd.f32 %v3940, %v1792
        %v3957 = vadd.f32 %v3941, %v1797
        %v3958 = vadd.f32 %v3942, %v1802
        %v3959 = vadd.f32 %v3943, %v1807
        %v3960 = vadd.f32 %v3944, %v1812
        %v3961 = vadd.f32 %v3945, %v1817
        %v3962 = vadd.f32 %v3946, %v1822
        %v3963 = vadd.f32 %v3947, %v1827
        %v3964 = vadd.f32 %v3948, %v1832
        %v3965 = vadd.f32 %v3949, %v1837
        %v3966 = vadd.f32 %v3950, %v1842
        %v3967 = vadd.f32 %v3951, %v1847
        %v3968 = vld [vmem:[#allocation14] sm:$0x1]
        %v3969 = vld [vmem:[#allocation16] sm:$0x1]
        %v3970 = vsel %vm947, %v3952, 0.0
        %3971 = vadd.xlane.f32.xlu0 %v3970
        %v3972 = vpop.xlane.xlu0 %3971
        %v3973 = vsel %vm947, %v3953, 0.0
        %3974 = vadd.xlane.f32.xlu0 %v3973
        %v3975 = vpop.xlane.xlu0 %3974
        %v3976 = vsel %vm947, %v3954, 0.0
        %3977 = vadd.xlane.f32.xlu0 %v3976
        %v3978 = vpop.xlane.xlu0 %3977
        %v3979 = vsel %vm947, %v3955, 0.0
        %3980 = vadd.xlane.f32.xlu0 %v3979
        %v3981 = vpop.xlane.xlu0 %3980
        %v3982 = vsel %vm947, %v3956, 0.0
        %3983 = vadd.xlane.f32.xlu0 %v3982
        %v3984 = vpop.xlane.xlu0 %3983
        %v3985 = vsel %vm947, %v3957, 0.0
        %3986 = vadd.xlane.f32.xlu0 %v3985
        %v3987 = vpop.xlane.xlu0 %3986
        %v3988 = vsel %vm947, %v3958, 0.0
        %3989 = vadd.xlane.f32.xlu0 %v3988
        %v3990 = vpop.xlane.xlu0 %3989
        %v3991 = vsel %vm947, %v3959, 0.0
        %3992 = vadd.xlane.f32.xlu0 %v3991
        %v3993 = vpop.xlane.xlu0 %3992
        %v3994 = vsel %vm947, %v3960, 0.0
        %3995 = vadd.xlane.f32.xlu0 %v3994
        %v3996 = vpop.xlane.xlu0 %3995
        %v3997 = vsel %vm947, %v3961, 0.0
        %3998 = vadd.xlane.f32.xlu0 %v3997
        %v3999 = vpop.xlane.xlu0 %3998
        %v4000 = vsel %vm947, %v3962, 0.0
        %4001 = vadd.xlane.f32.xlu0 %v4000
        %v4002 = vpop.xlane.xlu0 %4001
        %v4003 = vsel %vm947, %v3963, 0.0
        %4004 = vadd.xlane.f32.xlu0 %v4003
        %v4005 = vpop.xlane.xlu0 %4004
        %v4006 = vsel %vm947, %v3964, 0.0
        %4007 = vadd.xlane.f32.xlu0 %v4006
        %v4008 = vpop.xlane.xlu0 %4007
        %v4009 = vsel %vm947, %v3965, 0.0
        %4010 = vadd.xlane.f32.xlu0 %v4009
        %v4011 = vpop.xlane.xlu0 %4010
        %v4012 = vsel %vm947, %v3966, 0.0
        %4013 = vadd.xlane.f32.xlu0 %v4012
        %v4014 = vpop.xlane.xlu0 %4013
        %v4015 = vsel %vm947, %v3967, 0.0
        %4016 = vadd.xlane.f32.xlu0 %v4015
        %v4017 = vpop.xlane.xlu0 %4016
        %v4018 = vmul.f32 %v3972, %v1900
        %v4019 = vmul.f32 %v3975, %v1900
        %v4020 = vmul.f32 %v3978, %v1900
        %v4021 = vmul.f32 %v3981, %v1900
        %v4022 = vmul.f32 %v3984, %v1900
        %v4023 = vmul.f32 %v3987, %v1900
        %v4024 = vmul.f32 %v3990, %v1900
        %v4025 = vmul.f32 %v3993, %v1900
        %v4026 = vmul.f32 %v3996, %v1900
        %v4027 = vmul.f32 %v3999, %v1900
        %v4028 = vmul.f32 %v4002, %v1900
        %v4029 = vmul.f32 %v4005, %v1900
        %v4030 = vmul.f32 %v4008, %v1900
        %v4031 = vmul.f32 %v4011, %v1900
        %v4032 = vmul.f32 %v4014, %v1900
        %v4033 = vmul.f32 %v4017, %v1900
        %v4034 = vsub.f32 %v3952, %v4018
        %v4035 = vsub.f32 %v3953, %v4019
        %v4036 = vsub.f32 %v3954, %v4020
        %v4037 = vsub.f32 %v3955, %v4021
        %v4038 = vsub.f32 %v3956, %v4022
        %v4039 = vsub.f32 %v3957, %v4023
        %v4040 = vsub.f32 %v3958, %v4024
        %v4041 = vsub.f32 %v3959, %v4025
        %v4042 = vsub.f32 %v3960, %v4026
        %v4043 = vsub.f32 %v3961, %v4027
        %v4044 = vsub.f32 %v3962, %v4028
        %v4045 = vsub.f32 %v3963, %v4029
        %v4046 = vsub.f32 %v3964, %v4030
        %v4047 = vsub.f32 %v3965, %v4031
        %v4048 = vsub.f32 %v3966, %v4032
        %v4049 = vsub.f32 %v3967, %v4033
        %v4050 = vmul.f32 %v4034, %v4034
        %v4051 = vmul.f32 %v4035, %v4035
        %v4052 = vmul.f32 %v4036, %v4036
        %v4053 = vmul.f32 %v4037, %v4037
        %v4054 = vmul.f32 %v4038, %v4038
        %v4055 = vmul.f32 %v4039, %v4039
        %v4056 = vmul.f32 %v4040, %v4040
        %v4057 = vmul.f32 %v4041, %v4041
        %v4058 = vmul.f32 %v4042, %v4042
        %v4059 = vmul.f32 %v4043, %v4043
        %v4060 = vmul.f32 %v4044, %v4044
        %v4061 = vmul.f32 %v4045, %v4045
        %v4062 = vmul.f32 %v4046, %v4046
        %v4063 = vmul.f32 %v4047, %v4047
        %v4064 = vmul.f32 %v4048, %v4048
        %v4065 = vmul.f32 %v4049, %v4049
        %v4066 = vsel %vm947, %v4050, 0.0
        %4067 = vadd.xlane.f32.xlu0 %v4066
        %v4068 = vpop.xlane.xlu0 %4067
        %v4069 = vsel %vm947, %v4051, 0.0
        %4070 = vadd.xlane.f32.xlu0 %v4069
        %v4071 = vpop.xlane.xlu0 %4070
        %v4072 = vsel %vm947, %v4052, 0.0
        %4073 = vadd.xlane.f32.xlu0 %v4072
        %v4074 = vpop.xlane.xlu0 %4073
        %v4075 = vsel %vm947, %v4053, 0.0
        %4076 = vadd.xlane.f32.xlu0 %v4075
        %v4077 = vpop.xlane.xlu0 %4076
        %v4078 = vsel %vm947, %v4054, 0.0
        %4079 = vadd.xlane.f32.xlu0 %v4078
        %v4080 = vpop.xlane.xlu0 %4079
        %v4081 = vsel %vm947, %v4055, 0.0
        %4082 = vadd.xlane.f32.xlu0 %v4081
        %v4083 = vpop.xlane.xlu0 %4082
        %v4084 = vsel %vm947, %v4056, 0.0
        %4085 = vadd.xlane.f32.xlu0 %v4084
        %v4086 = vpop.xlane.xlu0 %4085
        %v4087 = vsel %vm947, %v4057, 0.0
        %4088 = vadd.xlane.f32.xlu0 %v4087
        %v4089 = vpop.xlane.xlu0 %4088
        %v4090 = vsel %vm947, %v4058, 0.0
        %4091 = vadd.xlane.f32.xlu0 %v4090
        %v4092 = vpop.xlane.xlu0 %4091
        %v4093 = vsel %vm947, %v4059, 0.0
        %4094 = vadd.xlane.f32.xlu0 %v4093
        %v4095 = vpop.xlane.xlu0 %4094
        %v4096 = vsel %vm947, %v4060, 0.0
        %4097 = vadd.xlane.f32.xlu0 %v4096
        %v4098 = vpop.xlane.xlu0 %4097
        %v4099 = vsel %vm947, %v4061, 0.0
        %4100 = vadd.xlane.f32.xlu0 %v4099
        %v4101 = vpop.xlane.xlu0 %4100
        %v4102 = vsel %vm947, %v4062, 0.0
        %4103 = vadd.xlane.f32.xlu0 %v4102
        %v4104 = vpop.xlane.xlu0 %4103
        %v4105 = vsel %vm947, %v4063, 0.0
        %4106 = vadd.xlane.f32.xlu0 %v4105
        %v4107 = vpop.xlane.xlu0 %4106
        %v4108 = vsel %vm947, %v4064, 0.0
        %4109 = vadd.xlane.f32.xlu0 %v4108
        %v4110 = vpop.xlane.xlu0 %4109
        %v4111 = vsel %vm947, %v4065, 0.0
        %4112 = vadd.xlane.f32.xlu0 %v4111
        %v4113 = vpop.xlane.xlu0 %4112
        %v4114 = vmul.f32 %v4068, %v1900
        %v4115 = vmul.f32 %v4071, %v1900
        %v4116 = vmul.f32 %v4074, %v1900
        %v4117 = vmul.f32 %v4077, %v1900
        %v4118 = vmul.f32 %v4080, %v1900
        %v4119 = vmul.f32 %v4083, %v1900
        %v4120 = vmul.f32 %v4086, %v1900
        %v4121 = vmul.f32 %v4089, %v1900
        %v4122 = vmul.f32 %v4092, %v1900
        %v4123 = vmul.f32 %v4095, %v1900
        %v4124 = vmul.f32 %v4098, %v1900
        %v4125 = vmul.f32 %v4101, %v1900
        %v4126 = vmul.f32 %v4104, %v1900
        %v4127 = vmul.f32 %v4107, %v1900
        %v4128 = vmul.f32 %v4110, %v1900
        %v4129 = vmul.f32 %v4113, %v1900
        %v4130 = vadd.f32 %v4114, 1e-05
        %v4131 = vadd.f32 %v4115, 1e-05
        %v4132 = vadd.f32 %v4116, 1e-05
        %v4133 = vadd.f32 %v4117, 1e-05
        %v4134 = vadd.f32 %v4118, 1e-05
        %v4135 = vadd.f32 %v4119, 1e-05
        %v4136 = vadd.f32 %v4120, 1e-05
        %v4137 = vadd.f32 %v4121, 1e-05
        %v4138 = vadd.f32 %v4122, 1e-05
        %v4139 = vadd.f32 %v4123, 1e-05
        %v4140 = vadd.f32 %v4124, 1e-05
        %v4141 = vadd.f32 %v4125, 1e-05
        %v4142 = vadd.f32 %v4126, 1e-05
        %v4143 = vadd.f32 %v4127, 1e-05
        %v4144 = vadd.f32 %v4128, 1e-05
        %v4145 = vadd.f32 %v4129, 1e-05
        %v4146 = vrsqrt.pop %v4130
        %v4147 = vrsqrt.pop %v4131
        %v4148 = vrsqrt.pop %v4132
        %v4149 = vrsqrt.pop %v4133
        %v4150 = vrsqrt.pop %v4134
        %v4151 = vrsqrt.pop %v4135
        %v4152 = vrsqrt.pop %v4136
        %v4153 = vrsqrt.pop %v4137
        %v4154 = vrsqrt.pop %v4138
        %v4155 = vrsqrt.pop %v4139
        %v4156 = vrsqrt.pop %v4140
        %v4157 = vrsqrt.pop %v4141
        %v4158 = vrsqrt.pop %v4142
        %v4159 = vrsqrt.pop %v4143
        %v4160 = vrsqrt.pop %v4144
        %v4161 = vrsqrt.pop %v4145
        %v4162 = vmul.f32 %v4034, %v4146
        %v4163 = vmul.f32 %v4035, %v4147
        %v4164 = vmul.f32 %v4036, %v4148
        %v4165 = vmul.f32 %v4037, %v4149
        %v4166 = vmul.f32 %v4038, %v4150
        %v4167 = vmul.f32 %v4039, %v4151
        %v4168 = vmul.f32 %v4040, %v4152
        %v4169 = vmul.f32 %v4041, %v4153
        %v4170 = vmul.f32 %v4042, %v4154
        %v4171 = vmul.f32 %v4043, %v4155
        %v4172 = vmul.f32 %v4044, %v4156
        %v4173 = vmul.f32 %v4045, %v4157
        %v4174 = vmul.f32 %v4046, %v4158
        %v4175 = vmul.f32 %v4047, %v4159
        %v4176 = vmul.f32 %v4048, %v4160
        %v4177 = vmul.f32 %v4049, %v4161
        %v4179 = vlaneseq
        %v4180 = vshrl.u32 %v4179, 7
        %v4181 = vsub.s32 0, %v4180
        %v4182 = vrot.slane %v3968, %v4181
        %v4184 = vmul.f32 %v4162, %v4182
        %v4185 = vmul.f32 %v4163, %v4182
        %v4186 = vmul.f32 %v4164, %v4182
        %v4187 = vmul.f32 %v4165, %v4182
        %v4188 = vmul.f32 %v4166, %v4182
        %v4189 = vmul.f32 %v4167, %v4182
        %v4190 = vmul.f32 %v4168, %v4182
        %v4191 = vmul.f32 %v4169, %v4182
        %v4192 = vmul.f32 %v4170, %v4182
        %v4193 = vmul.f32 %v4171, %v4182
        %v4194 = vmul.f32 %v4172, %v4182
        %v4195 = vmul.f32 %v4173, %v4182
        %v4196 = vmul.f32 %v4174, %v4182
        %v4197 = vmul.f32 %v4175, %v4182
        %v4198 = vmul.f32 %v4176, %v4182
        %v4199 = vmul.f32 %v4177, %v4182
        %v4201 = vlaneseq
        %v4202 = vshrl.u32 %v4201, 7
        %v4203 = vsub.s32 0, %v4202
        %v4204 = vrot.slane %v3969, %v4203
        %v4206 = vadd.f32 %v4184, %v4204
        %v4207 = vadd.f32 %v4185, %v4204
        %v4208 = vadd.f32 %v4186, %v4204
        %v4209 = vadd.f32 %v4187, %v4204
        %v4210 = vadd.f32 %v4188, %v4204
        %v4211 = vadd.f32 %v4189, %v4204
        %v4212 = vadd.f32 %v4190, %v4204
        %v4213 = vadd.f32 %v4191, %v4204
        %v4214 = vadd.f32 %v4192, %v4204
        %v4215 = vadd.f32 %v4193, %v4204
        %v4216 = vadd.f32 %v4194, %v4204
        %v4217 = vadd.f32 %v4195, %v4204
        %v4218 = vadd.f32 %v4196, %v4204
        %v4219 = vadd.f32 %v4197, %v4204
        %v4220 = vadd.f32 %v4198, %v4204
        %v4221 = vadd.f32 %v4199, %v4204
        %v4222 = vld [vmem:[#allocation17] sm:$0xff]
        %v4223 = vld [vmem:[#allocation17 + $0x8] sm:$0xff]
        %v4224 = vld [vmem:[#allocation17 + $0x10] sm:$0xff]
        %v4225 = vld [vmem:[#allocation17 + $0x18] sm:$0xff]
        %v4226 = vld [vmem:[#allocation19] sm:$0xff]
        %v4227 = vld [vmem:[#allocation19 + $0x8] sm:$0xff]
        %v4228 = vld [vmem:[#allocation19 + $0x10] sm:$0xff]
        %v4229 = vld [vmem:[#allocation19 + $0x18] sm:$0xff]
        %v4230 = vld [vmem:[#allocation20] sm:$0x1]
        %v4232 = vsel %vm947, %v4206, 0
        %v4235 = vsel %vm947, %v4207, 0
        %v4238 = vsel %vm947, %v4208, 0
        %v4241 = vsel %vm947, %v4209, 0
        %v4244 = vsel %vm947, %v4210, 0
        %v4247 = vsel %vm947, %v4211, 0
        %v4250 = vsel %vm947, %v4212, 0
        %v4253 = vsel %vm947, %v4213, 0
        %v4256 = vsel %vm947, %v4214, 0
        %v4259 = vsel %vm947, %v4215, 0
        %v4262 = vsel %vm947, %v4216, 0
        %v4265 = vsel %vm947, %v4217, 0
        %v4268 = vsel %vm947, %v4218, 0
        %v4271 = vsel %vm947, %v4219, 0
        %v4274 = vsel %vm947, %v4220, 0
        %v4277 = vsel %vm947, %v4221, 0
        %4279 = vmatprep.subr.mxu0 0.0
        %4280 = vmatpush1.msra.mxu0 %v4222
        %4281 = vmatprep.subr.mxu0 0.0
        %4282 = vmatpush1.msra.mxu0 %v4223
        %4283 = vmatprep.subr.mxu0 0.0
        %4284 = vmatpush1.msra.mxu0 %v4224
        %4285 = vmatprep.subr.mxu0 0.0
        %4286 = vmatpush1.msra.mxu0 %v4225
        %4287 = vmatprep.subr.mxu0 0.0
        %4288 = vmatpush1.msra.mxu0 0.0
        %4289 = vmatprep.subr.mxu0 0.0
        %4290 = vmatpush1.msra.mxu0 0.0
        %4291 = vmatprep.subr.mxu0 0.0
        %4292 = vmatpush1.msra.mxu0 0.0
        %4293 = vmatprep.subr.mxu0 0.0
        %4294 = vmatpush1.msra.mxu0 0.0
        %4295 = vmatprep.subr.mxu0 0.0
        %4296 = vmatpush1.msra.mxu0 0.0
        %4297 = vmatprep.subr.mxu0 0.0
        %4298 = vmatpush1.msra.mxu0 0.0
        %4299 = vmatprep.subr.mxu0 0.0
        %4300 = vmatpush1.msra.mxu0 0.0
        %4301 = vmatprep.subr.mxu0 0.0
        %4302 = vmatpush1.msra.mxu0 0.0
        %4303 = vmatprep.subr.mxu0 0.0
        %4304 = vmatpush1.msra.mxu0 0.0
        %4305 = vmatprep.subr.mxu0 0.0
        %4306 = vmatpush1.msra.mxu0 0.0
        %4307 = vmatprep.subr.mxu0 0.0
        %4308 = vmatpush1.msra.mxu0 0.0
        %4309 = vmatprep.subr.mxu0 0.0
        %4310 = vmatpush1.msra.mxu0 0.0
        %4311 = vmatprep.subr.mxu0 0.0
        %4312 = vmatpush1.msra.mxu0 0.0
        %4313 = vmatprep.subr.mxu0 0.0
        %4314 = vmatpush1.msra.mxu0 0.0
        %4315 = vmatprep.subr.mxu0 0.0
        %4316 = vmatpush1.msra.mxu0 0.0
        %4317 = vmatprep.subr.mxu0 0.0
        %4318 = vmatpush1.msra.mxu0 0.0
        %4319 = vmatprep.subr.mxu0 0.0
        %4320 = vmatpush1.msra.mxu0 0.0
        %4321 = vmatprep.subr.mxu0 0.0
        %4322 = vmatpush1.msra.mxu0 0.0
        %4323 = vmatprep.subr.mxu0 0.0
        %4324 = vmatpush1.msra.mxu0 0.0
        %4325 = vmatprep.subr.mxu0 0.0
        %4326 = vmatpush1.msra.mxu0 0.0
        %4327 = vmatprep.subr.mxu0 0.0
        %4328 = vmatpush1.msra.mxu0 0.0
        %4329 = vmatprep.subr.mxu0 0.0
        %4330 = vmatpush1.msra.mxu0 0.0
        %4331 = vmatprep.subr.mxu0 0.0
        %4332 = vmatpush1.msra.mxu0 0.0
        %4333 = vmatprep.subr.mxu0 0.0
        %4334 = vmatpush1.msra.mxu0 0.0
        %4335 = vmatprep.subr.mxu0 0.0
        %4336 = vmatpush1.msra.mxu0 0.0
        %4337 = vmatprep.subr.mxu0 0.0
        %4338 = vmatpush1.msra.mxu0 0.0
        %4339 = vmatprep.subr.mxu0 0.0
        %4340 = vmatpush1.msra.mxu0 0.0
        %4341 = vmatprep.subr.mxu0 0.0
        %4342 = vmatpush1.msra.mxu0 0.0
        %4343 = vmatprep.mubr.f32.mxu0 0.0
        %4344 = vmatmul.mubr.f32.gmra.mrb[0].mxu0 %v4232
        %v4345 = vpop.f32.mrb[0].mxu0
        %v4346 = vadd.f32 0.0, %v4345
        %v4347 = vpop.f32.mrb[0].mxu0
        %4348 = vmatprep.mubr.f32.mxu0 0.0
        %4349 = vmatmul.mubr.f32.gmra.mrb[0].mxu0 %v4235
        %v4350 = vpop.f32.mrb[0].mxu0
        %v4351 = vadd.f32 0.0, %v4350
        %v4352 = vpop.f32.mrb[0].mxu0
        %4353 = vmatprep.mubr.f32.mxu0 0.0
        %4354 = vmatmul.mubr.f32.gmra.mrb[0].mxu0 %v4238
        %v4355 = vpop.f32.mrb[0].mxu0
        %v4356 = vadd.f32 0.0, %v4355
        %v4357 = vpop.f32.mrb[0].mxu0
        %4358 = vmatprep.mubr.f32.mxu0 0.0
        %4359 = vmatmul.mubr.f32.gmra.mrb[0].mxu0 %v4241
        %v4360 = vpop.f32.mrb[0].mxu0
        %v4361 = vadd.f32 0.0, %v4360
        %v4362 = vpop.f32.mrb[0].mxu0
        %4363 = vmatprep.mubr.f32.mxu0 0.0
        %4364 = vmatmul.mubr.f32.gmra.mrb[0].mxu0 %v4244
        %v4365 = vpop.f32.mrb[0].mxu0
        %v4366 = vadd.f32 0.0, %v4365
        %v4367 = vpop.f32.mrb[0].mxu0
        %4368 = vmatprep.mubr.f32.mxu0 0.0
        %4369 = vmatmul.mubr.f32.gmra.mrb[0].mxu0 %v4247
        %v4370 = vpop.f32.mrb[0].mxu0
        %v4371 = vadd.f32 0.0, %v4370
        %v4372 = vpop.f32.mrb[0].mxu0
        %4373 = vmatprep.mubr.f32.mxu0 0.0
        %4374 = vmatmul.mubr.f32.gmra.mrb[0].mxu0 %v4250
        %v4375 = vpop.f32.mrb[0].mxu0
        %v4376 = vadd.f32 0.0, %v4375
        %v4377 = vpop.f32.mrb[0].mxu0
        %4378 = vmatprep.mubr.f32.mxu0 0.0
        %4379 = vmatmul.mubr.f32.gmra.mrb[0].mxu0 %v4253
        %v4380 = vpop.f32.mrb[0].mxu0
        %v4381 = vadd.f32 0.0, %v4380
        %v4382 = vpop.f32.mrb[0].mxu0
        %4383 = vmatprep.mubr.f32.mxu0 0.0
        %4384 = vmatmul.mubr.f32.gmra.mrb[0].mxu0 %v4256
        %v4385 = vpop.f32.mrb[0].mxu0
        %v4386 = vadd.f32 0.0, %v4385
        %v4387 = vpop.f32.mrb[0].mxu0
        %4388 = vmatprep.mubr.f32.mxu0 0.0
        %4389 = vmatmul.mubr.f32.gmra.mrb[0].mxu0 %v4259
        %v4390 = vpop.f32.mrb[0].mxu0
        %v4391 = vadd.f32 0.0, %v4390
        %v4392 = vpop.f32.mrb[0].mxu0
        %4393 = vmatprep.mubr.f32.mxu0 0.0
        %4394 = vmatmul.mubr.f32.gmra.mrb[0].mxu0 %v4262
        %v4395 = vpop.f32.mrb[0].mxu0
        %v4396 = vadd.f32 0.0, %v4395
        %v4397 = vpop.f32.mrb[0].mxu0
        %4398 = vmatprep.mubr.f32.mxu0 0.0
        %4399 = vmatmul.mubr.f32.gmra.mrb[0].mxu0 %v4265
        %v4400 = vpop.f32.mrb[0].mxu0
        %v4401 = vadd.f32 0.0, %v4400
        %v4402 = vpop.f32.mrb[0].mxu0
        %4403 = vmatprep.mubr.f32.mxu0 0.0
        %4404 = vmatmul.mubr.f32.gmra.mrb[0].mxu0 %v4268
        %v4405 = vpop.f32.mrb[0].mxu0
        %v4406 = vadd.f32 0.0, %v4405
        %v4407 = vpop.f32.mrb[0].mxu0
        %4408 = vmatprep.mubr.f32.mxu0 0.0
        %4409 = vmatmul.mubr.f32.gmra.mrb[0].mxu0 %v4271
        %v4410 = vpop.f32.mrb[0].mxu0
        %v4411 = vadd.f32 0.0, %v4410
        %v4412 = vpop.f32.mrb[0].mxu0
        %4413 = vmatprep.mubr.f32.mxu0 0.0
        %4414 = vmatmul.mubr.f32.gmra.mrb[0].mxu0 %v4274
        %v4415 = vpop.f32.mrb[0].mxu0
        %v4416 = vadd.f32 0.0, %v4415
        %v4417 = vpop.f32.mrb[0].mxu0
        %4418 = vmatprep.mubr.f32.mxu0 0.0
        %4419 = vmatmul.mubr.f32.gmra.mrb[0].mxu0 %v4277
        %v4420 = vpop.f32.mrb[0].mxu0
        %v4421 = vadd.f32 0.0, %v4420
        %v4422 = vpop.f32.mrb[0].mxu0
        %4423 = vdwg.mxu0
        %v4424 = vmul.f32 %v4346, 0.25
        %v4425 = vmul.f32 %v4351, 0.25
        %v4426 = vmul.f32 %v4356, 0.25
        %v4427 = vmul.f32 %v4361, 0.25
        %v4428 = vmul.f32 %v4366, 0.25
        %v4429 = vmul.f32 %v4371, 0.25
        %v4430 = vmul.f32 %v4376, 0.25
        %v4431 = vmul.f32 %v4381, 0.25
        %v4432 = vmul.f32 %v4386, 0.25
        %v4433 = vmul.f32 %v4391, 0.25
        %v4434 = vmul.f32 %v4396, 0.25
        %v4435 = vmul.f32 %v4401, 0.25
        %v4436 = vmul.f32 %v4406, 0.25
        %v4437 = vmul.f32 %v4411, 0.25
        %v4438 = vmul.f32 %v4416, 0.25
        %v4439 = vmul.f32 %v4421, 0.25
        %4448 = vrot.lane.b32.xlu0 %v4346, 96
        %v4449 = vpop.permute.xlu0 %4448
        %4450 = vrot.lane.b32.xlu0 %v4351, 96
        %v4451 = vpop.permute.xlu0 %4450
        %4452 = vrot.lane.b32.xlu0 %v4356, 96
        %v4453 = vpop.permute.xlu0 %4452
        %4454 = vrot.lane.b32.xlu0 %v4361, 96
        %v4455 = vpop.permute.xlu0 %4454
        %4456 = vrot.lane.b32.xlu0 %v4366, 96
        %v4457 = vpop.permute.xlu0 %4456
        %4458 = vrot.lane.b32.xlu0 %v4371, 96
        %v4459 = vpop.permute.xlu0 %4458
        %4460 = vrot.lane.b32.xlu0 %v4376, 96
        %v4461 = vpop.permute.xlu0 %4460
        %4462 = vrot.lane.b32.xlu0 %v4381, 96
        %v4463 = vpop.permute.xlu0 %4462
        %v4465 = vsel %vm2371, %v4424, 0
        %v4468 = vsel %vm2371, %v4425, 0
        %v4471 = vsel %vm2371, %v4426, 0
        %v4474 = vsel %vm2371, %v4427, 0
        %v4477 = vsel %vm2371, %v4428, 0
        %v4480 = vsel %vm2371, %v4429, 0
        %v4483 = vsel %vm2371, %v4430, 0
        %v4486 = vsel %vm2371, %v4431, 0
        %v4488 = vsel %vm2371, %v4449, 0
        %v4490 = vsel %vm2371, %v4451, 0
        %v4492 = vsel %vm2371, %v4453, 0
        %v4494 = vsel %vm2371, %v4455, 0
        %v4496 = vsel %vm2371, %v4457, 0
        %v4498 = vsel %vm2371, %v4459, 0
        %v4500 = vsel %vm2371, %v4461, 0
        %v4502 = vsel %vm2371, %v4463, 0
        %4504 = vmatprep.subr.mxu0 0.0
        %4505 = vmatpush1.xpose.msra.mxu0 %v4488
        %4506 = vmatprep.subr.mxu0 0.0
        %4507 = vmatpush1.xpose.msra.mxu0 %v4490
        %4508 = vmatprep.subr.mxu0 0.0
        %4509 = vmatpush1.xpose.msra.mxu0 %v4492
        %4510 = vmatprep.subr.mxu0 0.0
        %4511 = vmatpush1.xpose.msra.mxu0 %v4494
        %4512 = vmatprep.subr.mxu0 0.0
        %4513 = vmatpush1.xpose.msra.mxu0 %v4496
        %4514 = vmatprep.subr.mxu0 0.0
        %4515 = vmatpush1.xpose.msra.mxu0 %v4498
        %4516 = vmatprep.subr.mxu0 0.0
        %4517 = vmatpush1.xpose.msra.mxu0 %v4500
        %4518 = vmatprep.subr.mxu0 0.0
        %4519 = vmatpush1.xpose.msra.mxu0 %v4502
        %4520 = vmatprep.subr.mxu0 0.0
        %4521 = vmatpush1.xpose.msra.mxu0 0.0
        %4522 = vmatprep.subr.mxu0 0.0
        %4523 = vmatpush1.xpose.msra.mxu0 0.0
        %4524 = vmatprep.subr.mxu0 0.0
        %4525 = vmatpush1.xpose.msra.mxu0 0.0
        %4526 = vmatprep.subr.mxu0 0.0
        %4527 = vmatpush1.xpose.msra.mxu0 0.0
        %4528 = vmatprep.subr.mxu0 0.0
        %4529 = vmatpush1.xpose.msra.mxu0 0.0
        %4530 = vmatprep.subr.mxu0 0.0
        %4531 = vmatpush1.xpose.msra.mxu0 0.0
        %4532 = vmatprep.subr.mxu0 0.0
        %4533 = vmatpush1.xpose.msra.mxu0 0.0
        %4534 = vmatprep.subr.mxu0 0.0
        %4535 = vmatpush1.xpose.msra.mxu0 0.0
        %4536 = vmatprep.subr.mxu0 0.0
        %4537 = vmatpush1.xpose.msra.mxu0 0.0
        %4538 = vmatprep.subr.mxu0 0.0
        %4539 = vmatpush1.xpose.msra.mxu0 0.0
        %4540 = vmatprep.subr.mxu0 0.0
        %4541 = vmatpush1.xpose.msra.mxu0 0.0
        %4542 = vmatprep.subr.mxu0 0.0
        %4543 = vmatpush1.xpose.msra.mxu0 0.0
        %4544 = vmatprep.subr.mxu0 0.0
        %4545 = vmatpush1.xpose.msra.mxu0 0.0
        %4546 = vmatprep.subr.mxu0 0.0
        %4547 = vmatpush1.xpose.msra.mxu0 0.0
        %4548 = vmatprep.subr.mxu0 0.0
        %4549 = vmatpush1.xpose.msra.mxu0 0.0
        %4550 = vmatprep.subr.mxu0 0.0
        %4551 = vmatpush1.xpose.msra.mxu0 0.0
        %4552 = vmatprep.subr.mxu0 0.0
        %4553 = vmatpush1.xpose.msra.mxu0 0.0
        %4554 = vmatprep.subr.mxu0 0.0
        %4555 = vmatpush1.xpose.msra.mxu0 0.0
        %4556 = vmatprep.subr.mxu0 0.0
        %4557 = vmatpush1.xpose.msra.mxu0 0.0
        %4558 = vmatprep.subr.mxu0 0.0
        %4559 = vmatpush1.xpose.msra.mxu0 0.0
        %4560 = vmatprep.subr.mxu0 0.0
        %4561 = vmatpush1.xpose.msra.mxu0 0.0
        %4562 = vmatprep.subr.mxu0 0.0
        %4563 = vmatpush1.xpose.msra.mxu0 0.0
        %4564 = vmatprep.subr.mxu0 0.0
        %4565 = vmatpush1.xpose.msra.mxu0 0.0
        %4566 = vmatprep.subr.mxu0 0.0
        %4567 = vmatpush1.xpose.msra.mxu0 0.0
        %4568 = vmatprep.mubr.f32.mxu0 0.0
        %4569 = vmatmul.mubr.f32.gmra.mrb[0].mxu0 %v4465
        %v4570 = vpop.f32.mrb[0].mxu0
        %v4571 = vadd.f32 0.0, %v4570
        %v4572 = vpop.f32.mrb[0].mxu0
        %4573 = vmatprep.mubr.f32.mxu0 0.0
        %4574 = vmatmul.mubr.f32.gmra.mrb[0].mxu0 %v4468
        %v4575 = vpop.f32.mrb[0].mxu0
        %v4576 = vadd.f32 0.0, %v4575
        %v4577 = vpop.f32.mrb[0].mxu0
        %4578 = vmatprep.mubr.f32.mxu0 0.0
        %4579 = vmatmul.mubr.f32.gmra.mrb[0].mxu0 %v4471
        %v4580 = vpop.f32.mrb[0].mxu0
        %v4581 = vadd.f32 0.0, %v4580
        %v4582 = vpop.f32.mrb[0].mxu0
        %4583 = vmatprep.mubr.f32.mxu0 0.0
        %4584 = vmatmul.mubr.f32.gmra.mrb[0].mxu0 %v4474
        %v4585 = vpop.f32.mrb[0].mxu0
        %v4586 = vadd.f32 0.0, %v4585
        %v4587 = vpop.f32.mrb[0].mxu0
        %4588 = vmatprep.mubr.f32.mxu0 0.0
        %4589 = vmatmul.mubr.f32.gmra.mrb[0].mxu0 %v4477
        %v4590 = vpop.f32.mrb[0].mxu0
        %v4591 = vadd.f32 0.0, %v4590
        %v4592 = vpop.f32.mrb[0].mxu0
        %4593 = vmatprep.mubr.f32.mxu0 0.0
        %4594 = vmatmul.mubr.f32.gmra.mrb[0].mxu0 %v4480
        %v4595 = vpop.f32.mrb[0].mxu0
        %v4596 = vadd.f32 0.0, %v4595
        %v4597 = vpop.f32.mrb[0].mxu0
        %4598 = vmatprep.mubr.f32.mxu0 0.0
        %4599 = vmatmul.mubr.f32.gmra.mrb[0].mxu0 %v4483
        %v4600 = vpop.f32.mrb[0].mxu0
        %v4601 = vadd.f32 0.0, %v4600
        %v4602 = vpop.f32.mrb[0].mxu0
        %4603 = vmatprep.mubr.f32.mxu0 0.0
        %4604 = vmatmul.mubr.f32.gmra.mrb[0].mxu0 %v4486
        %v4605 = vpop.f32.mrb[0].mxu0
        %v4606 = vadd.f32 0.0, %v4605
        %v4607 = vpop.f32.mrb[0].mxu0
        %4608 = vdwg.mxu0
        %vm4609 = vcmask 523264
        %v4610 = vsel %vm4609, %v4571, -inf
        %4611 = vmax.xlane.f32.xlu0 %v4610
        %v4612 = vpop.xlane.xlu0 %4611
        %v4613 = vsel %vm4609, %v4576, -inf
        %4614 = vmax.xlane.f32.xlu0 %v4613
        %v4615 = vpop.xlane.xlu0 %4614
        %v4616 = vsel %vm4609, %v4581, -inf
        %4617 = vmax.xlane.f32.xlu0 %v4616
        %v4618 = vpop.xlane.xlu0 %4617
        %v4619 = vsel %vm4609, %v4586, -inf
        %4620 = vmax.xlane.f32.xlu0 %v4619
        %v4621 = vpop.xlane.xlu0 %4620
        %v4622 = vsel %vm4609, %v4591, -inf
        %4623 = vmax.xlane.f32.xlu0 %v4622
        %v4624 = vpop.xlane.xlu0 %4623
        %v4625 = vsel %vm4609, %v4596, -inf
        %4626 = vmax.xlane.f32.xlu0 %v4625
        %v4627 = vpop.xlane.xlu0 %4626
        %v4628 = vsel %vm4609, %v4601, -inf
        %4629 = vmax.xlane.f32.xlu0 %v4628
        %v4630 = vpop.xlane.xlu0 %4629
        %v4631 = vsel %vm4609, %v4606, -inf
        %4632 = vmax.xlane.f32.xlu0 %v4631
        %v4633 = vpop.xlane.xlu0 %4632
        %v4634 = vsub.f32 %v4571, %v4612
        %v4635 = vsub.f32 %v4576, %v4615
        %v4636 = vsub.f32 %v4581, %v4618
        %v4637 = vsub.f32 %v4586, %v4621
        %v4638 = vsub.f32 %v4591, %v4624
        %v4639 = vsub.f32 %v4596, %v4627
        %v4640 = vsub.f32 %v4601, %v4630
        %v4641 = vsub.f32 %v4606, %v4633
        %v4642 = vmul.f32 %v4634, 1.442695
        %v4643 = vpow.pop %v4642
        %v4644 = vmul.f32 %v4635, 1.442695
        %v4645 = vpow.pop %v4644
        %v4646 = vmul.f32 %v4636, 1.442695
        %v4647 = vpow.pop %v4646
        %v4648 = vmul.f32 %v4637, 1.442695
        %v4649 = vpow.pop %v4648
        %v4650 = vmul.f32 %v4638, 1.442695
        %v4651 = vpow.pop %v4650
        %v4652 = vmul.f32 %v4639, 1.442695
        %v4653 = vpow.pop %v4652
        %v4654 = vmul.f32 %v4640, 1.442695
        %v4655 = vpow.pop %v4654
        %v4656 = vmul.f32 %v4641, 1.442695
        %v4657 = vpow.pop %v4656
        %v4658 = vsel %vm4609, %v4643, 0.0
        %4659 = vadd.xlane.f32.xlu0 %v4658
        %v4660 = vpop.xlane.xlu0 %4659
        %v4661 = vsel %vm4609, %v4645, 0.0
        %4662 = vadd.xlane.f32.xlu0 %v4661
        %v4663 = vpop.xlane.xlu0 %4662
        %v4664 = vsel %vm4609, %v4647, 0.0
        %4665 = vadd.xlane.f32.xlu0 %v4664
        %v4666 = vpop.xlane.xlu0 %4665
        %v4667 = vsel %vm4609, %v4649, 0.0
        %4668 = vadd.xlane.f32.xlu0 %v4667
        %v4669 = vpop.xlane.xlu0 %4668
        %v4670 = vsel %vm4609, %v4651, 0.0
        %4671 = vadd.xlane.f32.xlu0 %v4670
        %v4672 = vpop.xlane.xlu0 %4671
        %v4673 = vsel %vm4609, %v4653, 0.0
        %4674 = vadd.xlane.f32.xlu0 %v4673
        %v4675 = vpop.xlane.xlu0 %4674
        %v4676 = vsel %vm4609, %v4655, 0.0
        %4677 = vadd.xlane.f32.xlu0 %v4676
        %v4678 = vpop.xlane.xlu0 %4677
        %v4679 = vsel %vm4609, %v4657, 0.0
        %4680 = vadd.xlane.f32.xlu0 %v4679
        %v4681 = vpop.xlane.xlu0 %4680
        %v4682 = vrcp.pop %v4660
        %v4683 = vmul.f32 %v4643, %v4682
        %v4684 = vrcp.pop %v4663
        %v4685 = vmul.f32 %v4645, %v4684
        %v4686 = vrcp.pop %v4666
        %v4687 = vmul.f32 %v4647, %v4686
        %v4688 = vrcp.pop %v4669
        %v4689 = vmul.f32 %v4649, %v4688
        %v4690 = vrcp.pop %v4672
        %v4691 = vmul.f32 %v4651, %v4690
        %v4692 = vrcp.pop %v4675
        %v4693 = vmul.f32 %v4653, %v4692
        %v4694 = vrcp.pop %v4678
        %v4695 = vmul.f32 %v4655, %v4694
        %v4696 = vrcp.pop %v4681
        %v4697 = vmul.f32 %v4657, %v4696
        %4698 = vrot.lane.b32.xlu0 %v4346, 64
        %v4699 = vpop.permute.xlu0 %4698
        %4700 = vrot.lane.b32.xlu0 %v4351, 64
        %v4701 = vpop.permute.xlu0 %4700
        %4702 = vrot.lane.b32.xlu0 %v4356, 64
        %v4703 = vpop.permute.xlu0 %4702
        %4704 = vrot.lane.b32.xlu0 %v4361, 64
        %v4705 = vpop.permute.xlu0 %4704
        %4706 = vrot.lane.b32.xlu0 %v4366, 64
        %v4707 = vpop.permute.xlu0 %4706
        %4708 = vrot.lane.b32.xlu0 %v4371, 64
        %v4709 = vpop.permute.xlu0 %4708
        %4710 = vrot.lane.b32.xlu0 %v4376, 64
        %v4711 = vpop.permute.xlu0 %4710
        %4712 = vrot.lane.b32.xlu0 %v4381, 64
        %v4713 = vpop.permute.xlu0 %4712
        %v4723 = vsel %vm4609, %v4683, 0
        %v4726 = vsel %vm4609, %v4685, 0
        %v4729 = vsel %vm4609, %v4687, 0
        %v4732 = vsel %vm4609, %v4689, 0
        %v4735 = vsel %vm4609, %v4691, 0
        %v4738 = vsel %vm4609, %v4693, 0
        %v4741 = vsel %vm4609, %v4695, 0
        %v4744 = vsel %vm4609, %v4697, 0
        %4746 = vmatprep.subr.mxu0 0.0
        %4747 = vmatpush1.msra.mxu0 %v4699
        %4748 = vmatprep.subr.mxu0 0.0
        %4749 = vmatpush1.msra.mxu0 %v4701
        %4750 = vmatprep.subr.mxu0 0.0
        %4751 = vmatpush1.msra.mxu0 %v4703
        %4752 = vmatprep.subr.mxu0 0.0
        %4753 = vmatpush1.msra.mxu0 %v4705
        %4754 = vmatprep.subr.mxu0 0.0
        %4755 = vmatpush1.msra.mxu0 %v4707
        %4756 = vmatprep.subr.mxu0 0.0
        %4757 = vmatpush1.msra.mxu0 %v4709
        %4758 = vmatprep.subr.mxu0 0.0
        %4759 = vmatpush1.msra.mxu0 %v4711
        %4760 = vmatprep.subr.mxu0 0.0
        %4761 = vmatpush1.msra.mxu0 %v4713
        %4762 = vmatprep.subr.mxu0 0.0
        %4763 = vmatpush1.msra.mxu0 0.0
        %4764 = vmatprep.subr.mxu0 0.0
        %4765 = vmatpush1.msra.mxu0 0.0
        %4766 = vmatprep.subr.mxu0 0.0
        %4767 = vmatpush1.msra.mxu0 0.0
        %4768 = vmatprep.subr.mxu0 0.0
        %4769 = vmatpush1.msra.mxu0 0.0
        %4770 = vmatprep.subr.mxu0 0.0
        %4771 = vmatpush1.msra.mxu0 0.0
        %4772 = vmatprep.subr.mxu0 0.0
        %4773 = vmatpush1.msra.mxu0 0.0
        %4774 = vmatprep.subr.mxu0 0.0
        %4775 = vmatpush1.msra.mxu0 0.0
        %4776 = vmatprep.subr.mxu0 0.0
        %4777 = vmatpush1.msra.mxu0 0.0
        %4778 = vmatprep.subr.mxu0 0.0
        %4779 = vmatpush1.msra.mxu0 0.0
        %4780 = vmatprep.subr.mxu0 0.0
        %4781 = vmatpush1.msra.mxu0 0.0
        %4782 = vmatprep.subr.mxu0 0.0
        %4783 = vmatpush1.msra.mxu0 0.0
        %4784 = vmatprep.subr.mxu0 0.0
        %4785 = vmatpush1.msra.mxu0 0.0
        %4786 = vmatprep.subr.mxu0 0.0
        %4787 = vmatpush1.msra.mxu0 0.0
        %4788 = vmatprep.subr.mxu0 0.0
        %4789 = vmatpush1.msra.mxu0 0.0
        %4790 = vmatprep.subr.mxu0 0.0
        %4791 = vmatpush1.msra.mxu0 0.0
        %4792 = vmatprep.subr.mxu0 0.0
        %4793 = vmatpush1.msra.mxu0 0.0
        %4794 = vmatprep.subr.mxu0 0.0
        %4795 = vmatpush1.msra.mxu0 0.0
        %4796 = vmatprep.subr.mxu0 0.0
        %4797 = vmatpush1.msra.mxu0 0.0
        %4798 = vmatprep.subr.mxu0 0.0
        %4799 = vmatpush1.msra.mxu0 0.0
        %4800 = vmatprep.subr.mxu0 0.0
        %4801 = vmatpush1.msra.mxu0 0.0
        %4802 = vmatprep.subr.mxu0 0.0
        %4803 = vmatpush1.msra.mxu0 0.0
        %4804 = vmatprep.subr.mxu0 0.0
        %4805 = vmatpush1.msra.mxu0 0.0
        %4806 = vmatprep.subr.mxu0 0.0
        %4807 = vmatpush1.msra.mxu0 0.0
        %4808 = vmatprep.subr.mxu0 0.0
        %4809 = vmatpush1.msra.mxu0 0.0
        %4810 = vmatprep.mubr.f32.mxu0 0.0
        %4811 = vmatmul.mubr.f32.gmra.mrb[0].mxu0 %v4723
        %v4812 = vpop.f32.mrb[0].mxu0
        %v4813 = vadd.f32 0.0, %v4812
        %v4814 = vpop.f32.mrb[0].mxu0
        %4815 = vmatprep.mubr.f32.mxu0 0.0
        %4816 = vmatmul.mubr.f32.gmra.mrb[0].mxu0 %v4726
        %v4817 = vpop.f32.mrb[0].mxu0
        %v4818 = vadd.f32 0.0, %v4817
        %v4819 = vpop.f32.mrb[0].mxu0
        %4820 = vmatprep.mubr.f32.mxu0 0.0
        %4821 = vmatmul.mubr.f32.gmra.mrb[0].mxu0 %v4729
        %v4822 = vpop.f32.mrb[0].mxu0
        %v4823 = vadd.f32 0.0, %v4822
        %v4824 = vpop.f32.mrb[0].mxu0
        %4825 = vmatprep.mubr.f32.mxu0 0.0
        %4826 = vmatmul.mubr.f32.gmra.mrb[0].mxu0 %v4732
        %v4827 = vpop.f32.mrb[0].mxu0
        %v4828 = vadd.f32 0.0, %v4827
        %v4829 = vpop.f32.mrb[0].mxu0
        %4830 = vmatprep.mubr.f32.mxu0 0.0
        %4831 = vmatmul.mubr.f32.gmra.mrb[0].mxu0 %v4735
        %v4832 = vpop.f32.mrb[0].mxu0
        %v4833 = vadd.f32 0.0, %v4832
        %v4834 = vpop.f32.mrb[0].mxu0
        %4835 = vmatprep.mubr.f32.mxu0 0.0
        %4836 = vmatmul.mubr.f32.gmra.mrb[0].mxu0 %v4738
        %v4837 = vpop.f32.mrb[0].mxu0
        %v4838 = vadd.f32 0.0, %v4837
        %v4839 = vpop.f32.mrb[0].mxu0
        %4840 = vmatprep.mubr.f32.mxu0 0.0
        %4841 = vmatmul.mubr.f32.gmra.mrb[0].mxu0 %v4741
        %v4842 = vpop.f32.mrb[0].mxu0
        %v4843 = vadd.f32 0.0, %v4842
        %v4844 = vpop.f32.mrb[0].mxu0
        %4845 = vmatprep.mubr.f32.mxu0 0.0
        %4846 = vmatmul.mubr.f32.gmra.mrb[0].mxu0 %v4744
        %v4847 = vpop.f32.mrb[0].mxu0
        %v4848 = vadd.f32 0.0, %v4847
        %v4849 = vpop.f32.mrb[0].mxu0
        %4850 = vdwg.mxu0
        %4851 = vrot.lane.b32.xlu0 %v4424, 112
        %v4852 = vpop.permute.xlu0 %4851
        %4853 = vrot.lane.b32.xlu0 %v4425, 112
        %v4854 = vpop.permute.xlu0 %4853
        %4855 = vrot.lane.b32.xlu0 %v4426, 112
        %v4856 = vpop.permute.xlu0 %4855
        %4857 = vrot.lane.b32.xlu0 %v4427, 112
        %v4858 = vpop.permute.xlu0 %4857
        %4859 = vrot.lane.b32.xlu0 %v4428, 112
        %v4860 = vpop.permute.xlu0 %4859
        %4861 = vrot.lane.b32.xlu0 %v4429, 112
        %v4862 = vpop.permute.xlu0 %4861
        %4863 = vrot.lane.b32.xlu0 %v4430, 112
        %v4864 = vpop.permute.xlu0 %4863
        %4865 = vrot.lane.b32.xlu0 %v4431, 112
        %v4866 = vpop.permute.xlu0 %4865
        %4867 = vrot.lane.b32.xlu0 %v4346, 80
        %v4868 = vpop.permute.xlu0 %4867
        %4869 = vrot.lane.b32.xlu0 %v4351, 80
        %v4870 = vpop.permute.xlu0 %4869
        %4871 = vrot.lane.b32.xlu0 %v4356, 80
        %v4872 = vpop.permute.xlu0 %4871
        %4873 = vrot.lane.b32.xlu0 %v4361, 80
        %v4874 = vpop.permute.xlu0 %4873
        %4875 = vrot.lane.b32.xlu0 %v4366, 80
        %v4876 = vpop.permute.xlu0 %4875
        %4877 = vrot.lane.b32.xlu0 %v4371, 80
        %v4878 = vpop.permute.xlu0 %4877
        %4879 = vrot.lane.b32.xlu0 %v4376, 80
        %v4880 = vpop.permute.xlu0 %4879
        %4881 = vrot.lane.b32.xlu0 %v4381, 80
        %v4882 = vpop.permute.xlu0 %4881
        %v4883 = vsel %vm2371, %v4852, 0
        %v4885 = vsel %vm2371, %v4854, 0
        %v4887 = vsel %vm2371, %v4856, 0
        %v4889 = vsel %vm2371, %v4858, 0
        %v4891 = vsel %vm2371, %v4860, 0
        %v4893 = vsel %vm2371, %v4862, 0
        %v4895 = vsel %vm2371, %v4864, 0
        %v4897 = vsel %vm2371, %v4866, 0
        %v4899 = vsel %vm2371, %v4868, 0
        %v4901 = vsel %vm2371, %v4870, 0
        %v4903 = vsel %vm2371, %v4872, 0
        %v4905 = vsel %vm2371, %v4874, 0
        %v4907 = vsel %vm2371, %v4876, 0
        %v4909 = vsel %vm2371, %v4878, 0
        %v4911 = vsel %vm2371, %v4880, 0
        %v4913 = vsel %vm2371, %v4882, 0
        %4915 = vmatprep.subr.mxu0 0.0
        %4916 = vmatpush1.xpose.msra.mxu0 %v4899
        %4917 = vmatprep.subr.mxu0 0.0
        %4918 = vmatpush1.xpose.msra.mxu0 %v4901
        %4919 = vmatprep.subr.mxu0 0.0
        %4920 = vmatpush1.xpose.msra.mxu0 %v4903
        %4921 = vmatprep.subr.mxu0 0.0
        %4922 = vmatpush1.xpose.msra.mxu0 %v4905
        %4923 = vmatprep.subr.mxu0 0.0
        %4924 = vmatpush1.xpose.msra.mxu0 %v4907
        %4925 = vmatprep.subr.mxu0 0.0
        %4926 = vmatpush1.xpose.msra.mxu0 %v4909
        %4927 = vmatprep.subr.mxu0 0.0
        %4928 = vmatpush1.xpose.msra.mxu0 %v4911
        %4929 = vmatprep.subr.mxu0 0.0
        %4930 = vmatpush1.xpose.msra.mxu0 %v4913
        %4931 = vmatprep.subr.mxu0 0.0
        %4932 = vmatpush1.xpose.msra.mxu0 0.0
        %4933 = vmatprep.subr.mxu0 0.0
        %4934 = vmatpush1.xpose.msra.mxu0 0.0
        %4935 = vmatprep.subr.mxu0 0.0
        %4936 = vmatpush1.xpose.msra.mxu0 0.0
        %4937 = vmatprep.subr.mxu0 0.0
        %4938 = vmatpush1.xpose.msra.mxu0 0.0
        %4939 = vmatprep.subr.mxu0 0.0
        %4940 = vmatpush1.xpose.msra.mxu0 0.0
        %4941 = vmatprep.subr.mxu0 0.0
        %4942 = vmatpush1.xpose.msra.mxu0 0.0
        %4943 = vmatprep.subr.mxu0 0.0
        %4944 = vmatpush1.xpose.msra.mxu0 0.0
        %4945 = vmatprep.subr.mxu0 0.0
        %4946 = vmatpush1.xpose.msra.mxu0 0.0
        %4947 = vmatprep.subr.mxu0 0.0
        %4948 = vmatpush1.xpose.msra.mxu0 0.0
        %4949 = vmatprep.subr.mxu0 0.0
        %4950 = vmatpush1.xpose.msra.mxu0 0.0
        %4951 = vmatprep.subr.mxu0 0.0
        %4952 = vmatpush1.xpose.msra.mxu0 0.0
        %4953 = vmatprep.subr.mxu0 0.0
        %4954 = vmatpush1.xpose.msra.mxu0 0.0
        %4955 = vmatprep.subr.mxu0 0.0
        %4956 = vmatpush1.xpose.msra.mxu0 0.0
        %4957 = vmatprep.subr.mxu0 0.0
        %4958 = vmatpush1.xpose.msra.mxu0 0.0
        %4959 = vmatprep.subr.mxu0 0.0
        %4960 = vmatpush1.xpose.msra.mxu0 0.0
        %4961 = vmatprep.subr.mxu0 0.0
        %4962 = vmatpush1.xpose.msra.mxu0 0.0
        %4963 = vmatprep.subr.mxu0 0.0
        %4964 = vmatpush1.xpose.msra.mxu0 0.0
        %4965 = vmatprep.subr.mxu0 0.0
        %4966 = vmatpush1.xpose.msra.mxu0 0.0
        %4967 = vmatprep.subr.mxu0 0.0
        %4968 = vmatpush1.xpose.msra.mxu0 0.0
        %4969 = vmatprep.subr.mxu0 0.0
        %4970 = vmatpush1.xpose.msra.mxu0 0.0
        %4971 = vmatprep.subr.mxu0 0.0
        %4972 = vmatpush1.xpose.msra.mxu0 0.0
        %4973 = vmatprep.subr.mxu0 0.0
        %4974 = vmatpush1.xpose.msra.mxu0 0.0
        %4975 = vmatprep.subr.mxu0 0.0
        %4976 = vmatpush1.xpose.msra.mxu0 0.0
        %4977 = vmatprep.subr.mxu0 0.0
        %4978 = vmatpush1.xpose.msra.mxu0 0.0
        %4979 = vmatprep.mubr.f32.mxu0 0.0
        %4980 = vmatmul.mubr.f32.gmra.mrb[0].mxu0 %v4883
        %v4981 = vpop.f32.mrb[0].mxu0
        %v4982 = vadd.f32 0.0, %v4981
        %v4983 = vpop.f32.mrb[0].mxu0
        %4984 = vmatprep.mubr.f32.mxu0 0.0
        %4985 = vmatmul.mubr.f32.gmra.mrb[0].mxu0 %v4885
        %v4986 = vpop.f32.mrb[0].mxu0
        %v4987 = vadd.f32 0.0, %v4986
        %v4988 = vpop.f32.mrb[0].mxu0
        %4989 = vmatprep.mubr.f32.mxu0 0.0
        %4990 = vmatmul.mubr.f32.gmra.mrb[0].mxu0 %v4887
        %v4991 = vpop.f32.mrb[0].mxu0
        %v4992 = vadd.f32 0.0, %v4991
        %v4993 = vpop.f32.mrb[0].mxu0
        %4994 = vmatprep.mubr.f32.mxu0 0.0
        %4995 = vmatmul.mubr.f32.gmra.mrb[0].mxu0 %v4889
        %v4996 = vpop.f32.mrb[0].mxu0
        %v4997 = vadd.f32 0.0, %v4996
        %v4998 = vpop.f32.mrb[0].mxu0
        %4999 = vmatprep.mubr.f32.mxu0 0.0
        %5000 = vmatmul.mubr.f32.gmra.mrb[0].mxu0 %v4891
        %v5001 = vpop.f32.mrb[0].mxu0
        %v5002 = vadd.f32 0.0, %v5001
        %v5003 = vpop.f32.mrb[0].mxu0
        %5004 = vmatprep.mubr.f32.mxu0 0.0
        %5005 = vmatmul.mubr.f32.gmra.mrb[0].mxu0 %v4893
        %v5006 = vpop.f32.mrb[0].mxu0
        %v5007 = vadd.f32 0.0, %v5006
        %v5008 = vpop.f32.mrb[0].mxu0
        %5009 = vmatprep.mubr.f32.mxu0 0.0
        %5010 = vmatmul.mubr.f32.gmra.mrb[0].mxu0 %v4895
        %v5011 = vpop.f32.mrb[0].mxu0
        %v5012 = vadd.f32 0.0, %v5011
        %v5013 = vpop.f32.mrb[0].mxu0
        %5014 = vmatprep.mubr.f32.mxu0 0.0
        %5015 = vmatmul.mubr.f32.gmra.mrb[0].mxu0 %v4897
        %v5016 = vpop.f32.mrb[0].mxu0
        %v5017 = vadd.f32 0.0, %v5016
        %v5018 = vpop.f32.mrb[0].mxu0
        %5019 = vdwg.mxu0
        %v5020 = vsel %vm4609, %v4982, -inf
        %5021 = vmax.xlane.f32.xlu0 %v5020
        %v5022 = vpop.xlane.xlu0 %5021
        %v5023 = vsel %vm4609, %v4987, -inf
        %5024 = vmax.xlane.f32.xlu0 %v5023
        %v5025 = vpop.xlane.xlu0 %5024
        %v5026 = vsel %vm4609, %v4992, -inf
        %5027 = vmax.xlane.f32.xlu0 %v5026
        %v5028 = vpop.xlane.xlu0 %5027
        %v5029 = vsel %vm4609, %v4997, -inf
        %5030 = vmax.xlane.f32.xlu0 %v5029
        %v5031 = vpop.xlane.xlu0 %5030
        %v5032 = vsel %vm4609, %v5002, -inf
        %5033 = vmax.xlane.f32.xlu0 %v5032
        %v5034 = vpop.xlane.xlu0 %5033
        %v5035 = vsel %vm4609, %v5007, -inf
        %5036 = vmax.xlane.f32.xlu0 %v5035
        %v5037 = vpop.xlane.xlu0 %5036
        %v5038 = vsel %vm4609, %v5012, -inf
        %5039 = vmax.xlane.f32.xlu0 %v5038
        %v5040 = vpop.xlane.xlu0 %5039
        %v5041 = vsel %vm4609, %v5017, -inf
        %5042 = vmax.xlane.f32.xlu0 %v5041
        %v5043 = vpop.xlane.xlu0 %5042
        %v5044 = vsub.f32 %v4982, %v5022
        %v5045 = vsub.f32 %v4987, %v5025
        %v5046 = vsub.f32 %v4992, %v5028
        %v5047 = vsub.f32 %v4997, %v5031
        %v5048 = vsub.f32 %v5002, %v5034
        %v5049 = vsub.f32 %v5007, %v5037
        %v5050 = vsub.f32 %v5012, %v5040
        %v5051 = vsub.f32 %v5017, %v5043
        %v5052 = vmul.f32 %v5044, 1.442695
        %v5053 = vpow.pop %v5052
        %v5054 = vmul.f32 %v5045, 1.442695
        %v5055 = vpow.pop %v5054
        %v5056 = vmul.f32 %v5046, 1.442695
        %v5057 = vpow.pop %v5056
        %v5058 = vmul.f32 %v5047, 1.442695
        %v5059 = vpow.pop %v5058
        %v5060 = vmul.f32 %v5048, 1.442695
        %v5061 = vpow.pop %v5060
        %v5062 = vmul.f32 %v5049, 1.442695
        %v5063 = vpow.pop %v5062
        %v5064 = vmul.f32 %v5050, 1.442695
        %v5065 = vpow.pop %v5064
        %v5066 = vmul.f32 %v5051, 1.442695
        %v5067 = vpow.pop %v5066
        %v5068 = vsel %vm4609, %v5053, 0.0
        %5069 = vadd.xlane.f32.xlu0 %v5068
        %v5070 = vpop.xlane.xlu0 %5069
        %v5071 = vsel %vm4609, %v5055, 0.0
        %5072 = vadd.xlane.f32.xlu0 %v5071
        %v5073 = vpop.xlane.xlu0 %5072
        %v5074 = vsel %vm4609, %v5057, 0.0
        %5075 = vadd.xlane.f32.xlu0 %v5074
        %v5076 = vpop.xlane.xlu0 %5075
        %v5077 = vsel %vm4609, %v5059, 0.0
        %5078 = vadd.xlane.f32.xlu0 %v5077
        %v5079 = vpop.xlane.xlu0 %5078
        %v5080 = vsel %vm4609, %v5061, 0.0
        %5081 = vadd.xlane.f32.xlu0 %v5080
        %v5082 = vpop.xlane.xlu0 %5081
        %v5083 = vsel %vm4609, %v5063, 0.0
        %5084 = vadd.xlane.f32.xlu0 %v5083
        %v5085 = vpop.xlane.xlu0 %5084
        %v5086 = vsel %vm4609, %v5065, 0.0
        %5087 = vadd.xlane.f32.xlu0 %v5086
        %v5088 = vpop.xlane.xlu0 %5087
        %v5089 = vsel %vm4609, %v5067, 0.0
        %5090 = vadd.xlane.f32.xlu0 %v5089
        %v5091 = vpop.xlane.xlu0 %5090
        %v5092 = vrcp.pop %v5070
        %v5093 = vmul.f32 %v5053, %v5092
        %v5094 = vrcp.pop %v5073
        %v5095 = vmul.f32 %v5055, %v5094
        %v5096 = vrcp.pop %v5076
        %v5097 = vmul.f32 %v5057, %v5096
        %v5098 = vrcp.pop %v5079
        %v5099 = vmul.f32 %v5059, %v5098
        %v5100 = vrcp.pop %v5082
        %v5101 = vmul.f32 %v5061, %v5100
        %v5102 = vrcp.pop %v5085
        %v5103 = vmul.f32 %v5063, %v5102
        %v5104 = vrcp.pop %v5088
        %v5105 = vmul.f32 %v5065, %v5104
        %v5106 = vrcp.pop %v5091
        %v5107 = vmul.f32 %v5067, %v5106
        %5108 = vrot.lane.b32.xlu0 %v4346, 48
        %v5109 = vpop.permute.xlu0 %5108
        %5110 = vrot.lane.b32.xlu0 %v4351, 48
        %v5111 = vpop.permute.xlu0 %5110
        %5112 = vrot.lane.b32.xlu0 %v4356, 48
        %v5113 = vpop.permute.xlu0 %5112
        %5114 = vrot.lane.b32.xlu0 %v4361, 48
        %v5115 = vpop.permute.xlu0 %5114
        %5116 = vrot.lane.b32.xlu0 %v4366, 48
        %v5117 = vpop.permute.xlu0 %5116
        %5118 = vrot.lane.b32.xlu0 %v4371, 48
        %v5119 = vpop.permute.xlu0 %5118
        %5120 = vrot.lane.b32.xlu0 %v4376, 48
        %v5121 = vpop.permute.xlu0 %5120
        %5122 = vrot.lane.b32.xlu0 %v4381, 48
        %v5123 = vpop.permute.xlu0 %5122
        %v5133 = vsel %vm4609, %v5093, 0
        %v5136 = vsel %vm4609, %v5095, 0
        %v5139 = vsel %vm4609, %v5097, 0
        %v5142 = vsel %vm4609, %v5099, 0
        %v5145 = vsel %vm4609, %v5101, 0
        %v5148 = vsel %vm4609, %v5103, 0
        %v5151 = vsel %vm4609, %v5105, 0
        %v5154 = vsel %vm4609, %v5107, 0
        %5156 = vmatprep.subr.mxu0 0.0
        %5157 = vmatpush1.msra.mxu0 %v5109
        %5158 = vmatprep.subr.mxu0 0.0
        %5159 = vmatpush1.msra.mxu0 %v5111
        %5160 = vmatprep.subr.mxu0 0.0
        %5161 = vmatpush1.msra.mxu0 %v5113
        %5162 = vmatprep.subr.mxu0 0.0
        %5163 = vmatpush1.msra.mxu0 %v5115
        %5164 = vmatprep.subr.mxu0 0.0
        %5165 = vmatpush1.msra.mxu0 %v5117
        %5166 = vmatprep.subr.mxu0 0.0
        %5167 = vmatpush1.msra.mxu0 %v5119
        %5168 = vmatprep.subr.mxu0 0.0
        %5169 = vmatpush1.msra.mxu0 %v5121
        %5170 = vmatprep.subr.mxu0 0.0
        %5171 = vmatpush1.msra.mxu0 %v5123
        %5172 = vmatprep.subr.mxu0 0.0
        %5173 = vmatpush1.msra.mxu0 0.0
        %5174 = vmatprep.subr.mxu0 0.0
        %5175 = vmatpush1.msra.mxu0 0.0
        %5176 = vmatprep.subr.mxu0 0.0
        %5177 = vmatpush1.msra.mxu0 0.0
        %5178 = vmatprep.subr.mxu0 0.0
        %5179 = vmatpush1.msra.mxu0 0.0
        %5180 = vmatprep.subr.mxu0 0.0
        %5181 = vmatpush1.msra.mxu0 0.0
        %5182 = vmatprep.subr.mxu0 0.0
        %5183 = vmatpush1.msra.mxu0 0.0
        %5184 = vmatprep.subr.mxu0 0.0
        %5185 = vmatpush1.msra.mxu0 0.0
        %5186 = vmatprep.subr.mxu0 0.0
        %5187 = vmatpush1.msra.mxu0 0.0
        %5188 = vmatprep.subr.mxu0 0.0
        %5189 = vmatpush1.msra.mxu0 0.0
        %5190 = vmatprep.subr.mxu0 0.0
        %5191 = vmatpush1.msra.mxu0 0.0
        %5192 = vmatprep.subr.mxu0 0.0
        %5193 = vmatpush1.msra.mxu0 0.0
        %5194 = vmatprep.subr.mxu0 0.0
        %5195 = vmatpush1.msra.mxu0 0.0
        %5196 = vmatprep.subr.mxu0 0.0
        %5197 = vmatpush1.msra.mxu0 0.0
        %5198 = vmatprep.subr.mxu0 0.0
        %5199 = vmatpush1.msra.mxu0 0.0
        %5200 = vmatprep.subr.mxu0 0.0
        %5201 = vmatpush1.msra.mxu0 0.0
        %5202 = vmatprep.subr.mxu0 0.0
        %5203 = vmatpush1.msra.mxu0 0.0
        %5204 = vmatprep.subr.mxu0 0.0
        %5205 = vmatpush1.msra.mxu0 0.0
        %5206 = vmatprep.subr.mxu0 0.0
        %5207 = vmatpush1.msra.mxu0 0.0
        %5208 = vmatprep.subr.mxu0 0.0
        %5209 = vmatpush1.msra.mxu0 0.0
        %5210 = vmatprep.subr.mxu0 0.0
        %5211 = vmatpush1.msra.mxu0 0.0
        %5212 = vmatprep.subr.mxu0 0.0
        %5213 = vmatpush1.msra.mxu0 0.0
        %5214 = vmatprep.subr.mxu0 0.0
        %5215 = vmatpush1.msra.mxu0 0.0
        %5216 = vmatprep.subr.mxu0 0.0
        %5217 = vmatpush1.msra.mxu0 0.0
        %5218 = vmatprep.subr.mxu0 0.0
        %5219 = vmatpush1.msra.mxu0 0.0
        %5220 = vmatprep.mubr.f32.mxu0 0.0
        %5221 = vmatmul.mubr.f32.gmra.mrb[0].mxu0 %v5133
        %v5222 = vpop.f32.mrb[0].mxu0
        %v5223 = vadd.f32 0.0, %v5222
        %v5224 = vpop.f32.mrb[0].mxu0
        %5225 = vmatprep.mubr.f32.mxu0 0.0
        %5226 = vmatmul.mubr.f32.gmra.mrb[0].mxu0 %v5136
        %v5227 = vpop.f32.mrb[0].mxu0
        %v5228 = vadd.f32 0.0, %v5227
        %v5229 = vpop.f32.mrb[0].mxu0
        %5230 = vmatprep.mubr.f32.mxu0 0.0
        %5231 = vmatmul.mubr.f32.gmra.mrb[0].mxu0 %v5139
        %v5232 = vpop.f32.mrb[0].mxu0
        %v5233 = vadd.f32 0.0, %v5232
        %v5234 = vpop.f32.mrb[0].mxu0
        %5235 = vmatprep.mubr.f32.mxu0 0.0
        %5236 = vmatmul.mubr.f32.gmra.mrb[0].mxu0 %v5142
        %v5237 = vpop.f32.mrb[0].mxu0
        %v5238 = vadd.f32 0.0, %v5237
        %v5239 = vpop.f32.mrb[0].mxu0
        %5240 = vmatprep.mubr.f32.mxu0 0.0
        %5241 = vmatmul.mubr.f32.gmra.mrb[0].mxu0 %v5145
        %v5242 = vpop.f32.mrb[0].mxu0
        %v5243 = vadd.f32 0.0, %v5242
        %v5244 = vpop.f32.mrb[0].mxu0
        %5245 = vmatprep.mubr.f32.mxu0 0.0
        %5246 = vmatmul.mubr.f32.gmra.mrb[0].mxu0 %v5148
        %v5247 = vpop.f32.mrb[0].mxu0
        %v5248 = vadd.f32 0.0, %v5247
        %v5249 = vpop.f32.mrb[0].mxu0
        %5250 = vmatprep.mubr.f32.mxu0 0.0
        %5251 = vmatmul.mubr.f32.gmra.mrb[0].mxu0 %v5151
        %v5252 = vpop.f32.mrb[0].mxu0
        %v5253 = vadd.f32 0.0, %v5252
        %v5254 = vpop.f32.mrb[0].mxu0
        %5255 = vmatprep.mubr.f32.mxu0 0.0
        %5256 = vmatmul.mubr.f32.gmra.mrb[0].mxu0 %v5154
        %v5257 = vpop.f32.mrb[0].mxu0
        %v5258 = vadd.f32 0.0, %v5257
        %v5259 = vpop.f32.mrb[0].mxu0
        %5260 = vdwg.mxu0
        %v5262 = vsel %vm2371, %v5223, 0
        %v5265 = vsel %vm2371, %v5228, 0
        %v5268 = vsel %vm2371, %v5233, 0
        %v5271 = vsel %vm2371, %v5238, 0
        %v5274 = vsel %vm2371, %v5243, 0
        %v5277 = vsel %vm2371, %v5248, 0
        %v5280 = vsel %vm2371, %v5253, 0
        %v5283 = vsel %vm2371, %v5258, 0
        %5285 = vmatprep.subr.mxu0 0.0
        %5286 = vmatpush1.msra.mxu0 %v4228
        %5287 = vmatprep.subr.mxu0 0.0
        %5288 = vmatpush1.msra.mxu0 %v4229
        %5289 = vmatprep.subr.mxu0 0.0
        %5290 = vmatpush1.msra.mxu0 0.0
        %5291 = vmatprep.subr.mxu0 0.0
        %5292 = vmatpush1.msra.mxu0 0.0
        %5293 = vmatprep.subr.mxu0 0.0
        %5294 = vmatpush1.msra.mxu0 0.0
        %5295 = vmatprep.subr.mxu0 0.0
        %5296 = vmatpush1.msra.mxu0 0.0
        %5297 = vmatprep.subr.mxu0 0.0
        %5298 = vmatpush1.msra.mxu0 0.0
        %5299 = vmatprep.subr.mxu0 0.0
        %5300 = vmatpush1.msra.mxu0 0.0
        %5301 = vmatprep.subr.mxu0 0.0
        %5302 = vmatpush1.msra.mxu0 0.0
        %5303 = vmatprep.subr.mxu0 0.0
        %5304 = vmatpush1.msra.mxu0 0.0
        %5305 = vmatprep.subr.mxu0 0.0
        %5306 = vmatpush1.msra.mxu0 0.0
        %5307 = vmatprep.subr.mxu0 0.0
        %5308 = vmatpush1.msra.mxu0 0.0
        %5309 = vmatprep.subr.mxu0 0.0
        %5310 = vmatpush1.msra.mxu0 0.0
        %5311 = vmatprep.subr.mxu0 0.0
        %5312 = vmatpush1.msra.mxu0 0.0
        %5313 = vmatprep.subr.mxu0 0.0
        %5314 = vmatpush1.msra.mxu0 0.0
        %5315 = vmatprep.subr.mxu0 0.0
        %5316 = vmatpush1.msra.mxu0 0.0
        %5317 = vmatprep.subr.mxu0 0.0
        %5318 = vmatpush1.msra.mxu0 0.0
        %5319 = vmatprep.subr.mxu0 0.0
        %5320 = vmatpush1.msra.mxu0 0.0
        %5321 = vmatprep.subr.mxu0 0.0
        %5322 = vmatpush1.msra.mxu0 0.0
        %5323 = vmatprep.subr.mxu0 0.0
        %5324 = vmatpush1.msra.mxu0 0.0
        %5325 = vmatprep.subr.mxu0 0.0
        %5326 = vmatpush1.msra.mxu0 0.0
        %5327 = vmatprep.subr.mxu0 0.0
        %5328 = vmatpush1.msra.mxu0 0.0
        %5329 = vmatprep.subr.mxu0 0.0
        %5330 = vmatpush1.msra.mxu0 0.0
        %5331 = vmatprep.subr.mxu0 0.0
        %5332 = vmatpush1.msra.mxu0 0.0
        %5333 = vmatprep.subr.mxu0 0.0
        %5334 = vmatpush1.msra.mxu0 0.0
        %5335 = vmatprep.subr.mxu0 0.0
        %5336 = vmatpush1.msra.mxu0 0.0
        %5337 = vmatprep.subr.mxu0 0.0
        %5338 = vmatpush1.msra.mxu0 0.0
        %5339 = vmatprep.subr.mxu0 0.0
        %5340 = vmatpush1.msra.mxu0 0.0
        %5341 = vmatprep.subr.mxu0 0.0
        %5342 = vmatpush1.msra.mxu0 0.0
        %5343 = vmatprep.subr.mxu0 0.0
        %5344 = vmatpush1.msra.mxu0 0.0
        %5345 = vmatprep.subr.mxu0 0.0
        %5346 = vmatpush1.msra.mxu0 0.0
        %5347 = vmatprep.subr.mxu0 0.0
        %5348 = vmatpush1.msra.mxu0 0.0
        %5349 = vmatprep.mubr.f32.mxu0 0.0
        %5350 = vmatmul.mubr.f32.gmra.mrb[0].mxu0 %v5262
        %v5351 = vpop.f32.mrb[0].mxu0
        %v5352 = vadd.f32 0.0, %v5351
        %v5353 = vpop.f32.mrb[0].mxu0
        %5354 = vmatprep.mubr.f32.mxu0 0.0
        %5355 = vmatmul.mubr.f32.gmra.mrb[0].mxu0 %v5265
        %v5356 = vpop.f32.mrb[0].mxu0
        %v5357 = vadd.f32 0.0, %v5356
        %v5358 = vpop.f32.mrb[0].mxu0
        %5359 = vmatprep.mubr.f32.mxu0 0.0
        %5360 = vmatmul.mubr.f32.gmra.mrb[0].mxu0 %v5268
        %v5361 = vpop.f32.mrb[0].mxu0
        %v5362 = vadd.f32 0.0, %v5361
        %v5363 = vpop.f32.mrb[0].mxu0
        %5364 = vmatprep.mubr.f32.mxu0 0.0
        %5365 = vmatmul.mubr.f32.gmra.mrb[0].mxu0 %v5271
        %v5366 = vpop.f32.mrb[0].mxu0
        %v5367 = vadd.f32 0.0, %v5366
        %v5368 = vpop.f32.mrb[0].mxu0
        %5369 = vmatprep.mubr.f32.mxu0 0.0
        %5370 = vmatmul.mubr.f32.gmra.mrb[0].mxu0 %v5274
        %v5371 = vpop.f32.mrb[0].mxu0
        %v5372 = vadd.f32 0.0, %v5371
        %v5373 = vpop.f32.mrb[0].mxu0
        %5374 = vmatprep.mubr.f32.mxu0 0.0
        %5375 = vmatmul.mubr.f32.gmra.mrb[0].mxu0 %v5277
        %v5376 = vpop.f32.mrb[0].mxu0
        %v5377 = vadd.f32 0.0, %v5376
        %v5378 = vpop.f32.mrb[0].mxu0
        %5379 = vmatprep.mubr.f32.mxu0 0.0
        %5380 = vmatmul.mubr.f32.gmra.mrb[0].mxu0 %v5280
        %v5381 = vpop.f32.mrb[0].mxu0
        %v5382 = vadd.f32 0.0, %v5381
        %v5383 = vpop.f32.mrb[0].mxu0
        %5384 = vmatprep.mubr.f32.mxu0 0.0
        %5385 = vmatmul.mubr.f32.gmra.mrb[0].mxu0 %v5283
        %v5386 = vpop.f32.mrb[0].mxu0
        %v5387 = vadd.f32 0.0, %v5386
        %v5388 = vpop.f32.mrb[0].mxu0
        %5389 = vdwg.mxu0
        %v5391 = vsel %vm2371, %v4813, 0
        %v5394 = vsel %vm2371, %v4818, 0
        %v5397 = vsel %vm2371, %v4823, 0
        %v5400 = vsel %vm2371, %v4828, 0
        %v5403 = vsel %vm2371, %v4833, 0
        %v5406 = vsel %vm2371, %v4838, 0
        %v5409 = vsel %vm2371, %v4843, 0
        %v5412 = vsel %vm2371, %v4848, 0
        %5414 = vmatprep.subr.mxu0 0.0
        %5415 = vmatpush1.msra.mxu0 %v4226
        %5416 = vmatprep.subr.mxu0 0.0
        %5417 = vmatpush1.msra.mxu0 %v4227
        %5418 = vmatprep.subr.mxu0 0.0
        %5419 = vmatpush1.msra.mxu0 0.0
        %5420 = vmatprep.subr.mxu0 0.0
        %5421 = vmatpush1.msra.mxu0 0.0
        %5422 = vmatprep.subr.mxu0 0.0
        %5423 = vmatpush1.msra.mxu0 0.0
        %5424 = vmatprep.subr.mxu0 0.0
        %5425 = vmatpush1.msra.mxu0 0.0
        %5426 = vmatprep.subr.mxu0 0.0
        %5427 = vmatpush1.msra.mxu0 0.0
        %5428 = vmatprep.subr.mxu0 0.0
        %5429 = vmatpush1.msra.mxu0 0.0
        %5430 = vmatprep.subr.mxu0 0.0
        %5431 = vmatpush1.msra.mxu0 0.0
        %5432 = vmatprep.subr.mxu0 0.0
        %5433 = vmatpush1.msra.mxu0 0.0
        %5434 = vmatprep.subr.mxu0 0.0
        %5435 = vmatpush1.msra.mxu0 0.0
        %5436 = vmatprep.subr.mxu0 0.0
        %5437 = vmatpush1.msra.mxu0 0.0
        %5438 = vmatprep.subr.mxu0 0.0
        %5439 = vmatpush1.msra.mxu0 0.0
        %5440 = vmatprep.subr.mxu0 0.0
        %5441 = vmatpush1.msra.mxu0 0.0
        %5442 = vmatprep.subr.mxu0 0.0
        %5443 = vmatpush1.msra.mxu0 0.0
        %5444 = vmatprep.subr.mxu0 0.0
        %5445 = vmatpush1.msra.mxu0 0.0
        %5446 = vmatprep.subr.mxu0 0.0
        %5447 = vmatpush1.msra.mxu0 0.0
        %5448 = vmatprep.subr.mxu0 0.0
        %5449 = vmatpush1.msra.mxu0 0.0
        %5450 = vmatprep.subr.mxu0 0.0
        %5451 = vmatpush1.msra.mxu0 0.0
        %5452 = vmatprep.subr.mxu0 0.0
        %5453 = vmatpush1.msra.mxu0 0.0
        %5454 = vmatprep.subr.mxu0 0.0
        %5455 = vmatpush1.msra.mxu0 0.0
        %5456 = vmatprep.subr.mxu0 0.0
        %5457 = vmatpush1.msra.mxu0 0.0
        %5458 = vmatprep.subr.mxu0 0.0
        %5459 = vmatpush1.msra.mxu0 0.0
        %5460 = vmatprep.subr.mxu0 0.0
        %5461 = vmatpush1.msra.mxu0 0.0
        %5462 = vmatprep.subr.mxu0 0.0
        %5463 = vmatpush1.msra.mxu0 0.0
        %5464 = vmatprep.subr.mxu0 0.0
        %5465 = vmatpush1.msra.mxu0 0.0
        %5466 = vmatprep.subr.mxu0 0.0
        %5467 = vmatpush1.msra.mxu0 0.0
        %5468 = vmatprep.subr.mxu0 0.0
        %5469 = vmatpush1.msra.mxu0 0.0
        %5470 = vmatprep.subr.mxu0 0.0
        %5471 = vmatpush1.msra.mxu0 0.0
        %5472 = vmatprep.subr.mxu0 0.0
        %5473 = vmatpush1.msra.mxu0 0.0
        %5474 = vmatprep.subr.mxu0 0.0
        %5475 = vmatpush1.msra.mxu0 0.0
        %5476 = vmatprep.subr.mxu0 0.0
        %5477 = vmatpush1.msra.mxu0 0.0
        %5478 = vmatprep.mubr.f32.mxu0 0.0
        %5479 = vmatmul.mubr.f32.gmra.mrb[0].mxu0 %v5391
        %v5480 = vpop.f32.mrb[0].mxu0
        %v5481 = vadd.f32 %v5352, %v5480
        %v5482 = vpop.f32.mrb[0].mxu0
        %5483 = vmatprep.mubr.f32.mxu0 0.0
        %5484 = vmatmul.mubr.f32.gmra.mrb[0].mxu0 %v5394
        %v5485 = vpop.f32.mrb[0].mxu0
        %v5486 = vadd.f32 %v5357, %v5485
        %v5487 = vpop.f32.mrb[0].mxu0
        %5488 = vmatprep.mubr.f32.mxu0 0.0
        %5489 = vmatmul.mubr.f32.gmra.mrb[0].mxu0 %v5397
        %v5490 = vpop.f32.mrb[0].mxu0
        %v5491 = vadd.f32 %v5362, %v5490
        %v5492 = vpop.f32.mrb[0].mxu0
        %5493 = vmatprep.mubr.f32.mxu0 0.0
        %5494 = vmatmul.mubr.f32.gmra.mrb[0].mxu0 %v5400
        %v5495 = vpop.f32.mrb[0].mxu0
        %v5496 = vadd.f32 %v5367, %v5495
        %v5497 = vpop.f32.mrb[0].mxu0
        %5498 = vmatprep.mubr.f32.mxu0 0.0
        %5499 = vmatmul.mubr.f32.gmra.mrb[0].mxu0 %v5403
        %v5500 = vpop.f32.mrb[0].mxu0
        %v5501 = vadd.f32 %v5372, %v5500
        %v5502 = vpop.f32.mrb[0].mxu0
        %5503 = vmatprep.mubr.f32.mxu0 0.0
        %5504 = vmatmul.mubr.f32.gmra.mrb[0].mxu0 %v5406
        %v5505 = vpop.f32.mrb[0].mxu0
        %v5506 = vadd.f32 %v5377, %v5505
        %v5507 = vpop.f32.mrb[0].mxu0
        %5508 = vmatprep.mubr.f32.mxu0 0.0
        %5509 = vmatmul.mubr.f32.gmra.mrb[0].mxu0 %v5409
        %v5510 = vpop.f32.mrb[0].mxu0
        %v5511 = vadd.f32 %v5382, %v5510
        %v5512 = vpop.f32.mrb[0].mxu0
        %5513 = vmatprep.mubr.f32.mxu0 0.0
        %5514 = vmatmul.mubr.f32.gmra.mrb[0].mxu0 %v5412
        %v5515 = vpop.f32.mrb[0].mxu0
        %v5516 = vadd.f32 %v5387, %v5515
        %v5517 = vpop.f32.mrb[0].mxu0
        %5518 = vdwg.mxu0
        %5527 = vrot.lane.b32.xlu0 %v4386, 96
        %v5528 = vpop.permute.xlu0 %5527
        %5529 = vrot.lane.b32.xlu0 %v4391, 96
        %v5530 = vpop.permute.xlu0 %5529
        %5531 = vrot.lane.b32.xlu0 %v4396, 96
        %v5532 = vpop.permute.xlu0 %5531
        %5533 = vrot.lane.b32.xlu0 %v4401, 96
        %v5534 = vpop.permute.xlu0 %5533
        %5535 = vrot.lane.b32.xlu0 %v4406, 96
        %v5536 = vpop.permute.xlu0 %5535
        %5537 = vrot.lane.b32.xlu0 %v4411, 96
        %v5538 = vpop.permute.xlu0 %5537
        %5539 = vrot.lane.b32.xlu0 %v4416, 96
        %v5540 = vpop.permute.xlu0 %5539
        %5541 = vrot.lane.b32.xlu0 %v4421, 96
        %v5542 = vpop.permute.xlu0 %5541
        %v5544 = vsel %vm2371, %v4432, 0
        %v5547 = vsel %vm2371, %v4433, 0
        %v5550 = vsel %vm2371, %v4434, 0
        %v5553 = vsel %vm2371, %v4435, 0
        %v5556 = vsel %vm2371, %v4436, 0
        %v5559 = vsel %vm2371, %v4437, 0
        %v5562 = vsel %vm2371, %v4438, 0
        %v5565 = vsel %vm2371, %v4439, 0
        %v5567 = vsel %vm2371, %v5528, 0
        %v5569 = vsel %vm2371, %v5530, 0
        %v5571 = vsel %vm2371, %v5532, 0
        %v5573 = vsel %vm2371, %v5534, 0
        %v5575 = vsel %vm2371, %v5536, 0
        %v5577 = vsel %vm2371, %v5538, 0
        %v5579 = vsel %vm2371, %v5540, 0
        %v5581 = vsel %vm2371, %v5542, 0
        %5583 = vmatprep.subr.mxu0 0.0
        %5584 = vmatpush1.xpose.msra.mxu0 %v5567
        %5585 = vmatprep.subr.mxu0 0.0
        %5586 = vmatpush1.xpose.msra.mxu0 %v5569
        %5587 = vmatprep.subr.mxu0 0.0
        %5588 = vmatpush1.xpose.msra.mxu0 %v5571
        %5589 = vmatprep.subr.mxu0 0.0
        %5590 = vmatpush1.xpose.msra.mxu0 %v5573
        %5591 = vmatprep.subr.mxu0 0.0
        %5592 = vmatpush1.xpose.msra.mxu0 %v5575
        %5593 = vmatprep.subr.mxu0 0.0
        %5594 = vmatpush1.xpose.msra.mxu0 %v5577
        %5595 = vmatprep.subr.mxu0 0.0
        %5596 = vmatpush1.xpose.msra.mxu0 %v5579
        %5597 = vmatprep.subr.mxu0 0.0
        %5598 = vmatpush1.xpose.msra.mxu0 %v5581
        %5599 = vmatprep.subr.mxu0 0.0
        %5600 = vmatpush1.xpose.msra.mxu0 0.0
        %5601 = vmatprep.subr.mxu0 0.0
        %5602 = vmatpush1.xpose.msra.mxu0 0.0
        %5603 = vmatprep.subr.mxu0 0.0
        %5604 = vmatpush1.xpose.msra.mxu0 0.0
        %5605 = vmatprep.subr.mxu0 0.0
        %5606 = vmatpush1.xpose.msra.mxu0 0.0
        %5607 = vmatprep.subr.mxu0 0.0
        %5608 = vmatpush1.xpose.msra.mxu0 0.0
        %5609 = vmatprep.subr.mxu0 0.0
        %5610 = vmatpush1.xpose.msra.mxu0 0.0
        %5611 = vmatprep.subr.mxu0 0.0
        %5612 = vmatpush1.xpose.msra.mxu0 0.0
        %5613 = vmatprep.subr.mxu0 0.0
        %5614 = vmatpush1.xpose.msra.mxu0 0.0
        %5615 = vmatprep.subr.mxu0 0.0
        %5616 = vmatpush1.xpose.msra.mxu0 0.0
        %5617 = vmatprep.subr.mxu0 0.0
        %5618 = vmatpush1.xpose.msra.mxu0 0.0
        %5619 = vmatprep.subr.mxu0 0.0
        %5620 = vmatpush1.xpose.msra.mxu0 0.0
        %5621 = vmatprep.subr.mxu0 0.0
        %5622 = vmatpush1.xpose.msra.mxu0 0.0
        %5623 = vmatprep.subr.mxu0 0.0
        %5624 = vmatpush1.xpose.msra.mxu0 0.0
        %5625 = vmatprep.subr.mxu0 0.0
        %5626 = vmatpush1.xpose.msra.mxu0 0.0
        %5627 = vmatprep.subr.mxu0 0.0
        %5628 = vmatpush1.xpose.msra.mxu0 0.0
        %5629 = vmatprep.subr.mxu0 0.0
        %5630 = vmatpush1.xpose.msra.mxu0 0.0
        %5631 = vmatprep.subr.mxu0 0.0
        %5632 = vmatpush1.xpose.msra.mxu0 0.0
        %5633 = vmatprep.subr.mxu0 0.0
        %5634 = vmatpush1.xpose.msra.mxu0 0.0
        %5635 = vmatprep.subr.mxu0 0.0
        %5636 = vmatpush1.xpose.msra.mxu0 0.0
        %5637 = vmatprep.subr.mxu0 0.0
        %5638 = vmatpush1.xpose.msra.mxu0 0.0
        %5639 = vmatprep.subr.mxu0 0.0
        %5640 = vmatpush1.xpose.msra.mxu0 0.0
        %5641 = vmatprep.subr.mxu0 0.0
        %5642 = vmatpush1.xpose.msra.mxu0 0.0
        %5643 = vmatprep.subr.mxu0 0.0
        %5644 = vmatpush1.xpose.msra.mxu0 0.0
        %5645 = vmatprep.subr.mxu0 0.0
        %5646 = vmatpush1.xpose.msra.mxu0 0.0
        %5647 = vmatprep.mubr.f32.mxu0 0.0
        %5648 = vmatmul.mubr.f32.gmra.mrb[0].mxu0 %v5544
        %v5649 = vpop.f32.mrb[0].mxu0
        %v5650 = vadd.f32 0.0, %v5649
        %v5651 = vpop.f32.mrb[0].mxu0
        %5652 = vmatprep.mubr.f32.mxu0 0.0
        %5653 = vmatmul.mubr.f32.gmra.mrb[0].mxu0 %v5547
        %v5654 = vpop.f32.mrb[0].mxu0
        %v5655 = vadd.f32 0.0, %v5654
        %v5656 = vpop.f32.mrb[0].mxu0
        %5657 = vmatprep.mubr.f32.mxu0 0.0
        %5658 = vmatmul.mubr.f32.gmra.mrb[0].mxu0 %v5550
        %v5659 = vpop.f32.mrb[0].mxu0
        %v5660 = vadd.f32 0.0, %v5659
        %v5661 = vpop.f32.mrb[0].mxu0
        %5662 = vmatprep.mubr.f32.mxu0 0.0
        %5663 = vmatmul.mubr.f32.gmra.mrb[0].mxu0 %v5553
        %v5664 = vpop.f32.mrb[0].mxu0
        %v5665 = vadd.f32 0.0, %v5664
        %v5666 = vpop.f32.mrb[0].mxu0
        %5667 = vmatprep.mubr.f32.mxu0 0.0
        %5668 = vmatmul.mubr.f32.gmra.mrb[0].mxu0 %v5556
        %v5669 = vpop.f32.mrb[0].mxu0
        %v5670 = vadd.f32 0.0, %v5669
        %v5671 = vpop.f32.mrb[0].mxu0
        %5672 = vmatprep.mubr.f32.mxu0 0.0
        %5673 = vmatmul.mubr.f32.gmra.mrb[0].mxu0 %v5559
        %v5674 = vpop.f32.mrb[0].mxu0
        %v5675 = vadd.f32 0.0, %v5674
        %v5676 = vpop.f32.mrb[0].mxu0
        %5677 = vmatprep.mubr.f32.mxu0 0.0
        %5678 = vmatmul.mubr.f32.gmra.mrb[0].mxu0 %v5562
        %v5679 = vpop.f32.mrb[0].mxu0
        %v5680 = vadd.f32 0.0, %v5679
        %v5681 = vpop.f32.mrb[0].mxu0
        %5682 = vmatprep.mubr.f32.mxu0 0.0
        %5683 = vmatmul.mubr.f32.gmra.mrb[0].mxu0 %v5565
        %v5684 = vpop.f32.mrb[0].mxu0
        %v5685 = vadd.f32 0.0, %v5684
        %v5686 = vpop.f32.mrb[0].mxu0
        %5687 = vdwg.mxu0
        %v5688 = vsel %vm4609, %v5650, -inf
        %5689 = vmax.xlane.f32.xlu0 %v5688
        %v5690 = vpop.xlane.xlu0 %5689
        %v5691 = vsel %vm4609, %v5655, -inf
        %5692 = vmax.xlane.f32.xlu0 %v5691
        %v5693 = vpop.xlane.xlu0 %5692
        %v5694 = vsel %vm4609, %v5660, -inf
        %5695 = vmax.xlane.f32.xlu0 %v5694
        %v5696 = vpop.xlane.xlu0 %5695
        %v5697 = vsel %vm4609, %v5665, -inf
        %5698 = vmax.xlane.f32.xlu0 %v5697
        %v5699 = vpop.xlane.xlu0 %5698
        %v5700 = vsel %vm4609, %v5670, -inf
        %5701 = vmax.xlane.f32.xlu0 %v5700
        %v5702 = vpop.xlane.xlu0 %5701
        %v5703 = vsel %vm4609, %v5675, -inf
        %5704 = vmax.xlane.f32.xlu0 %v5703
        %v5705 = vpop.xlane.xlu0 %5704
        %v5706 = vsel %vm4609, %v5680, -inf
        %5707 = vmax.xlane.f32.xlu0 %v5706
        %v5708 = vpop.xlane.xlu0 %5707
        %v5709 = vsel %vm4609, %v5685, -inf
        %5710 = vmax.xlane.f32.xlu0 %v5709
        %v5711 = vpop.xlane.xlu0 %5710
        %v5712 = vsub.f32 %v5650, %v5690
        %v5713 = vsub.f32 %v5655, %v5693
        %v5714 = vsub.f32 %v5660, %v5696
        %v5715 = vsub.f32 %v5665, %v5699
        %v5716 = vsub.f32 %v5670, %v5702
        %v5717 = vsub.f32 %v5675, %v5705
        %v5718 = vsub.f32 %v5680, %v5708
        %v5719 = vsub.f32 %v5685, %v5711
        %v5720 = vmul.f32 %v5712, 1.442695
        %v5721 = vpow.pop %v5720
        %v5722 = vmul.f32 %v5713, 1.442695
        %v5723 = vpow.pop %v5722
        %v5724 = vmul.f32 %v5714, 1.442695
        %v5725 = vpow.pop %v5724
        %v5726 = vmul.f32 %v5715, 1.442695
        %v5727 = vpow.pop %v5726
        %v5728 = vmul.f32 %v5716, 1.442695
        %v5729 = vpow.pop %v5728
        %v5730 = vmul.f32 %v5717, 1.442695
        %v5731 = vpow.pop %v5730
        %v5732 = vmul.f32 %v5718, 1.442695
        %v5733 = vpow.pop %v5732
        %v5734 = vmul.f32 %v5719, 1.442695
        %v5735 = vpow.pop %v5734
        %v5736 = vsel %vm4609, %v5721, 0.0
        %5737 = vadd.xlane.f32.xlu0 %v5736
        %v5738 = vpop.xlane.xlu0 %5737
        %v5739 = vsel %vm4609, %v5723, 0.0
        %5740 = vadd.xlane.f32.xlu0 %v5739
        %v5741 = vpop.xlane.xlu0 %5740
        %v5742 = vsel %vm4609, %v5725, 0.0
        %5743 = vadd.xlane.f32.xlu0 %v5742
        %v5744 = vpop.xlane.xlu0 %5743
        %v5745 = vsel %vm4609, %v5727, 0.0
        %5746 = vadd.xlane.f32.xlu0 %v5745
        %v5747 = vpop.xlane.xlu0 %5746
        %v5748 = vsel %vm4609, %v5729, 0.0
        %5749 = vadd.xlane.f32.xlu0 %v5748
        %v5750 = vpop.xlane.xlu0 %5749
        %v5751 = vsel %vm4609, %v5731, 0.0
        %5752 = vadd.xlane.f32.xlu0 %v5751
        %v5753 = vpop.xlane.xlu0 %5752
        %v5754 = vsel %vm4609, %v5733, 0.0
        %5755 = vadd.xlane.f32.xlu0 %v5754
        %v5756 = vpop.xlane.xlu0 %5755
        %v5757 = vsel %vm4609, %v5735, 0.0
        %5758 = vadd.xlane.f32.xlu0 %v5757
        %v5759 = vpop.xlane.xlu0 %5758
        %v5760 = vrcp.pop %v5738
        %v5761 = vmul.f32 %v5721, %v5760
        %v5762 = vrcp.pop %v5741
        %v5763 = vmul.f32 %v5723, %v5762
        %v5764 = vrcp.pop %v5744
        %v5765 = vmul.f32 %v5725, %v5764
        %v5766 = vrcp.pop %v5747
        %v5767 = vmul.f32 %v5727, %v5766
        %v5768 = vrcp.pop %v5750
        %v5769 = vmul.f32 %v5729, %v5768
        %v5770 = vrcp.pop %v5753
        %v5771 = vmul.f32 %v5731, %v5770
        %v5772 = vrcp.pop %v5756
        %v5773 = vmul.f32 %v5733, %v5772
        %v5774 = vrcp.pop %v5759
        %v5775 = vmul.f32 %v5735, %v5774
        %5776 = vrot.lane.b32.xlu0 %v4386, 64
        %v5777 = vpop.permute.xlu0 %5776
        %5778 = vrot.lane.b32.xlu0 %v4391, 64
        %v5779 = vpop.permute.xlu0 %5778
        %5780 = vrot.lane.b32.xlu0 %v4396, 64
        %v5781 = vpop.permute.xlu0 %5780
        %5782 = vrot.lane.b32.xlu0 %v4401, 64
        %v5783 = vpop.permute.xlu0 %5782
        %5784 = vrot.lane.b32.xlu0 %v4406, 64
        %v5785 = vpop.permute.xlu0 %5784
        %5786 = vrot.lane.b32.xlu0 %v4411, 64
        %v5787 = vpop.permute.xlu0 %5786
        %5788 = vrot.lane.b32.xlu0 %v4416, 64
        %v5789 = vpop.permute.xlu0 %5788
        %5790 = vrot.lane.b32.xlu0 %v4421, 64
        %v5791 = vpop.permute.xlu0 %5790
        %v5801 = vsel %vm4609, %v5761, 0
        %v5804 = vsel %vm4609, %v5763, 0
        %v5807 = vsel %vm4609, %v5765, 0
        %v5810 = vsel %vm4609, %v5767, 0
        %v5813 = vsel %vm4609, %v5769, 0
        %v5816 = vsel %vm4609, %v5771, 0
        %v5819 = vsel %vm4609, %v5773, 0
        %v5822 = vsel %vm4609, %v5775, 0
        %5824 = vmatprep.subr.mxu0 0.0
        %5825 = vmatpush1.msra.mxu0 %v5777
        %5826 = vmatprep.subr.mxu0 0.0
        %5827 = vmatpush1.msra.mxu0 %v5779
        %5828 = vmatprep.subr.mxu0 0.0
        %5829 = vmatpush1.msra.mxu0 %v5781
        %5830 = vmatprep.subr.mxu0 0.0
        %5831 = vmatpush1.msra.mxu0 %v5783
        %5832 = vmatprep.subr.mxu0 0.0
        %5833 = vmatpush1.msra.mxu0 %v5785
        %5834 = vmatprep.subr.mxu0 0.0
        %5835 = vmatpush1.msra.mxu0 %v5787
        %5836 = vmatprep.subr.mxu0 0.0
        %5837 = vmatpush1.msra.mxu0 %v5789
        %5838 = vmatprep.subr.mxu0 0.0
        %5839 = vmatpush1.msra.mxu0 %v5791
        %5840 = vmatprep.subr.mxu0 0.0
        %5841 = vmatpush1.msra.mxu0 0.0
        %5842 = vmatprep.subr.mxu0 0.0
        %5843 = vmatpush1.msra.mxu0 0.0
        %5844 = vmatprep.subr.mxu0 0.0
        %5845 = vmatpush1.msra.mxu0 0.0
        %5846 = vmatprep.subr.mxu0 0.0
        %5847 = vmatpush1.msra.mxu0 0.0
        %5848 = vmatprep.subr.mxu0 0.0
        %5849 = vmatpush1.msra.mxu0 0.0
        %5850 = vmatprep.subr.mxu0 0.0
        %5851 = vmatpush1.msra.mxu0 0.0
        %5852 = vmatprep.subr.mxu0 0.0
        %5853 = vmatpush1.msra.mxu0 0.0
        %5854 = vmatprep.subr.mxu0 0.0
        %5855 = vmatpush1.msra.mxu0 0.0
        %5856 = vmatprep.subr.mxu0 0.0
        %5857 = vmatpush1.msra.mxu0 0.0
        %5858 = vmatprep.subr.mxu0 0.0
        %5859 = vmatpush1.msra.mxu0 0.0
        %5860 = vmatprep.subr.mxu0 0.0
        %5861 = vmatpush1.msra.mxu0 0.0
        %5862 = vmatprep.subr.mxu0 0.0
        %5863 = vmatpush1.msra.mxu0 0.0
        %5864 = vmatprep.subr.mxu0 0.0
        %5865 = vmatpush1.msra.mxu0 0.0
        %5866 = vmatprep.subr.mxu0 0.0
        %5867 = vmatpush1.msra.mxu0 0.0
        %5868 = vmatprep.subr.mxu0 0.0
        %5869 = vmatpush1.msra.mxu0 0.0
        %5870 = vmatprep.subr.mxu0 0.0
        %5871 = vmatpush1.msra.mxu0 0.0
        %5872 = vmatprep.subr.mxu0 0.0
        %5873 = vmatpush1.msra.mxu0 0.0
        %5874 = vmatprep.subr.mxu0 0.0
        %5875 = vmatpush1.msra.mxu0 0.0
        %5876 = vmatprep.subr.mxu0 0.0
        %5877 = vmatpush1.msra.mxu0 0.0
        %5878 = vmatprep.subr.mxu0 0.0
        %5879 = vmatpush1.msra.mxu0 0.0
        %5880 = vmatprep.subr.mxu0 0.0
        %5881 = vmatpush1.msra.mxu0 0.0
        %5882 = vmatprep.subr.mxu0 0.0
        %5883 = vmatpush1.msra.mxu0 0.0
        %5884 = vmatprep.subr.mxu0 0.0
        %5885 = vmatpush1.msra.mxu0 0.0
        %5886 = vmatprep.subr.mxu0 0.0
        %5887 = vmatpush1.msra.mxu0 0.0
        %5888 = vmatprep.mubr.f32.mxu0 0.0
        %5889 = vmatmul.mubr.f32.gmra.mrb[0].mxu0 %v5801
        %v5890 = vpop.f32.mrb[0].mxu0
        %v5891 = vadd.f32 0.0, %v5890
        %v5892 = vpop.f32.mrb[0].mxu0
        %5893 = vmatprep.mubr.f32.mxu0 0.0
        %5894 = vmatmul.mubr.f32.gmra.mrb[0].mxu0 %v5804
        %v5895 = vpop.f32.mrb[0].mxu0
        %v5896 = vadd.f32 0.0, %v5895
        %v5897 = vpop.f32.mrb[0].mxu0
        %5898 = vmatprep.mubr.f32.mxu0 0.0
        %5899 = vmatmul.mubr.f32.gmra.mrb[0].mxu0 %v5807
        %v5900 = vpop.f32.mrb[0].mxu0
        %v5901 = vadd.f32 0.0, %v5900
        %v5902 = vpop.f32.mrb[0].mxu0
        %5903 = vmatprep.mubr.f32.mxu0 0.0
        %5904 = vmatmul.mubr.f32.gmra.mrb[0].mxu0 %v5810
        %v5905 = vpop.f32.mrb[0].mxu0
        %v5906 = vadd.f32 0.0, %v5905
        %v5907 = vpop.f32.mrb[0].mxu0
        %5908 = vmatprep.mubr.f32.mxu0 0.0
        %5909 = vmatmul.mubr.f32.gmra.mrb[0].mxu0 %v5813
        %v5910 = vpop.f32.mrb[0].mxu0
        %v5911 = vadd.f32 0.0, %v5910
        %v5912 = vpop.f32.mrb[0].mxu0
        %5913 = vmatprep.mubr.f32.mxu0 0.0
        %5914 = vmatmul.mubr.f32.gmra.mrb[0].mxu0 %v5816
        %v5915 = vpop.f32.mrb[0].mxu0
        %v5916 = vadd.f32 0.0, %v5915
        %v5917 = vpop.f32.mrb[0].mxu0
        %5918 = vmatprep.mubr.f32.mxu0 0.0
        %5919 = vmatmul.mubr.f32.gmra.mrb[0].mxu0 %v5819
        %v5920 = vpop.f32.mrb[0].mxu0
        %v5921 = vadd.f32 0.0, %v5920
        %v5922 = vpop.f32.mrb[0].mxu0
        %5923 = vmatprep.mubr.f32.mxu0 0.0
        %5924 = vmatmul.mubr.f32.gmra.mrb[0].mxu0 %v5822
        %v5925 = vpop.f32.mrb[0].mxu0
        %v5926 = vadd.f32 0.0, %v5925
        %v5927 = vpop.f32.mrb[0].mxu0
        %5928 = vdwg.mxu0
        %5929 = vrot.lane.b32.xlu0 %v4432, 112
        %v5930 = vpop.permute.xlu0 %5929
        %5931 = vrot.lane.b32.xlu0 %v4433, 112
        %v5932 = vpop.permute.xlu0 %5931
        %5933 = vrot.lane.b32.xlu0 %v4434, 112
        %v5934 = vpop.permute.xlu0 %5933
        %5935 = vrot.lane.b32.xlu0 %v4435, 112
        %v5936 = vpop.permute.xlu0 %5935
        %5937 = vrot.lane.b32.xlu0 %v4436, 112
        %v5938 = vpop.permute.xlu0 %5937
        %5939 = vrot.lane.b32.xlu0 %v4437, 112
        %v5940 = vpop.permute.xlu0 %5939
        %5941 = vrot.lane.b32.xlu0 %v4438, 112
        %v5942 = vpop.permute.xlu0 %5941
        %5943 = vrot.lane.b32.xlu0 %v4439, 112
        %v5944 = vpop.permute.xlu0 %5943
        %5945 = vrot.lane.b32.xlu0 %v4386, 80
        %v5946 = vpop.permute.xlu0 %5945
        %5947 = vrot.lane.b32.xlu0 %v4391, 80
        %v5948 = vpop.permute.xlu0 %5947
        %5949 = vrot.lane.b32.xlu0 %v4396, 80
        %v5950 = vpop.permute.xlu0 %5949
        %5951 = vrot.lane.b32.xlu0 %v4401, 80
        %v5952 = vpop.permute.xlu0 %5951
        %5953 = vrot.lane.b32.xlu0 %v4406, 80
        %v5954 = vpop.permute.xlu0 %5953
        %5955 = vrot.lane.b32.xlu0 %v4411, 80
        %v5956 = vpop.permute.xlu0 %5955
        %5957 = vrot.lane.b32.xlu0 %v4416, 80
        %v5958 = vpop.permute.xlu0 %5957
        %5959 = vrot.lane.b32.xlu0 %v4421, 80
        %v5960 = vpop.permute.xlu0 %5959
        %v5961 = vsel %vm2371, %v5930, 0
        %v5963 = vsel %vm2371, %v5932, 0
        %v5965 = vsel %vm2371, %v5934, 0
        %v5967 = vsel %vm2371, %v5936, 0
        %v5969 = vsel %vm2371, %v5938, 0
        %v5971 = vsel %vm2371, %v5940, 0
        %v5973 = vsel %vm2371, %v5942, 0
        %v5975 = vsel %vm2371, %v5944, 0
        %v5977 = vsel %vm2371, %v5946, 0
        %v5979 = vsel %vm2371, %v5948, 0
        %v5981 = vsel %vm2371, %v5950, 0
        %v5983 = vsel %vm2371, %v5952, 0
        %v5985 = vsel %vm2371, %v5954, 0
        %v5987 = vsel %vm2371, %v5956, 0
        %v5989 = vsel %vm2371, %v5958, 0
        %v5991 = vsel %vm2371, %v5960, 0
        %5993 = vmatprep.subr.mxu0 0.0
        %5994 = vmatpush1.xpose.msra.mxu0 %v5977
        %5995 = vmatprep.subr.mxu0 0.0
        %5996 = vmatpush1.xpose.msra.mxu0 %v5979
        %5997 = vmatprep.subr.mxu0 0.0
        %5998 = vmatpush1.xpose.msra.mxu0 %v5981
        %5999 = vmatprep.subr.mxu0 0.0
        %6000 = vmatpush1.xpose.msra.mxu0 %v5983
        %6001 = vmatprep.subr.mxu0 0.0
        %6002 = vmatpush1.xpose.msra.mxu0 %v5985
        %6003 = vmatprep.subr.mxu0 0.0
        %6004 = vmatpush1.xpose.msra.mxu0 %v5987
        %6005 = vmatprep.subr.mxu0 0.0
        %6006 = vmatpush1.xpose.msra.mxu0 %v5989
        %6007 = vmatprep.subr.mxu0 0.0
        %6008 = vmatpush1.xpose.msra.mxu0 %v5991
        %6009 = vmatprep.subr.mxu0 0.0
        %6010 = vmatpush1.xpose.msra.mxu0 0.0
        %6011 = vmatprep.subr.mxu0 0.0
        %6012 = vmatpush1.xpose.msra.mxu0 0.0
        %6013 = vmatprep.subr.mxu0 0.0
        %6014 = vmatpush1.xpose.msra.mxu0 0.0
        %6015 = vmatprep.subr.mxu0 0.0
        %6016 = vmatpush1.xpose.msra.mxu0 0.0
        %6017 = vmatprep.subr.mxu0 0.0
        %6018 = vmatpush1.xpose.msra.mxu0 0.0
        %6019 = vmatprep.subr.mxu0 0.0
        %6020 = vmatpush1.xpose.msra.mxu0 0.0
        %6021 = vmatprep.subr.mxu0 0.0
        %6022 = vmatpush1.xpose.msra.mxu0 0.0
        %6023 = vmatprep.subr.mxu0 0.0
        %6024 = vmatpush1.xpose.msra.mxu0 0.0
        %6025 = vmatprep.subr.mxu0 0.0
        %6026 = vmatpush1.xpose.msra.mxu0 0.0
        %6027 = vmatprep.subr.mxu0 0.0
        %6028 = vmatpush1.xpose.msra.mxu0 0.0
        %6029 = vmatprep.subr.mxu0 0.0
        %6030 = vmatpush1.xpose.msra.mxu0 0.0
        %6031 = vmatprep.subr.mxu0 0.0
        %6032 = vmatpush1.xpose.msra.mxu0 0.0
        %6033 = vmatprep.subr.mxu0 0.0
        %6034 = vmatpush1.xpose.msra.mxu0 0.0
        %6035 = vmatprep.subr.mxu0 0.0
        %6036 = vmatpush1.xpose.msra.mxu0 0.0
        %6037 = vmatprep.subr.mxu0 0.0
        %6038 = vmatpush1.xpose.msra.mxu0 0.0
        %6039 = vmatprep.subr.mxu0 0.0
        %6040 = vmatpush1.xpose.msra.mxu0 0.0
        %6041 = vmatprep.subr.mxu0 0.0
        %6042 = vmatpush1.xpose.msra.mxu0 0.0
        %6043 = vmatprep.subr.mxu0 0.0
        %6044 = vmatpush1.xpose.msra.mxu0 0.0
        %6045 = vmatprep.subr.mxu0 0.0
        %6046 = vmatpush1.xpose.msra.mxu0 0.0
        %6047 = vmatprep.subr.mxu0 0.0
        %6048 = vmatpush1.xpose.msra.mxu0 0.0
        %6049 = vmatprep.subr.mxu0 0.0
        %6050 = vmatpush1.xpose.msra.mxu0 0.0
        %6051 = vmatprep.subr.mxu0 0.0
        %6052 = vmatpush1.xpose.msra.mxu0 0.0
        %6053 = vmatprep.subr.mxu0 0.0
        %6054 = vmatpush1.xpose.msra.mxu0 0.0
        %6055 = vmatprep.subr.mxu0 0.0
        %6056 = vmatpush1.xpose.msra.mxu0 0.0
        %6057 = vmatprep.mubr.f32.mxu0 0.0
        %6058 = vmatmul.mubr.f32.gmra.mrb[0].mxu0 %v5961
        %v6059 = vpop.f32.mrb[0].mxu0
        %v6060 = vadd.f32 0.0, %v6059
        %v6061 = vpop.f32.mrb[0].mxu0
        %6062 = vmatprep.mubr.f32.mxu0 0.0
        %6063 = vmatmul.mubr.f32.gmra.mrb[0].mxu0 %v5963
        %v6064 = vpop.f32.mrb[0].mxu0
        %v6065 = vadd.f32 0.0, %v6064
        %v6066 = vpop.f32.mrb[0].mxu0
        %6067 = vmatprep.mubr.f32.mxu0 0.0
        %6068 = vmatmul.mubr.f32.gmra.mrb[0].mxu0 %v5965
        %v6069 = vpop.f32.mrb[0].mxu0
        %v6070 = vadd.f32 0.0, %v6069
        %v6071 = vpop.f32.mrb[0].mxu0
        %6072 = vmatprep.mubr.f32.mxu0 0.0
        %6073 = vmatmul.mubr.f32.gmra.mrb[0].mxu0 %v5967
        %v6074 = vpop.f32.mrb[0].mxu0
        %v6075 = vadd.f32 0.0, %v6074
        %v6076 = vpop.f32.mrb[0].mxu0
        %6077 = vmatprep.mubr.f32.mxu0 0.0
        %6078 = vmatmul.mubr.f32.gmra.mrb[0].mxu0 %v5969
        %v6079 = vpop.f32.mrb[0].mxu0
        %v6080 = vadd.f32 0.0, %v6079
        %v6081 = vpop.f32.mrb[0].mxu0
        %6082 = vmatprep.mubr.f32.mxu0 0.0
        %6083 = vmatmul.mubr.f32.gmra.mrb[0].mxu0 %v5971
        %v6084 = vpop.f32.mrb[0].mxu0
        %v6085 = vadd.f32 0.0, %v6084
        %v6086 = vpop.f32.mrb[0].mxu0
        %6087 = vmatprep.mubr.f32.mxu0 0.0
        %6088 = vmatmul.mubr.f32.gmra.mrb[0].mxu0 %v5973
        %v6089 = vpop.f32.mrb[0].mxu0
        %v6090 = vadd.f32 0.0, %v6089
        %v6091 = vpop.f32.mrb[0].mxu0
        %6092 = vmatprep.mubr.f32.mxu0 0.0
        %6093 = vmatmul.mubr.f32.gmra.mrb[0].mxu0 %v5975
        %v6094 = vpop.f32.mrb[0].mxu0
        %v6095 = vadd.f32 0.0, %v6094
        %v6096 = vpop.f32.mrb[0].mxu0
        %6097 = vdwg.mxu0
        %v6098 = vsel %vm4609, %v6060, -inf
        %6099 = vmax.xlane.f32.xlu0 %v6098
        %v6100 = vpop.xlane.xlu0 %6099
        %v6101 = vsel %vm4609, %v6065, -inf
        %6102 = vmax.xlane.f32.xlu0 %v6101
        %v6103 = vpop.xlane.xlu0 %6102
        %v6104 = vsel %vm4609, %v6070, -inf
        %6105 = vmax.xlane.f32.xlu0 %v6104
        %v6106 = vpop.xlane.xlu0 %6105
        %v6107 = vsel %vm4609, %v6075, -inf
        %6108 = vmax.xlane.f32.xlu0 %v6107
        %v6109 = vpop.xlane.xlu0 %6108
        %v6110 = vsel %vm4609, %v6080, -inf
        %6111 = vmax.xlane.f32.xlu0 %v6110
        %v6112 = vpop.xlane.xlu0 %6111
        %v6113 = vsel %vm4609, %v6085, -inf
        %6114 = vmax.xlane.f32.xlu0 %v6113
        %v6115 = vpop.xlane.xlu0 %6114
        %v6116 = vsel %vm4609, %v6090, -inf
        %6117 = vmax.xlane.f32.xlu0 %v6116
        %v6118 = vpop.xlane.xlu0 %6117
        %v6119 = vsel %vm4609, %v6095, -inf
        %6120 = vmax.xlane.f32.xlu0 %v6119
        %v6121 = vpop.xlane.xlu0 %6120
        %v6122 = vsub.f32 %v6060, %v6100
        %v6123 = vsub.f32 %v6065, %v6103
        %v6124 = vsub.f32 %v6070, %v6106
        %v6125 = vsub.f32 %v6075, %v6109
        %v6126 = vsub.f32 %v6080, %v6112
        %v6127 = vsub.f32 %v6085, %v6115
        %v6128 = vsub.f32 %v6090, %v6118
        %v6129 = vsub.f32 %v6095, %v6121
        %v6130 = vmul.f32 %v6122, 1.442695
        %v6131 = vpow.pop %v6130
        %v6132 = vmul.f32 %v6123, 1.442695
        %v6133 = vpow.pop %v6132
        %v6134 = vmul.f32 %v6124, 1.442695
        %v6135 = vpow.pop %v6134
        %v6136 = vmul.f32 %v6125, 1.442695
        %v6137 = vpow.pop %v6136
        %v6138 = vmul.f32 %v6126, 1.442695
        %v6139 = vpow.pop %v6138
        %v6140 = vmul.f32 %v6127, 1.442695
        %v6141 = vpow.pop %v6140
        %v6142 = vmul.f32 %v6128, 1.442695
        %v6143 = vpow.pop %v6142
        %v6144 = vmul.f32 %v6129, 1.442695
        %v6145 = vpow.pop %v6144
        %v6146 = vsel %vm4609, %v6131, 0.0
        %6147 = vadd.xlane.f32.xlu0 %v6146
        %v6148 = vpop.xlane.xlu0 %6147
        %v6149 = vsel %vm4609, %v6133, 0.0
        %6150 = vadd.xlane.f32.xlu0 %v6149
        %v6151 = vpop.xlane.xlu0 %6150
        %v6152 = vsel %vm4609, %v6135, 0.0
        %6153 = vadd.xlane.f32.xlu0 %v6152
        %v6154 = vpop.xlane.xlu0 %6153
        %v6155 = vsel %vm4609, %v6137, 0.0
        %6156 = vadd.xlane.f32.xlu0 %v6155
        %v6157 = vpop.xlane.xlu0 %6156
        %v6158 = vsel %vm4609, %v6139, 0.0
        %6159 = vadd.xlane.f32.xlu0 %v6158
        %v6160 = vpop.xlane.xlu0 %6159
        %v6161 = vsel %vm4609, %v6141, 0.0
        %6162 = vadd.xlane.f32.xlu0 %v6161
        %v6163 = vpop.xlane.xlu0 %6162
        %v6164 = vsel %vm4609, %v6143, 0.0
        %6165 = vadd.xlane.f32.xlu0 %v6164
        %v6166 = vpop.xlane.xlu0 %6165
        %v6167 = vsel %vm4609, %v6145, 0.0
        %6168 = vadd.xlane.f32.xlu0 %v6167
        %v6169 = vpop.xlane.xlu0 %6168
        %v6170 = vrcp.pop %v6148
        %v6171 = vmul.f32 %v6131, %v6170
        %v6172 = vrcp.pop %v6151
        %v6173 = vmul.f32 %v6133, %v6172
        %v6174 = vrcp.pop %v6154
        %v6175 = vmul.f32 %v6135, %v6174
        %v6176 = vrcp.pop %v6157
        %v6177 = vmul.f32 %v6137, %v6176
        %v6178 = vrcp.pop %v6160
        %v6179 = vmul.f32 %v6139, %v6178
        %v6180 = vrcp.pop %v6163
        %v6181 = vmul.f32 %v6141, %v6180
        %v6182 = vrcp.pop %v6166
        %v6183 = vmul.f32 %v6143, %v6182
        %v6184 = vrcp.pop %v6169
        %v6185 = vmul.f32 %v6145, %v6184
        %6186 = vrot.lane.b32.xlu0 %v4386, 48
        %v6187 = vpop.permute.xlu0 %6186
        %6188 = vrot.lane.b32.xlu0 %v4391, 48
        %v6189 = vpop.permute.xlu0 %6188
        %6190 = vrot.lane.b32.xlu0 %v4396, 48
        %v6191 = vpop.permute.xlu0 %6190
        %6192 = vrot.lane.b32.xlu0 %v4401, 48
        %v6193 = vpop.permute.xlu0 %6192
        %6194 = vrot.lane.b32.xlu0 %v4406, 48
        %v6195 = vpop.permute.xlu0 %6194
        %6196 = vrot.lane.b32.xlu0 %v4411, 48
        %v6197 = vpop.permute.xlu0 %6196
        %6198 = vrot.lane.b32.xlu0 %v4416, 48
        %v6199 = vpop.permute.xlu0 %6198
        %6200 = vrot.lane.b32.xlu0 %v4421, 48
        %v6201 = vpop.permute.xlu0 %6200
        %v6211 = vsel %vm4609, %v6171, 0
        %v6214 = vsel %vm4609, %v6173, 0
        %v6217 = vsel %vm4609, %v6175, 0
        %v6220 = vsel %vm4609, %v6177, 0
        %v6223 = vsel %vm4609, %v6179, 0
        %v6226 = vsel %vm4609, %v6181, 0
        %v6229 = vsel %vm4609, %v6183, 0
        %v6232 = vsel %vm4609, %v6185, 0
        %6234 = vmatprep.subr.mxu0 0.0
        %6235 = vmatpush1.msra.mxu0 %v6187
        %6236 = vmatprep.subr.mxu0 0.0
        %6237 = vmatpush1.msra.mxu0 %v6189
        %6238 = vmatprep.subr.mxu0 0.0
        %6239 = vmatpush1.msra.mxu0 %v6191
        %6240 = vmatprep.subr.mxu0 0.0
        %6241 = vmatpush1.msra.mxu0 %v6193
        %6242 = vmatprep.subr.mxu0 0.0
        %6243 = vmatpush1.msra.mxu0 %v6195
        %6244 = vmatprep.subr.mxu0 0.0
        %6245 = vmatpush1.msra.mxu0 %v6197
        %6246 = vmatprep.subr.mxu0 0.0
        %6247 = vmatpush1.msra.mxu0 %v6199
        %6248 = vmatprep.subr.mxu0 0.0
        %6249 = vmatpush1.msra.mxu0 %v6201
        %6250 = vmatprep.subr.mxu0 0.0
        %6251 = vmatpush1.msra.mxu0 0.0
        %6252 = vmatprep.subr.mxu0 0.0
        %6253 = vmatpush1.msra.mxu0 0.0
        %6254 = vmatprep.subr.mxu0 0.0
        %6255 = vmatpush1.msra.mxu0 0.0
        %6256 = vmatprep.subr.mxu0 0.0
        %6257 = vmatpush1.msra.mxu0 0.0
        %6258 = vmatprep.subr.mxu0 0.0
        %6259 = vmatpush1.msra.mxu0 0.0
        %6260 = vmatprep.subr.mxu0 0.0
        %6261 = vmatpush1.msra.mxu0 0.0
        %6262 = vmatprep.subr.mxu0 0.0
        %6263 = vmatpush1.msra.mxu0 0.0
        %6264 = vmatprep.subr.mxu0 0.0
        %6265 = vmatpush1.msra.mxu0 0.0
        %6266 = vmatprep.subr.mxu0 0.0
        %6267 = vmatpush1.msra.mxu0 0.0
        %6268 = vmatprep.subr.mxu0 0.0
        %6269 = vmatpush1.msra.mxu0 0.0
        %6270 = vmatprep.subr.mxu0 0.0
        %6271 = vmatpush1.msra.mxu0 0.0
        %6272 = vmatprep.subr.mxu0 0.0
        %6273 = vmatpush1.msra.mxu0 0.0
        %6274 = vmatprep.subr.mxu0 0.0
        %6275 = vmatpush1.msra.mxu0 0.0
        %6276 = vmatprep.subr.mxu0 0.0
        %6277 = vmatpush1.msra.mxu0 0.0
        %6278 = vmatprep.subr.mxu0 0.0
        %6279 = vmatpush1.msra.mxu0 0.0
        %6280 = vmatprep.subr.mxu0 0.0
        %6281 = vmatpush1.msra.mxu0 0.0
        %6282 = vmatprep.subr.mxu0 0.0
        %6283 = vmatpush1.msra.mxu0 0.0
        %6284 = vmatprep.subr.mxu0 0.0
        %6285 = vmatpush1.msra.mxu0 0.0
        %6286 = vmatprep.subr.mxu0 0.0
        %6287 = vmatpush1.msra.mxu0 0.0
        %6288 = vmatprep.subr.mxu0 0.0
        %6289 = vmatpush1.msra.mxu0 0.0
        %6290 = vmatprep.subr.mxu0 0.0
        %6291 = vmatpush1.msra.mxu0 0.0
        %6292 = vmatprep.subr.mxu0 0.0
        %6293 = vmatpush1.msra.mxu0 0.0
        %6294 = vmatprep.subr.mxu0 0.0
        %6295 = vmatpush1.msra.mxu0 0.0
        %6296 = vmatprep.subr.mxu0 0.0
        %6297 = vmatpush1.msra.mxu0 0.0
        %6298 = vmatprep.mubr.f32.mxu0 0.0
        %6299 = vmatmul.mubr.f32.gmra.mrb[0].mxu0 %v6211
        %v6300 = vpop.f32.mrb[0].mxu0
        %v6301 = vadd.f32 0.0, %v6300
        %v6302 = vpop.f32.mrb[0].mxu0
        %6303 = vmatprep.mubr.f32.mxu0 0.0
        %6304 = vmatmul.mubr.f32.gmra.mrb[0].mxu0 %v6214
        %v6305 = vpop.f32.mrb[0].mxu0
        %v6306 = vadd.f32 0.0, %v6305
        %v6307 = vpop.f32.mrb[0].mxu0
        %6308 = vmatprep.mubr.f32.mxu0 0.0
        %6309 = vmatmul.mubr.f32.gmra.mrb[0].mxu0 %v6217
        %v6310 = vpop.f32.mrb[0].mxu0
        %v6311 = vadd.f32 0.0, %v6310
        %v6312 = vpop.f32.mrb[0].mxu0
        %6313 = vmatprep.mubr.f32.mxu0 0.0
        %6314 = vmatmul.mubr.f32.gmra.mrb[0].mxu0 %v6220
        %v6315 = vpop.f32.mrb[0].mxu0
        %v6316 = vadd.f32 0.0, %v6315
        %v6317 = vpop.f32.mrb[0].mxu0
        %6318 = vmatprep.mubr.f32.mxu0 0.0
        %6319 = vmatmul.mubr.f32.gmra.mrb[0].mxu0 %v6223
        %v6320 = vpop.f32.mrb[0].mxu0
        %v6321 = vadd.f32 0.0, %v6320
        %v6322 = vpop.f32.mrb[0].mxu0
        %6323 = vmatprep.mubr.f32.mxu0 0.0
        %6324 = vmatmul.mubr.f32.gmra.mrb[0].mxu0 %v6226
        %v6325 = vpop.f32.mrb[0].mxu0
        %v6326 = vadd.f32 0.0, %v6325
        %v6327 = vpop.f32.mrb[0].mxu0
        %6328 = vmatprep.mubr.f32.mxu0 0.0
        %6329 = vmatmul.mubr.f32.gmra.mrb[0].mxu0 %v6229
        %v6330 = vpop.f32.mrb[0].mxu0
        %v6331 = vadd.f32 0.0, %v6330
        %v6332 = vpop.f32.mrb[0].mxu0
        %6333 = vmatprep.mubr.f32.mxu0 0.0
        %6334 = vmatmul.mubr.f32.gmra.mrb[0].mxu0 %v6232
        %v6335 = vpop.f32.mrb[0].mxu0
        %v6336 = vadd.f32 0.0, %v6335
        %v6337 = vpop.f32.mrb[0].mxu0
        %6338 = vdwg.mxu0
        %v6340 = vsel %vm2371, %v6301, 0
        %v6343 = vsel %vm2371, %v6306, 0
        %v6346 = vsel %vm2371, %v6311, 0
        %v6349 = vsel %vm2371, %v6316, 0
        %v6352 = vsel %vm2371, %v6321, 0
        %v6355 = vsel %vm2371, %v6326, 0
        %v6358 = vsel %vm2371, %v6331, 0
        %v6361 = vsel %vm2371, %v6336, 0
        %6363 = vmatprep.subr.mxu0 0.0
        %6364 = vmatpush1.msra.mxu0 %v4228
        %6365 = vmatprep.subr.mxu0 0.0
        %6366 = vmatpush1.msra.mxu0 %v4229
        %6367 = vmatprep.subr.mxu0 0.0
        %6368 = vmatpush1.msra.mxu0 0.0
        %6369 = vmatprep.subr.mxu0 0.0
        %6370 = vmatpush1.msra.mxu0 0.0
        %6371 = vmatprep.subr.mxu0 0.0
        %6372 = vmatpush1.msra.mxu0 0.0
        %6373 = vmatprep.subr.mxu0 0.0
        %6374 = vmatpush1.msra.mxu0 0.0
        %6375 = vmatprep.subr.mxu0 0.0
        %6376 = vmatpush1.msra.mxu0 0.0
        %6377 = vmatprep.subr.mxu0 0.0
        %6378 = vmatpush1.msra.mxu0 0.0
        %6379 = vmatprep.subr.mxu0 0.0
        %6380 = vmatpush1.msra.mxu0 0.0
        %6381 = vmatprep.subr.mxu0 0.0
        %6382 = vmatpush1.msra.mxu0 0.0
        %6383 = vmatprep.subr.mxu0 0.0
        %6384 = vmatpush1.msra.mxu0 0.0
        %6385 = vmatprep.subr.mxu0 0.0
        %6386 = vmatpush1.msra.mxu0 0.0
        %6387 = vmatprep.subr.mxu0 0.0
        %6388 = vmatpush1.msra.mxu0 0.0
        %6389 = vmatprep.subr.mxu0 0.0
        %6390 = vmatpush1.msra.mxu0 0.0
        %6391 = vmatprep.subr.mxu0 0.0
        %6392 = vmatpush1.msra.mxu0 0.0
        %6393 = vmatprep.subr.mxu0 0.0
        %6394 = vmatpush1.msra.mxu0 0.0
        %6395 = vmatprep.subr.mxu0 0.0
        %6396 = vmatpush1.msra.mxu0 0.0
        %6397 = vmatprep.subr.mxu0 0.0
        %6398 = vmatpush1.msra.mxu0 0.0
        %6399 = vmatprep.subr.mxu0 0.0
        %6400 = vmatpush1.msra.mxu0 0.0
        %6401 = vmatprep.subr.mxu0 0.0
        %6402 = vmatpush1.msra.mxu0 0.0
        %6403 = vmatprep.subr.mxu0 0.0
        %6404 = vmatpush1.msra.mxu0 0.0
        %6405 = vmatprep.subr.mxu0 0.0
        %6406 = vmatpush1.msra.mxu0 0.0
        %6407 = vmatprep.subr.mxu0 0.0
        %6408 = vmatpush1.msra.mxu0 0.0
        %6409 = vmatprep.subr.mxu0 0.0
        %6410 = vmatpush1.msra.mxu0 0.0
        %6411 = vmatprep.subr.mxu0 0.0
        %6412 = vmatpush1.msra.mxu0 0.0
        %6413 = vmatprep.subr.mxu0 0.0
        %6414 = vmatpush1.msra.mxu0 0.0
        %6415 = vmatprep.subr.mxu0 0.0
        %6416 = vmatpush1.msra.mxu0 0.0
        %6417 = vmatprep.subr.mxu0 0.0
        %6418 = vmatpush1.msra.mxu0 0.0
        %6419 = vmatprep.subr.mxu0 0.0
        %6420 = vmatpush1.msra.mxu0 0.0
        %6421 = vmatprep.subr.mxu0 0.0
        %6422 = vmatpush1.msra.mxu0 0.0
        %6423 = vmatprep.subr.mxu0 0.0
        %6424 = vmatpush1.msra.mxu0 0.0
        %6425 = vmatprep.subr.mxu0 0.0
        %6426 = vmatpush1.msra.mxu0 0.0
        %6427 = vmatprep.mubr.f32.mxu0 0.0
        %6428 = vmatmul.mubr.f32.gmra.mrb[0].mxu0 %v6340
        %v6429 = vpop.f32.mrb[0].mxu0
        %v6430 = vadd.f32 0.0, %v6429
        %v6431 = vpop.f32.mrb[0].mxu0
        %6432 = vmatprep.mubr.f32.mxu0 0.0
        %6433 = vmatmul.mubr.f32.gmra.mrb[0].mxu0 %v6343
        %v6434 = vpop.f32.mrb[0].mxu0
        %v6435 = vadd.f32 0.0, %v6434
        %v6436 = vpop.f32.mrb[0].mxu0
        %6437 = vmatprep.mubr.f32.mxu0 0.0
        %6438 = vmatmul.mubr.f32.gmra.mrb[0].mxu0 %v6346
        %v6439 = vpop.f32.mrb[0].mxu0
        %v6440 = vadd.f32 0.0, %v6439
        %v6441 = vpop.f32.mrb[0].mxu0
        %6442 = vmatprep.mubr.f32.mxu0 0.0
        %6443 = vmatmul.mubr.f32.gmra.mrb[0].mxu0 %v6349
        %v6444 = vpop.f32.mrb[0].mxu0
        %v6445 = vadd.f32 0.0, %v6444
        %v6446 = vpop.f32.mrb[0].mxu0
        %6447 = vmatprep.mubr.f32.mxu0 0.0
        %6448 = vmatmul.mubr.f32.gmra.mrb[0].mxu0 %v6352
        %v6449 = vpop.f32.mrb[0].mxu0
        %v6450 = vadd.f32 0.0, %v6449
        %v6451 = vpop.f32.mrb[0].mxu0
        %6452 = vmatprep.mubr.f32.mxu0 0.0
        %6453 = vmatmul.mubr.f32.gmra.mrb[0].mxu0 %v6355
        %v6454 = vpop.f32.mrb[0].mxu0
        %v6455 = vadd.f32 0.0, %v6454
        %v6456 = vpop.f32.mrb[0].mxu0
        %6457 = vmatprep.mubr.f32.mxu0 0.0
        %6458 = vmatmul.mubr.f32.gmra.mrb[0].mxu0 %v6358
        %v6459 = vpop.f32.mrb[0].mxu0
        %v6460 = vadd.f32 0.0, %v6459
        %v6461 = vpop.f32.mrb[0].mxu0
        %6462 = vmatprep.mubr.f32.mxu0 0.0
        %6463 = vmatmul.mubr.f32.gmra.mrb[0].mxu0 %v6361
        %v6464 = vpop.f32.mrb[0].mxu0
        %v6465 = vadd.f32 0.0, %v6464
        %v6466 = vpop.f32.mrb[0].mxu0
        %6467 = vdwg.mxu0
        %v6469 = vsel %vm2371, %v5891, 0
        %v6472 = vsel %vm2371, %v5896, 0
        %v6475 = vsel %vm2371, %v5901, 0
        %v6478 = vsel %vm2371, %v5906, 0
        %v6481 = vsel %vm2371, %v5911, 0
        %v6484 = vsel %vm2371, %v5916, 0
        %v6487 = vsel %vm2371, %v5921, 0
        %v6490 = vsel %vm2371, %v5926, 0
        %6492 = vmatprep.subr.mxu0 0.0
        %6493 = vmatpush1.msra.mxu0 %v4226
        %6494 = vmatprep.subr.mxu0 0.0
        %6495 = vmatpush1.msra.mxu0 %v4227
        %6496 = vmatprep.subr.mxu0 0.0
        %6497 = vmatpush1.msra.mxu0 0.0
        %6498 = vmatprep.subr.mxu0 0.0
        %6499 = vmatpush1.msra.mxu0 0.0
        %6500 = vmatprep.subr.mxu0 0.0
        %6501 = vmatpush1.msra.mxu0 0.0
        %6502 = vmatprep.subr.mxu0 0.0
        %6503 = vmatpush1.msra.mxu0 0.0
        %6504 = vmatprep.subr.mxu0 0.0
        %6505 = vmatpush1.msra.mxu0 0.0
        %6506 = vmatprep.subr.mxu0 0.0
        %6507 = vmatpush1.msra.mxu0 0.0
        %6508 = vmatprep.subr.mxu0 0.0
        %6509 = vmatpush1.msra.mxu0 0.0
        %6510 = vmatprep.subr.mxu0 0.0
        %6511 = vmatpush1.msra.mxu0 0.0
        %6512 = vmatprep.subr.mxu0 0.0
        %6513 = vmatpush1.msra.mxu0 0.0
        %6514 = vmatprep.subr.mxu0 0.0
        %6515 = vmatpush1.msra.mxu0 0.0
        %6516 = vmatprep.subr.mxu0 0.0
        %6517 = vmatpush1.msra.mxu0 0.0
        %6518 = vmatprep.subr.mxu0 0.0
        %6519 = vmatpush1.msra.mxu0 0.0
        %6520 = vmatprep.subr.mxu0 0.0
        %6521 = vmatpush1.msra.mxu0 0.0
        %6522 = vmatprep.subr.mxu0 0.0
        %6523 = vmatpush1.msra.mxu0 0.0
        %6524 = vmatprep.subr.mxu0 0.0
        %6525 = vmatpush1.msra.mxu0 0.0
        %6526 = vmatprep.subr.mxu0 0.0
        %6527 = vmatpush1.msra.mxu0 0.0
        %6528 = vmatprep.subr.mxu0 0.0
        %6529 = vmatpush1.msra.mxu0 0.0
        %6530 = vmatprep.subr.mxu0 0.0
        %6531 = vmatpush1.msra.mxu0 0.0
        %6532 = vmatprep.subr.mxu0 0.0
        %6533 = vmatpush1.msra.mxu0 0.0
        %6534 = vmatprep.subr.mxu0 0.0
        %6535 = vmatpush1.msra.mxu0 0.0
        %6536 = vmatprep.subr.mxu0 0.0
        %6537 = vmatpush1.msra.mxu0 0.0
        %6538 = vmatprep.subr.mxu0 0.0
        %6539 = vmatpush1.msra.mxu0 0.0
        %6540 = vmatprep.subr.mxu0 0.0
        %6541 = vmatpush1.msra.mxu0 0.0
        %6542 = vmatprep.subr.mxu0 0.0
        %6543 = vmatpush1.msra.mxu0 0.0
        %6544 = vmatprep.subr.mxu0 0.0
        %6545 = vmatpush1.msra.mxu0 0.0
        %6546 = vmatprep.subr.mxu0 0.0
        %6547 = vmatpush1.msra.mxu0 0.0
        %6548 = vmatprep.subr.mxu0 0.0
        %6549 = vmatpush1.msra.mxu0 0.0
        %6550 = vmatprep.subr.mxu0 0.0
        %6551 = vmatpush1.msra.mxu0 0.0
        %6552 = vmatprep.subr.mxu0 0.0
        %6553 = vmatpush1.msra.mxu0 0.0
        %6554 = vmatprep.subr.mxu0 0.0
        %6555 = vmatpush1.msra.mxu0 0.0
        %6556 = vmatprep.mubr.f32.mxu0 0.0
        %6557 = vmatmul.mubr.f32.gmra.mrb[0].mxu0 %v6469
        %v6558 = vpop.f32.mrb[0].mxu0
        %v6559 = vadd.f32 %v6430, %v6558
        %v6560 = vpop.f32.mrb[0].mxu0
        %6561 = vmatprep.mubr.f32.mxu0 0.0
        %6562 = vmatmul.mubr.f32.gmra.mrb[0].mxu0 %v6472
        %v6563 = vpop.f32.mrb[0].mxu0
        %v6564 = vadd.f32 %v6435, %v6563
        %v6565 = vpop.f32.mrb[0].mxu0
        %6566 = vmatprep.mubr.f32.mxu0 0.0
        %6567 = vmatmul.mubr.f32.gmra.mrb[0].mxu0 %v6475
        %v6568 = vpop.f32.mrb[0].mxu0
        %v6569 = vadd.f32 %v6440, %v6568
        %v6570 = vpop.f32.mrb[0].mxu0
        %6571 = vmatprep.mubr.f32.mxu0 0.0
        %6572 = vmatmul.mubr.f32.gmra.mrb[0].mxu0 %v6478
        %v6573 = vpop.f32.mrb[0].mxu0
        %v6574 = vadd.f32 %v6445, %v6573
        %v6575 = vpop.f32.mrb[0].mxu0
        %6576 = vmatprep.mubr.f32.mxu0 0.0
        %6577 = vmatmul.mubr.f32.gmra.mrb[0].mxu0 %v6481
        %v6578 = vpop.f32.mrb[0].mxu0
        %v6579 = vadd.f32 %v6450, %v6578
        %v6580 = vpop.f32.mrb[0].mxu0
        %6581 = vmatprep.mubr.f32.mxu0 0.0
        %6582 = vmatmul.mubr.f32.gmra.mrb[0].mxu0 %v6484
        %v6583 = vpop.f32.mrb[0].mxu0
        %v6584 = vadd.f32 %v6455, %v6583
        %v6585 = vpop.f32.mrb[0].mxu0
        %6586 = vmatprep.mubr.f32.mxu0 0.0
        %6587 = vmatmul.mubr.f32.gmra.mrb[0].mxu0 %v6487
        %v6588 = vpop.f32.mrb[0].mxu0
        %v6589 = vadd.f32 %v6460, %v6588
        %v6590 = vpop.f32.mrb[0].mxu0
        %6591 = vmatprep.mubr.f32.mxu0 0.0
        %6592 = vmatmul.mubr.f32.gmra.mrb[0].mxu0 %v6490
        %v6593 = vpop.f32.mrb[0].mxu0
        %v6594 = vadd.f32 %v6465, %v6593
        %v6595 = vpop.f32.mrb[0].mxu0
        %6596 = vdwg.mxu0
        %v6598 = vlaneseq
        %v6599 = vshrl.u32 %v6598, 7
        %v6600 = vsub.s32 0, %v6599
        %v6601 = vrot.slane %v4230, %v6600
        %v6603 = vadd.f32 %v5481, %v6601
        %v6604 = vadd.f32 %v5486, %v6601
        %v6605 = vadd.f32 %v5491, %v6601
        %v6606 = vadd.f32 %v5496, %v6601
        %v6607 = vadd.f32 %v5501, %v6601
        %v6608 = vadd.f32 %v5506, %v6601
        %v6609 = vadd.f32 %v5511, %v6601
        %v6610 = vadd.f32 %v5516, %v6601
        %v6611 = vadd.f32 %v6559, %v6601
        %v6612 = vadd.f32 %v6564, %v6601
        %v6613 = vadd.f32 %v6569, %v6601
        %v6614 = vadd.f32 %v6574, %v6601
        %v6615 = vadd.f32 %v6579, %v6601
        %v6616 = vadd.f32 %v6584, %v6601
        %v6617 = vadd.f32 %v6589, %v6601
        %v6618 = vadd.f32 %v6594, %v6601
        %v6619 = vadd.f32 %v6603, %v3952
        %v6620 = vadd.f32 %v6604, %v3953
        %v6621 = vadd.f32 %v6605, %v3954
        %v6622 = vadd.f32 %v6606, %v3955
        %v6623 = vadd.f32 %v6607, %v3956
        %v6624 = vadd.f32 %v6608, %v3957
        %v6625 = vadd.f32 %v6609, %v3958
        %v6626 = vadd.f32 %v6610, %v3959
        %v6627 = vadd.f32 %v6611, %v3960
        %v6628 = vadd.f32 %v6612, %v3961
        %v6629 = vadd.f32 %v6613, %v3962
        %v6630 = vadd.f32 %v6614, %v3963
        %v6631 = vadd.f32 %v6615, %v3964
        %v6632 = vadd.f32 %v6616, %v3965
        %v6633 = vadd.f32 %v6617, %v3966
        %v6634 = vadd.f32 %v6618, %v3967
        %v6635 = vld [vmem:[%s16] sm:$0x1]
        %v6636 = vld [vmem:[%s17] sm:$0x1]
        %v6637 = vsel %vm947, %v6619, 0.0
        %6638 = vadd.xlane.f32.xlu0 %v6637
        %v6639 = vpop.xlane.xlu0 %6638
        %v6640 = vsel %vm947, %v6620, 0.0
        %6641 = vadd.xlane.f32.xlu0 %v6640
        %v6642 = vpop.xlane.xlu0 %6641
        %v6643 = vsel %vm947, %v6621, 0.0
        %6644 = vadd.xlane.f32.xlu0 %v6643
        %v6645 = vpop.xlane.xlu0 %6644
        %v6646 = vsel %vm947, %v6622, 0.0
        %6647 = vadd.xlane.f32.xlu0 %v6646
        %v6648 = vpop.xlane.xlu0 %6647
        %v6649 = vsel %vm947, %v6623, 0.0
        %6650 = vadd.xlane.f32.xlu0 %v6649
        %v6651 = vpop.xlane.xlu0 %6650
        %v6652 = vsel %vm947, %v6624, 0.0
        %6653 = vadd.xlane.f32.xlu0 %v6652
        %v6654 = vpop.xlane.xlu0 %6653
        %v6655 = vsel %vm947, %v6625, 0.0
        %6656 = vadd.xlane.f32.xlu0 %v6655
        %v6657 = vpop.xlane.xlu0 %6656
        %v6658 = vsel %vm947, %v6626, 0.0
        %6659 = vadd.xlane.f32.xlu0 %v6658
        %v6660 = vpop.xlane.xlu0 %6659
        %v6661 = vsel %vm947, %v6627, 0.0
        %6662 = vadd.xlane.f32.xlu0 %v6661
        %v6663 = vpop.xlane.xlu0 %6662
        %v6664 = vsel %vm947, %v6628, 0.0
        %6665 = vadd.xlane.f32.xlu0 %v6664
        %v6666 = vpop.xlane.xlu0 %6665
        %v6667 = vsel %vm947, %v6629, 0.0
        %6668 = vadd.xlane.f32.xlu0 %v6667
        %v6669 = vpop.xlane.xlu0 %6668
        %v6670 = vsel %vm947, %v6630, 0.0
        %6671 = vadd.xlane.f32.xlu0 %v6670
        %v6672 = vpop.xlane.xlu0 %6671
        %v6673 = vsel %vm947, %v6631, 0.0
        %6674 = vadd.xlane.f32.xlu0 %v6673
        %v6675 = vpop.xlane.xlu0 %6674
        %v6676 = vsel %vm947, %v6632, 0.0
        %6677 = vadd.xlane.f32.xlu0 %v6676
        %v6678 = vpop.xlane.xlu0 %6677
        %v6679 = vsel %vm947, %v6633, 0.0
        %6680 = vadd.xlane.f32.xlu0 %v6679
        %v6681 = vpop.xlane.xlu0 %6680
        %v6682 = vsel %vm947, %v6634, 0.0
        %6683 = vadd.xlane.f32.xlu0 %v6682
        %v6684 = vpop.xlane.xlu0 %6683
        %v6685 = vmul.f32 %v6639, %v1900
        %v6686 = vmul.f32 %v6642, %v1900
        %v6687 = vmul.f32 %v6645, %v1900
        %v6688 = vmul.f32 %v6648, %v1900
        %v6689 = vmul.f32 %v6651, %v1900
        %v6690 = vmul.f32 %v6654, %v1900
        %v6691 = vmul.f32 %v6657, %v1900
        %v6692 = vmul.f32 %v6660, %v1900
        %v6693 = vmul.f32 %v6663, %v1900
        %v6694 = vmul.f32 %v6666, %v1900
        %v6695 = vmul.f32 %v6669, %v1900
        %v6696 = vmul.f32 %v6672, %v1900
        %v6697 = vmul.f32 %v6675, %v1900
        %v6698 = vmul.f32 %v6678, %v1900
        %v6699 = vmul.f32 %v6681, %v1900
        %v6700 = vmul.f32 %v6684, %v1900
        %v6701 = vsub.f32 %v6619, %v6685
        %v6702 = vsub.f32 %v6620, %v6686
        %v6703 = vsub.f32 %v6621, %v6687
        %v6704 = vsub.f32 %v6622, %v6688
        %v6705 = vsub.f32 %v6623, %v6689
        %v6706 = vsub.f32 %v6624, %v6690
        %v6707 = vsub.f32 %v6625, %v6691
        %v6708 = vsub.f32 %v6626, %v6692
        %v6709 = vsub.f32 %v6627, %v6693
        %v6710 = vsub.f32 %v6628, %v6694
        %v6711 = vsub.f32 %v6629, %v6695
        %v6712 = vsub.f32 %v6630, %v6696
        %v6713 = vsub.f32 %v6631, %v6697
        %v6714 = vsub.f32 %v6632, %v6698
        %v6715 = vsub.f32 %v6633, %v6699
        %v6716 = vsub.f32 %v6634, %v6700
        %v6717 = vmul.f32 %v6701, %v6701
        %v6718 = vmul.f32 %v6702, %v6702
        %v6719 = vmul.f32 %v6703, %v6703
        %v6720 = vmul.f32 %v6704, %v6704
        %v6721 = vmul.f32 %v6705, %v6705
        %v6722 = vmul.f32 %v6706, %v6706
        %v6723 = vmul.f32 %v6707, %v6707
        %v6724 = vmul.f32 %v6708, %v6708
        %v6725 = vmul.f32 %v6709, %v6709
        %v6726 = vmul.f32 %v6710, %v6710
        %v6727 = vmul.f32 %v6711, %v6711
        %v6728 = vmul.f32 %v6712, %v6712
        %v6729 = vmul.f32 %v6713, %v6713
        %v6730 = vmul.f32 %v6714, %v6714
        %v6731 = vmul.f32 %v6715, %v6715
        %v6732 = vmul.f32 %v6716, %v6716
        %v6733 = vsel %vm947, %v6717, 0.0
        %6734 = vadd.xlane.f32.xlu0 %v6733
        %v6735 = vpop.xlane.xlu0 %6734
        %v6736 = vsel %vm947, %v6718, 0.0
        %6737 = vadd.xlane.f32.xlu0 %v6736
        %v6738 = vpop.xlane.xlu0 %6737
        %v6739 = vsel %vm947, %v6719, 0.0
        %6740 = vadd.xlane.f32.xlu0 %v6739
        %v6741 = vpop.xlane.xlu0 %6740
        %v6742 = vsel %vm947, %v6720, 0.0
        %6743 = vadd.xlane.f32.xlu0 %v6742
        %v6744 = vpop.xlane.xlu0 %6743
        %v6745 = vsel %vm947, %v6721, 0.0
        %6746 = vadd.xlane.f32.xlu0 %v6745
        %v6747 = vpop.xlane.xlu0 %6746
        %v6748 = vsel %vm947, %v6722, 0.0
        %6749 = vadd.xlane.f32.xlu0 %v6748
        %v6750 = vpop.xlane.xlu0 %6749
        %v6751 = vsel %vm947, %v6723, 0.0
        %6752 = vadd.xlane.f32.xlu0 %v6751
        %v6753 = vpop.xlane.xlu0 %6752
        %v6754 = vsel %vm947, %v6724, 0.0
        %6755 = vadd.xlane.f32.xlu0 %v6754
        %v6756 = vpop.xlane.xlu0 %6755
        %v6757 = vsel %vm947, %v6725, 0.0
        %6758 = vadd.xlane.f32.xlu0 %v6757
        %v6759 = vpop.xlane.xlu0 %6758
        %v6760 = vsel %vm947, %v6726, 0.0
        %6761 = vadd.xlane.f32.xlu0 %v6760
        %v6762 = vpop.xlane.xlu0 %6761
        %v6763 = vsel %vm947, %v6727, 0.0
        %6764 = vadd.xlane.f32.xlu0 %v6763
        %v6765 = vpop.xlane.xlu0 %6764
        %v6766 = vsel %vm947, %v6728, 0.0
        %6767 = vadd.xlane.f32.xlu0 %v6766
        %v6768 = vpop.xlane.xlu0 %6767
        %v6769 = vsel %vm947, %v6729, 0.0
        %6770 = vadd.xlane.f32.xlu0 %v6769
        %v6771 = vpop.xlane.xlu0 %6770
        %v6772 = vsel %vm947, %v6730, 0.0
        %6773 = vadd.xlane.f32.xlu0 %v6772
        %v6774 = vpop.xlane.xlu0 %6773
        %v6775 = vsel %vm947, %v6731, 0.0
        %6776 = vadd.xlane.f32.xlu0 %v6775
        %v6777 = vpop.xlane.xlu0 %6776
        %v6778 = vsel %vm947, %v6732, 0.0
        %6779 = vadd.xlane.f32.xlu0 %v6778
        %v6780 = vpop.xlane.xlu0 %6779
        %v6781 = vmul.f32 %v6735, %v1900
        %v6782 = vmul.f32 %v6738, %v1900
        %v6783 = vmul.f32 %v6741, %v1900
        %v6784 = vmul.f32 %v6744, %v1900
        %v6785 = vmul.f32 %v6747, %v1900
        %v6786 = vmul.f32 %v6750, %v1900
        %v6787 = vmul.f32 %v6753, %v1900
        %v6788 = vmul.f32 %v6756, %v1900
        %v6789 = vmul.f32 %v6759, %v1900
        %v6790 = vmul.f32 %v6762, %v1900
        %v6791 = vmul.f32 %v6765, %v1900
        %v6792 = vmul.f32 %v6768, %v1900
        %v6793 = vmul.f32 %v6771, %v1900
        %v6794 = vmul.f32 %v6774, %v1900
        %v6795 = vmul.f32 %v6777, %v1900
        %v6796 = vmul.f32 %v6780, %v1900
        %v6797 = vadd.f32 %v6781, 1e-05
        %v6798 = vadd.f32 %v6782, 1e-05
        %v6799 = vadd.f32 %v6783, 1e-05
        %v6800 = vadd.f32 %v6784, 1e-05
        %v6801 = vadd.f32 %v6785, 1e-05
        %v6802 = vadd.f32 %v6786, 1e-05
        %v6803 = vadd.f32 %v6787, 1e-05
        %v6804 = vadd.f32 %v6788, 1e-05
        %v6805 = vadd.f32 %v6789, 1e-05
        %v6806 = vadd.f32 %v6790, 1e-05
        %v6807 = vadd.f32 %v6791, 1e-05
        %v6808 = vadd.f32 %v6792, 1e-05
        %v6809 = vadd.f32 %v6793, 1e-05
        %v6810 = vadd.f32 %v6794, 1e-05
        %v6811 = vadd.f32 %v6795, 1e-05
        %v6812 = vadd.f32 %v6796, 1e-05
        %v6813 = vrsqrt.pop %v6797
        %v6814 = vrsqrt.pop %v6798
        %v6815 = vrsqrt.pop %v6799
        %v6816 = vrsqrt.pop %v6800
        %v6817 = vrsqrt.pop %v6801
        %v6818 = vrsqrt.pop %v6802
        %v6819 = vrsqrt.pop %v6803
        %v6820 = vrsqrt.pop %v6804
        %v6821 = vrsqrt.pop %v6805
        %v6822 = vrsqrt.pop %v6806
        %v6823 = vrsqrt.pop %v6807
        %v6824 = vrsqrt.pop %v6808
        %v6825 = vrsqrt.pop %v6809
        %v6826 = vrsqrt.pop %v6810
        %v6827 = vrsqrt.pop %v6811
        %v6828 = vrsqrt.pop %v6812
        %v6829 = vmul.f32 %v6701, %v6813
        %v6830 = vmul.f32 %v6702, %v6814
        %v6831 = vmul.f32 %v6703, %v6815
        %v6832 = vmul.f32 %v6704, %v6816
        %v6833 = vmul.f32 %v6705, %v6817
        %v6834 = vmul.f32 %v6706, %v6818
        %v6835 = vmul.f32 %v6707, %v6819
        %v6836 = vmul.f32 %v6708, %v6820
        %v6837 = vmul.f32 %v6709, %v6821
        %v6838 = vmul.f32 %v6710, %v6822
        %v6839 = vmul.f32 %v6711, %v6823
        %v6840 = vmul.f32 %v6712, %v6824
        %v6841 = vmul.f32 %v6713, %v6825
        %v6842 = vmul.f32 %v6714, %v6826
        %v6843 = vmul.f32 %v6715, %v6827
        %v6844 = vmul.f32 %v6716, %v6828
        %v6846 = vlaneseq
        %v6847 = vshrl.u32 %v6846, 7
        %v6848 = vsub.s32 0, %v6847
        %v6849 = vrot.slane %v6635, %v6848
        %v6851 = vmul.f32 %v6829, %v6849
        %v6852 = vmul.f32 %v6830, %v6849
        %v6853 = vmul.f32 %v6831, %v6849
        %v6854 = vmul.f32 %v6832, %v6849
        %v6855 = vmul.f32 %v6833, %v6849
        %v6856 = vmul.f32 %v6834, %v6849
        %v6857 = vmul.f32 %v6835, %v6849
        %v6858 = vmul.f32 %v6836, %v6849
        %v6859 = vmul.f32 %v6837, %v6849
        %v6860 = vmul.f32 %v6838, %v6849
        %v6861 = vmul.f32 %v6839, %v6849
        %v6862 = vmul.f32 %v6840, %v6849
        %v6863 = vmul.f32 %v6841, %v6849
        %v6864 = vmul.f32 %v6842, %v6849
        %v6865 = vmul.f32 %v6843, %v6849
        %v6866 = vmul.f32 %v6844, %v6849
        %v6868 = vlaneseq
        %v6869 = vshrl.u32 %v6868, 7
        %v6870 = vsub.s32 0, %v6869
        %v6871 = vrot.slane %v6636, %v6870
        %v6873 = vadd.f32 %v6851, %v6871
        %v6874 = vadd.f32 %v6852, %v6871
        %v6875 = vadd.f32 %v6853, %v6871
        %v6876 = vadd.f32 %v6854, %v6871
        %v6877 = vadd.f32 %v6855, %v6871
        %v6878 = vadd.f32 %v6856, %v6871
        %v6879 = vadd.f32 %v6857, %v6871
        %v6880 = vadd.f32 %v6858, %v6871
        %v6881 = vadd.f32 %v6859, %v6871
        %v6882 = vadd.f32 %v6860, %v6871
        %v6883 = vadd.f32 %v6861, %v6871
        %v6884 = vadd.f32 %v6862, %v6871
        %v6885 = vadd.f32 %v6863, %v6871
        %v6886 = vadd.f32 %v6864, %v6871
        %v6887 = vadd.f32 %v6865, %v6871
        %v6888 = vadd.f32 %v6866, %v6871
        %v6889 = vld [vmem:[%s18] sm:$0xff]
        %v6890 = vld [vmem:[%s18 + $0x8] sm:$0xff]
        %v6891 = vld [vmem:[%s18 + $0x10] sm:$0xff]
        %v6892 = vld [vmem:[%s18 + $0x18] sm:$0xff]
        %v6893 = vld [vmem:[%s18 + $0x20] sm:$0xff]
        %v6894 = vld [vmem:[%s18 + $0x28] sm:$0xff]
        %v6895 = vld [vmem:[%s18 + $0x30] sm:$0xff]
        %v6896 = vld [vmem:[%s18 + $0x38] sm:$0xff]
        %v6897 = vld [vmem:[#allocation22] sm:$0x3]
        %v6899 = vlaneseq
        %v6900 = vshrl.u32 %v6899, 7
        %v6901 = vsub.s32 0, %v6900
        %v6902 = vrot.slane %v6897, %v6901
        %v6903 = vlaneseq
        %v6904 = vshrl.u32 %v6903, 7
        %v6905 = vsub.s32 1, %v6904
        %v6906 = vrot.slane %v6897, %v6905
        %v6910 = vsel %vm947, %v6873, 0
        %v6913 = vsel %vm947, %v6874, 0
        %v6916 = vsel %vm947, %v6875, 0
        %v6919 = vsel %vm947, %v6876, 0
        %v6922 = vsel %vm947, %v6877, 0
        %v6925 = vsel %vm947, %v6878, 0
        %v6928 = vsel %vm947, %v6879, 0
        %v6931 = vsel %vm947, %v6880, 0
        %v6934 = vsel %vm947, %v6881, 0
        %v6937 = vsel %vm947, %v6882, 0
        %v6940 = vsel %vm947, %v6883, 0
        %v6943 = vsel %vm947, %v6884, 0
        %v6946 = vsel %vm947, %v6885, 0
        %v6949 = vsel %vm947, %v6886, 0
        %v6952 = vsel %vm947, %v6887, 0
        %v6955 = vsel %vm947, %v6888, 0
        %6957 = vmatprep.subr.mxu0 %v6890
        %6958 = vmatpush1.msra.mxu0 %v6889
        %6959 = vmatprep.subr.mxu0 %v6892
        %6960 = vmatpush1.msra.mxu0 %v6891
        %6961 = vmatprep.subr.mxu0 %v6894
        %6962 = vmatpush1.msra.mxu0 %v6893
        %6963 = vmatprep.subr.mxu0 %v6896
        %6964 = vmatpush1.msra.mxu0 %v6895
        %6965 = vmatprep.subr.mxu0 0.0
        %6966 = vmatpush1.msra.mxu0 0.0
        %6967 = vmatprep.subr.mxu0 0.0
        %6968 = vmatpush1.msra.mxu0 0.0
        %6969 = vmatprep.subr.mxu0 0.0
        %6970 = vmatpush1.msra.mxu0 0.0
        %6971 = vmatprep.subr.mxu0 0.0
        %6972 = vmatpush1.msra.mxu0 0.0
        %6973 = vmatprep.subr.mxu0 0.0
        %6974 = vmatpush1.msra.mxu0 0.0
        %6975 = vmatprep.subr.mxu0 0.0
        %6976 = vmatpush1.msra.mxu0 0.0
        %6977 = vmatprep.subr.mxu0 0.0
        %6978 = vmatpush1.msra.mxu0 0.0
        %6979 = vmatprep.subr.mxu0 0.0
        %6980 = vmatpush1.msra.mxu0 0.0
        %6981 = vmatprep.subr.mxu0 0.0
        %6982 = vmatpush1.msra.mxu0 0.0
        %6983 = vmatprep.subr.mxu0 0.0
        %6984 = vmatpush1.msra.mxu0 0.0
        %6985 = vmatprep.subr.mxu0 0.0
        %6986 = vmatpush1.msra.mxu0 0.0
        %6987 = vmatprep.subr.mxu0 0.0
        %6988 = vmatpush1.msra.mxu0 0.0
        %6989 = vmatprep.subr.mxu0 0.0
        %6990 = vmatpush1.msra.mxu0 0.0
        %6991 = vmatprep.subr.mxu0 0.0
        %6992 = vmatpush1.msra.mxu0 0.0
        %6993 = vmatprep.subr.mxu0 0.0
        %6994 = vmatpush1.msra.mxu0 0.0
        %6995 = vmatprep.subr.mxu0 0.0
        %6996 = vmatpush1.msra.mxu0 0.0
        %6997 = vmatprep.subr.mxu0 0.0
        %6998 = vmatpush1.msra.mxu0 0.0
        %6999 = vmatprep.subr.mxu0 0.0
        %7000 = vmatpush1.msra.mxu0 0.0
        %7001 = vmatprep.subr.mxu0 0.0
        %7002 = vmatpush1.msra.mxu0 0.0
        %7003 = vmatprep.subr.mxu0 0.0
        %7004 = vmatpush1.msra.mxu0 0.0
        %7005 = vmatprep.subr.mxu0 0.0
        %7006 = vmatpush1.msra.mxu0 0.0
        %7007 = vmatprep.subr.mxu0 0.0
        %7008 = vmatpush1.msra.mxu0 0.0
        %7009 = vmatprep.subr.mxu0 0.0
        %7010 = vmatpush1.msra.mxu0 0.0
        %7011 = vmatprep.subr.mxu0 0.0
        %7012 = vmatpush1.msra.mxu0 0.0
        %7013 = vmatprep.subr.mxu0 0.0
        %7014 = vmatpush1.msra.mxu0 0.0
        %7015 = vmatprep.subr.mxu0 0.0
        %7016 = vmatpush1.msra.mxu0 0.0
        %7017 = vmatprep.subr.mxu0 0.0
        %7018 = vmatpush1.msra.mxu0 0.0
        %7019 = vmatprep.subr.mxu0 0.0
        %7020 = vmatpush1.msra.mxu0 0.0
        %7021 = vmatprep.mubr.f32.mxu0 0.0
        %7022 = vmatmul.mubr.f32.gmra.mrb[0].mxu0 %v6910
        %v7023 = vpop.f32.mrb[0].mxu0
        %v7024 = vadd.f32 %v6902, %v7023
        %v7025 = vpop.f32.mrb[0].mxu0
        %v7026 = vadd.f32 %v6906, %v7025
        %7027 = vmatprep.mubr.f32.mxu0 0.0
        %7028 = vmatmul.mubr.f32.gmra.mrb[0].mxu0 %v6913
        %v7029 = vpop.f32.mrb[0].mxu0
        %v7030 = vadd.f32 %v6902, %v7029
        %v7031 = vpop.f32.mrb[0].mxu0
        %v7032 = vadd.f32 %v6906, %v7031
        %7033 = vmatprep.mubr.f32.mxu0 0.0
        %7034 = vmatmul.mubr.f32.gmra.mrb[0].mxu0 %v6916
        %v7035 = vpop.f32.mrb[0].mxu0
        %v7036 = vadd.f32 %v6902, %v7035
        %v7037 = vpop.f32.mrb[0].mxu0
        %v7038 = vadd.f32 %v6906, %v7037
        %7039 = vmatprep.mubr.f32.mxu0 0.0
        %7040 = vmatmul.mubr.f32.gmra.mrb[0].mxu0 %v6919
        %v7041 = vpop.f32.mrb[0].mxu0
        %v7042 = vadd.f32 %v6902, %v7041
        %v7043 = vpop.f32.mrb[0].mxu0
        %v7044 = vadd.f32 %v6906, %v7043
        %7045 = vmatprep.mubr.f32.mxu0 0.0
        %7046 = vmatmul.mubr.f32.gmra.mrb[0].mxu0 %v6922
        %v7047 = vpop.f32.mrb[0].mxu0
        %v7048 = vadd.f32 %v6902, %v7047
        %v7049 = vpop.f32.mrb[0].mxu0
        %v7050 = vadd.f32 %v6906, %v7049
        %7051 = vmatprep.mubr.f32.mxu0 0.0
        %7052 = vmatmul.mubr.f32.gmra.mrb[0].mxu0 %v6925
        %v7053 = vpop.f32.mrb[0].mxu0
        %v7054 = vadd.f32 %v6902, %v7053
        %v7055 = vpop.f32.mrb[0].mxu0
        %v7056 = vadd.f32 %v6906, %v7055
        %7057 = vmatprep.mubr.f32.mxu0 0.0
        %7058 = vmatmul.mubr.f32.gmra.mrb[0].mxu0 %v6928
        %v7059 = vpop.f32.mrb[0].mxu0
        %v7060 = vadd.f32 %v6902, %v7059
        %v7061 = vpop.f32.mrb[0].mxu0
        %v7062 = vadd.f32 %v6906, %v7061
        %7063 = vmatprep.mubr.f32.mxu0 0.0
        %7064 = vmatmul.mubr.f32.gmra.mrb[0].mxu0 %v6931
        %v7065 = vpop.f32.mrb[0].mxu0
        %v7066 = vadd.f32 %v6902, %v7065
        %v7067 = vpop.f32.mrb[0].mxu0
        %v7068 = vadd.f32 %v6906, %v7067
        %7069 = vmatprep.mubr.f32.mxu0 0.0
        %7070 = vmatmul.mubr.f32.gmra.mrb[0].mxu0 %v6934
        %v7071 = vpop.f32.mrb[0].mxu0
        %v7072 = vadd.f32 %v6902, %v7071
        %v7073 = vpop.f32.mrb[0].mxu0
        %v7074 = vadd.f32 %v6906, %v7073
        %7075 = vmatprep.mubr.f32.mxu0 0.0
        %7076 = vmatmul.mubr.f32.gmra.mrb[0].mxu0 %v6937
        %v7077 = vpop.f32.mrb[0].mxu0
        %v7078 = vadd.f32 %v6902, %v7077
        %v7079 = vpop.f32.mrb[0].mxu0
        %v7080 = vadd.f32 %v6906, %v7079
        %7081 = vmatprep.mubr.f32.mxu0 0.0
        %7082 = vmatmul.mubr.f32.gmra.mrb[0].mxu0 %v6940
        %v7083 = vpop.f32.mrb[0].mxu0
        %v7084 = vadd.f32 %v6902, %v7083
        %v7085 = vpop.f32.mrb[0].mxu0
        %v7086 = vadd.f32 %v6906, %v7085
        %7087 = vmatprep.mubr.f32.mxu0 0.0
        %7088 = vmatmul.mubr.f32.gmra.mrb[0].mxu0 %v6943
        %v7089 = vpop.f32.mrb[0].mxu0
        %v7090 = vadd.f32 %v6902, %v7089
        %v7091 = vpop.f32.mrb[0].mxu0
        %v7092 = vadd.f32 %v6906, %v7091
        %7093 = vmatprep.mubr.f32.mxu0 0.0
        %7094 = vmatmul.mubr.f32.gmra.mrb[0].mxu0 %v6946
        %v7095 = vpop.f32.mrb[0].mxu0
        %v7096 = vadd.f32 %v6902, %v7095
        %v7097 = vpop.f32.mrb[0].mxu0
        %v7098 = vadd.f32 %v6906, %v7097
        %7099 = vmatprep.mubr.f32.mxu0 0.0
        %7100 = vmatmul.mubr.f32.gmra.mrb[0].mxu0 %v6949
        %v7101 = vpop.f32.mrb[0].mxu0
        %v7102 = vadd.f32 %v6902, %v7101
        %v7103 = vpop.f32.mrb[0].mxu0
        %v7104 = vadd.f32 %v6906, %v7103
        %7105 = vmatprep.mubr.f32.mxu0 0.0
        %7106 = vmatmul.mubr.f32.gmra.mrb[0].mxu0 %v6952
        %v7107 = vpop.f32.mrb[0].mxu0
        %v7108 = vadd.f32 %v6902, %v7107
        %v7109 = vpop.f32.mrb[0].mxu0
        %v7110 = vadd.f32 %v6906, %v7109
        %7111 = vmatprep.mubr.f32.mxu0 0.0
        %7112 = vmatmul.mubr.f32.gmra.mrb[0].mxu0 %v6955
        %v7113 = vpop.f32.mrb[0].mxu0
        %v7114 = vadd.f32 %v6902, %v7113
        %v7115 = vpop.f32.mrb[0].mxu0
        %v7116 = vadd.f32 %v6906, %v7115
        %7117 = vdwg.mxu0
        %v7118 = vmul.f32 %v7026, 0.5
        %v7119 = vmul.f32 %v7032, 0.5
        %v7120 = vmul.f32 %v7038, 0.5
        %v7121 = vmul.f32 %v7044, 0.5
        %v7122 = vmul.f32 %v7050, 0.5
        %v7123 = vmul.f32 %v7056, 0.5
        %v7124 = vmul.f32 %v7062, 0.5
        %v7125 = vmul.f32 %v7068, 0.5
        %v7126 = vmul.f32 %v7074, 0.5
        %v7127 = vmul.f32 %v7080, 0.5
        %v7128 = vmul.f32 %v7086, 0.5
        %v7129 = vmul.f32 %v7092, 0.5
        %v7130 = vmul.f32 %v7098, 0.5
        %v7131 = vmul.f32 %v7104, 0.5
        %v7132 = vmul.f32 %v7110, 0.5
        %v7133 = vmul.f32 %v7116, 0.5
        %v7134 = vmul.f32 %v7026, 0.70710677
        %v7135 = vmul.f32 %v7032, 0.70710677
        %v7136 = vmul.f32 %v7038, 0.70710677
        %v7137 = vmul.f32 %v7044, 0.70710677
        %v7138 = vmul.f32 %v7050, 0.70710677
        %v7139 = vmul.f32 %v7056, 0.70710677
        %v7140 = vmul.f32 %v7062, 0.70710677
        %v7141 = vmul.f32 %v7068, 0.70710677
        %v7142 = vmul.f32 %v7074, 0.70710677
        %v7143 = vmul.f32 %v7080, 0.70710677
        %v7144 = vmul.f32 %v7086, 0.70710677
        %v7145 = vmul.f32 %v7092, 0.70710677
        %v7146 = vmul.f32 %v7098, 0.70710677
        %v7147 = vmul.f32 %v7104, 0.70710677
        %v7148 = vmul.f32 %v7110, 0.70710677
        %v7149 = vmul.f32 %v7116, 0.70710677
        %vm7150 = vcmp.ge.f32.partialorder %v7134, 0.0
        %vm7151 = vcmp.ge.f32.partialorder %v7135, 0.0
        %vm7152 = vcmp.ge.f32.partialorder %v7136, 0.0
        %vm7153 = vcmp.ge.f32.partialorder %v7137, 0.0
        %vm7154 = vcmp.ge.f32.partialorder %v7138, 0.0
        %vm7155 = vcmp.ge.f32.partialorder %v7139, 0.0
        %vm7156 = vcmp.ge.f32.partialorder %v7140, 0.0
        %vm7157 = vcmp.ge.f32.partialorder %v7141, 0.0
        %vm7158 = vcmp.ge.f32.partialorder %v7142, 0.0
        %vm7159 = vcmp.ge.f32.partialorder %v7143, 0.0
        %vm7160 = vcmp.ge.f32.partialorder %v7144, 0.0
        %vm7161 = vcmp.ge.f32.partialorder %v7145, 0.0
        %vm7162 = vcmp.ge.f32.partialorder %v7146, 0.0
        %vm7163 = vcmp.ge.f32.partialorder %v7147, 0.0
        %vm7164 = vcmp.ge.f32.partialorder %v7148, 0.0
        %vm7165 = vcmp.ge.f32.partialorder %v7149, 0.0
        %v7166 = vsel %vm7150, 1.0, -1.0
        %v7167 = vsel %vm7151, 1.0, -1.0
        %v7168 = vsel %vm7152, 1.0, -1.0
        %v7169 = vsel %vm7153, 1.0, -1.0
        %v7170 = vsel %vm7154, 1.0, -1.0
        %v7171 = vsel %vm7155, 1.0, -1.0
        %v7172 = vsel %vm7156, 1.0, -1.0
        %v7173 = vsel %vm7157, 1.0, -1.0
        %v7174 = vsel %vm7158, 1.0, -1.0
        %v7175 = vsel %vm7159, 1.0, -1.0
        %v7176 = vsel %vm7160, 1.0, -1.0
        %v7177 = vsel %vm7161, 1.0, -1.0
        %v7178 = vsel %vm7162, 1.0, -1.0
        %v7179 = vsel %vm7163, 1.0, -1.0
        %v7180 = vsel %vm7164, 1.0, -1.0
        %v7181 = vsel %vm7165, 1.0, -1.0
        %v7182 = vand.u32 2147483647, %v7134
        %v7183 = vand.u32 2147483647, %v7135
        %v7184 = vand.u32 2147483647, %v7136
        %v7185 = vand.u32 2147483647, %v7137
        %v7186 = vand.u32 2147483647, %v7138
        %v7187 = vand.u32 2147483647, %v7139
        %v7188 = vand.u32 2147483647, %v7140
        %v7189 = vand.u32 2147483647, %v7141
        %v7190 = vand.u32 2147483647, %v7142
        %v7191 = vand.u32 2147483647, %v7143
        %v7192 = vand.u32 2147483647, %v7144
        %v7193 = vand.u32 2147483647, %v7145
        %v7194 = vand.u32 2147483647, %v7146
        %v7195 = vand.u32 2147483647, %v7147
        %v7196 = vand.u32 2147483647, %v7148
        %v7197 = vand.u32 2147483647, %v7149
        %v7198 = vmul.f32 %v7182, 0.3275911
        %v7199 = vmul.f32 %v7183, 0.3275911
        %v7200 = vmul.f32 %v7184, 0.3275911
        %v7201 = vmul.f32 %v7185, 0.3275911
        %v7202 = vmul.f32 %v7186, 0.3275911
        %v7203 = vmul.f32 %v7187, 0.3275911
        %v7204 = vmul.f32 %v7188, 0.3275911
        %v7205 = vmul.f32 %v7189, 0.3275911
        %v7206 = vmul.f32 %v7190, 0.3275911
        %v7207 = vmul.f32 %v7191, 0.3275911
        %v7208 = vmul.f32 %v7192, 0.3275911
        %v7209 = vmul.f32 %v7193, 0.3275911
        %v7210 = vmul.f32 %v7194, 0.3275911
        %v7211 = vmul.f32 %v7195, 0.3275911
        %v7212 = vmul.f32 %v7196, 0.3275911
        %v7213 = vmul.f32 %v7197, 0.3275911
        %v7214 = vadd.f32 %v7198, 1.0
        %v7215 = vadd.f32 %v7199, 1.0
        %v7216 = vadd.f32 %v7200, 1.0
        %v7217 = vadd.f32 %v7201, 1.0
        %v7218 = vadd.f32 %v7202, 1.0
        %v7219 = vadd.f32 %v7203, 1.0
        %v7220 = vadd.f32 %v7204, 1.0
        %v7221 = vadd.f32 %v7205, 1.0
        %v7222 = vadd.f32 %v7206, 1.0
        %v7223 = vadd.f32 %v7207, 1.0
        %v7224 = vadd.f32 %v7208, 1.0
        %v7225 = vadd.f32 %v7209, 1.0
        %v7226 = vadd.f32 %v7210, 1.0
        %v7227 = vadd.f32 %v7211, 1.0
        %v7228 = vadd.f32 %v7212, 1.0
        %v7229 = vadd.f32 %v7213, 1.0
        %v7230 = vrcp.pop %v7214
        %v7231 = vmul.f32 1.0, %v7230
        %v7232 = vrcp.pop %v7215
        %v7233 = vmul.f32 1.0, %v7232
        %v7234 = vrcp.pop %v7216
        %v7235 = vmul.f32 1.0, %v7234
        %v7236 = vrcp.pop %v7217
        %v7237 = vmul.f32 1.0, %v7236
        %v7238 = vrcp.pop %v7218
        %v7239 = vmul.f32 1.0, %v7238
        %v7240 = vrcp.pop %v7219
        %v7241 = vmul.f32 1.0, %v7240
        %v7242 = vrcp.pop %v7220
        %v7243 = vmul.f32 1.0, %v7242
        %v7244 = vrcp.pop %v7221
        %v7245 = vmul.f32 1.0, %v7244
        %v7246 = vrcp.pop %v7222
        %v7247 = vmul.f32 1.0, %v7246
        %v7248 = vrcp.pop %v7223
        %v7249 = vmul.f32 1.0, %v7248
        %v7250 = vrcp.pop %v7224
        %v7251 = vmul.f32 1.0, %v7250
        %v7252 = vrcp.pop %v7225
        %v7253 = vmul.f32 1.0, %v7252
        %v7254 = vrcp.pop %v7226
        %v7255 = vmul.f32 1.0, %v7254
        %v7256 = vrcp.pop %v7227
        %v7257 = vmul.f32 1.0, %v7256
        %v7258 = vrcp.pop %v7228
        %v7259 = vmul.f32 1.0, %v7258
        %v7260 = vrcp.pop %v7229
        %v7261 = vmul.f32 1.0, %v7260
        %v7262 = vmul.f32 %v7231, 1.0614054
        %v7263 = vmul.f32 %v7233, 1.0614054
        %v7264 = vmul.f32 %v7235, 1.0614054
        %v7265 = vmul.f32 %v7237, 1.0614054
        %v7266 = vmul.f32 %v7239, 1.0614054
        %v7267 = vmul.f32 %v7241, 1.0614054
        %v7268 = vmul.f32 %v7243, 1.0614054
        %v7269 = vmul.f32 %v7245, 1.0614054
        %v7270 = vmul.f32 %v7247, 1.0614054
        %v7271 = vmul.f32 %v7249, 1.0614054
        %v7272 = vmul.f32 %v7251, 1.0614054
        %v7273 = vmul.f32 %v7253, 1.0614054
        %v7274 = vmul.f32 %v7255, 1.0614054
        %v7275 = vmul.f32 %v7257, 1.0614054
        %v7276 = vmul.f32 %v7259, 1.0614054
        %v7277 = vmul.f32 %v7261, 1.0614054
        %v7278 = vadd.f32 %v7262, -1.4531521
        %v7279 = vadd.f32 %v7263, -1.4531521
        %v7280 = vadd.f32 %v7264, -1.4531521
        %v7281 = vadd.f32 %v7265, -1.4531521
        %v7282 = vadd.f32 %v7266, -1.4531521
        %v7283 = vadd.f32 %v7267, -1.4531521
        %v7284 = vadd.f32 %v7268, -1.4531521
        %v7285 = vadd.f32 %v7269, -1.4531521
        %v7286 = vadd.f32 %v7270, -1.4531521
        %v7287 = vadd.f32 %v7271, -1.4531521
        %v7288 = vadd.f32 %v7272, -1.4531521
        %v7289 = vadd.f32 %v7273, -1.4531521
        %v7290 = vadd.f32 %v7274, -1.4531521
        %v7291 = vadd.f32 %v7275, -1.4531521
        %v7292 = vadd.f32 %v7276, -1.4531521
        %v7293 = vadd.f32 %v7277, -1.4531521
        %v7294 = vmul.f32 %v7278, %v7231
        %v7295 = vmul.f32 %v7279, %v7233
        %v7296 = vmul.f32 %v7280, %v7235
        %v7297 = vmul.f32 %v7281, %v7237
        %v7298 = vmul.f32 %v7282, %v7239
        %v7299 = vmul.f32 %v7283, %v7241
        %v7300 = vmul.f32 %v7284, %v7243
        %v7301 = vmul.f32 %v7285, %v7245
        %v7302 = vmul.f32 %v7286, %v7247
        %v7303 = vmul.f32 %v7287, %v7249
        %v7304 = vmul.f32 %v7288, %v7251
        %v7305 = vmul.f32 %v7289, %v7253
        %v7306 = vmul.f32 %v7290, %v7255
        %v7307 = vmul.f32 %v7291, %v7257
        %v7308 = vmul.f32 %v7292, %v7259
        %v7309 = vmul.f32 %v7293, %v7261
        %v7310 = vadd.f32 %v7294, 1.4214138
        %v7311 = vadd.f32 %v7295, 1.4214138
        %v7312 = vadd.f32 %v7296, 1.4214138
        %v7313 = vadd.f32 %v7297, 1.4214138
        %v7314 = vadd.f32 %v7298, 1.4214138
        %v7315 = vadd.f32 %v7299, 1.4214138
        %v7316 = vadd.f32 %v7300, 1.4214138
        %v7317 = vadd.f32 %v7301, 1.4214138
        %v7318 = vadd.f32 %v7302, 1.4214138
        %v7319 = vadd.f32 %v7303, 1.4214138
        %v7320 = vadd.f32 %v7304, 1.4214138
        %v7321 = vadd.f32 %v7305, 1.4214138
        %v7322 = vadd.f32 %v7306, 1.4214138
        %v7323 = vadd.f32 %v7307, 1.4214138
        %v7324 = vadd.f32 %v7308, 1.4214138
        %v7325 = vadd.f32 %v7309, 1.4214138
        %v7326 = vmul.f32 %v7310, %v7231
        %v7327 = vmul.f32 %v7311, %v7233
        %v7328 = vmul.f32 %v7312, %v7235
        %v7329 = vmul.f32 %v7313, %v7237
        %v7330 = vmul.f32 %v7314, %v7239
        %v7331 = vmul.f32 %v7315, %v7241
        %v7332 = vmul.f32 %v7316, %v7243
        %v7333 = vmul.f32 %v7317, %v7245
        %v7334 = vmul.f32 %v7318, %v7247
        %v7335 = vmul.f32 %v7319, %v7249
        %v7336 = vmul.f32 %v7320, %v7251
        %v7337 = vmul.f32 %v7321, %v7253
        %v7338 = vmul.f32 %v7322, %v7255
        %v7339 = vmul.f32 %v7323, %v7257
        %v7340 = vmul.f32 %v7324, %v7259
        %v7341 = vmul.f32 %v7325, %v7261
        %v7342 = vadd.f32 %v7326, -0.28449672
        %v7343 = vadd.f32 %v7327, -0.28449672
        %v7344 = vadd.f32 %v7328, -0.28449672
        %v7345 = vadd.f32 %v7329, -0.28449672
        %v7346 = vadd.f32 %v7330, -0.28449672
        %v7347 = vadd.f32 %v7331, -0.28449672
        %v7348 = vadd.f32 %v7332, -0.28449672
        %v7349 = vadd.f32 %v7333, -0.28449672
        %v7350 = vadd.f32 %v7334, -0.28449672
        %v7351 = vadd.f32 %v7335, -0.28449672
        %v7352 = vadd.f32 %v7336, -0.28449672
        %v7353 = vadd.f32 %v7337, -0.28449672
        %v7354 = vadd.f32 %v7338, -0.28449672
        %v7355 = vadd.f32 %v7339, -0.28449672
        %v7356 = vadd.f32 %v7340, -0.28449672
        %v7357 = vadd.f32 %v7341, -0.28449672
        %v7358 = vmul.f32 %v7342, %v7231
        %v7359 = vmul.f32 %v7343, %v7233
        %v7360 = vmul.f32 %v7344, %v7235
        %v7361 = vmul.f32 %v7345, %v7237
        %v7362 = vmul.f32 %v7346, %v7239
        %v7363 = vmul.f32 %v7347, %v7241
        %v7364 = vmul.f32 %v7348, %v7243
        %v7365 = vmul.f32 %v7349, %v7245
        %v7366 = vmul.f32 %v7350, %v7247
        %v7367 = vmul.f32 %v7351, %v7249
        %v7368 = vmul.f32 %v7352, %v7251
        %v7369 = vmul.f32 %v7353, %v7253
        %v7370 = vmul.f32 %v7354, %v7255
        %v7371 = vmul.f32 %v7355, %v7257
        %v7372 = vmul.f32 %v7356, %v7259
        %v7373 = vmul.f32 %v7357, %v7261
        %v7374 = vadd.f32 %v7358, 0.2548296
        %v7375 = vadd.f32 %v7359, 0.2548296
        %v7376 = vadd.f32 %v7360, 0.2548296
        %v7377 = vadd.f32 %v7361, 0.2548296
        %v7378 = vadd.f32 %v7362, 0.2548296
        %v7379 = vadd.f32 %v7363, 0.2548296
        %v7380 = vadd.f32 %v7364, 0.2548296
        %v7381 = vadd.f32 %v7365, 0.2548296
        %v7382 = vadd.f32 %v7366, 0.2548296
        %v7383 = vadd.f32 %v7367, 0.2548296
        %v7384 = vadd.f32 %v7368, 0.2548296
        %v7385 = vadd.f32 %v7369, 0.2548296
        %v7386 = vadd.f32 %v7370, 0.2548296
        %v7387 = vadd.f32 %v7371, 0.2548296
        %v7388 = vadd.f32 %v7372, 0.2548296
        %v7389 = vadd.f32 %v7373, 0.2548296
        %v7390 = vmul.f32 %v7374, %v7231
        %v7391 = vmul.f32 %v7375, %v7233
        %v7392 = vmul.f32 %v7376, %v7235
        %v7393 = vmul.f32 %v7377, %v7237
        %v7394 = vmul.f32 %v7378, %v7239
        %v7395 = vmul.f32 %v7379, %v7241
        %v7396 = vmul.f32 %v7380, %v7243
        %v7397 = vmul.f32 %v7381, %v7245
        %v7398 = vmul.f32 %v7382, %v7247
        %v7399 = vmul.f32 %v7383, %v7249
        %v7400 = vmul.f32 %v7384, %v7251
        %v7401 = vmul.f32 %v7385, %v7253
        %v7402 = vmul.f32 %v7386, %v7255
        %v7403 = vmul.f32 %v7387, %v7257
        %v7404 = vmul.f32 %v7388, %v7259
        %v7405 = vmul.f32 %v7389, %v7261
        %v7406 = vsub.f32 0.0, %v7182
        %v7407 = vsub.f32 0.0, %v7183
        %v7408 = vsub.f32 0.0, %v7184
        %v7409 = vsub.f32 0.0, %v7185
        %v7410 = vsub.f32 0.0, %v7186
        %v7411 = vsub.f32 0.0, %v7187
        %v7412 = vsub.f32 0.0, %v7188
        %v7413 = vsub.f32 0.0, %v7189
        %v7414 = vsub.f32 0.0, %v7190
        %v7415 = vsub.f32 0.0, %v7191
        %v7416 = vsub.f32 0.0, %v7192
        %v7417 = vsub.f32 0.0, %v7193
        %v7418 = vsub.f32 0.0, %v7194
        %v7419 = vsub.f32 0.0, %v7195
        %v7420 = vsub.f32 0.0, %v7196
        %v7421 = vsub.f32 0.0, %v7197
        %v7422 = vmul.f32 %v7406, %v7182
        %v7423 = vmul.f32 %v7407, %v7183
        %v7424 = vmul.f32 %v7408, %v7184
        %v7425 = vmul.f32 %v7409, %v7185
        %v7426 = vmul.f32 %v7410, %v7186
        %v7427 = vmul.f32 %v7411, %v7187
        %v7428 = vmul.f32 %v7412, %v7188
        %v7429 = vmul.f32 %v7413, %v7189
        %v7430 = vmul.f32 %v7414, %v7190
        %v7431 = vmul.f32 %v7415, %v7191
        %v7432 = vmul.f32 %v7416, %v7192
        %v7433 = vmul.f32 %v7417, %v7193
        %v7434 = vmul.f32 %v7418, %v7194
        %v7435 = vmul.f32 %v7419, %v7195
        %v7436 = vmul.f32 %v7420, %v7196
        %v7437 = vmul.f32 %v7421, %v7197
        %v7438 = vmul.f32 %v7422, 1.442695
        %v7439 = vpow.pop %v7438
        %v7440 = vmul.f32 %v7423, 1.442695
        %v7441 = vpow.pop %v7440
        %v7442 = vmul.f32 %v7424, 1.442695
        %v7443 = vpow.pop %v7442
        %v7444 = vmul.f32 %v7425, 1.442695
        %v7445 = vpow.pop %v7444
        %v7446 = vmul.f32 %v7426, 1.442695
        %v7447 = vpow.pop %v7446
        %v7448 = vmul.f32 %v7427, 1.442695
        %v7449 = vpow.pop %v7448
        %v7450 = vmul.f32 %v7428, 1.442695
        %v7451 = vpow.pop %v7450
        %v7452 = vmul.f32 %v7429, 1.442695
        %v7453 = vpow.pop %v7452
        %v7454 = vmul.f32 %v7430, 1.442695
        %v7455 = vpow.pop %v7454
        %v7456 = vmul.f32 %v7431, 1.442695
        %v7457 = vpow.pop %v7456
        %v7458 = vmul.f32 %v7432, 1.442695
        %v7459 = vpow.pop %v7458
        %v7460 = vmul.f32 %v7433, 1.442695
        %v7461 = vpow.pop %v7460
        %v7462 = vmul.f32 %v7434, 1.442695
        %v7463 = vpow.pop %v7462
        %v7464 = vmul.f32 %v7435, 1.442695
        %v7465 = vpow.pop %v7464
        %v7466 = vmul.f32 %v7436, 1.442695
        %v7467 = vpow.pop %v7466
        %v7468 = vmul.f32 %v7437, 1.442695
        %v7469 = vpow.pop %v7468
        %v7470 = vmul.f32 %v7390, %v7439
        %v7471 = vmul.f32 %v7391, %v7441
        %v7472 = vmul.f32 %v7392, %v7443
        %v7473 = vmul.f32 %v7393, %v7445
        %v7474 = vmul.f32 %v7394, %v7447
        %v7475 = vmul.f32 %v7395, %v7449
        %v7476 = vmul.f32 %v7396, %v7451
        %v7477 = vmul.f32 %v7397, %v7453
        %v7478 = vmul.f32 %v7398, %v7455
        %v7479 = vmul.f32 %v7399, %v7457
        %v7480 = vmul.f32 %v7400, %v7459
        %v7481 = vmul.f32 %v7401, %v7461
        %v7482 = vmul.f32 %v7402, %v7463
        %v7483 = vmul.f32 %v7403, %v7465
        %v7484 = vmul.f32 %v7404, %v7467
        %v7485 = vmul.f32 %v7405, %v7469
        %v7486 = vsub.f32 1.0, %v7470
        %v7487 = vsub.f32 1.0, %v7471
        %v7488 = vsub.f32 1.0, %v7472
        %v7489 = vsub.f32 1.0, %v7473
        %v7490 = vsub.f32 1.0, %v7474
        %v7491 = vsub.f32 1.0, %v7475
        %v7492 = vsub.f32 1.0, %v7476
        %v7493 = vsub.f32 1.0, %v7477
        %v7494 = vsub.f32 1.0, %v7478
        %v7495 = vsub.f32 1.0, %v7479
        %v7496 = vsub.f32 1.0, %v7480
        %v7497 = vsub.f32 1.0, %v7481
        %v7498 = vsub.f32 1.0, %v7482
        %v7499 = vsub.f32 1.0, %v7483
        %v7500 = vsub.f32 1.0, %v7484
        %v7501 = vsub.f32 1.0, %v7485
        %v7502 = vmul.f32 %v7166, %v7486
        %v7503 = vmul.f32 %v7167, %v7487
        %v7504 = vmul.f32 %v7168, %v7488
        %v7505 = vmul.f32 %v7169, %v7489
        %v7506 = vmul.f32 %v7170, %v7490
        %v7507 = vmul.f32 %v7171, %v7491
        %v7508 = vmul.f32 %v7172, %v7492
        %v7509 = vmul.f32 %v7173, %v7493
        %v7510 = vmul.f32 %v7174, %v7494
        %v7511 = vmul.f32 %v7175, %v7495
        %v7512 = vmul.f32 %v7176, %v7496
        %v7513 = vmul.f32 %v7177, %v7497
        %v7514 = vmul.f32 %v7178, %v7498
        %v7515 = vmul.f32 %v7179, %v7499
        %v7516 = vmul.f32 %v7180, %v7500
        %v7517 = vmul.f32 %v7181, %v7501
        %v7518 = vadd.f32 %v7502, 1.0
        %v7519 = vadd.f32 %v7503, 1.0
        %v7520 = vadd.f32 %v7504, 1.0
        %v7521 = vadd.f32 %v7505, 1.0
        %v7522 = vadd.f32 %v7506, 1.0
        %v7523 = vadd.f32 %v7507, 1.0
        %v7524 = vadd.f32 %v7508, 1.0
        %v7525 = vadd.f32 %v7509, 1.0
        %v7526 = vadd.f32 %v7510, 1.0
        %v7527 = vadd.f32 %v7511, 1.0
        %v7528 = vadd.f32 %v7512, 1.0
        %v7529 = vadd.f32 %v7513, 1.0
        %v7530 = vadd.f32 %v7514, 1.0
        %v7531 = vadd.f32 %v7515, 1.0
        %v7532 = vadd.f32 %v7516, 1.0
        %v7533 = vadd.f32 %v7517, 1.0
        %v7534 = vmul.f32 %v7118, %v7518
        %v7535 = vmul.f32 %v7119, %v7519
        %v7536 = vmul.f32 %v7120, %v7520
        %v7537 = vmul.f32 %v7121, %v7521
        %v7538 = vmul.f32 %v7122, %v7522
        %v7539 = vmul.f32 %v7123, %v7523
        %v7540 = vmul.f32 %v7124, %v7524
        %v7541 = vmul.f32 %v7125, %v7525
        %v7542 = vmul.f32 %v7126, %v7526
        %v7543 = vmul.f32 %v7127, %v7527
        %v7544 = vmul.f32 %v7128, %v7528
        %v7545 = vmul.f32 %v7129, %v7529
        %v7546 = vmul.f32 %v7130, %v7530
        %v7547 = vmul.f32 %v7131, %v7531
        %v7548 = vmul.f32 %v7132, %v7532
        %v7549 = vmul.f32 %v7133, %v7533
        %v7550 = vmul.f32 %v7024, %v7534
        %v7551 = vmul.f32 %v7030, %v7535
        %v7552 = vmul.f32 %v7036, %v7536
        %v7553 = vmul.f32 %v7042, %v7537
        %v7554 = vmul.f32 %v7048, %v7538
        %v7555 = vmul.f32 %v7054, %v7539
        %v7556 = vmul.f32 %v7060, %v7540
        %v7557 = vmul.f32 %v7066, %v7541
        %v7558 = vmul.f32 %v7072, %v7542
        %v7559 = vmul.f32 %v7078, %v7543
        %v7560 = vmul.f32 %v7084, %v7544
        %v7561 = vmul.f32 %v7090, %v7545
        %v7562 = vmul.f32 %v7096, %v7546
        %v7563 = vmul.f32 %v7102, %v7547
        %v7564 = vmul.f32 %v7108, %v7548
        %v7565 = vmul.f32 %v7114, %v7549
        %v7566 = vld [vmem:[%s20] sm:$0xff]
        %v7567 = vld [vmem:[%s20 + $0x8] sm:$0xff]
        %v7568 = vld [vmem:[%s20 + $0x10] sm:$0xff]
        %v7569 = vld [vmem:[%s20 + $0x18] sm:$0xff]
        %v7570 = vld [vmem:[%s20 + $0x20] sm:$0xff]
        %v7571 = vld [vmem:[%s20 + $0x28] sm:$0xff]
        %v7572 = vld [vmem:[%s20 + $0x30] sm:$0xff]
        %v7573 = vld [vmem:[%s20 + $0x38] sm:$0xff]
        %v7574 = vld [vmem:[%s20 + $0x40] sm:$0xff]
        %v7575 = vld [vmem:[%s20 + $0x48] sm:$0xff]
        %v7576 = vld [vmem:[%s20 + $0x50] sm:$0xff]
        %v7577 = vld [vmem:[%s20 + $0x58] sm:$0xff]
        %v7578 = vld [vmem:[%s20 + $0x60] sm:$0xff]
        %v7579 = vld [vmem:[%s20 + $0x68] sm:$0xff]
        %v7580 = vld [vmem:[%s20 + $0x70] sm:$0xff]
        %v7581 = vld [vmem:[%s20 + $0x78] sm:$0xff]
        %v7582 = vld [vmem:[#allocation23] sm:$0x1]
        %v7584 = vlaneseq
        %v7585 = vshrl.u32 %v7584, 7
        %v7586 = vsub.s32 0, %v7585
        %v7587 = vrot.slane %v7582, %v7586
        %7589 = vmatprep.subr.mxu0 0.0
        %7590 = vmatpush1.msra.mxu0 %v7566
        %7591 = vmatprep.subr.mxu0 0.0
        %7592 = vmatpush1.msra.mxu0 %v7567
        %7593 = vmatprep.subr.mxu0 0.0
        %7594 = vmatpush1.msra.mxu0 %v7568
        %7595 = vmatprep.subr.mxu0 0.0
        %7596 = vmatpush1.msra.mxu0 %v7569
        %7597 = vmatprep.subr.mxu0 0.0
        %7598 = vmatpush1.msra.mxu0 %v7570
        %7599 = vmatprep.subr.mxu0 0.0
        %7600 = vmatpush1.msra.mxu0 %v7571
        %7601 = vmatprep.subr.mxu0 0.0
        %7602 = vmatpush1.msra.mxu0 %v7572
        %7603 = vmatprep.subr.mxu0 0.0
        %7604 = vmatpush1.msra.mxu0 %v7573
        %7605 = vmatprep.subr.mxu0 0.0
        %7606 = vmatpush1.msra.mxu0 %v7574
        %7607 = vmatprep.subr.mxu0 0.0
        %7608 = vmatpush1.msra.mxu0 %v7575
        %7609 = vmatprep.subr.mxu0 0.0
        %7610 = vmatpush1.msra.mxu0 %v7576
        %7611 = vmatprep.subr.mxu0 0.0
        %7612 = vmatpush1.msra.mxu0 %v7577
        %7613 = vmatprep.subr.mxu0 0.0
        %7614 = vmatpush1.msra.mxu0 %v7578
        %7615 = vmatprep.subr.mxu0 0.0
        %7616 = vmatpush1.msra.mxu0 %v7579
        %7617 = vmatprep.subr.mxu0 0.0
        %7618 = vmatpush1.msra.mxu0 %v7580
        %7619 = vmatprep.subr.mxu0 0.0
        %7620 = vmatpush1.msra.mxu0 %v7581
        %7621 = vmatprep.subr.mxu0 0.0
        %7622 = vmatpush1.msra.mxu0 0.0
        %7623 = vmatprep.subr.mxu0 0.0
        %7624 = vmatpush1.msra.mxu0 0.0
        %7625 = vmatprep.subr.mxu0 0.0
        %7626 = vmatpush1.msra.mxu0 0.0
        %7627 = vmatprep.subr.mxu0 0.0
        %7628 = vmatpush1.msra.mxu0 0.0
        %7629 = vmatprep.subr.mxu0 0.0
        %7630 = vmatpush1.msra.mxu0 0.0
        %7631 = vmatprep.subr.mxu0 0.0
        %7632 = vmatpush1.msra.mxu0 0.0
        %7633 = vmatprep.subr.mxu0 0.0
        %7634 = vmatpush1.msra.mxu0 0.0
        %7635 = vmatprep.subr.mxu0 0.0
        %7636 = vmatpush1.msra.mxu0 0.0
        %7637 = vmatprep.subr.mxu0 0.0
        %7638 = vmatpush1.msra.mxu0 0.0
        %7639 = vmatprep.subr.mxu0 0.0
        %7640 = vmatpush1.msra.mxu0 0.0
        %7641 = vmatprep.subr.mxu0 0.0
        %7642 = vmatpush1.msra.mxu0 0.0
        %7643 = vmatprep.subr.mxu0 0.0
        %7644 = vmatpush1.msra.mxu0 0.0
        %7645 = vmatprep.subr.mxu0 0.0
        %7646 = vmatpush1.msra.mxu0 0.0
        %7647 = vmatprep.subr.mxu0 0.0
        %7648 = vmatpush1.msra.mxu0 0.0
        %7649 = vmatprep.subr.mxu0 0.0
        %7650 = vmatpush1.msra.mxu0 0.0
        %7651 = vmatprep.subr.mxu0 0.0
        %7652 = vmatpush1.msra.mxu0 0.0
        %7653 = vmatprep.mubr.f32.mxu0 0.0
        %7654 = vmatmul.mubr.f32.gmra.mrb[0].mxu0 %v7550
        %v7655 = vpop.f32.mrb[0].mxu0
        %v7656 = vadd.f32 %v7587, %v7655
        %v7657 = vpop.f32.mrb[0].mxu0
        %7658 = vmatprep.mubr.f32.mxu0 0.0
        %7659 = vmatmul.mubr.f32.gmra.mrb[0].mxu0 %v7551
        %v7660 = vpop.f32.mrb[0].mxu0
        %v7661 = vadd.f32 %v7587, %v7660
        %v7662 = vpop.f32.mrb[0].mxu0
        %7663 = vmatprep.mubr.f32.mxu0 0.0
        %7664 = vmatmul.mubr.f32.gmra.mrb[0].mxu0 %v7552
        %v7665 = vpop.f32.mrb[0].mxu0
        %v7666 = vadd.f32 %v7587, %v7665
        %v7667 = vpop.f32.mrb[0].mxu0
        %7668 = vmatprep.mubr.f32.mxu0 0.0
        %7669 = vmatmul.mubr.f32.gmra.mrb[0].mxu0 %v7553
        %v7670 = vpop.f32.mrb[0].mxu0
        %v7671 = vadd.f32 %v7587, %v7670
        %v7672 = vpop.f32.mrb[0].mxu0
        %7673 = vmatprep.mubr.f32.mxu0 0.0
        %7674 = vmatmul.mubr.f32.gmra.mrb[0].mxu0 %v7554
        %v7675 = vpop.f32.mrb[0].mxu0
        %v7676 = vadd.f32 %v7587, %v7675
        %v7677 = vpop.f32.mrb[0].mxu0
        %7678 = vmatprep.mubr.f32.mxu0 0.0
        %7679 = vmatmul.mubr.f32.gmra.mrb[0].mxu0 %v7555
        %v7680 = vpop.f32.mrb[0].mxu0
        %v7681 = vadd.f32 %v7587, %v7680
        %v7682 = vpop.f32.mrb[0].mxu0
        %7683 = vmatprep.mubr.f32.mxu0 0.0
        %7684 = vmatmul.mubr.f32.gmra.mrb[0].mxu0 %v7556
        %v7685 = vpop.f32.mrb[0].mxu0
        %v7686 = vadd.f32 %v7587, %v7685
        %v7687 = vpop.f32.mrb[0].mxu0
        %7688 = vmatprep.mubr.f32.mxu0 0.0
        %7689 = vmatmul.mubr.f32.gmra.mrb[0].mxu0 %v7557
        %v7690 = vpop.f32.mrb[0].mxu0
        %v7691 = vadd.f32 %v7587, %v7690
        %v7692 = vpop.f32.mrb[0].mxu0
        %7693 = vmatprep.mubr.f32.mxu0 0.0
        %7694 = vmatmul.mubr.f32.gmra.mrb[0].mxu0 %v7558
        %v7695 = vpop.f32.mrb[0].mxu0
        %v7696 = vadd.f32 %v7587, %v7695
        %v7697 = vpop.f32.mrb[0].mxu0
        %7698 = vmatprep.mubr.f32.mxu0 0.0
        %7699 = vmatmul.mubr.f32.gmra.mrb[0].mxu0 %v7559
        %v7700 = vpop.f32.mrb[0].mxu0
        %v7701 = vadd.f32 %v7587, %v7700
        %v7702 = vpop.f32.mrb[0].mxu0
        %7703 = vmatprep.mubr.f32.mxu0 0.0
        %7704 = vmatmul.mubr.f32.gmra.mrb[0].mxu0 %v7560
        %v7705 = vpop.f32.mrb[0].mxu0
        %v7706 = vadd.f32 %v7587, %v7705
        %v7707 = vpop.f32.mrb[0].mxu0
        %7708 = vmatprep.mubr.f32.mxu0 0.0
        %7709 = vmatmul.mubr.f32.gmra.mrb[0].mxu0 %v7561
        %v7710 = vpop.f32.mrb[0].mxu0
        %v7711 = vadd.f32 %v7587, %v7710
        %v7712 = vpop.f32.mrb[0].mxu0
        %7713 = vmatprep.mubr.f32.mxu0 0.0
        %7714 = vmatmul.mubr.f32.gmra.mrb[0].mxu0 %v7562
        %v7715 = vpop.f32.mrb[0].mxu0
        %v7716 = vadd.f32 %v7587, %v7715
        %v7717 = vpop.f32.mrb[0].mxu0
        %7718 = vmatprep.mubr.f32.mxu0 0.0
        %7719 = vmatmul.mubr.f32.gmra.mrb[0].mxu0 %v7563
        %v7720 = vpop.f32.mrb[0].mxu0
        %v7721 = vadd.f32 %v7587, %v7720
        %v7722 = vpop.f32.mrb[0].mxu0
        %7723 = vmatprep.mubr.f32.mxu0 0.0
        %7724 = vmatmul.mubr.f32.gmra.mrb[0].mxu0 %v7564
        %v7725 = vpop.f32.mrb[0].mxu0
        %v7726 = vadd.f32 %v7587, %v7725
        %v7727 = vpop.f32.mrb[0].mxu0
        %7728 = vmatprep.mubr.f32.mxu0 0.0
        %7729 = vmatmul.mubr.f32.gmra.mrb[0].mxu0 %v7565
        %v7730 = vpop.f32.mrb[0].mxu0
        %v7731 = vadd.f32 %v7587, %v7730
        %v7732 = vpop.f32.mrb[0].mxu0
        %7733 = vdwg.mxu0
        %v7734 = vadd.f32 %v7656, %v6619
        %v7735 = vadd.f32 %v7661, %v6620
        %v7736 = vadd.f32 %v7666, %v6621
        %v7737 = vadd.f32 %v7671, %v6622
        %v7738 = vadd.f32 %v7676, %v6623
        %v7739 = vadd.f32 %v7681, %v6624
        %v7740 = vadd.f32 %v7686, %v6625
        %v7741 = vadd.f32 %v7691, %v6626
        %v7742 = vadd.f32 %v7696, %v6627
        %v7743 = vadd.f32 %v7701, %v6628
        %v7744 = vadd.f32 %v7706, %v6629
        %v7745 = vadd.f32 %v7711, %v6630
        %v7746 = vadd.f32 %v7716, %v6631
        %v7747 = vadd.f32 %v7721, %v6632
        %v7748 = vadd.f32 %v7726, %v6633
        %v7749 = vadd.f32 %v7731, %v6634
        %v7750 = vld [vmem:[%s22] sm:$0xff]
        %v7751 = vld [vmem:[%s22 + $0x8] sm:$0xff]
        %v7752 = vld [vmem:[%s22 + $0x10] sm:$0xff]
        %v7753 = vld [vmem:[%s22 + $0x18] sm:$0xff]
        %v7754 = vld [vmem:[%s23] sm:$0x1]
        %v7756 = vlaneseq
        %v7757 = vshrl.u32 %v7756, 7
        %v7758 = vsub.s32 0, %v7757
        %v7759 = vrot.slane %v7754, %v7758
        %v7762 = vsel %vm947, %v7734, 0
        %v7765 = vsel %vm947, %v7735, 0
        %v7768 = vsel %vm947, %v7736, 0
        %v7771 = vsel %vm947, %v7737, 0
        %v7774 = vsel %vm947, %v7738, 0
        %v7777 = vsel %vm947, %v7739, 0
        %v7780 = vsel %vm947, %v7740, 0
        %v7783 = vsel %vm947, %v7741, 0
        %v7786 = vsel %vm947, %v7742, 0
        %v7789 = vsel %vm947, %v7743, 0
        %v7792 = vsel %vm947, %v7744, 0
        %v7795 = vsel %vm947, %v7745, 0
        %v7798 = vsel %vm947, %v7746, 0
        %v7801 = vsel %vm947, %v7747, 0
        %v7804 = vsel %vm947, %v7748, 0
        %v7807 = vsel %vm947, %v7749, 0
        %7809 = vmatprep.subr.mxu0 0.0
        %7810 = vmatpush1.msra.mxu0 %v7750
        %7811 = vmatprep.subr.mxu0 0.0
        %7812 = vmatpush1.msra.mxu0 %v7751
        %7813 = vmatprep.subr.mxu0 0.0
        %7814 = vmatpush1.msra.mxu0 %v7752
        %7815 = vmatprep.subr.mxu0 0.0
        %7816 = vmatpush1.msra.mxu0 %v7753
        %7817 = vmatprep.subr.mxu0 0.0
        %7818 = vmatpush1.msra.mxu0 0.0
        %7819 = vmatprep.subr.mxu0 0.0
        %7820 = vmatpush1.msra.mxu0 0.0
        %7821 = vmatprep.subr.mxu0 0.0
        %7822 = vmatpush1.msra.mxu0 0.0
        %7823 = vmatprep.subr.mxu0 0.0
        %7824 = vmatpush1.msra.mxu0 0.0
        %7825 = vmatprep.subr.mxu0 0.0
        %7826 = vmatpush1.msra.mxu0 0.0
        %7827 = vmatprep.subr.mxu0 0.0
        %7828 = vmatpush1.msra.mxu0 0.0
        %7829 = vmatprep.subr.mxu0 0.0
        %7830 = vmatpush1.msra.mxu0 0.0
        %7831 = vmatprep.subr.mxu0 0.0
        %7832 = vmatpush1.msra.mxu0 0.0
        %7833 = vmatprep.subr.mxu0 0.0
        %7834 = vmatpush1.msra.mxu0 0.0
        %7835 = vmatprep.subr.mxu0 0.0
        %7836 = vmatpush1.msra.mxu0 0.0
        %7837 = vmatprep.subr.mxu0 0.0
        %7838 = vmatpush1.msra.mxu0 0.0
        %7839 = vmatprep.subr.mxu0 0.0
        %7840 = vmatpush1.msra.mxu0 0.0
        %7841 = vmatprep.subr.mxu0 0.0
        %7842 = vmatpush1.msra.mxu0 0.0
        %7843 = vmatprep.subr.mxu0 0.0
        %7844 = vmatpush1.msra.mxu0 0.0
        %7845 = vmatprep.subr.mxu0 0.0
        %7846 = vmatpush1.msra.mxu0 0.0
        %7847 = vmatprep.subr.mxu0 0.0
        %7848 = vmatpush1.msra.mxu0 0.0
        %7849 = vmatprep.subr.mxu0 0.0
        %7850 = vmatpush1.msra.mxu0 0.0
        %7851 = vmatprep.subr.mxu0 0.0
        %7852 = vmatpush1.msra.mxu0 0.0
        %7853 = vmatprep.subr.mxu0 0.0
        %7854 = vmatpush1.msra.mxu0 0.0
        %7855 = vmatprep.subr.mxu0 0.0
        %7856 = vmatpush1.msra.mxu0 0.0
        %7857 = vmatprep.subr.mxu0 0.0
        %7858 = vmatpush1.msra.mxu0 0.0
        %7859 = vmatprep.subr.mxu0 0.0
        %7860 = vmatpush1.msra.mxu0 0.0
        %7861 = vmatprep.subr.mxu0 0.0
        %7862 = vmatpush1.msra.mxu0 0.0
        %7863 = vmatprep.subr.mxu0 0.0
        %7864 = vmatpush1.msra.mxu0 0.0
        %7865 = vmatprep.subr.mxu0 0.0
        %7866 = vmatpush1.msra.mxu0 0.0
        %7867 = vmatprep.subr.mxu0 0.0
        %7868 = vmatpush1.msra.mxu0 0.0
        %7869 = vmatprep.subr.mxu0 0.0
        %7870 = vmatpush1.msra.mxu0 0.0
        %7871 = vmatprep.subr.mxu0 0.0
        %7872 = vmatpush1.msra.mxu0 0.0
        %7873 = vmatprep.mubr.f32.mxu0 0.0
        %7874 = vmatmul.mubr.f32.gmra.mrb[0].mxu0 %v7762
        %v7875 = vpop.f32.mrb[0].mxu0
        %v7876 = vadd.f32 %v7759, %v7875
        %v7877 = vpop.f32.mrb[0].mxu0
        %7878 = vmatprep.mubr.f32.mxu0 0.0
        %7879 = vmatmul.mubr.f32.gmra.mrb[0].mxu0 %v7765
        %v7880 = vpop.f32.mrb[0].mxu0
        %v7881 = vadd.f32 %v7759, %v7880
        %v7882 = vpop.f32.mrb[0].mxu0
        %7883 = vmatprep.mubr.f32.mxu0 0.0
        %7884 = vmatmul.mubr.f32.gmra.mrb[0].mxu0 %v7768
        %v7885 = vpop.f32.mrb[0].mxu0
        %v7886 = vadd.f32 %v7759, %v7885
        %v7887 = vpop.f32.mrb[0].mxu0
        %7888 = vmatprep.mubr.f32.mxu0 0.0
        %7889 = vmatmul.mubr.f32.gmra.mrb[0].mxu0 %v7771
        %v7890 = vpop.f32.mrb[0].mxu0
        %v7891 = vadd.f32 %v7759, %v7890
        %v7892 = vpop.f32.mrb[0].mxu0
        %7893 = vmatprep.mubr.f32.mxu0 0.0
        %7894 = vmatmul.mubr.f32.gmra.mrb[0].mxu0 %v7774
        %v7895 = vpop.f32.mrb[0].mxu0
        %v7896 = vadd.f32 %v7759, %v7895
        %v7897 = vpop.f32.mrb[0].mxu0
        %7898 = vmatprep.mubr.f32.mxu0 0.0
        %7899 = vmatmul.mubr.f32.gmra.mrb[0].mxu0 %v7777
        %v7900 = vpop.f32.mrb[0].mxu0
        %v7901 = vadd.f32 %v7759, %v7900
        %v7902 = vpop.f32.mrb[0].mxu0
        %7903 = vmatprep.mubr.f32.mxu0 0.0
        %7904 = vmatmul.mubr.f32.gmra.mrb[0].mxu0 %v7780
        %v7905 = vpop.f32.mrb[0].mxu0
        %v7906 = vadd.f32 %v7759, %v7905
        %v7907 = vpop.f32.mrb[0].mxu0
        %7908 = vmatprep.mubr.f32.mxu0 0.0
        %7909 = vmatmul.mubr.f32.gmra.mrb[0].mxu0 %v7783
        %v7910 = vpop.f32.mrb[0].mxu0
        %v7911 = vadd.f32 %v7759, %v7910
        %v7912 = vpop.f32.mrb[0].mxu0
        %7913 = vmatprep.mubr.f32.mxu0 0.0
        %7914 = vmatmul.mubr.f32.gmra.mrb[0].mxu0 %v7786
        %v7915 = vpop.f32.mrb[0].mxu0
        %v7916 = vadd.f32 %v7759, %v7915
        %v7917 = vpop.f32.mrb[0].mxu0
        %7918 = vmatprep.mubr.f32.mxu0 0.0
        %7919 = vmatmul.mubr.f32.gmra.mrb[0].mxu0 %v7789
        %v7920 = vpop.f32.mrb[0].mxu0
        %v7921 = vadd.f32 %v7759, %v7920
        %v7922 = vpop.f32.mrb[0].mxu0
        %7923 = vmatprep.mubr.f32.mxu0 0.0
        %7924 = vmatmul.mubr.f32.gmra.mrb[0].mxu0 %v7792
        %v7925 = vpop.f32.mrb[0].mxu0
        %v7926 = vadd.f32 %v7759, %v7925
        %v7927 = vpop.f32.mrb[0].mxu0
        %7928 = vmatprep.mubr.f32.mxu0 0.0
        %7929 = vmatmul.mubr.f32.gmra.mrb[0].mxu0 %v7795
        %v7930 = vpop.f32.mrb[0].mxu0
        %v7931 = vadd.f32 %v7759, %v7930
        %v7932 = vpop.f32.mrb[0].mxu0
        %7933 = vmatprep.mubr.f32.mxu0 0.0
        %7934 = vmatmul.mubr.f32.gmra.mrb[0].mxu0 %v7798
        %v7935 = vpop.f32.mrb[0].mxu0
        %v7936 = vadd.f32 %v7759, %v7935
        %v7937 = vpop.f32.mrb[0].mxu0
        %7938 = vmatprep.mubr.f32.mxu0 0.0
        %7939 = vmatmul.mubr.f32.gmra.mrb[0].mxu0 %v7801
        %v7940 = vpop.f32.mrb[0].mxu0
        %v7941 = vadd.f32 %v7759, %v7940
        %v7942 = vpop.f32.mrb[0].mxu0
        %7943 = vmatprep.mubr.f32.mxu0 0.0
        %7944 = vmatmul.mubr.f32.gmra.mrb[0].mxu0 %v7804
        %v7945 = vpop.f32.mrb[0].mxu0
        %v7946 = vadd.f32 %v7759, %v7945
        %v7947 = vpop.f32.mrb[0].mxu0
        %7948 = vmatprep.mubr.f32.mxu0 0.0
        %7949 = vmatmul.mubr.f32.gmra.mrb[0].mxu0 %v7807
        %v7950 = vpop.f32.mrb[0].mxu0
        %v7951 = vadd.f32 %v7759, %v7950
        %v7952 = vpop.f32.mrb[0].mxu0
        %7953 = vdwg.mxu0
        %v7954 = vadd.f32 %v7876, %v927
        %v7955 = vadd.f32 %v7881, %v928
        %v7956 = vadd.f32 %v7886, %v929
        %v7957 = vadd.f32 %v7891, %v930
        %v7958 = vadd.f32 %v7896, %v931
        %v7959 = vadd.f32 %v7901, %v932
        %v7960 = vadd.f32 %v7906, %v933
        %v7961 = vadd.f32 %v7911, %v934
        %v7962 = vadd.f32 %v7916, %v935
        %v7963 = vadd.f32 %v7921, %v936
        %v7964 = vadd.f32 %v7926, %v937
        %v7965 = vadd.f32 %v7931, %v938
        %v7966 = vadd.f32 %v7936, %v939
        %v7967 = vadd.f32 %v7941, %v940
        %v7968 = vadd.f32 %v7946, %v941
        %v7969 = vadd.f32 %v7951, %v942
        %7970 = vst.msk [vmem:[%s924] sm:$0xff] %vm947, %v7954
        %7971 = vst.msk [vmem:[%s924 + $0x8] sm:$0xff] %vm947, %v7955
        %7972 = vst.msk [vmem:[%s924 + $0x10] sm:$0xff] %vm947, %v7956
        %7973 = vst.msk [vmem:[%s924 + $0x18] sm:$0xff] %vm947, %v7957
        %7974 = vst.msk [vmem:[%s924 + $0x20] sm:$0xff] %vm947, %v7958
        %7975 = vst.msk [vmem:[%s924 + $0x28] sm:$0xff] %vm947, %v7959
        %7976 = vst.msk [vmem:[%s924 + $0x30] sm:$0xff] %vm947, %v7960
        %7977 = vst.msk [vmem:[%s924 + $0x38] sm:$0xff] %vm947, %v7961
        %7978 = vst.msk [vmem:[%s924 + $0x40] sm:$0xff] %vm947, %v7962
        %7979 = vst.msk [vmem:[%s924 + $0x48] sm:$0xff] %vm947, %v7963
        %7980 = vst.msk [vmem:[%s924 + $0x50] sm:$0xff] %vm947, %v7964
        %7981 = vst.msk [vmem:[%s924 + $0x58] sm:$0xff] %vm947, %v7965
        %7982 = vst.msk [vmem:[%s924 + $0x60] sm:$0xff] %vm947, %v7966
        %7983 = vst.msk [vmem:[%s924 + $0x68] sm:$0xff] %vm947, %v7967
        %7984 = vst.msk [vmem:[%s924 + $0x70] sm:$0xff] %vm947, %v7968
        %7985 = vst.msk [vmem:[%s924 + $0x78] sm:$0xff] %vm947, %v7969
        %s7986 = sand.u32 %s565, 1
        %s7987 = scalar_lea.sflag [#allocation4], %s7986
        %s7988 = sand.u32 %s565, 1
        %s7989 = smul.addr %s7988, 128
        %s7990 = scalar_lea.vmem [#allocation25], %s7989
        // Predicated region
        $region173: #{spatial_transformer_3d.1} parent=115 // pred_check
          %p7991 = pneg %p575
        $region174: #{spatial_transformer_3d.1} parent=115 // pred_check_branch
          %7993 = sbr.rel (%p7991) target = $region176
        $region175: #{spatial_transformer_3d.1} parent=115 // pred_region
          %s7994 = smul.u32 16, %s48
          %s7996 = ssub.s32 2048, 2048
          %7997 = vsyncadd %s7987, %s7996
          %s7998 = smul.addr %s7994, 128
          %s7999 = scalar_lea.hbm %s24, %s7998
          %s8000 = sshll.u32 %s7990, 4
          %s8001 = int_to_ptr.vmem [resolvable:$true] %s8000
          %8006 = dma.vmem_to_hbm [thread:$0]  %s8001, 2048, %s7999, %s7987, 128, 128, 8
        $region176: #{spatial_transformer_3d.1} parent=115 // pred_fallthru
          _
      $region116: #{spatial_transformer_3d.1} parent=5 // pred_fallthru
        _
      %p8007 = scmp.le.s32.totalorder 2, %s43
      // Predicated region
      $region177: #{spatial_transformer_3d.1} parent=5 // pred_check
        %p8008 = pneg %p8007
      $region178: #{spatial_transformer_3d.1} parent=5 // pred_check_branch
        %8010 = sbr.rel (%p8008) target = $region180
      $region179: #{spatial_transformer_3d.1} parent=5 // pred_region
        %s8011 = ssub.s32 %s43, 2
        // Predicated region
        $region181: #{spatial_transformer_3d.1} parent=179 // pred_check
          %p8012 = pneg %p581
        $region182: #{spatial_transformer_3d.1} parent=179 // pred_check_branch
          %8014 = sbr.rel (%p8012) target = $region184
        $region183: #{spatial_transformer_3d.1} parent=179 // pred_region
          %s8015 = sand.u32 %s566, 1
          %s8016 = scalar_lea.sflag [#allocation4], %s8015
          %s8017 = sand.u32 %s566, 1
          %s8018 = smul.addr %s8017, 128
          %s8019 = scalar_lea.vmem [#allocation25], %s8018
          %8020 = dma.done %s8016, 2048
        $region184: #{spatial_transformer_3d.1} parent=179 // pred_fallthru
          _
      $region180: #{spatial_transformer_3d.1} parent=5 // pred_fallthru
        _
    $region6: #{spatial_transformer_3d.1} parent=1 // loop_footer
      %s47 = sadd.s32 1, %s43
    $region7: #{spatial_transformer_3d.1} parent=1 // loop_footer_branch
      %42 = sbr.rel target = $region3
    $region8: #{spatial_transformer_3d.1} parent=1 // loop_exit
      _
    %8021 = vsyncpa [#allocation3], 1
    %s8022 = scalar_lea.sflag [#allocation3], 1
    %8023 = vsyncpa %s8022, 1
    %8024 = vsyncpa [#allocation6], 1
    %8025 = vsyncpa [#allocation9], 1
    %8026 = vsyncpa [#allocation12], 1
    %8027 = vsyncpa [#allocation15], 1
    %8028 = vsyncpa [#allocation18], 1
    %8029 = vsyncpa [#allocation21], 1
    %8030 = vsyncpa [#allocation24], 1
    %8031 = vsyncpa [#allocation4], 1
    %s8032 = scalar_lea.sflag [#allocation4], 1
    %8033 = vsyncpa %s8032, 1

</llo_original>
